<compile_context>
chip_gen: v6e
topology: v6e:2x2x1
jax: 0.10.0
libtpu: 0.0.40
codegen_flags: <defaults>
</compile_context>

<pallas_src>
import functools

import jax
import jax.numpy as jnp
from jax.experimental import pallas as pl
from jax.experimental.pallas import tpu as pltpu

_LANE = 128


def _round_up(x, m):
    return (x + m - 1) // m * m


def _vmem_limit_bytes():
    # Per-generation scoped-VMEM budget with headroom (v7x: 64 MiB physical).
    try:
        cap = pltpu.get_tpu_info().vmem_capacity_bytes
    except Exception:
        cap = 64 * 1024 * 1024
    return int(min(96 * 1024 * 1024, max(32 * 1024 * 1024, 0.75 * cap)))


def _estimate_tile_vmem(th, W, cin_p, cmid_p, cout_p, esize):
    """Rough per-grid-step VMEM footprint for tile height `th`."""
    h1, w1c = th + 2, W + 2
    xin = (th + 4) * (W + 4) * cin_p * esize          # input slab (scratch)
    patch1 = h1 * w1c * 9 * cin_p * esize             # im2col slab, conv1
    acc1 = h1 * w1c * cmid_p * 4                      # f32 accumulator
    mid = h1 * w1c * cmid_p * esize                   # intermediate activation
    patch2 = th * W * 9 * cmid_p * esize              # im2col slab, conv2
    acc2 = th * W * cout_p * 4
    out = 2 * th * W * cout_p * 4                     # double-buffered output
    wts = 2 * 9 * (cin_p * cmid_p + cmid_p * cout_p) * esize
    return xin + patch1 + acc1 + mid + patch2 + acc2 + out + wts


def _pick_tile_h(H, W, cin_p, cmid_p, cout_p, esize, budget):
    """Largest divisor of H (<= 8 rows) whose working set fits the budget."""
    best = 1
    for th in range(1, min(H, 8) + 1):
        if H % th:
            continue
        if _estimate_tile_vmem(th, W, cin_p, cmid_p, cout_p, esize) <= budget:
            best = th
    return best


def _double_conv_kernel(x_hbm, w1_ref, s1_ref, b1_ref, w2_ref, s2_ref, b2_ref,
                        o_ref, xin_ref, dma_sem, *, tile_h, img_h):
    """One (batch, row-tile) step of the fused double conv.

    x_hbm:  (N, H+4, W+4, Cin_p)  full padded input, left in HBM (pl.ANY)
    w*_ref: (9*Cin_p, Cout_p)     im2col-flattened conv weights (VMEM)
    s*/b*:  (1, Cout_p)           folded BN scale / shift, f32
    o_ref:  (1, TILE_H, W, Cout_p)
    xin_ref:(1, TILE_H+4, W+4, Cin_p) VMEM scratch for the halo'd row tile
    """
    n = pl.program_id(0)
    t = pl.program_id(1)

    th = tile_h
    W = o_ref.shape[2]
    cin_p = xin_ref.shape[-1]
    cmid_p = w1_ref.shape[-1]
    cout_p = o_ref.shape[-1]
    h1, w1c = th + 2, W + 2          # conv1 grid: output rows + conv2 halo

    # ---- fetch this row tile (2-row halo each side) straight from HBM ----
    row0 = pl.multiple_of(t * th, th)
    cp = pltpu.make_async_copy(
        x_hbm.at[pl.ds(n, 1), pl.ds(row0, th + 4)], xin_ref, dma_sem.at[0])
    cp.start()
    cp.wait()
    # TODO(synk): double-buffer this input DMA across row tiles (needs a
    # sequential grid axis or an inner emit_pipeline) to hide its latency.

    def conv3x3(load_tap, rows, cols, cin, w_flat):
        # im2col: concatenate the 9 shifted taps along lanes -> one deep matmul.
        taps = [load_tap(dy, dx).reshape(rows * cols, cin)
                for dy in range(3) for dx in range(3)]
        patch = jnp.concatenate(taps, axis=-1)          # (rows*cols, 9*cin)
        return jnp.dot(patch, w_flat, preferred_element_type=jnp.float32)

    # ---- conv1 + BN1 + ReLU on the (th+2, W+2) halo grid ----
    acc1 = conv3x3(lambda dy, dx: xin_ref[0, dy:dy + h1, dx:dx + w1c, :],
                   h1, w1c, cin_p, w1_ref[...])
    y1 = jnp.maximum(acc1 * s1_ref[...] + b1_ref[...], 0.0)     # f32 epilogue
    y1 = y1.reshape(h1, w1c, cmid_p)

    # Halo positions that fall OUTSIDE the original image are conv2's zero
    # padding, not conv1's value there -> zero them.
    row_g = row0 - 1 + jax.lax.broadcasted_iota(jnp.int32, (h1, w1c, 1), 0)
    col_g = -1 + jax.lax.broadcasted_iota(jnp.int32, (h1, w1c, 1), 1)
    inside = (row_g >= 0) & (row_g < img_h) & (col_g >= 0) & (col_g < W)
    mid = jnp.where(inside, y1, 0.0).astype(xin_ref.dtype)      # compute dtype

    # ---- conv2 + BN2 + ReLU on the (th, W) output tile ----
    acc2 = conv3x3(lambda dy, dx: mid[dy:dy + th, dx:dx + W, :],
                   th, W, cmid_p, w2_ref[...])
    y2 = jnp.maximum(acc2 * s2_ref[...] + b2_ref[...], 0.0)
    o_ref[...] = y2.reshape(1, th, W, cout_p).astype(o_ref.dtype)


def _fold_bn(conv_bias, gamma, beta, running_mean, running_var, eps=1e-5):
    """Fold conv bias + inference-mode BatchNorm into (scale, shift)."""
    inv_std = 1.0 / jnp.sqrt(running_var + eps)
    scale = gamma * inv_std
    shift = (conv_bias - running_mean) * scale + beta
    return scale, shift


@functools.partial(jax.jit, static_argnames=("compute_dtype",))
def double_conv_forward(x_nchw, params, compute_dtype=jnp.bfloat16):
    """Forward pass. x_nchw: (N, Cin, H, W) like PyTorch; returns (N, Cout, H, W)."""
    N, cin, H, W = x_nchw.shape
    cout = params["w1"].shape[-1]
    out_dtype = x_nchw.dtype

    cin_p = _round_up(cin, _LANE)
    cmid_p = _round_up(cout, _LANE)
    cout_p = _round_up(cout, _LANE)
    esize = jnp.dtype(compute_dtype).itemsize

    # ---- host-side prep (one pass over the small input tensor) ----
    # NCHW -> NHWC, 2-pixel spatial halo (1 px per conv), channels padded to a
    # multiple of 128 so every in-kernel operand / store is lane-dense.
    # TODO(synk): in a full NHWC UNet these transposes/pads disappear.
    x = jnp.transpose(x_nchw, (0, 2, 3, 1)).astype(compute_dtype)
    x = jnp.pad(x, ((0, 0), (2, 2), (2, 2), (0, cin_p - cin)))

    def prep_w(w, ci, ci_p, co, co_p):
        w = jnp.pad(w, ((0, 0), (0, 0), (0, ci_p - ci), (0, co_p - co)))
        return w.reshape(9 * ci_p, co_p).astype(compute_dtype)   # im2col layout

    def prep_affine(scale, shift, co, co_p):
        scale = jnp.pad(scale.astype(jnp.float32), (0, co_p - co))
        shift = jnp.pad(shift.astype(jnp.float32), (0, co_p - co))
        return scale.reshape(1, co_p), shift.reshape(1, co_p)

    w1 = prep_w(params["w1"], cin, cin_p, cout, cmid_p)
    w2 = prep_w(params["w2"], cout, cmid_p, cout, cout_p)
    s1, t1 = _fold_bn(params["b1"], params["gamma1"], params["beta1"],
                      params["mean1"], params["var1"])
    s2, t2 = _fold_bn(params["b2"], params["gamma2"], params["beta2"],
                      params["mean2"], params["var2"])
    s1, t1 = prep_affine(s1, t1, cout, cmid_p)
    s2, t2 = prep_affine(s2, t2, cout, cout_p)

    vmem_limit = _vmem_limit_bytes()
    tile_h = _pick_tile_h(H, W, cin_p, cmid_p, cout_p, esize, vmem_limit // 3)
    grid = (N, H // tile_h)

    kernel = functools.partial(_double_conv_kernel, tile_h=tile_h, img_h=H)

    out = pl.pallas_call(
        kernel,
        out_shape=jax.ShapeDtypeStruct((N, H, W, cout_p), out_dtype),
        grid_spec=pltpu.PrefetchScalarGridSpec(
            num_scalar_prefetch=0,
            grid=grid,
            in_specs=[
                pl.BlockSpec(memory_space=pl.ANY),                    # x (HBM)
                pl.BlockSpec((9 * cin_p, cmid_p), lambda n, t: (0, 0)),
                pl.BlockSpec((1, cmid_p), lambda n, t: (0, 0)),
                pl.BlockSpec((1, cmid_p), lambda n, t: (0, 0)),
                pl.BlockSpec((9 * cmid_p, cout_p), lambda n, t: (0, 0)),
                pl.BlockSpec((1, cout_p), lambda n, t: (0, 0)),
                pl.BlockSpec((1, cout_p), lambda n, t: (0, 0)),
            ],
            out_specs=pl.BlockSpec((1, tile_h, W, cout_p),
                                   lambda n, t: (n, t, 0, 0)),
            scratch_shapes=[
                pltpu.VMEM((1, tile_h + 4, W + 4, cin_p), compute_dtype),
                pltpu.SemaphoreType.DMA((1,)),
            ]),
        compiler_params=pltpu.CompilerParams(
            dimension_semantics=("parallel", "parallel"),
            vmem_limit_bytes=vmem_limit),
    )(x, w1, s1, t1, w2, s2, t2)

    out = out[..., :cout]                       # drop channel padding
    return jnp.transpose(out, (0, 3, 1, 2))     # NHWC -> NCHW


def init_double_conv_params(key, in_ch, out_ch, dtype=jnp.float32):
    """Deterministic synthetic parameters (shapes match nn.Conv2d/BatchNorm2d)."""
    keys = jax.random.split(key, 12)

    def conv_w(k, cin, cout):
        # PyTorch layout (out, in, kh, kw) -> HWIO (kh, kw, in, out).
        w_oihw = jax.random.normal(k, (cout, cin, 3, 3), dtype) * 0.1
        return jnp.transpose(w_oihw, (2, 3, 1, 0))

    return {
        "w1": conv_w(keys[0], in_ch, out_ch),
        "b1": 0.1 * jax.random.normal(keys[1], (out_ch,), dtype),
        "gamma1": 1.0 + 0.1 * jax.random.normal(keys[2], (out_ch,), dtype),
        "beta1": 0.1 * jax.random.normal(keys[3], (out_ch,), dtype),
        "mean1": 0.05 * jax.random.normal(keys[4], (out_ch,), dtype),
        "var1": 1.0 + 0.1 * jnp.abs(jax.random.normal(keys[5], (out_ch,), dtype)),
        "w2": conv_w(keys[6], out_ch, out_ch),
        "b2": 0.1 * jax.random.normal(keys[7], (out_ch,), dtype),
        "gamma2": 1.0 + 0.1 * jax.random.normal(keys[8], (out_ch,), dtype),
        "beta2": 0.1 * jax.random.normal(keys[9], (out_ch,), dtype),
        "mean2": 0.05 * jax.random.normal(keys[10], (out_ch,), dtype),
        "var2": 1.0 + 0.1 * jnp.abs(jax.random.normal(keys[11], (out_ch,), dtype)),
    }


def _reference_forward(x_nchw, params):
    """Pure-JAX reference (lax.conv) for a sanity check."""
    def conv_bn_relu(x, w, scale, shift):
        y = jax.lax.conv_general_dilated(
            x, w, window_strides=(1, 1), padding="SAME",
            dimension_numbers=("NCHW", "HWIO", "NCHW"),
            precision=jax.lax.Precision.HIGHEST)
        y = y * scale[None, :, None, None] + shift[None, :, None, None]
        return jnp.maximum(y, 0.0)

    s1, t1 = _fold_bn(params["b1"], params["gamma1"], params["beta1"],
                      params["mean1"], params["var1"])
    s2, t2 = _fold_bn(params["b2"], params["gamma2"], params["beta2"],
                      params["mean2"], params["var2"])
    y = conv_bn_relu(x_nchw, params["w1"], s1, t1)
    return conv_bn_relu(y, params["w2"], s2, t2)


if __name__ == "__main__":
    key = jax.random.PRNGKey(0)
    k_x, k_p = jax.random.split(key)

    N, in_ch, out_ch, H, W = 2, 4, 8, 16, 16
    x = jax.random.normal(k_x, (N, in_ch, H, W), jnp.float32)
    params = init_double_conv_params(k_p, in_ch, out_ch)

    ref = _reference_forward(x, params)

    # Exactness check: f32 compute path (f32 MXU passes, f32 epilogue).
    out_f32 = jax.block_until_ready(
        double_conv_forward(x, params, compute_dtype=jnp.float32))
    assert out_f32.shape == (N, out_ch, H, W), out_f32.shape
    err = float(jnp.max(jnp.abs(out_f32 - ref)))
    assert err < 1e-3, f"f32 path max abs err {err}"

    # Default fast path: bf16 activations/weights, f32 accumulation/epilogue.
    out_bf16 = jax.block_until_ready(double_conv_forward(x, params))
    assert out_bf16.shape == (N, out_ch, H, W), out_bf16.shape
    err_bf = float(jnp.max(jnp.abs(out_bf16 - ref)))
    assert err_bf < 5e-2, f"bf16 path max abs err {err_bf}"

    print("KERNEL_OK")
</pallas_src>

<mosaic_0001>
module attributes {stable_mosaic.version = 11 : i64} {
  func.func @_double_conv_kernel(%arg0: i32, %arg1: i32, %arg2: memref<2x20x20x128xf32, #tpu.memory_space<any>>, %arg3: memref<1152x128xf32, #tpu.memory_space<vmem>>, %arg4: memref<1x128xf32, #tpu.memory_space<vmem>>, %arg5: memref<1x128xf32, #tpu.memory_space<vmem>>, %arg6: memref<1152x128xf32, #tpu.memory_space<vmem>>, %arg7: memref<1x128xf32, #tpu.memory_space<vmem>>, %arg8: memref<1x128xf32, #tpu.memory_space<vmem>>, %arg9: memref<1x8x16x128xf32, #tpu.memory_space<vmem>>, %arg10: memref<1x12x20x128xf32, #tpu.memory_space<vmem>>, %arg11: memref<1x!tpu.dma_semaphore, #tpu.memory_space<semaphore_mem>>) attributes {dimension_semantics = [#tpu.dimension_semantics<parallel>, #tpu.dimension_semantics<parallel>], iteration_bounds = array<i64: 2, 2>, scalar_prefetch = 0 : i64, scratch_operands = 2 : i64, tpu.core_type = #tpu.core_type<tc>, window_params = [{}, {pipeline_mode = #tpu.pipeline_mode<synchronous>, transform_indices = @transform_1, window_bounds = array<i64: 1152, 128>}, {pipeline_mode = #tpu.pipeline_mode<synchronous>, transform_indices = @transform_2, window_bounds = array<i64: 1, 128>}, {pipeline_mode = #tpu.pipeline_mode<synchronous>, transform_indices = @transform_3, window_bounds = array<i64: 1, 128>}, {pipeline_mode = #tpu.pipeline_mode<synchronous>, transform_indices = @transform_4, window_bounds = array<i64: 1152, 128>}, {pipeline_mode = #tpu.pipeline_mode<synchronous>, transform_indices = @transform_5, window_bounds = array<i64: 1, 128>}, {pipeline_mode = #tpu.pipeline_mode<synchronous>, transform_indices = @transform_6, window_bounds = array<i64: 1, 128>}, {transform_indices = @transform_7, window_bounds = array<i64: 1, 8, 16, 128>}]} {
    %c8_i32 = arith.constant 8 : i32
    %0 = arith.muli %arg1, %c8_i32 : i32
    %1 = tpu.assume_multiple %0, 8 : i32
    %c0_i32 = arith.constant 0 : i32
    %c0_i32_0 = arith.constant 0 : i32
    %c0_i32_1 = arith.constant 0 : i32
    %2 = tpu.memref_slice %arg2[%arg0, %1, %c0_i32_0, %c0_i32_1] : memref<2x20x20x128xf32, #tpu.memory_space<any>> -> memref<1x12x20x128xf32, #tpu.memory_space<any>>
    %3 = tpu.memref_slice %arg11[%c0_i32] : memref<1x!tpu.dma_semaphore, #tpu.memory_space<semaphore_mem>> -> memref<1x!tpu.dma_semaphore, #tpu.memory_space<semaphore_mem>>
    %4 = tpu.memref_squeeze %3 : memref<1x!tpu.dma_semaphore, #tpu.memory_space<semaphore_mem>> -> memref<!tpu.dma_semaphore, #tpu.memory_space<semaphore_mem>>
    tpu.enqueue_dma source(%2 : memref<1x12x20x128xf32, #tpu.memory_space<any>>) target(%arg10 : memref<1x12x20x128xf32, #tpu.memory_space<vmem>>) target_semaphore(%4 : memref<!tpu.dma_semaphore, #tpu.memory_space<semaphore_mem>>)
    %c0_i32_2 = arith.constant 0 : i32
    %c0_i32_3 = arith.constant 0 : i32
    %c0_i32_4 = arith.constant 0 : i32
    %5 = tpu.memref_slice %arg2[%arg0, %1, %c0_i32_3, %c0_i32_4] : memref<2x20x20x128xf32, #tpu.memory_space<any>> -> memref<1x12x20x128xf32, #tpu.memory_space<any>>
    %6 = tpu.memref_slice %arg11[%c0_i32_2] : memref<1x!tpu.dma_semaphore, #tpu.memory_space<semaphore_mem>> -> memref<1x!tpu.dma_semaphore, #tpu.memory_space<semaphore_mem>>
    %7 = tpu.memref_squeeze %6 : memref<1x!tpu.dma_semaphore, #tpu.memory_space<semaphore_mem>> -> memref<!tpu.dma_semaphore, #tpu.memory_space<semaphore_mem>>
    tpu.wait_dma2 semaphore(%7 : memref<!tpu.dma_semaphore, #tpu.memory_space<semaphore_mem>>) src(%5 : memref<1x12x20x128xf32, #tpu.memory_space<any>>) dst(%arg10 : memref<1x12x20x128xf32, #tpu.memory_space<vmem>>)
    %c0 = arith.constant 0 : index
    %c0_5 = arith.constant 0 : index
    %8 = vector.load %arg3[%c0, %c0_5] : memref<1152x128xf32, #tpu.memory_space<vmem>>, vector<1152x128xf32>
    %c0_6 = arith.constant 0 : index
    %c0_7 = arith.constant 0 : index
    %c0_8 = arith.constant 0 : index
    %c0_9 = arith.constant 0 : index
    %9 = vector.load %arg10[%c0_6, %c0_7, %c0_8, %c0_9] : memref<1x12x20x128xf32, #tpu.memory_space<vmem>>, vector<1x10x18x128xf32>
    %10 = vector.shape_cast %9 : vector<1x10x18x128xf32> to vector<10x18x128xf32>
    %11 = vector.shape_cast %10 : vector<10x18x128xf32> to vector<180x128xf32>
    %c0_10 = arith.constant 0 : index
    %c0_11 = arith.constant 0 : index
    %c1 = arith.constant 1 : index
    %c0_12 = arith.constant 0 : index
    %12 = vector.load %arg10[%c0_10, %c0_11, %c1, %c0_12] : memref<1x12x20x128xf32, #tpu.memory_space<vmem>>, vector<1x10x18x128xf32>
    %13 = vector.shape_cast %12 : vector<1x10x18x128xf32> to vector<10x18x128xf32>
    %14 = vector.shape_cast %13 : vector<10x18x128xf32> to vector<180x128xf32>
    %c0_13 = arith.constant 0 : index
    %c0_14 = arith.constant 0 : index
    %c2 = arith.constant 2 : index
    %c0_15 = arith.constant 0 : index
    %15 = vector.load %arg10[%c0_13, %c0_14, %c2, %c0_15] : memref<1x12x20x128xf32, #tpu.memory_space<vmem>>, vector<1x10x18x128xf32>
    %16 = vector.shape_cast %15 : vector<1x10x18x128xf32> to vector<10x18x128xf32>
    %17 = vector.shape_cast %16 : vector<10x18x128xf32> to vector<180x128xf32>
    %c0_16 = arith.constant 0 : index
    %c1_17 = arith.constant 1 : index
    %c0_18 = arith.constant 0 : index
    %c0_19 = arith.constant 0 : index
    %18 = vector.load %arg10[%c0_16, %c1_17, %c0_18, %c0_19] : memref<1x12x20x128xf32, #tpu.memory_space<vmem>>, vector<1x10x18x128xf32>
    %19 = vector.shape_cast %18 : vector<1x10x18x128xf32> to vector<10x18x128xf32>
    %20 = vector.shape_cast %19 : vector<10x18x128xf32> to vector<180x128xf32>
    %c0_20 = arith.constant 0 : index
    %c1_21 = arith.constant 1 : index
    %c1_22 = arith.constant 1 : index
    %c0_23 = arith.constant 0 : index
    %21 = vector.load %arg10[%c0_20, %c1_21, %c1_22, %c0_23] : memref<1x12x20x128xf32, #tpu.memory_space<vmem>>, vector<1x10x18x128xf32>
    %22 = vector.shape_cast %21 : vector<1x10x18x128xf32> to vector<10x18x128xf32>
    %23 = vector.shape_cast %22 : vector<10x18x128xf32> to vector<180x128xf32>
    %c0_24 = arith.constant 0 : index
    %c1_25 = arith.constant 1 : index
    %c2_26 = arith.constant 2 : index
    %c0_27 = arith.constant 0 : index
    %24 = vector.load %arg10[%c0_24, %c1_25, %c2_26, %c0_27] : memref<1x12x20x128xf32, #tpu.memory_space<vmem>>, vector<1x10x18x128xf32>
    %25 = vector.shape_cast %24 : vector<1x10x18x128xf32> to vector<10x18x128xf32>
    %26 = vector.shape_cast %25 : vector<10x18x128xf32> to vector<180x128xf32>
    %c0_28 = arith.constant 0 : index
    %c2_29 = arith.constant 2 : index
    %c0_30 = arith.constant 0 : index
    %c0_31 = arith.constant 0 : index
    %27 = vector.load %arg10[%c0_28, %c2_29, %c0_30, %c0_31] : memref<1x12x20x128xf32, #tpu.memory_space<vmem>>, vector<1x10x18x128xf32>
    %28 = vector.shape_cast %27 : vector<1x10x18x128xf32> to vector<10x18x128xf32>
    %29 = vector.shape_cast %28 : vector<10x18x128xf32> to vector<180x128xf32>
    %c0_32 = arith.constant 0 : index
    %c2_33 = arith.constant 2 : index
    %c1_34 = arith.constant 1 : index
    %c0_35 = arith.constant 0 : index
    %30 = vector.load %arg10[%c0_32, %c2_33, %c1_34, %c0_35] : memref<1x12x20x128xf32, #tpu.memory_space<vmem>>, vector<1x10x18x128xf32>
    %31 = vector.shape_cast %30 : vector<1x10x18x128xf32> to vector<10x18x128xf32>
    %32 = vector.shape_cast %31 : vector<10x18x128xf32> to vector<180x128xf32>
    %c0_36 = arith.constant 0 : index
    %c2_37 = arith.constant 2 : index
    %c2_38 = arith.constant 2 : index
    %c0_39 = arith.constant 0 : index
    %33 = vector.load %arg10[%c0_36, %c2_37, %c2_38, %c0_39] : memref<1x12x20x128xf32, #tpu.memory_space<vmem>>, vector<1x10x18x128xf32>
    %34 = vector.shape_cast %33 : vector<1x10x18x128xf32> to vector<10x18x128xf32>
    %35 = vector.shape_cast %34 : vector<10x18x128xf32> to vector<180x128xf32>
    %36 = tpu.concatenate %11, %14, %17, %20, %23, %26, %29, %32, %35 in 1 : vector<180x128xf32>, vector<180x128xf32>, vector<180x128xf32>, vector<180x128xf32>, vector<180x128xf32>, vector<180x128xf32>, vector<180x128xf32>, vector<180x128xf32>, vector<180x128xf32> -> vector<180x1152xf32>
    %cst = arith.constant dense<0.000000e+00> : vector<180x128xf32>
    %37 = tpu.matmul %36, %8, %cst {dimension_numbers = #tpu.dot_dimension_numbers<[1], [0], [0], [1], [0, 0, 1, 1], [], []>} : vector<180x1152xf32>, vector<1152x128xf32>, vector<180x128xf32> -> vector<180x128xf32>
    %c0_40 = arith.constant 0 : index
    %c0_41 = arith.constant 0 : index
    %38 = vector.load %arg4[%c0_40, %c0_41] : memref<1x128xf32, #tpu.memory_space<vmem>>, vector<1x128xf32>
    %39 = vector.broadcast %38 : vector<1x128xf32> to vector<180x128xf32>
    %40 = arith.mulf %37, %39 : vector<180x128xf32>
    %c0_42 = arith.constant 0 : index
    %c0_43 = arith.constant 0 : index
    %41 = vector.load %arg5[%c0_42, %c0_43] : memref<1x128xf32, #tpu.memory_space<vmem>>, vector<1x128xf32>
    %42 = vector.broadcast %41 : vector<1x128xf32> to vector<180x128xf32>
    %43 = arith.addf %40, %42 : vector<180x128xf32>
    %cst_44 = arith.constant 0.000000e+00 : f32
    %44 = vector.broadcast %cst_44 : f32 to vector<180x128xf32>
    %45 = arith.maximumf %43, %44 : vector<180x128xf32>
    %46 = vector.shape_cast %45 : vector<180x128xf32> to vector<10x18x128xf32>
    %c1_i32 = arith.constant 1 : i32
    %47 = arith.subi %1, %c1_i32 : i32
    %48 = tpu.iota {dimensions = array<i32: 0>} : vector<10x18x1xi32>
    %49 = vector.broadcast %47 : i32 to vector<10x18x1xi32>
    %50 = arith.addi %49, %48 : vector<10x18x1xi32>
    %51 = tpu.iota {dimensions = array<i32: 1>} : vector<10x18x1xi32>
    %c-1_i32 = arith.constant -1 : i32
    %52 = vector.broadcast %c-1_i32 : i32 to vector<10x18x1xi32>
    %53 = arith.addi %52, %51 : vector<10x18x1xi32>
    %c0_i32_45 = arith.constant 0 : i32
    %54 = vector.broadcast %c0_i32_45 : i32 to vector<10x18x1xi32>
    %55 = arith.cmpi sge, %50, %54 : vector<10x18x1xi32>
    %c16_i32 = arith.constant 16 : i32
    %56 = vector.broadcast %c16_i32 : i32 to vector<10x18x1xi32>
    %57 = arith.cmpi slt, %50, %56 : vector<10x18x1xi32>
    %58 = arith.andi %55, %57 : vector<10x18x1xi1>
    %c0_i32_46 = arith.constant 0 : i32
    %59 = vector.broadcast %c0_i32_46 : i32 to vector<10x18x1xi32>
    %60 = arith.cmpi sge, %53, %59 : vector<10x18x1xi32>
    %61 = arith.andi %58, %60 : vector<10x18x1xi1>
    %c16_i32_47 = arith.constant 16 : i32
    %62 = vector.broadcast %c16_i32_47 : i32 to vector<10x18x1xi32>
    %63 = arith.cmpi slt, %53, %62 : vector<10x18x1xi32>
    %64 = arith.andi %61, %63 : vector<10x18x1xi1>
    %cst_48 = arith.constant 0.000000e+00 : f32
    %65 = vector.shape_cast %64 : vector<10x18x1xi1> to vector<10x18x1xi1>
    %66 = vector.broadcast %65 : vector<10x18x1xi1> to vector<10x18x128xi1>
    %67 = vector.broadcast %cst_48 : f32 to vector<10x18x128xf32>
    %68 = arith.select %66, %46, %67 : vector<10x18x128xi1>, vector<10x18x128xf32>
    %c0_49 = arith.constant 0 : index
    %c0_50 = arith.constant 0 : index
    %69 = vector.load %arg6[%c0_49, %c0_50] : memref<1152x128xf32, #tpu.memory_space<vmem>>, vector<1152x128xf32>
    %70 = vector.extract_strided_slice %68 {offsets = [0, 0, 0], sizes = [8, 16, 128], strides = [1, 1, 1]} : vector<10x18x128xf32> to vector<8x16x128xf32>
    %71 = vector.shape_cast %70 : vector<8x16x128xf32> to vector<128x128xf32>
    %72 = vector.extract_strided_slice %68 {offsets = [0, 1, 0], sizes = [8, 16, 128], strides = [1, 1, 1]} : vector<10x18x128xf32> to vector<8x16x128xf32>
    %73 = vector.shape_cast %72 : vector<8x16x128xf32> to vector<128x128xf32>
    %74 = vector.extract_strided_slice %68 {offsets = [0, 2, 0], sizes = [8, 16, 128], strides = [1, 1, 1]} : vector<10x18x128xf32> to vector<8x16x128xf32>
    %75 = vector.shape_cast %74 : vector<8x16x128xf32> to vector<128x128xf32>
    %76 = vector.extract_strided_slice %68 {offsets = [1, 0, 0], sizes = [8, 16, 128], strides = [1, 1, 1]} : vector<10x18x128xf32> to vector<8x16x128xf32>
    %77 = vector.shape_cast %76 : vector<8x16x128xf32> to vector<128x128xf32>
    %78 = vector.extract_strided_slice %68 {offsets = [1, 1, 0], sizes = [8, 16, 128], strides = [1, 1, 1]} : vector<10x18x128xf32> to vector<8x16x128xf32>
    %79 = vector.shape_cast %78 : vector<8x16x128xf32> to vector<128x128xf32>
    %80 = vector.extract_strided_slice %68 {offsets = [1, 2, 0], sizes = [8, 16, 128], strides = [1, 1, 1]} : vector<10x18x128xf32> to vector<8x16x128xf32>
    %81 = vector.shape_cast %80 : vector<8x16x128xf32> to vector<128x128xf32>
    %82 = vector.extract_strided_slice %68 {offsets = [2, 0, 0], sizes = [8, 16, 128], strides = [1, 1, 1]} : vector<10x18x128xf32> to vector<8x16x128xf32>
    %83 = vector.shape_cast %82 : vector<8x16x128xf32> to vector<128x128xf32>
    %84 = vector.extract_strided_slice %68 {offsets = [2, 1, 0], sizes = [8, 16, 128], strides = [1, 1, 1]} : vector<10x18x128xf32> to vector<8x16x128xf32>
    %85 = vector.shape_cast %84 : vector<8x16x128xf32> to vector<128x128xf32>
    %86 = vector.extract_strided_slice %68 {offsets = [2, 2, 0], sizes = [8, 16, 128], strides = [1, 1, 1]} : vector<10x18x128xf32> to vector<8x16x128xf32>
    %87 = vector.shape_cast %86 : vector<8x16x128xf32> to vector<128x128xf32>
    %88 = tpu.concatenate %71, %73, %75, %77, %79, %81, %83, %85, %87 in 1 : vector<128x128xf32>, vector<128x128xf32>, vector<128x128xf32>, vector<128x128xf32>, vector<128x128xf32>, vector<128x128xf32>, vector<128x128xf32>, vector<128x128xf32>, vector<128x128xf32> -> vector<128x1152xf32>
    %cst_51 = arith.constant dense<0.000000e+00> : vector<128x128xf32>
    %89 = tpu.matmul %88, %69, %cst_51 {dimension_numbers = #tpu.dot_dimension_numbers<[1], [0], [0], [1], [0, 0, 1, 1], [], []>} : vector<128x1152xf32>, vector<1152x128xf32>, vector<128x128xf32> -> vector<128x128xf32>
    %c0_52 = arith.constant 0 : index
    %c0_53 = arith.constant 0 : index
    %90 = vector.load %arg7[%c0_52, %c0_53] : memref<1x128xf32, #tpu.memory_space<vmem>>, vector<1x128xf32>
    %91 = vector.broadcast %90 : vector<1x128xf32> to vector<128x128xf32>
    %92 = arith.mulf %89, %91 : vector<128x128xf32>
    %c0_54 = arith.constant 0 : index
    %c0_55 = arith.constant 0 : index
    %93 = vector.load %arg8[%c0_54, %c0_55] : memref<1x128xf32, #tpu.memory_space<vmem>>, vector<1x128xf32>
    %94 = vector.broadcast %93 : vector<1x128xf32> to vector<128x128xf32>
    %95 = arith.addf %92, %94 : vector<128x128xf32>
    %cst_56 = arith.constant 0.000000e+00 : f32
    %96 = vector.broadcast %cst_56 : f32 to vector<128x128xf32>
    %97 = arith.maximumf %95, %96 : vector<128x128xf32>
    %98 = vector.shape_cast %97 : vector<128x128xf32> to vector<1x8x16x128xf32>
    %c0_57 = arith.constant 0 : index
    %c0_58 = arith.constant 0 : index
    %c0_59 = arith.constant 0 : index
    %c0_60 = arith.constant 0 : index
    %99 = vector.load %arg9[%c0_57, %c0_58, %c0_59, %c0_60] : memref<1x8x16x128xf32, #tpu.memory_space<vmem>>, vector<1x8x16x128xf32>
    tpu.vector_store %arg9[%c0_57, %c0_58, %c0_59, %c0_60], %98 {strides = array<i32>} : memref<1x8x16x128xf32, #tpu.memory_space<vmem>>, vector<1x8x16x128xf32>,
    return
  }
  func.func @transform_1(%arg0: i32, %arg1: i32) -> (i32, i32) {
    %c0_i32 = arith.constant 0 : i32
    %c0_i32_0 = arith.constant 0 : i32
    %c0_i32_1 = arith.constant 0 : i32
    return %c0_i32, %c0_i32_0 : i32, i32
  }
  func.func @transform_2(%arg0: i32, %arg1: i32) -> (i32, i32) {
    %c0_i32 = arith.constant 0 : i32
    %c0_i32_0 = arith.constant 0 : i32
    %c0_i32_1 = arith.constant 0 : i32
    return %c0_i32, %c0_i32_0 : i32, i32
  }
  func.func @transform_3(%arg0: i32, %arg1: i32) -> (i32, i32) {
    %c0_i32 = arith.constant 0 : i32
    %c0_i32_0 = arith.constant 0 : i32
    %c0_i32_1 = arith.constant 0 : i32
    return %c0_i32, %c0_i32_0 : i32, i32
  }
  func.func @transform_4(%arg0: i32, %arg1: i32) -> (i32, i32) {
    %c0_i32 = arith.constant 0 : i32
    %c0_i32_0 = arith.constant 0 : i32
    %c0_i32_1 = arith.constant 0 : i32
    return %c0_i32, %c0_i32_0 : i32, i32
  }
  func.func @transform_5(%arg0: i32, %arg1: i32) -> (i32, i32) {
    %c0_i32 = arith.constant 0 : i32
    %c0_i32_0 = arith.constant 0 : i32
    %c0_i32_1 = arith.constant 0 : i32
    return %c0_i32, %c0_i32_0 : i32, i32
  }
  func.func @transform_6(%arg0: i32, %arg1: i32) -> (i32, i32) {
    %c0_i32 = arith.constant 0 : i32
    %c0_i32_0 = arith.constant 0 : i32
    %c0_i32_1 = arith.constant 0 : i32
    return %c0_i32, %c0_i32_0 : i32, i32
  }
  func.func @transform_7(%arg0: i32, %arg1: i32) -> (i32, i32, i32, i32) {
    %c0_i32 = arith.constant 0 : i32
    %c0_i32_0 = arith.constant 0 : i32
    %c0_i32_1 = arith.constant 0 : i32
    return %arg0, %arg1, %c0_i32, %c0_i32_0 : i32, i32, i32, i32
  }
}

</mosaic_0001>

<llo_original>
// kernel: double_conv_forward.1
$region0: #{double_conv_forward.1}
  #allocation0 [shape = 'u32[]', space=smem, size = 0x4, offset = 0x4, fixed_abs, tag = 'smem constant byte address 0x4 - core index']
  #allocation1 [shape = 'u32[144,128]{1,0:T(1,128)}', space=vmem, size = 0x12000, scoped, tag = 'internal scratch']
  #allocation2 [shape = 'f32[1,12,20,128]{3,2,1,0:T(8,128)}', space=vmem, size = 0x24000, scoped, tag = 'scratch operand']
  #allocation3 [shape = 's32[1]{0}', space=sflag, size = 0x4, scoped, tag = 'scratch operand']
  #allocation4 [shape = 's32[]', space=sflag, size = 0x4, offset = 0, fixed_abs, tag = 'sflag constant byte address 0x0 - dummy sync flag']
  %s0 = inlined_call_operand.vmem [shape: f32[2,20,20,128], index: 0, kind: input, shape index: {}]
  %s1 = inlined_call_operand.vmem [shape: f32[1152,128], index: 1, kind: input, shape index: {}]
  %s2 = inlined_call_operand.vmem [shape: f32[1,128], index: 2, kind: input, shape index: {}]
  %s3 = inlined_call_operand.vmem [shape: f32[1,128], index: 3, kind: input, shape index: {}]
  %s4 = inlined_call_operand.vmem [shape: f32[1152,128], index: 4, kind: input, shape index: {}]
  %s5 = inlined_call_operand.vmem [shape: f32[1,128], index: 5, kind: input, shape index: {}]
  %s6 = inlined_call_operand.vmem [shape: f32[1,128], index: 6, kind: input, shape index: {}]
  %s7 = inlined_call_operand.vmem [shape: f32[2,16,16,128], index: 7, kind: output, shape index: {}]
  %s8 = sld [smem:[#allocation0]]
  $region94: #{double_conv_forward.1} parent=0
    _
  %s10 = ssub.s32 1, %s8
  %s11 = scalar_select 0, %s10, %s8
  loop: start=0, step=1, limit=6
  $region2: #{double_conv_forward.1} parent=0 // loop_pre_header
    _
  $region3: #{double_conv_forward.1} parent=0 // loop_header
    %s13 = sphi 0, %s17
    %p14 = scmp.ge.s32.totalorder %s13, 6
    %s20 = sphi 0, %s32
    %s21 = sphi 0, %s28
    %s22 = sphi 0, %s20
    %s23 = sphi 0, %s21
    %s24 = sphi 0, %s22
    %s25 = sphi 0, %s23
    %s33 = sphi 0, %s33
    %s35 = sphi 0, %s33
    %s36 = sphi 0, %s35
    %s50 = sphi 0, %s36
    %s54 = sphi 0, %s54
    %s56 = sphi 0, %s54
    %s57 = sphi 0, %s56
    %s71 = sphi 0, %s57
    %s75 = sphi 0, %s75
    %s77 = sphi 0, %s75
    %s78 = sphi 0, %s77
    %s92 = sphi 0, %s78
    %s96 = sphi 0, %s96
    %s98 = sphi 0, %s96
    %s99 = sphi 0, %s98
    %s113 = sphi 0, %s99
    %s117 = sphi 0, %s117
    %s119 = sphi 0, %s117
    %s120 = sphi 0, %s119
    %s134 = sphi 0, %s120
    %s138 = sphi 0, %s138
    %s140 = sphi 0, %s138
    %s141 = sphi 0, %s140
    %s155 = sphi 0, %s141
    %s163 = sphi 0, %s165
    %s166 = sphi 0, %s163
    %s167 = sphi 0, %s166
    %s183 = sphi 0, %s167
  $region4: #{double_conv_forward.1} parent=0 // loop_header_branch
    %16 = sbr.rel (%p14) target = $region8
  $region5: #{double_conv_forward.1} parent=0 // loop_body
    %s18 = ssub.s32 %s13, 1
    %s19 = ssub.s32 %s13, 2
    %s26 = sadd.s32 1, %s21
    %p27 = scmp.ge.s32.totalorder %s26, 2
    %s28 = scalar_select %p27, 0, %s26
    %s29 = sadd.s32 1, %s20
    %s30 = scalar_select %p27, %s29, %s20
    %p31 = scmp.ge.s32.totalorder %s30, 2
    %s32 = scalar_select %p31, 0, %s30
    %s34 = sadd.s32 %s33, 1
    %p37 = scmp.eq.s32.totalorder %s13, 3
    %p38 = scmp.ne.s32.totalorder %s33, %s35
    %p39 = scmp.eq.s32.totalorder %s13, 0
    %p40 = por %p38, %p39
    %p41 = scmp.ne.s32.totalorder %s33, %s35
    %p42 = scmp.eq.s32.totalorder %s18, 3
    %p43 = por %p41, %p42
    %p44 = scmp.ne.s32.totalorder %s35, %s36
    %p45 = scmp.eq.s32.totalorder %s18, 0
    %p46 = por %p44, %p45
    %p47 = scmp.ne.s32.totalorder %s35, %s36
    %p48 = scmp.eq.s32.totalorder %s19, 3
    %p49 = por %p47, %p48
    %p51 = scmp.ne.s32.totalorder %s36, %s50
    %p52 = scmp.eq.s32.totalorder %s19, 0
    %p53 = por %p51, %p52
    %s55 = sadd.s32 %s54, 1
    %p58 = scmp.eq.s32.totalorder %s13, 3
    %p59 = scmp.ne.s32.totalorder %s54, %s56
    %p60 = scmp.eq.s32.totalorder %s13, 0
    %p61 = por %p59, %p60
    %p62 = scmp.ne.s32.totalorder %s54, %s56
    %p63 = scmp.eq.s32.totalorder %s18, 3
    %p64 = por %p62, %p63
    %p65 = scmp.ne.s32.totalorder %s56, %s57
    %p66 = scmp.eq.s32.totalorder %s18, 0
    %p67 = por %p65, %p66
    %p68 = scmp.ne.s32.totalorder %s56, %s57
    %p69 = scmp.eq.s32.totalorder %s19, 3
    %p70 = por %p68, %p69
    %p72 = scmp.ne.s32.totalorder %s57, %s71
    %p73 = scmp.eq.s32.totalorder %s19, 0
    %p74 = por %p72, %p73
    %s76 = sadd.s32 %s75, 1
    %p79 = scmp.eq.s32.totalorder %s13, 3
    %p80 = scmp.ne.s32.totalorder %s75, %s77
    %p81 = scmp.eq.s32.totalorder %s13, 0
    %p82 = por %p80, %p81
    %p83 = scmp.ne.s32.totalorder %s75, %s77
    %p84 = scmp.eq.s32.totalorder %s18, 3
    %p85 = por %p83, %p84
    %p86 = scmp.ne.s32.totalorder %s77, %s78
    %p87 = scmp.eq.s32.totalorder %s18, 0
    %p88 = por %p86, %p87
    %p89 = scmp.ne.s32.totalorder %s77, %s78
    %p90 = scmp.eq.s32.totalorder %s19, 3
    %p91 = por %p89, %p90
    %p93 = scmp.ne.s32.totalorder %s78, %s92
    %p94 = scmp.eq.s32.totalorder %s19, 0
    %p95 = por %p93, %p94
    %s97 = sadd.s32 %s96, 1
    %p100 = scmp.eq.s32.totalorder %s13, 3
    %p101 = scmp.ne.s32.totalorder %s96, %s98
    %p102 = scmp.eq.s32.totalorder %s13, 0
    %p103 = por %p101, %p102
    %p104 = scmp.ne.s32.totalorder %s96, %s98
    %p105 = scmp.eq.s32.totalorder %s18, 3
    %p106 = por %p104, %p105
    %p107 = scmp.ne.s32.totalorder %s98, %s99
    %p108 = scmp.eq.s32.totalorder %s18, 0
    %p109 = por %p107, %p108
    %p110 = scmp.ne.s32.totalorder %s98, %s99
    %p111 = scmp.eq.s32.totalorder %s19, 3
    %p112 = por %p110, %p111
    %p114 = scmp.ne.s32.totalorder %s99, %s113
    %p115 = scmp.eq.s32.totalorder %s19, 0
    %p116 = por %p114, %p115
    %s118 = sadd.s32 %s117, 1
    %p121 = scmp.eq.s32.totalorder %s13, 3
    %p122 = scmp.ne.s32.totalorder %s117, %s119
    %p123 = scmp.eq.s32.totalorder %s13, 0
    %p124 = por %p122, %p123
    %p125 = scmp.ne.s32.totalorder %s117, %s119
    %p126 = scmp.eq.s32.totalorder %s18, 3
    %p127 = por %p125, %p126
    %p128 = scmp.ne.s32.totalorder %s119, %s120
    %p129 = scmp.eq.s32.totalorder %s18, 0
    %p130 = por %p128, %p129
    %p131 = scmp.ne.s32.totalorder %s119, %s120
    %p132 = scmp.eq.s32.totalorder %s19, 3
    %p133 = por %p131, %p132
    %p135 = scmp.ne.s32.totalorder %s120, %s134
    %p136 = scmp.eq.s32.totalorder %s19, 0
    %p137 = por %p135, %p136
    %s139 = sadd.s32 %s138, 1
    %p142 = scmp.eq.s32.totalorder %s13, 3
    %p143 = scmp.ne.s32.totalorder %s138, %s140
    %p144 = scmp.eq.s32.totalorder %s13, 0
    %p145 = por %p143, %p144
    %p146 = scmp.ne.s32.totalorder %s138, %s140
    %p147 = scmp.eq.s32.totalorder %s18, 3
    %p148 = por %p146, %p147
    %p149 = scmp.ne.s32.totalorder %s140, %s141
    %p150 = scmp.eq.s32.totalorder %s18, 0
    %p151 = por %p149, %p150
    %p152 = scmp.ne.s32.totalorder %s140, %s141
    %p153 = scmp.eq.s32.totalorder %s19, 3
    %p154 = por %p152, %p153
    %p156 = scmp.ne.s32.totalorder %s141, %s155
    %p157 = scmp.eq.s32.totalorder %s19, 0
    %p158 = por %p156, %p157
    %s159 = ssub.s32 %s20, %s32
    %s160 = ssub.s32 %s21, %s28
    %s161 = sor.u32 %s159, %s160
    %p162 = scmp.eq.s32.totalorder %s161, 0
    %s164 = sadd.s32 %s163, 1
    %s165 = scalar_select %p162, %s163, %s164
    %p168 = pneg %p162
    %p169 = scmp.eq.s32.totalorder %s13, 3
    %p170 = por %p168, %p169
    %p171 = scmp.ne.s32.totalorder %s163, %s166
    %p172 = scmp.eq.s32.totalorder %s13, 0
    %p173 = por %p171, %p172
    %p174 = scmp.ne.s32.totalorder %s163, %s166
    %p175 = scmp.eq.s32.totalorder %s18, 3
    %p176 = por %p174, %p175
    %p177 = scmp.ne.s32.totalorder %s166, %s167
    %p178 = scmp.eq.s32.totalorder %s18, 0
    %p179 = por %p177, %p178
    %p180 = scmp.ne.s32.totalorder %s166, %s167
    %p181 = scmp.eq.s32.totalorder %s19, 3
    %p182 = por %p180, %p181
    %p184 = scmp.ne.s32.totalorder %s167, %s183
    %p185 = scmp.eq.s32.totalorder %s19, 0
    %p186 = por %p184, %p185
    %p187 = scmp.le.s32.totalorder 1, %s13
    %p188 = scmp.lt.s32.totalorder %s13, 5
    %p189 = pnand %p187, %p188
    %p190 = pneg %p189
    // Predicated region
    $region9: #{double_conv_forward.1} parent=5 // pred_check
      _
    $region10: #{double_conv_forward.1} parent=5 // pred_check_branch
      %192 = sbr.rel (%p189) target = $region12
    $region11: #{double_conv_forward.1} parent=5 // pred_region
      %s193 = ssub.s32 %s13, 1
      // Predicated region
      $region13: #{double_conv_forward.1} parent=11 // pred_check
        %p194 = pneg %p46
      $region14: #{double_conv_forward.1} parent=11 // pred_check_branch
        %196 = sbr.rel (%p194) target = $region16
      $region15: #{double_conv_forward.1} parent=11 // pred_region
        _
      $region16: #{double_conv_forward.1} parent=11 // pred_fallthru
        _
      // Predicated region
      $region17: #{double_conv_forward.1} parent=11 // pred_check
        %p197 = pneg %p67
      $region18: #{double_conv_forward.1} parent=11 // pred_check_branch
        %199 = sbr.rel (%p197) target = $region20
      $region19: #{double_conv_forward.1} parent=11 // pred_region
        _
      $region20: #{double_conv_forward.1} parent=11 // pred_fallthru
        _
      // Predicated region
      $region21: #{double_conv_forward.1} parent=11 // pred_check
        %p200 = pneg %p88
      $region22: #{double_conv_forward.1} parent=11 // pred_check_branch
        %202 = sbr.rel (%p200) target = $region24
      $region23: #{double_conv_forward.1} parent=11 // pred_region
        _
      $region24: #{double_conv_forward.1} parent=11 // pred_fallthru
        _
      // Predicated region
      $region25: #{double_conv_forward.1} parent=11 // pred_check
        %p203 = pneg %p109
      $region26: #{double_conv_forward.1} parent=11 // pred_check_branch
        %205 = sbr.rel (%p203) target = $region28
      $region27: #{double_conv_forward.1} parent=11 // pred_region
        _
      $region28: #{double_conv_forward.1} parent=11 // pred_fallthru
        _
      // Predicated region
      $region29: #{double_conv_forward.1} parent=11 // pred_check
        %p206 = pneg %p130
      $region30: #{double_conv_forward.1} parent=11 // pred_check_branch
        %208 = sbr.rel (%p206) target = $region32
      $region31: #{double_conv_forward.1} parent=11 // pred_region
        _
      $region32: #{double_conv_forward.1} parent=11 // pred_fallthru
        _
      // Predicated region
      $region33: #{double_conv_forward.1} parent=11 // pred_check
        %p209 = pneg %p151
      $region34: #{double_conv_forward.1} parent=11 // pred_check_branch
        %211 = sbr.rel (%p209) target = $region36
      $region35: #{double_conv_forward.1} parent=11 // pred_region
        _
      $region36: #{double_conv_forward.1} parent=11 // pred_fallthru
        _
    $region12: #{double_conv_forward.1} parent=5 // pred_fallthru
      _
    %p212 = scmp.lt.s32.totalorder %s13, 4
    // Predicated region
    $region37: #{double_conv_forward.1} parent=5 // pred_check
      %p213 = pneg %p212
    $region38: #{double_conv_forward.1} parent=5 // pred_check_branch
      %215 = sbr.rel (%p213) target = $region40
    $region39: #{double_conv_forward.1} parent=5 // pred_region
      _
    $region40: #{double_conv_forward.1} parent=5 // pred_fallthru
      _
    %p216 = scmp.le.s32.totalorder 1, %s13
    %p217 = scmp.lt.s32.totalorder %s13, 5
    %p218 = pnand %p216, %p217
    %p219 = pneg %p218
    // Predicated region
    $region41: #{double_conv_forward.1} parent=5 // pred_check
      _
    $region42: #{double_conv_forward.1} parent=5 // pred_check_branch
      %221 = sbr.rel (%p218) target = $region44
    $region43: #{double_conv_forward.1} parent=5 // pred_region
      %s222 = ssub.s32 %s13, 1
      %p223 = pneg %p46
      %p224 = pneg %p43
      %p225 = pneg %p67
      %p226 = pneg %p64
      %p227 = pneg %p88
      %p228 = pneg %p85
      %p229 = pneg %p109
      %p230 = pneg %p106
      %p231 = pneg %p130
      %p232 = pneg %p127
      %p233 = pneg %p151
      %p234 = pneg %p148
      %p235 = pneg %p179
      %p236 = pneg %p176
      %s237 = smul.u32 8, %s23
      %p238 = scmp.lt.s32.totalorder %s22, 1
      %s239 = scalar_select %p238, %s22, 1
      %p240 = scmp.lt.s32.totalorder %s237, 15
      %s241 = scalar_select %p240, %s237, 15
      %s242 = smul.addr %s241, 2
      %s243 = smul.addr %s239, 32
      %s244 = sadd.s32 %s242, %s243
      %s245 = smul.addr %s244, 8
      %s246 = scalar_lea.vmem %s7, %s245
      %s247 = smul.u32 8, %s23
      %p248 = scmp.lt.s32.totalorder %s22, 1
      %s249 = scalar_select %p248, %s22, 1
      %p250 = scmp.lt.s32.totalorder %s247, 15
      %s251 = scalar_select %p250, %s247, 15
      %s252 = smul.addr %s251, 2
      %s253 = smul.addr %s249, 32
      %s254 = sadd.s32 %s252, %s253
      %s255 = smul.addr %s254, 8
      %s256 = scalar_lea.vmem %s7, %s255
      %s257 = smul.u32 8, %s23
      %s258 = smul.u32 %s23, 8
      %s259 = smul.u32 %s258, 24
      %s260 = smul.u32 %s22, 480
      %s261 = sadd.s32 %s259, %s260
      %s262 = scalar_lea.vmem %s0, %s261
      %p264 = scmp.lt.u32.totalorder 20, 8
      %p265 = pneg %p264
      // Predicated region
      $region45: #{double_conv_forward.1} parent=43 // pred_check
        _
      $region46: #{double_conv_forward.1} parent=43 // pred_check_branch
        %267 = sbr.rel (%p264) target = $region48
      $region47: #{double_conv_forward.1} parent=43 // pred_region
        %s305 = sand.u32 20, 7
        %p306 = scmp.eq.s32.totalorder %s305, 0
        %p307 = pneg %p306
        // Predicated region
        $region60: #{double_conv_forward.1} parent=47 // pred_check
          _
        $region61: #{double_conv_forward.1} parent=47 // pred_check_branch
          %309 = sbr.rel (%p306) target = $region63
        $region62: #{double_conv_forward.1} parent=47 // pred_region
          %s310 = sand.u32 20, 7
          %s311 = ssub.s32 20, %s310
          %s312 = scalar_lea.vmem %s262, %s311
          %s313 = ssub.s32 20, %s310
          %s314 = scalar_lea.vmem [#allocation2], %s313
          loop: start=0, step=1, limit=1
          $region64: #{double_conv_forward.1} parent=62 // loop_pre_header
            _
          $region65: #{double_conv_forward.1} parent=62 // loop_header
            %s316 = sphi 0, %s320
            %p317 = scmp.ge.s32.totalorder %s316, 1
            %s321 = sphi %s262, %s262
            %s322 = sphi [#allocation2], [#allocation2]
          $region66: #{double_conv_forward.1} parent=62 // loop_header_branch
            %319 = sbr.rel (%p317) target = $region70
          $region67: #{double_conv_forward.1} parent=62 // loop_body
            %v323 = vld [vmem:[%s321] sm:$0xff]
            %324 = vst [vmem:[%s322] sm:$0xff] %v323
            %v325 = vld [vmem:[%s321 + $0x8] sm:$0xff]
            %326 = vst [vmem:[%s322 + $0x8] sm:$0xff] %v325
            %v327 = vld [vmem:[%s321 + $0x18] sm:$0xff]
            %328 = vst [vmem:[%s322 + $0x18] sm:$0xff] %v327
            %v329 = vld [vmem:[%s321 + $0x20] sm:$0xff]
            %330 = vst [vmem:[%s322 + $0x20] sm:$0xff] %v329
            %v331 = vld [vmem:[%s321 + $0x30] sm:$0xff]
            %332 = vst [vmem:[%s322 + $0x30] sm:$0xff] %v331
            %v333 = vld [vmem:[%s321 + $0x38] sm:$0xff]
            %334 = vst [vmem:[%s322 + $0x38] sm:$0xff] %v333
            %v335 = vld [vmem:[%s321 + $0x48] sm:$0xff]
            %336 = vst [vmem:[%s322 + $0x48] sm:$0xff] %v335
            %v337 = vld [vmem:[%s321 + $0x50] sm:$0xff]
            %338 = vst [vmem:[%s322 + $0x50] sm:$0xff] %v337
            %v339 = vld [vmem:[%s321 + $0x60] sm:$0xff]
            %340 = vst [vmem:[%s322 + $0x60] sm:$0xff] %v339
            %v341 = vld [vmem:[%s321 + $0x68] sm:$0xff]
            %342 = vst [vmem:[%s322 + $0x68] sm:$0xff] %v341
            %v343 = vld [vmem:[%s321 + $0x78] sm:$0xff]
            %344 = vst [vmem:[%s322 + $0x78] sm:$0xff] %v343
            %v345 = vld [vmem:[%s321 + $0x80] sm:$0xff]
            %346 = vst [vmem:[%s322 + $0x80] sm:$0xff] %v345
            %v347 = vld [vmem:[%s321 + $0x90] sm:$0xff]
            %348 = vst [vmem:[%s322 + $0x90] sm:$0xff] %v347
            %v349 = vld [vmem:[%s321 + $0x98] sm:$0xff]
            %350 = vst [vmem:[%s322 + $0x98] sm:$0xff] %v349
            %v351 = vld [vmem:[%s321 + $0xa8] sm:$0xff]
            %352 = vst [vmem:[%s322 + $0xa8] sm:$0xff] %v351
            %v353 = vld [vmem:[%s321 + $0xb0] sm:$0xff]
            %354 = vst [vmem:[%s322 + $0xb0] sm:$0xff] %v353
            %v355 = vld [vmem:[%s321 + $0xc0] sm:$0xff]
            %356 = vst [vmem:[%s322 + $0xc0] sm:$0xff] %v355
            %v357 = vld [vmem:[%s321 + $0xc8] sm:$0xff]
            %358 = vst [vmem:[%s322 + $0xc8] sm:$0xff] %v357
            %v359 = vld [vmem:[%s321 + $0xd8] sm:$0xff]
            %360 = vst [vmem:[%s322 + $0xd8] sm:$0xff] %v359
            %v361 = vld [vmem:[%s321 + $0xe0] sm:$0xff]
            %362 = vst [vmem:[%s322 + $0xe0] sm:$0xff] %v361
            %v363 = vld [vmem:[%s321 + $0xf0] sm:$0xff]
            %364 = vst [vmem:[%s322 + $0xf0] sm:$0xff] %v363
            %v365 = vld [vmem:[%s321 + $0xf8] sm:$0xff]
            %366 = vst [vmem:[%s322 + $0xf8] sm:$0xff] %v365
            %v367 = vld [vmem:[%s321 + $0x108] sm:$0xff]
            %368 = vst [vmem:[%s322 + $0x108] sm:$0xff] %v367
            %v369 = vld [vmem:[%s321 + $0x110] sm:$0xff]
            %370 = vst [vmem:[%s322 + $0x110] sm:$0xff] %v369
          $region68: #{double_conv_forward.1} parent=62 // loop_footer
            %s320 = sadd.s32 1, %s316
          $region69: #{double_conv_forward.1} parent=62 // loop_footer_branch
            %315 = sbr.rel target = $region65
          $region70: #{double_conv_forward.1} parent=62 // loop_exit
            _
          %s371 = sshll.u32 1, %s310
          %s372 = ssub.s32 %s371, 1
          loop: start=0, step=1, limit=1
          $region71: #{double_conv_forward.1} parent=62 // loop_pre_header
            _
          $region72: #{double_conv_forward.1} parent=62 // loop_header
            %s374 = sphi 0, %s378
            %p375 = scmp.ge.s32.totalorder %s374, 1
            %s379 = sphi %s312, %s312
            %s380 = sphi %s314, %s314
          $region73: #{double_conv_forward.1} parent=62 // loop_header_branch
            %377 = sbr.rel (%p375) target = $region77
          $region74: #{double_conv_forward.1} parent=62 // loop_body
            %v381 = vld [vmem:[%s379] sm:%s372]
            %382 = vst [vmem:[%s380] sm:%s372] %v381
            %v383 = vld [vmem:[%s379 + $0x18] sm:%s372]
            %384 = vst [vmem:[%s380 + $0x18] sm:%s372] %v383
            %v385 = vld [vmem:[%s379 + $0x30] sm:%s372]
            %386 = vst [vmem:[%s380 + $0x30] sm:%s372] %v385
            %v387 = vld [vmem:[%s379 + $0x48] sm:%s372]
            %388 = vst [vmem:[%s380 + $0x48] sm:%s372] %v387
            %v389 = vld [vmem:[%s379 + $0x60] sm:%s372]
            %390 = vst [vmem:[%s380 + $0x60] sm:%s372] %v389
            %v391 = vld [vmem:[%s379 + $0x78] sm:%s372]
            %392 = vst [vmem:[%s380 + $0x78] sm:%s372] %v391
            %v393 = vld [vmem:[%s379 + $0x90] sm:%s372]
            %394 = vst [vmem:[%s380 + $0x90] sm:%s372] %v393
            %v395 = vld [vmem:[%s379 + $0xa8] sm:%s372]
            %396 = vst [vmem:[%s380 + $0xa8] sm:%s372] %v395
            %v397 = vld [vmem:[%s379 + $0xc0] sm:%s372]
            %398 = vst [vmem:[%s380 + $0xc0] sm:%s372] %v397
            %v399 = vld [vmem:[%s379 + $0xd8] sm:%s372]
            %400 = vst [vmem:[%s380 + $0xd8] sm:%s372] %v399
            %v401 = vld [vmem:[%s379 + $0xf0] sm:%s372]
            %402 = vst [vmem:[%s380 + $0xf0] sm:%s372] %v401
            %v403 = vld [vmem:[%s379 + $0x108] sm:%s372]
            %404 = vst [vmem:[%s380 + $0x108] sm:%s372] %v403
          $region75: #{double_conv_forward.1} parent=62 // loop_footer
            %s378 = sadd.s32 1, %s374
          $region76: #{double_conv_forward.1} parent=62 // loop_footer_branch
            %373 = sbr.rel target = $region72
          $region77: #{double_conv_forward.1} parent=62 // loop_exit
            _
        $region63: #{double_conv_forward.1} parent=47 // pred_fallthru
          _
      $region48: #{double_conv_forward.1} parent=43 // pred_fallthru
        _
      // Predicated region
      $region49: #{double_conv_forward.1} parent=43 // pred_check
        %p268 = pneg %p264
      $region50: #{double_conv_forward.1} parent=43 // pred_check_branch
        %270 = sbr.rel (%p268) target = $region52
      $region51: #{double_conv_forward.1} parent=43 // pred_region
        %s271 = sshll.u32 1, 20
        %s272 = ssub.s32 %s271, 1
        loop: start=0, step=1, limit=1
        $region53: #{double_conv_forward.1} parent=51 // loop_pre_header
          _
        $region54: #{double_conv_forward.1} parent=51 // loop_header
          %s274 = sphi 0, %s278
          %p275 = scmp.ge.s32.totalorder %s274, 1
          %s279 = sphi %s262, %s262
          %s280 = sphi [#allocation2], [#allocation2]
        $region55: #{double_conv_forward.1} parent=51 // loop_header_branch
          %277 = sbr.rel (%p275) target = $region59
        $region56: #{double_conv_forward.1} parent=51 // loop_body
          %v281 = vld [vmem:[%s279] sm:%s272]
          %282 = vst [vmem:[%s280] sm:%s272] %v281
          %v283 = vld [vmem:[%s279 + $0x18] sm:%s272]
          %284 = vst [vmem:[%s280 + $0x18] sm:%s272] %v283
          %v285 = vld [vmem:[%s279 + $0x30] sm:%s272]
          %286 = vst [vmem:[%s280 + $0x30] sm:%s272] %v285
          %v287 = vld [vmem:[%s279 + $0x48] sm:%s272]
          %288 = vst [vmem:[%s280 + $0x48] sm:%s272] %v287
          %v289 = vld [vmem:[%s279 + $0x60] sm:%s272]
          %290 = vst [vmem:[%s280 + $0x60] sm:%s272] %v289
          %v291 = vld [vmem:[%s279 + $0x78] sm:%s272]
          %292 = vst [vmem:[%s280 + $0x78] sm:%s272] %v291
          %v293 = vld [vmem:[%s279 + $0x90] sm:%s272]
          %294 = vst [vmem:[%s280 + $0x90] sm:%s272] %v293
          %v295 = vld [vmem:[%s279 + $0xa8] sm:%s272]
          %296 = vst [vmem:[%s280 + $0xa8] sm:%s272] %v295
          %v297 = vld [vmem:[%s279 + $0xc0] sm:%s272]
          %298 = vst [vmem:[%s280 + $0xc0] sm:%s272] %v297
          %v299 = vld [vmem:[%s279 + $0xd8] sm:%s272]
          %300 = vst [vmem:[%s280 + $0xd8] sm:%s272] %v299
          %v301 = vld [vmem:[%s279 + $0xf0] sm:%s272]
          %302 = vst [vmem:[%s280 + $0xf0] sm:%s272] %v301
          %v303 = vld [vmem:[%s279 + $0x108] sm:%s272]
          %304 = vst [vmem:[%s280 + $0x108] sm:%s272] %v303
        $region57: #{double_conv_forward.1} parent=51 // loop_footer
          %s278 = sadd.s32 1, %s274
        $region58: #{double_conv_forward.1} parent=51 // loop_footer_branch
          %273 = sbr.rel target = $region54
        $region59: #{double_conv_forward.1} parent=51 // loop_exit
          _
      $region52: #{double_conv_forward.1} parent=43 // pred_fallthru
        _
      // Predicated region
      $region78: #{double_conv_forward.1} parent=43 // pred_check
        _
      $region79: #{double_conv_forward.1} parent=43 // pred_check_branch
        %407 = sbr.rel (0) target = $region81
      $region80: #{double_conv_forward.1} parent=43 // pred_region
        %408 = vsyncadd [#allocation3], 3840
      $region81: #{double_conv_forward.1} parent=43 // pred_fallthru
        _
      %s409 = smul.u32 1, 12
      %s410 = smul.u32 %s409, 20
      %s411 = smul.u32 %s410, 1
      %s412 = sshll.u32 %s411, 4
      %413 = dma.done [#allocation3], %s412
      %v414 = vld [vmem:[%s1] sm:$0xff]
      %v415 = vld [vmem:[%s1 + $0x8] sm:$0xff]
      %v416 = vld [vmem:[%s1 + $0x10] sm:$0xff]
      %v417 = vld [vmem:[%s1 + $0x18] sm:$0xff]
      %v418 = vld [vmem:[%s1 + $0x20] sm:$0xff]
      %v419 = vld [vmem:[%s1 + $0x28] sm:$0xff]
      %v420 = vld [vmem:[%s1 + $0x30] sm:$0xff]
      %v421 = vld [vmem:[%s1 + $0x38] sm:$0xff]
      %v422 = vld [vmem:[%s1 + $0x40] sm:$0xff]
      %v423 = vld [vmem:[%s1 + $0x48] sm:$0xff]
      %v424 = vld [vmem:[%s1 + $0x50] sm:$0xff]
      %v425 = vld [vmem:[%s1 + $0x58] sm:$0xff]
      %v426 = vld [vmem:[%s1 + $0x60] sm:$0xff]
      %v427 = vld [vmem:[%s1 + $0x68] sm:$0xff]
      %v428 = vld [vmem:[%s1 + $0x70] sm:$0xff]
      %v429 = vld [vmem:[%s1 + $0x78] sm:$0xff]
      %v430 = vld [vmem:[%s1 + $0x80] sm:$0xff]
      %v431 = vld [vmem:[%s1 + $0x88] sm:$0xff]
      %v432 = vld [vmem:[%s1 + $0x90] sm:$0xff]
      %v433 = vld [vmem:[%s1 + $0x98] sm:$0xff]
      %v434 = vld [vmem:[%s1 + $0xa0] sm:$0xff]
      %v435 = vld [vmem:[%s1 + $0xa8] sm:$0xff]
      %v436 = vld [vmem:[%s1 + $0xb0] sm:$0xff]
      %v437 = vld [vmem:[%s1 + $0xb8] sm:$0xff]
      %v438 = vld [vmem:[%s1 + $0xc0] sm:$0xff]
      %v439 = vld [vmem:[%s1 + $0xc8] sm:$0xff]
      %v440 = vld [vmem:[%s1 + $0xd0] sm:$0xff]
      %v441 = vld [vmem:[%s1 + $0xd8] sm:$0xff]
      %v442 = vld [vmem:[%s1 + $0xe0] sm:$0xff]
      %v443 = vld [vmem:[%s1 + $0xe8] sm:$0xff]
      %v444 = vld [vmem:[%s1 + $0xf0] sm:$0xff]
      %v445 = vld [vmem:[%s1 + $0xf8] sm:$0xff]
      %v446 = vld [vmem:[%s1 + $0x100] sm:$0xff]
      %v447 = vld [vmem:[%s1 + $0x108] sm:$0xff]
      %v448 = vld [vmem:[%s1 + $0x110] sm:$0xff]
      %v449 = vld [vmem:[%s1 + $0x118] sm:$0xff]
      %v450 = vld [vmem:[%s1 + $0x120] sm:$0xff]
      %v451 = vld [vmem:[%s1 + $0x128] sm:$0xff]
      %v452 = vld [vmem:[%s1 + $0x130] sm:$0xff]
      %v453 = vld [vmem:[%s1 + $0x138] sm:$0xff]
      %v454 = vld [vmem:[%s1 + $0x140] sm:$0xff]
      %v455 = vld [vmem:[%s1 + $0x148] sm:$0xff]
      %v456 = vld [vmem:[%s1 + $0x150] sm:$0xff]
      %v457 = vld [vmem:[%s1 + $0x158] sm:$0xff]
      %v458 = vld [vmem:[%s1 + $0x160] sm:$0xff]
      %v459 = vld [vmem:[%s1 + $0x168] sm:$0xff]
      %v460 = vld [vmem:[%s1 + $0x170] sm:$0xff]
      %v461 = vld [vmem:[%s1 + $0x178] sm:$0xff]
      %v462 = vld [vmem:[%s1 + $0x180] sm:$0xff]
      %v463 = vld [vmem:[%s1 + $0x188] sm:$0xff]
      %v464 = vld [vmem:[%s1 + $0x190] sm:$0xff]
      %v465 = vld [vmem:[%s1 + $0x198] sm:$0xff]
      %v466 = vld [vmem:[%s1 + $0x1a0] sm:$0xff]
      %v467 = vld [vmem:[%s1 + $0x1a8] sm:$0xff]
      %v468 = vld [vmem:[%s1 + $0x1b0] sm:$0xff]
      %v469 = vld [vmem:[%s1 + $0x1b8] sm:$0xff]
      %v470 = vld [vmem:[%s1 + $0x1c0] sm:$0xff]
      %v471 = vld [vmem:[%s1 + $0x1c8] sm:$0xff]
      %v472 = vld [vmem:[%s1 + $0x1d0] sm:$0xff]
      %v473 = vld [vmem:[%s1 + $0x1d8] sm:$0xff]
      %v474 = vld [vmem:[%s1 + $0x1e0] sm:$0xff]
      %v475 = vld [vmem:[%s1 + $0x1e8] sm:$0xff]
      %v476 = vld [vmem:[%s1 + $0x1f0] sm:$0xff]
      %v477 = vld [vmem:[%s1 + $0x1f8] sm:$0xff]
      %v478 = vld [vmem:[%s1 + $0x200] sm:$0xff]
      %v479 = vld [vmem:[%s1 + $0x208] sm:$0xff]
      %v480 = vld [vmem:[%s1 + $0x210] sm:$0xff]
      %v481 = vld [vmem:[%s1 + $0x218] sm:$0xff]
      %v482 = vld [vmem:[%s1 + $0x220] sm:$0xff]
      %v483 = vld [vmem:[%s1 + $0x228] sm:$0xff]
      %v484 = vld [vmem:[%s1 + $0x230] sm:$0xff]
      %v485 = vld [vmem:[%s1 + $0x238] sm:$0xff]
      %v486 = vld [vmem:[%s1 + $0x240] sm:$0xff]
      %v487 = vld [vmem:[%s1 + $0x248] sm:$0xff]
      %v488 = vld [vmem:[%s1 + $0x250] sm:$0xff]
      %v489 = vld [vmem:[%s1 + $0x258] sm:$0xff]
      %v490 = vld [vmem:[%s1 + $0x260] sm:$0xff]
      %v491 = vld [vmem:[%s1 + $0x268] sm:$0xff]
      %v492 = vld [vmem:[%s1 + $0x270] sm:$0xff]
      %v493 = vld [vmem:[%s1 + $0x278] sm:$0xff]
      %v494 = vld [vmem:[%s1 + $0x280] sm:$0xff]
      %v495 = vld [vmem:[%s1 + $0x288] sm:$0xff]
      %v496 = vld [vmem:[%s1 + $0x290] sm:$0xff]
      %v497 = vld [vmem:[%s1 + $0x298] sm:$0xff]
      %v498 = vld [vmem:[%s1 + $0x2a0] sm:$0xff]
      %v499 = vld [vmem:[%s1 + $0x2a8] sm:$0xff]
      %v500 = vld [vmem:[%s1 + $0x2b0] sm:$0xff]
      %v501 = vld [vmem:[%s1 + $0x2b8] sm:$0xff]
      %v502 = vld [vmem:[%s1 + $0x2c0] sm:$0xff]
      %v503 = vld [vmem:[%s1 + $0x2c8] sm:$0xff]
      %v504 = vld [vmem:[%s1 + $0x2d0] sm:$0xff]
      %v505 = vld [vmem:[%s1 + $0x2d8] sm:$0xff]
      %v506 = vld [vmem:[%s1 + $0x2e0] sm:$0xff]
      %v507 = vld [vmem:[%s1 + $0x2e8] sm:$0xff]
      %v508 = vld [vmem:[%s1 + $0x2f0] sm:$0xff]
      %v509 = vld [vmem:[%s1 + $0x2f8] sm:$0xff]
      %v510 = vld [vmem:[%s1 + $0x300] sm:$0xff]
      %v511 = vld [vmem:[%s1 + $0x308] sm:$0xff]
      %v512 = vld [vmem:[%s1 + $0x310] sm:$0xff]
      %v513 = vld [vmem:[%s1 + $0x318] sm:$0xff]
      %v514 = vld [vmem:[%s1 + $0x320] sm:$0xff]
      %v515 = vld [vmem:[%s1 + $0x328] sm:$0xff]
      %v516 = vld [vmem:[%s1 + $0x330] sm:$0xff]
      %v517 = vld [vmem:[%s1 + $0x338] sm:$0xff]
      %v518 = vld [vmem:[%s1 + $0x340] sm:$0xff]
      %v519 = vld [vmem:[%s1 + $0x348] sm:$0xff]
      %v520 = vld [vmem:[%s1 + $0x350] sm:$0xff]
      %v521 = vld [vmem:[%s1 + $0x358] sm:$0xff]
      %v522 = vld [vmem:[%s1 + $0x360] sm:$0xff]
      %v523 = vld [vmem:[%s1 + $0x368] sm:$0xff]
      %v524 = vld [vmem:[%s1 + $0x370] sm:$0xff]
      %v525 = vld [vmem:[%s1 + $0x378] sm:$0xff]
      %v526 = vld [vmem:[%s1 + $0x380] sm:$0xff]
      %v527 = vld [vmem:[%s1 + $0x388] sm:$0xff]
      %v528 = vld [vmem:[%s1 + $0x390] sm:$0xff]
      %v529 = vld [vmem:[%s1 + $0x398] sm:$0xff]
      %v530 = vld [vmem:[%s1 + $0x3a0] sm:$0xff]
      %v531 = vld [vmem:[%s1 + $0x3a8] sm:$0xff]
      %v532 = vld [vmem:[%s1 + $0x3b0] sm:$0xff]
      %v533 = vld [vmem:[%s1 + $0x3b8] sm:$0xff]
      %v534 = vld [vmem:[%s1 + $0x3c0] sm:$0xff]
      %v535 = vld [vmem:[%s1 + $0x3c8] sm:$0xff]
      %v536 = vld [vmem:[%s1 + $0x3d0] sm:$0xff]
      %v537 = vld [vmem:[%s1 + $0x3d8] sm:$0xff]
      %v538 = vld [vmem:[%s1 + $0x3e0] sm:$0xff]
      %v539 = vld [vmem:[%s1 + $0x3e8] sm:$0xff]
      %v540 = vld [vmem:[%s1 + $0x3f0] sm:$0xff]
      %v541 = vld [vmem:[%s1 + $0x3f8] sm:$0xff]
      %v542 = vld [vmem:[%s1 + $0x400] sm:$0xff]
      %v543 = vld [vmem:[%s1 + $0x408] sm:$0xff]
      %v544 = vld [vmem:[%s1 + $0x410] sm:$0xff]
      %v545 = vld [vmem:[%s1 + $0x418] sm:$0xff]
      %v546 = vld [vmem:[%s1 + $0x420] sm:$0xff]
      %v547 = vld [vmem:[%s1 + $0x428] sm:$0xff]
      %v548 = vld [vmem:[%s1 + $0x430] sm:$0xff]
      %v549 = vld [vmem:[%s1 + $0x438] sm:$0xff]
      %v550 = vld [vmem:[%s1 + $0x440] sm:$0xff]
      %v551 = vld [vmem:[%s1 + $0x448] sm:$0xff]
      %v552 = vld [vmem:[%s1 + $0x450] sm:$0xff]
      %v553 = vld [vmem:[%s1 + $0x458] sm:$0xff]
      %v554 = vld [vmem:[%s1 + $0x460] sm:$0xff]
      %v555 = vld [vmem:[%s1 + $0x468] sm:$0xff]
      %v556 = vld [vmem:[%s1 + $0x470] sm:$0xff]
      %v557 = vld [vmem:[%s1 + $0x478] sm:$0xff]
      %v558 = vld [vmem:[#allocation2] sm:$0xff]
      %v559 = vld [vmem:[#allocation2 + $0x8] sm:$0xff]
      %v560 = vld [vmem:[#allocation2 + $0x10] sm:$0x3]
      %v561 = vld [vmem:[#allocation2 + $0x18] sm:$0xff]
      %v562 = vld [vmem:[#allocation2 + $0x20] sm:$0xff]
      %v563 = vld [vmem:[#allocation2 + $0x28] sm:$0x3]
      %v564 = vld [vmem:[#allocation2 + $0x30] sm:$0xff]
      %v565 = vld [vmem:[#allocation2 + $0x38] sm:$0xff]
      %v566 = vld [vmem:[#allocation2 + $0x40] sm:$0x3]
      %v567 = vld [vmem:[#allocation2 + $0x48] sm:$0xff]
      %v568 = vld [vmem:[#allocation2 + $0x50] sm:$0xff]
      %v569 = vld [vmem:[#allocation2 + $0x58] sm:$0x3]
      %v570 = vld [vmem:[#allocation2 + $0x60] sm:$0xff]
      %v571 = vld [vmem:[#allocation2 + $0x68] sm:$0xff]
      %v572 = vld [vmem:[#allocation2 + $0x70] sm:$0x3]
      %v573 = vld [vmem:[#allocation2 + $0x78] sm:$0xff]
      %v574 = vld [vmem:[#allocation2 + $0x80] sm:$0xff]
      %v575 = vld [vmem:[#allocation2 + $0x88] sm:$0x3]
      %v576 = vld [vmem:[#allocation2 + $0x90] sm:$0xff]
      %v577 = vld [vmem:[#allocation2 + $0x98] sm:$0xff]
      %v578 = vld [vmem:[#allocation2 + $0xa0] sm:$0x3]
      %v579 = vld [vmem:[#allocation2 + $0xa8] sm:$0xff]
      %v580 = vld [vmem:[#allocation2 + $0xb0] sm:$0xff]
      %v581 = vld [vmem:[#allocation2 + $0xb8] sm:$0x3]
      %v582 = vld [vmem:[#allocation2 + $0xc0] sm:$0xff]
      %v583 = vld [vmem:[#allocation2 + $0xc8] sm:$0xff]
      %v584 = vld [vmem:[#allocation2 + $0xd0] sm:$0x3]
      %v585 = vld [vmem:[#allocation2 + $0xd8] sm:$0xff]
      %v586 = vld [vmem:[#allocation2 + $0xe0] sm:$0xff]
      %v587 = vld [vmem:[#allocation2 + $0xe8] sm:$0x3]
      %v618 = vcombine.high %v558, %v558
      %v620 = vunpack.c.l.s4 1983009808
      %v621 = vunpack.c.0.s8 %v620
      %v622 = vlaneseq
      %v623 = vshrl.u32 %v622, 7
      %v624 = vsub.s32 %v621, %v623
      %v625 = vrot.slane %v558, %v624
      %v627 = vunpack.c.l.s4 1983009808
      %v628 = vunpack.c.0.s8 %v627
      %v629 = vlaneseq
      %v630 = vshrl.u32 %v629, 7
      %v631 = vsub.s32 %v628, %v630
      %v632 = vrot.slane %v618, %v631
      %v633 = vcombine.high %v625, %v625
      %v634 = vcombine.high %v632, %v632
      %v635 = vcombine.high %v559, %v559
      %v637 = vunpack.c.l.s4 1983009808
      %v638 = vunpack.c.0.s8 %v637
      %v639 = vlaneseq
      %v640 = vshrl.u32 %v639, 7
      %v641 = vsub.s32 %v638, %v640
      %v642 = vrot.slane %v559, %v641
      %v644 = vunpack.c.l.s4 1983009808
      %v645 = vunpack.c.0.s8 %v644
      %v646 = vlaneseq
      %v647 = vshrl.u32 %v646, 7
      %v648 = vsub.s32 %v645, %v647
      %v649 = vrot.slane %v635, %v648
      %v650 = vcombine.high %v642, %v642
      %v651 = vcombine.high %v649, %v649
      %v653 = vunpack.c.l.s4 1983009808
      %v654 = vunpack.c.0.s8 %v653
      %v655 = vlaneseq
      %v656 = vshrl.u32 %v655, 7
      %v657 = vsub.s32 %v654, %v656
      %v658 = vrot.slane %v560, %v657
      %v659 = vcombine.high %v561, %v561
      %v661 = vunpack.c.l.s4 1983009808
      %v662 = vunpack.c.0.s8 %v661
      %v663 = vlaneseq
      %v664 = vshrl.u32 %v663, 7
      %v665 = vsub.s32 %v662, %v664
      %v666 = vrot.slane %v561, %v665
      %v668 = vunpack.c.l.s4 1983009808
      %v669 = vunpack.c.0.s8 %v668
      %v670 = vlaneseq
      %v671 = vshrl.u32 %v670, 7
      %v672 = vsub.s32 %v669, %v671
      %v673 = vrot.slane %v659, %v672
      %v674 = vcombine.high %v666, %v666
      %v675 = vcombine.high %v673, %v673
      %v676 = vcombine.high %v562, %v562
      %v678 = vunpack.c.l.s4 1983009808
      %v679 = vunpack.c.0.s8 %v678
      %v680 = vlaneseq
      %v681 = vshrl.u32 %v680, 7
      %v682 = vsub.s32 %v679, %v681
      %v683 = vrot.slane %v562, %v682
      %v685 = vunpack.c.l.s4 1983009808
      %v686 = vunpack.c.0.s8 %v685
      %v687 = vlaneseq
      %v688 = vshrl.u32 %v687, 7
      %v689 = vsub.s32 %v686, %v688
      %v690 = vrot.slane %v676, %v689
      %v691 = vcombine.high %v683, %v683
      %v692 = vcombine.high %v690, %v690
      %v694 = vunpack.c.l.s4 1983009808
      %v695 = vunpack.c.0.s8 %v694
      %v696 = vlaneseq
      %v697 = vshrl.u32 %v696, 7
      %v698 = vsub.s32 %v695, %v697
      %v699 = vrot.slane %v563, %v698
      %v700 = vcombine.high %v564, %v564
      %v702 = vunpack.c.l.s4 1983009808
      %v703 = vunpack.c.0.s8 %v702
      %v704 = vlaneseq
      %v705 = vshrl.u32 %v704, 7
      %v706 = vsub.s32 %v703, %v705
      %v707 = vrot.slane %v564, %v706
      %v709 = vunpack.c.l.s4 1983009808
      %v710 = vunpack.c.0.s8 %v709
      %v711 = vlaneseq
      %v712 = vshrl.u32 %v711, 7
      %v713 = vsub.s32 %v710, %v712
      %v714 = vrot.slane %v700, %v713
      %v715 = vcombine.high %v707, %v707
      %v716 = vcombine.high %v714, %v714
      %v717 = vcombine.high %v565, %v565
      %v719 = vunpack.c.l.s4 1983009808
      %v720 = vunpack.c.0.s8 %v719
      %v721 = vlaneseq
      %v722 = vshrl.u32 %v721, 7
      %v723 = vsub.s32 %v720, %v722
      %v724 = vrot.slane %v565, %v723
      %v726 = vunpack.c.l.s4 1983009808
      %v727 = vunpack.c.0.s8 %v726
      %v728 = vlaneseq
      %v729 = vshrl.u32 %v728, 7
      %v730 = vsub.s32 %v727, %v729
      %v731 = vrot.slane %v717, %v730
      %v732 = vcombine.high %v724, %v724
      %v733 = vcombine.high %v731, %v731
      %v735 = vunpack.c.l.s4 1983009808
      %v736 = vunpack.c.0.s8 %v735
      %v737 = vlaneseq
      %v738 = vshrl.u32 %v737, 7
      %v739 = vsub.s32 %v736, %v738
      %v740 = vrot.slane %v566, %v739
      %v741 = vcombine.high %v567, %v567
      %v743 = vunpack.c.l.s4 1983009808
      %v744 = vunpack.c.0.s8 %v743
      %v745 = vlaneseq
      %v746 = vshrl.u32 %v745, 7
      %v747 = vsub.s32 %v744, %v746
      %v748 = vrot.slane %v567, %v747
      %v750 = vunpack.c.l.s4 1983009808
      %v751 = vunpack.c.0.s8 %v750
      %v752 = vlaneseq
      %v753 = vshrl.u32 %v752, 7
      %v754 = vsub.s32 %v751, %v753
      %v755 = vrot.slane %v741, %v754
      %v756 = vcombine.high %v748, %v748
      %v757 = vcombine.high %v755, %v755
      %v758 = vcombine.high %v568, %v568
      %v760 = vunpack.c.l.s4 1983009808
      %v761 = vunpack.c.0.s8 %v760
      %v762 = vlaneseq
      %v763 = vshrl.u32 %v762, 7
      %v764 = vsub.s32 %v761, %v763
      %v765 = vrot.slane %v568, %v764
      %v767 = vunpack.c.l.s4 1983009808
      %v768 = vunpack.c.0.s8 %v767
      %v769 = vlaneseq
      %v770 = vshrl.u32 %v769, 7
      %v771 = vsub.s32 %v768, %v770
      %v772 = vrot.slane %v758, %v771
      %v773 = vcombine.high %v765, %v765
      %v774 = vcombine.high %v772, %v772
      %v776 = vunpack.c.l.s4 1983009808
      %v777 = vunpack.c.0.s8 %v776
      %v778 = vlaneseq
      %v779 = vshrl.u32 %v778, 7
      %v780 = vsub.s32 %v777, %v779
      %v781 = vrot.slane %v569, %v780
      %v782 = vcombine.high %v570, %v570
      %v784 = vunpack.c.l.s4 1983009808
      %v785 = vunpack.c.0.s8 %v784
      %v786 = vlaneseq
      %v787 = vshrl.u32 %v786, 7
      %v788 = vsub.s32 %v785, %v787
      %v789 = vrot.slane %v570, %v788
      %v791 = vunpack.c.l.s4 1983009808
      %v792 = vunpack.c.0.s8 %v791
      %v793 = vlaneseq
      %v794 = vshrl.u32 %v793, 7
      %v795 = vsub.s32 %v792, %v794
      %v796 = vrot.slane %v782, %v795
      %v797 = vcombine.high %v789, %v789
      %v798 = vcombine.high %v796, %v796
      %v799 = vcombine.high %v571, %v571
      %v801 = vunpack.c.l.s4 1983009808
      %v802 = vunpack.c.0.s8 %v801
      %v803 = vlaneseq
      %v804 = vshrl.u32 %v803, 7
      %v805 = vsub.s32 %v802, %v804
      %v806 = vrot.slane %v571, %v805
      %v808 = vunpack.c.l.s4 1983009808
      %v809 = vunpack.c.0.s8 %v808
      %v810 = vlaneseq
      %v811 = vshrl.u32 %v810, 7
      %v812 = vsub.s32 %v809, %v811
      %v813 = vrot.slane %v799, %v812
      %v814 = vcombine.high %v806, %v806
      %v815 = vcombine.high %v813, %v813
      %v817 = vunpack.c.l.s4 1983009808
      %v818 = vunpack.c.0.s8 %v817
      %v819 = vlaneseq
      %v820 = vshrl.u32 %v819, 7
      %v821 = vsub.s32 %v818, %v820
      %v822 = vrot.slane %v572, %v821
      %v823 = vcombine.high %v573, %v573
      %v825 = vunpack.c.l.s4 1983009808
      %v826 = vunpack.c.0.s8 %v825
      %v827 = vlaneseq
      %v828 = vshrl.u32 %v827, 7
      %v829 = vsub.s32 %v826, %v828
      %v830 = vrot.slane %v573, %v829
      %v832 = vunpack.c.l.s4 1983009808
      %v833 = vunpack.c.0.s8 %v832
      %v834 = vlaneseq
      %v835 = vshrl.u32 %v834, 7
      %v836 = vsub.s32 %v833, %v835
      %v837 = vrot.slane %v823, %v836
      %v838 = vcombine.high %v830, %v830
      %v839 = vcombine.high %v837, %v837
      %v840 = vcombine.high %v574, %v574
      %v842 = vunpack.c.l.s4 1983009808
      %v843 = vunpack.c.0.s8 %v842
      %v844 = vlaneseq
      %v845 = vshrl.u32 %v844, 7
      %v846 = vsub.s32 %v843, %v845
      %v847 = vrot.slane %v574, %v846
      %v849 = vunpack.c.l.s4 1983009808
      %v850 = vunpack.c.0.s8 %v849
      %v851 = vlaneseq
      %v852 = vshrl.u32 %v851, 7
      %v853 = vsub.s32 %v850, %v852
      %v854 = vrot.slane %v840, %v853
      %v855 = vcombine.high %v847, %v847
      %v856 = vcombine.high %v854, %v854
      %v858 = vunpack.c.l.s4 1983009808
      %v859 = vunpack.c.0.s8 %v858
      %v860 = vlaneseq
      %v861 = vshrl.u32 %v860, 7
      %v862 = vsub.s32 %v859, %v861
      %v863 = vrot.slane %v575, %v862
      %v864 = vcombine.high %v576, %v576
      %v866 = vunpack.c.l.s4 1983009808
      %v867 = vunpack.c.0.s8 %v866
      %v868 = vlaneseq
      %v869 = vshrl.u32 %v868, 7
      %v870 = vsub.s32 %v867, %v869
      %v871 = vrot.slane %v576, %v870
      %v873 = vunpack.c.l.s4 1983009808
      %v874 = vunpack.c.0.s8 %v873
      %v875 = vlaneseq
      %v876 = vshrl.u32 %v875, 7
      %v877 = vsub.s32 %v874, %v876
      %v878 = vrot.slane %v864, %v877
      %v879 = vcombine.high %v871, %v871
      %v880 = vcombine.high %v878, %v878
      %v881 = vcombine.high %v577, %v577
      %v883 = vunpack.c.l.s4 1983009808
      %v884 = vunpack.c.0.s8 %v883
      %v885 = vlaneseq
      %v886 = vshrl.u32 %v885, 7
      %v887 = vsub.s32 %v884, %v886
      %v888 = vrot.slane %v577, %v887
      %v890 = vunpack.c.l.s4 1983009808
      %v891 = vunpack.c.0.s8 %v890
      %v892 = vlaneseq
      %v893 = vshrl.u32 %v892, 7
      %v894 = vsub.s32 %v891, %v893
      %v895 = vrot.slane %v881, %v894
      %v896 = vcombine.high %v888, %v888
      %v897 = vcombine.high %v895, %v895
      %v899 = vunpack.c.l.s4 1983009808
      %v900 = vunpack.c.0.s8 %v899
      %v901 = vlaneseq
      %v902 = vshrl.u32 %v901, 7
      %v903 = vsub.s32 %v900, %v902
      %v904 = vrot.slane %v578, %v903
      %v905 = vcombine.high %v579, %v579
      %v907 = vunpack.c.l.s4 1983009808
      %v908 = vunpack.c.0.s8 %v907
      %v909 = vlaneseq
      %v910 = vshrl.u32 %v909, 7
      %v911 = vsub.s32 %v908, %v910
      %v912 = vrot.slane %v579, %v911
      %v914 = vunpack.c.l.s4 1983009808
      %v915 = vunpack.c.0.s8 %v914
      %v916 = vlaneseq
      %v917 = vshrl.u32 %v916, 7
      %v918 = vsub.s32 %v915, %v917
      %v919 = vrot.slane %v905, %v918
      %v920 = vcombine.high %v912, %v912
      %v921 = vcombine.high %v919, %v919
      %v922 = vcombine.high %v580, %v580
      %v924 = vunpack.c.l.s4 1983009808
      %v925 = vunpack.c.0.s8 %v924
      %v926 = vlaneseq
      %v927 = vshrl.u32 %v926, 7
      %v928 = vsub.s32 %v925, %v927
      %v929 = vrot.slane %v580, %v928
      %v931 = vunpack.c.l.s4 1983009808
      %v932 = vunpack.c.0.s8 %v931
      %v933 = vlaneseq
      %v934 = vshrl.u32 %v933, 7
      %v935 = vsub.s32 %v932, %v934
      %v936 = vrot.slane %v922, %v935
      %v937 = vcombine.high %v929, %v929
      %v938 = vcombine.high %v936, %v936
      %v940 = vunpack.c.l.s4 1983009808
      %v941 = vunpack.c.0.s8 %v940
      %v942 = vlaneseq
      %v943 = vshrl.u32 %v942, 7
      %v944 = vsub.s32 %v941, %v943
      %v945 = vrot.slane %v581, %v944
      %v946 = vcombine.high %v582, %v582
      %v948 = vunpack.c.l.s4 1983009808
      %v949 = vunpack.c.0.s8 %v948
      %v950 = vlaneseq
      %v951 = vshrl.u32 %v950, 7
      %v952 = vsub.s32 %v949, %v951
      %v953 = vrot.slane %v582, %v952
      %v955 = vunpack.c.l.s4 1983009808
      %v956 = vunpack.c.0.s8 %v955
      %v957 = vlaneseq
      %v958 = vshrl.u32 %v957, 7
      %v959 = vsub.s32 %v956, %v958
      %v960 = vrot.slane %v946, %v959
      %v961 = vcombine.high %v953, %v953
      %v962 = vcombine.high %v960, %v960
      %v963 = vcombine.high %v583, %v583
      %v965 = vunpack.c.l.s4 1983009808
      %v966 = vunpack.c.0.s8 %v965
      %v967 = vlaneseq
      %v968 = vshrl.u32 %v967, 7
      %v969 = vsub.s32 %v966, %v968
      %v970 = vrot.slane %v583, %v969
      %v972 = vunpack.c.l.s4 1983009808
      %v973 = vunpack.c.0.s8 %v972
      %v974 = vlaneseq
      %v975 = vshrl.u32 %v974, 7
      %v976 = vsub.s32 %v973, %v975
      %v977 = vrot.slane %v963, %v976
      %v978 = vcombine.high %v970, %v970
      %v979 = vcombine.high %v977, %v977
      %v981 = vunpack.c.l.s4 1983009808
      %v982 = vunpack.c.0.s8 %v981
      %v983 = vlaneseq
      %v984 = vshrl.u32 %v983, 7
      %v985 = vsub.s32 %v982, %v984
      %v986 = vrot.slane %v584, %v985
      %v987 = vcombine.high %v585, %v585
      %v989 = vunpack.c.l.s4 1983009808
      %v990 = vunpack.c.0.s8 %v989
      %v991 = vlaneseq
      %v992 = vshrl.u32 %v991, 7
      %v993 = vsub.s32 %v990, %v992
      %v994 = vrot.slane %v585, %v993
      %v996 = vunpack.c.l.s4 1983009808
      %v997 = vunpack.c.0.s8 %v996
      %v998 = vlaneseq
      %v999 = vshrl.u32 %v998, 7
      %v1000 = vsub.s32 %v997, %v999
      %v1001 = vrot.slane %v987, %v1000
      %v1002 = vcombine.high %v994, %v994
      %v1003 = vcombine.high %v1001, %v1001
      %v1004 = vcombine.high %v586, %v586
      %v1006 = vunpack.c.l.s4 1983009808
      %v1007 = vunpack.c.0.s8 %v1006
      %v1008 = vlaneseq
      %v1009 = vshrl.u32 %v1008, 7
      %v1010 = vsub.s32 %v1007, %v1009
      %v1011 = vrot.slane %v586, %v1010
      %v1013 = vunpack.c.l.s4 1983009808
      %v1014 = vunpack.c.0.s8 %v1013
      %v1015 = vlaneseq
      %v1016 = vshrl.u32 %v1015, 7
      %v1017 = vsub.s32 %v1014, %v1016
      %v1018 = vrot.slane %v1004, %v1017
      %v1019 = vcombine.high %v1011, %v1011
      %v1020 = vcombine.high %v1018, %v1018
      %v1022 = vunpack.c.l.s4 1983009808
      %v1023 = vunpack.c.0.s8 %v1022
      %v1024 = vlaneseq
      %v1025 = vshrl.u32 %v1024, 7
      %v1026 = vsub.s32 %v1023, %v1025
      %v1027 = vrot.slane %v587, %v1026
      %v1028 = vld [vmem:[#allocation2 + $0x1] sm:$0xff]
      %v1029 = vld [vmem:[#allocation2 + $0x9] sm:$0xff]
      %v1030 = vld [vmem:[#allocation2 + $0x11] sm:$0x3]
      %v1031 = vld [vmem:[#allocation2 + $0x19] sm:$0xff]
      %v1032 = vld [vmem:[#allocation2 + $0x21] sm:$0xff]
      %v1033 = vld [vmem:[#allocation2 + $0x29] sm:$0x3]
      %v1034 = vld [vmem:[#allocation2 + $0x31] sm:$0xff]
      %v1035 = vld [vmem:[#allocation2 + $0x39] sm:$0xff]
      %v1036 = vld [vmem:[#allocation2 + $0x41] sm:$0x3]
      %v1037 = vld [vmem:[#allocation2 + $0x49] sm:$0xff]
      %v1038 = vld [vmem:[#allocation2 + $0x51] sm:$0xff]
      %v1039 = vld [vmem:[#allocation2 + $0x59] sm:$0x3]
      %v1040 = vld [vmem:[#allocation2 + $0x61] sm:$0xff]
      %v1041 = vld [vmem:[#allocation2 + $0x69] sm:$0xff]
      %v1042 = vld [vmem:[#allocation2 + $0x71] sm:$0x3]
      %v1043 = vld [vmem:[#allocation2 + $0x79] sm:$0xff]
      %v1044 = vld [vmem:[#allocation2 + $0x81] sm:$0xff]
      %v1045 = vld [vmem:[#allocation2 + $0x89] sm:$0x3]
      %v1046 = vld [vmem:[#allocation2 + $0x91] sm:$0xff]
      %v1047 = vld [vmem:[#allocation2 + $0x99] sm:$0xff]
      %v1048 = vld [vmem:[#allocation2 + $0xa1] sm:$0x3]
      %v1049 = vld [vmem:[#allocation2 + $0xa9] sm:$0xff]
      %v1050 = vld [vmem:[#allocation2 + $0xb1] sm:$0xff]
      %v1051 = vld [vmem:[#allocation2 + $0xb9] sm:$0x3]
      %v1052 = vld [vmem:[#allocation2 + $0xc1] sm:$0xff]
      %v1053 = vld [vmem:[#allocation2 + $0xc9] sm:$0xff]
      %v1054 = vld [vmem:[#allocation2 + $0xd1] sm:$0x3]
      %v1055 = vld [vmem:[#allocation2 + $0xd9] sm:$0xff]
      %v1056 = vld [vmem:[#allocation2 + $0xe1] sm:$0xff]
      %v1057 = vld [vmem:[#allocation2 + $0xe9] sm:$0x3]
      %v1088 = vcombine.high %v1028, %v1028
      %v1090 = vunpack.c.l.s4 1983009808
      %v1091 = vunpack.c.0.s8 %v1090
      %v1092 = vlaneseq
      %v1093 = vshrl.u32 %v1092, 7
      %v1094 = vsub.s32 %v1091, %v1093
      %v1095 = vrot.slane %v1028, %v1094
      %v1097 = vunpack.c.l.s4 1983009808
      %v1098 = vunpack.c.0.s8 %v1097
      %v1099 = vlaneseq
      %v1100 = vshrl.u32 %v1099, 7
      %v1101 = vsub.s32 %v1098, %v1100
      %v1102 = vrot.slane %v1088, %v1101
      %v1103 = vcombine.high %v1095, %v1095
      %v1104 = vcombine.high %v1102, %v1102
      %v1105 = vcombine.high %v1029, %v1029
      %v1107 = vunpack.c.l.s4 1983009808
      %v1108 = vunpack.c.0.s8 %v1107
      %v1109 = vlaneseq
      %v1110 = vshrl.u32 %v1109, 7
      %v1111 = vsub.s32 %v1108, %v1110
      %v1112 = vrot.slane %v1029, %v1111
      %v1114 = vunpack.c.l.s4 1983009808
      %v1115 = vunpack.c.0.s8 %v1114
      %v1116 = vlaneseq
      %v1117 = vshrl.u32 %v1116, 7
      %v1118 = vsub.s32 %v1115, %v1117
      %v1119 = vrot.slane %v1105, %v1118
      %v1120 = vcombine.high %v1112, %v1112
      %v1121 = vcombine.high %v1119, %v1119
      %v1123 = vunpack.c.l.s4 1983009808
      %v1124 = vunpack.c.0.s8 %v1123
      %v1125 = vlaneseq
      %v1126 = vshrl.u32 %v1125, 7
      %v1127 = vsub.s32 %v1124, %v1126
      %v1128 = vrot.slane %v1030, %v1127
      %v1129 = vcombine.high %v1031, %v1031
      %v1131 = vunpack.c.l.s4 1983009808
      %v1132 = vunpack.c.0.s8 %v1131
      %v1133 = vlaneseq
      %v1134 = vshrl.u32 %v1133, 7
      %v1135 = vsub.s32 %v1132, %v1134
      %v1136 = vrot.slane %v1031, %v1135
      %v1138 = vunpack.c.l.s4 1983009808
      %v1139 = vunpack.c.0.s8 %v1138
      %v1140 = vlaneseq
      %v1141 = vshrl.u32 %v1140, 7
      %v1142 = vsub.s32 %v1139, %v1141
      %v1143 = vrot.slane %v1129, %v1142
      %v1144 = vcombine.high %v1136, %v1136
      %v1145 = vcombine.high %v1143, %v1143
      %v1146 = vcombine.high %v1032, %v1032
      %v1148 = vunpack.c.l.s4 1983009808
      %v1149 = vunpack.c.0.s8 %v1148
      %v1150 = vlaneseq
      %v1151 = vshrl.u32 %v1150, 7
      %v1152 = vsub.s32 %v1149, %v1151
      %v1153 = vrot.slane %v1032, %v1152
      %v1155 = vunpack.c.l.s4 1983009808
      %v1156 = vunpack.c.0.s8 %v1155
      %v1157 = vlaneseq
      %v1158 = vshrl.u32 %v1157, 7
      %v1159 = vsub.s32 %v1156, %v1158
      %v1160 = vrot.slane %v1146, %v1159
      %v1161 = vcombine.high %v1153, %v1153
      %v1162 = vcombine.high %v1160, %v1160
      %v1164 = vunpack.c.l.s4 1983009808
      %v1165 = vunpack.c.0.s8 %v1164
      %v1166 = vlaneseq
      %v1167 = vshrl.u32 %v1166, 7
      %v1168 = vsub.s32 %v1165, %v1167
      %v1169 = vrot.slane %v1033, %v1168
      %v1170 = vcombine.high %v1034, %v1034
      %v1172 = vunpack.c.l.s4 1983009808
      %v1173 = vunpack.c.0.s8 %v1172
      %v1174 = vlaneseq
      %v1175 = vshrl.u32 %v1174, 7
      %v1176 = vsub.s32 %v1173, %v1175
      %v1177 = vrot.slane %v1034, %v1176
      %v1179 = vunpack.c.l.s4 1983009808
      %v1180 = vunpack.c.0.s8 %v1179
      %v1181 = vlaneseq
      %v1182 = vshrl.u32 %v1181, 7
      %v1183 = vsub.s32 %v1180, %v1182
      %v1184 = vrot.slane %v1170, %v1183
      %v1185 = vcombine.high %v1177, %v1177
      %v1186 = vcombine.high %v1184, %v1184
      %v1187 = vcombine.high %v1035, %v1035
      %v1189 = vunpack.c.l.s4 1983009808
      %v1190 = vunpack.c.0.s8 %v1189
      %v1191 = vlaneseq
      %v1192 = vshrl.u32 %v1191, 7
      %v1193 = vsub.s32 %v1190, %v1192
      %v1194 = vrot.slane %v1035, %v1193
      %v1196 = vunpack.c.l.s4 1983009808
      %v1197 = vunpack.c.0.s8 %v1196
      %v1198 = vlaneseq
      %v1199 = vshrl.u32 %v1198, 7
      %v1200 = vsub.s32 %v1197, %v1199
      %v1201 = vrot.slane %v1187, %v1200
      %v1202 = vcombine.high %v1194, %v1194
      %v1203 = vcombine.high %v1201, %v1201
      %v1205 = vunpack.c.l.s4 1983009808
      %v1206 = vunpack.c.0.s8 %v1205
      %v1207 = vlaneseq
      %v1208 = vshrl.u32 %v1207, 7
      %v1209 = vsub.s32 %v1206, %v1208
      %v1210 = vrot.slane %v1036, %v1209
      %v1211 = vcombine.high %v1037, %v1037
      %v1213 = vunpack.c.l.s4 1983009808
      %v1214 = vunpack.c.0.s8 %v1213
      %v1215 = vlaneseq
      %v1216 = vshrl.u32 %v1215, 7
      %v1217 = vsub.s32 %v1214, %v1216
      %v1218 = vrot.slane %v1037, %v1217
      %v1220 = vunpack.c.l.s4 1983009808
      %v1221 = vunpack.c.0.s8 %v1220
      %v1222 = vlaneseq
      %v1223 = vshrl.u32 %v1222, 7
      %v1224 = vsub.s32 %v1221, %v1223
      %v1225 = vrot.slane %v1211, %v1224
      %v1226 = vcombine.high %v1218, %v1218
      %v1227 = vcombine.high %v1225, %v1225
      %v1228 = vcombine.high %v1038, %v1038
      %v1230 = vunpack.c.l.s4 1983009808
      %v1231 = vunpack.c.0.s8 %v1230
      %v1232 = vlaneseq
      %v1233 = vshrl.u32 %v1232, 7
      %v1234 = vsub.s32 %v1231, %v1233
      %v1235 = vrot.slane %v1038, %v1234
      %v1237 = vunpack.c.l.s4 1983009808
      %v1238 = vunpack.c.0.s8 %v1237
      %v1239 = vlaneseq
      %v1240 = vshrl.u32 %v1239, 7
      %v1241 = vsub.s32 %v1238, %v1240
      %v1242 = vrot.slane %v1228, %v1241
      %v1243 = vcombine.high %v1235, %v1235
      %v1244 = vcombine.high %v1242, %v1242
      %v1246 = vunpack.c.l.s4 1983009808
      %v1247 = vunpack.c.0.s8 %v1246
      %v1248 = vlaneseq
      %v1249 = vshrl.u32 %v1248, 7
      %v1250 = vsub.s32 %v1247, %v1249
      %v1251 = vrot.slane %v1039, %v1250
      %v1252 = vcombine.high %v1040, %v1040
      %v1254 = vunpack.c.l.s4 1983009808
      %v1255 = vunpack.c.0.s8 %v1254
      %v1256 = vlaneseq
      %v1257 = vshrl.u32 %v1256, 7
      %v1258 = vsub.s32 %v1255, %v1257
      %v1259 = vrot.slane %v1040, %v1258
      %v1261 = vunpack.c.l.s4 1983009808
      %v1262 = vunpack.c.0.s8 %v1261
      %v1263 = vlaneseq
      %v1264 = vshrl.u32 %v1263, 7
      %v1265 = vsub.s32 %v1262, %v1264
      %v1266 = vrot.slane %v1252, %v1265
      %v1267 = vcombine.high %v1259, %v1259
      %v1268 = vcombine.high %v1266, %v1266
      %v1269 = vcombine.high %v1041, %v1041
      %v1271 = vunpack.c.l.s4 1983009808
      %v1272 = vunpack.c.0.s8 %v1271
      %v1273 = vlaneseq
      %v1274 = vshrl.u32 %v1273, 7
      %v1275 = vsub.s32 %v1272, %v1274
      %v1276 = vrot.slane %v1041, %v1275
      %v1278 = vunpack.c.l.s4 1983009808
      %v1279 = vunpack.c.0.s8 %v1278
      %v1280 = vlaneseq
      %v1281 = vshrl.u32 %v1280, 7
      %v1282 = vsub.s32 %v1279, %v1281
      %v1283 = vrot.slane %v1269, %v1282
      %v1284 = vcombine.high %v1276, %v1276
      %v1285 = vcombine.high %v1283, %v1283
      %v1287 = vunpack.c.l.s4 1983009808
      %v1288 = vunpack.c.0.s8 %v1287
      %v1289 = vlaneseq
      %v1290 = vshrl.u32 %v1289, 7
      %v1291 = vsub.s32 %v1288, %v1290
      %v1292 = vrot.slane %v1042, %v1291
      %v1293 = vcombine.high %v1043, %v1043
      %v1295 = vunpack.c.l.s4 1983009808
      %v1296 = vunpack.c.0.s8 %v1295
      %v1297 = vlaneseq
      %v1298 = vshrl.u32 %v1297, 7
      %v1299 = vsub.s32 %v1296, %v1298
      %v1300 = vrot.slane %v1043, %v1299
      %v1302 = vunpack.c.l.s4 1983009808
      %v1303 = vunpack.c.0.s8 %v1302
      %v1304 = vlaneseq
      %v1305 = vshrl.u32 %v1304, 7
      %v1306 = vsub.s32 %v1303, %v1305
      %v1307 = vrot.slane %v1293, %v1306
      %v1308 = vcombine.high %v1300, %v1300
      %v1309 = vcombine.high %v1307, %v1307
      %v1310 = vcombine.high %v1044, %v1044
      %v1312 = vunpack.c.l.s4 1983009808
      %v1313 = vunpack.c.0.s8 %v1312
      %v1314 = vlaneseq
      %v1315 = vshrl.u32 %v1314, 7
      %v1316 = vsub.s32 %v1313, %v1315
      %v1317 = vrot.slane %v1044, %v1316
      %v1319 = vunpack.c.l.s4 1983009808
      %v1320 = vunpack.c.0.s8 %v1319
      %v1321 = vlaneseq
      %v1322 = vshrl.u32 %v1321, 7
      %v1323 = vsub.s32 %v1320, %v1322
      %v1324 = vrot.slane %v1310, %v1323
      %v1325 = vcombine.high %v1317, %v1317
      %v1326 = vcombine.high %v1324, %v1324
      %v1328 = vunpack.c.l.s4 1983009808
      %v1329 = vunpack.c.0.s8 %v1328
      %v1330 = vlaneseq
      %v1331 = vshrl.u32 %v1330, 7
      %v1332 = vsub.s32 %v1329, %v1331
      %v1333 = vrot.slane %v1045, %v1332
      %v1334 = vcombine.high %v1046, %v1046
      %v1336 = vunpack.c.l.s4 1983009808
      %v1337 = vunpack.c.0.s8 %v1336
      %v1338 = vlaneseq
      %v1339 = vshrl.u32 %v1338, 7
      %v1340 = vsub.s32 %v1337, %v1339
      %v1341 = vrot.slane %v1046, %v1340
      %v1343 = vunpack.c.l.s4 1983009808
      %v1344 = vunpack.c.0.s8 %v1343
      %v1345 = vlaneseq
      %v1346 = vshrl.u32 %v1345, 7
      %v1347 = vsub.s32 %v1344, %v1346
      %v1348 = vrot.slane %v1334, %v1347
      %v1349 = vcombine.high %v1341, %v1341
      %v1350 = vcombine.high %v1348, %v1348
      %v1351 = vcombine.high %v1047, %v1047
      %v1353 = vunpack.c.l.s4 1983009808
      %v1354 = vunpack.c.0.s8 %v1353
      %v1355 = vlaneseq
      %v1356 = vshrl.u32 %v1355, 7
      %v1357 = vsub.s32 %v1354, %v1356
      %v1358 = vrot.slane %v1047, %v1357
      %v1360 = vunpack.c.l.s4 1983009808
      %v1361 = vunpack.c.0.s8 %v1360
      %v1362 = vlaneseq
      %v1363 = vshrl.u32 %v1362, 7
      %v1364 = vsub.s32 %v1361, %v1363
      %v1365 = vrot.slane %v1351, %v1364
      %v1366 = vcombine.high %v1358, %v1358
      %v1367 = vcombine.high %v1365, %v1365
      %v1369 = vunpack.c.l.s4 1983009808
      %v1370 = vunpack.c.0.s8 %v1369
      %v1371 = vlaneseq
      %v1372 = vshrl.u32 %v1371, 7
      %v1373 = vsub.s32 %v1370, %v1372
      %v1374 = vrot.slane %v1048, %v1373
      %v1375 = vcombine.high %v1049, %v1049
      %v1377 = vunpack.c.l.s4 1983009808
      %v1378 = vunpack.c.0.s8 %v1377
      %v1379 = vlaneseq
      %v1380 = vshrl.u32 %v1379, 7
      %v1381 = vsub.s32 %v1378, %v1380
      %v1382 = vrot.slane %v1049, %v1381
      %v1384 = vunpack.c.l.s4 1983009808
      %v1385 = vunpack.c.0.s8 %v1384
      %v1386 = vlaneseq
      %v1387 = vshrl.u32 %v1386, 7
      %v1388 = vsub.s32 %v1385, %v1387
      %v1389 = vrot.slane %v1375, %v1388
      %v1390 = vcombine.high %v1382, %v1382
      %v1391 = vcombine.high %v1389, %v1389
      %v1392 = vcombine.high %v1050, %v1050
      %v1394 = vunpack.c.l.s4 1983009808
      %v1395 = vunpack.c.0.s8 %v1394
      %v1396 = vlaneseq
      %v1397 = vshrl.u32 %v1396, 7
      %v1398 = vsub.s32 %v1395, %v1397
      %v1399 = vrot.slane %v1050, %v1398
      %v1401 = vunpack.c.l.s4 1983009808
      %v1402 = vunpack.c.0.s8 %v1401
      %v1403 = vlaneseq
      %v1404 = vshrl.u32 %v1403, 7
      %v1405 = vsub.s32 %v1402, %v1404
      %v1406 = vrot.slane %v1392, %v1405
      %v1407 = vcombine.high %v1399, %v1399
      %v1408 = vcombine.high %v1406, %v1406
      %v1410 = vunpack.c.l.s4 1983009808
      %v1411 = vunpack.c.0.s8 %v1410
      %v1412 = vlaneseq
      %v1413 = vshrl.u32 %v1412, 7
      %v1414 = vsub.s32 %v1411, %v1413
      %v1415 = vrot.slane %v1051, %v1414
      %v1416 = vcombine.high %v1052, %v1052
      %v1418 = vunpack.c.l.s4 1983009808
      %v1419 = vunpack.c.0.s8 %v1418
      %v1420 = vlaneseq
      %v1421 = vshrl.u32 %v1420, 7
      %v1422 = vsub.s32 %v1419, %v1421
      %v1423 = vrot.slane %v1052, %v1422
      %v1425 = vunpack.c.l.s4 1983009808
      %v1426 = vunpack.c.0.s8 %v1425
      %v1427 = vlaneseq
      %v1428 = vshrl.u32 %v1427, 7
      %v1429 = vsub.s32 %v1426, %v1428
      %v1430 = vrot.slane %v1416, %v1429
      %v1431 = vcombine.high %v1423, %v1423
      %v1432 = vcombine.high %v1430, %v1430
      %v1433 = vcombine.high %v1053, %v1053
      %v1435 = vunpack.c.l.s4 1983009808
      %v1436 = vunpack.c.0.s8 %v1435
      %v1437 = vlaneseq
      %v1438 = vshrl.u32 %v1437, 7
      %v1439 = vsub.s32 %v1436, %v1438
      %v1440 = vrot.slane %v1053, %v1439
      %v1442 = vunpack.c.l.s4 1983009808
      %v1443 = vunpack.c.0.s8 %v1442
      %v1444 = vlaneseq
      %v1445 = vshrl.u32 %v1444, 7
      %v1446 = vsub.s32 %v1443, %v1445
      %v1447 = vrot.slane %v1433, %v1446
      %v1448 = vcombine.high %v1440, %v1440
      %v1449 = vcombine.high %v1447, %v1447
      %v1451 = vunpack.c.l.s4 1983009808
      %v1452 = vunpack.c.0.s8 %v1451
      %v1453 = vlaneseq
      %v1454 = vshrl.u32 %v1453, 7
      %v1455 = vsub.s32 %v1452, %v1454
      %v1456 = vrot.slane %v1054, %v1455
      %v1457 = vcombine.high %v1055, %v1055
      %v1459 = vunpack.c.l.s4 1983009808
      %v1460 = vunpack.c.0.s8 %v1459
      %v1461 = vlaneseq
      %v1462 = vshrl.u32 %v1461, 7
      %v1463 = vsub.s32 %v1460, %v1462
      %v1464 = vrot.slane %v1055, %v1463
      %v1466 = vunpack.c.l.s4 1983009808
      %v1467 = vunpack.c.0.s8 %v1466
      %v1468 = vlaneseq
      %v1469 = vshrl.u32 %v1468, 7
      %v1470 = vsub.s32 %v1467, %v1469
      %v1471 = vrot.slane %v1457, %v1470
      %v1472 = vcombine.high %v1464, %v1464
      %v1473 = vcombine.high %v1471, %v1471
      %v1474 = vcombine.high %v1056, %v1056
      %v1476 = vunpack.c.l.s4 1983009808
      %v1477 = vunpack.c.0.s8 %v1476
      %v1478 = vlaneseq
      %v1479 = vshrl.u32 %v1478, 7
      %v1480 = vsub.s32 %v1477, %v1479
      %v1481 = vrot.slane %v1056, %v1480
      %v1483 = vunpack.c.l.s4 1983009808
      %v1484 = vunpack.c.0.s8 %v1483
      %v1485 = vlaneseq
      %v1486 = vshrl.u32 %v1485, 7
      %v1487 = vsub.s32 %v1484, %v1486
      %v1488 = vrot.slane %v1474, %v1487
      %v1489 = vcombine.high %v1481, %v1481
      %v1490 = vcombine.high %v1488, %v1488
      %v1492 = vunpack.c.l.s4 1983009808
      %v1493 = vunpack.c.0.s8 %v1492
      %v1494 = vlaneseq
      %v1495 = vshrl.u32 %v1494, 7
      %v1496 = vsub.s32 %v1493, %v1495
      %v1497 = vrot.slane %v1057, %v1496
      %v1498 = vld [vmem:[#allocation2 + $0x2] sm:$0xff]
      %v1499 = vld [vmem:[#allocation2 + $0xa] sm:$0xff]
      %v1500 = vld [vmem:[#allocation2 + $0x12] sm:$0x3]
      %v1501 = vld [vmem:[#allocation2 + $0x1a] sm:$0xff]
      %v1502 = vld [vmem:[#allocation2 + $0x22] sm:$0xff]
      %v1503 = vld [vmem:[#allocation2 + $0x2a] sm:$0x3]
      %v1504 = vld [vmem:[#allocation2 + $0x32] sm:$0xff]
      %v1505 = vld [vmem:[#allocation2 + $0x3a] sm:$0xff]
      %v1506 = vld [vmem:[#allocation2 + $0x42] sm:$0x3]
      %v1507 = vld [vmem:[#allocation2 + $0x4a] sm:$0xff]
      %v1508 = vld [vmem:[#allocation2 + $0x52] sm:$0xff]
      %v1509 = vld [vmem:[#allocation2 + $0x5a] sm:$0x3]
      %v1510 = vld [vmem:[#allocation2 + $0x62] sm:$0xff]
      %v1511 = vld [vmem:[#allocation2 + $0x6a] sm:$0xff]
      %v1512 = vld [vmem:[#allocation2 + $0x72] sm:$0x3]
      %v1513 = vld [vmem:[#allocation2 + $0x7a] sm:$0xff]
      %v1514 = vld [vmem:[#allocation2 + $0x82] sm:$0xff]
      %v1515 = vld [vmem:[#allocation2 + $0x8a] sm:$0x3]
      %v1516 = vld [vmem:[#allocation2 + $0x92] sm:$0xff]
      %v1517 = vld [vmem:[#allocation2 + $0x9a] sm:$0xff]
      %v1518 = vld [vmem:[#allocation2 + $0xa2] sm:$0x3]
      %v1519 = vld [vmem:[#allocation2 + $0xaa] sm:$0xff]
      %v1520 = vld [vmem:[#allocation2 + $0xb2] sm:$0xff]
      %v1521 = vld [vmem:[#allocation2 + $0xba] sm:$0x3]
      %v1522 = vld [vmem:[#allocation2 + $0xc2] sm:$0xff]
      %v1523 = vld [vmem:[#allocation2 + $0xca] sm:$0xff]
      %v1524 = vld [vmem:[#allocation2 + $0xd2] sm:$0x3]
      %v1525 = vld [vmem:[#allocation2 + $0xda] sm:$0xff]
      %v1526 = vld [vmem:[#allocation2 + $0xe2] sm:$0xff]
      %v1527 = vld [vmem:[#allocation2 + $0xea] sm:$0x3]
      %v1558 = vcombine.high %v1498, %v1498
      %v1560 = vunpack.c.l.s4 1983009808
      %v1561 = vunpack.c.0.s8 %v1560
      %v1562 = vlaneseq
      %v1563 = vshrl.u32 %v1562, 7
      %v1564 = vsub.s32 %v1561, %v1563
      %v1565 = vrot.slane %v1498, %v1564
      %v1567 = vunpack.c.l.s4 1983009808
      %v1568 = vunpack.c.0.s8 %v1567
      %v1569 = vlaneseq
      %v1570 = vshrl.u32 %v1569, 7
      %v1571 = vsub.s32 %v1568, %v1570
      %v1572 = vrot.slane %v1558, %v1571
      %v1573 = vcombine.high %v1565, %v1565
      %v1574 = vcombine.high %v1572, %v1572
      %v1575 = vcombine.high %v1499, %v1499
      %v1577 = vunpack.c.l.s4 1983009808
      %v1578 = vunpack.c.0.s8 %v1577
      %v1579 = vlaneseq
      %v1580 = vshrl.u32 %v1579, 7
      %v1581 = vsub.s32 %v1578, %v1580
      %v1582 = vrot.slane %v1499, %v1581
      %v1584 = vunpack.c.l.s4 1983009808
      %v1585 = vunpack.c.0.s8 %v1584
      %v1586 = vlaneseq
      %v1587 = vshrl.u32 %v1586, 7
      %v1588 = vsub.s32 %v1585, %v1587
      %v1589 = vrot.slane %v1575, %v1588
      %v1590 = vcombine.high %v1582, %v1582
      %v1591 = vcombine.high %v1589, %v1589
      %v1593 = vunpack.c.l.s4 1983009808
      %v1594 = vunpack.c.0.s8 %v1593
      %v1595 = vlaneseq
      %v1596 = vshrl.u32 %v1595, 7
      %v1597 = vsub.s32 %v1594, %v1596
      %v1598 = vrot.slane %v1500, %v1597
      %v1599 = vcombine.high %v1501, %v1501
      %v1601 = vunpack.c.l.s4 1983009808
      %v1602 = vunpack.c.0.s8 %v1601
      %v1603 = vlaneseq
      %v1604 = vshrl.u32 %v1603, 7
      %v1605 = vsub.s32 %v1602, %v1604
      %v1606 = vrot.slane %v1501, %v1605
      %v1608 = vunpack.c.l.s4 1983009808
      %v1609 = vunpack.c.0.s8 %v1608
      %v1610 = vlaneseq
      %v1611 = vshrl.u32 %v1610, 7
      %v1612 = vsub.s32 %v1609, %v1611
      %v1613 = vrot.slane %v1599, %v1612
      %v1614 = vcombine.high %v1606, %v1606
      %v1615 = vcombine.high %v1613, %v1613
      %v1616 = vcombine.high %v1502, %v1502
      %v1618 = vunpack.c.l.s4 1983009808
      %v1619 = vunpack.c.0.s8 %v1618
      %v1620 = vlaneseq
      %v1621 = vshrl.u32 %v1620, 7
      %v1622 = vsub.s32 %v1619, %v1621
      %v1623 = vrot.slane %v1502, %v1622
      %v1625 = vunpack.c.l.s4 1983009808
      %v1626 = vunpack.c.0.s8 %v1625
      %v1627 = vlaneseq
      %v1628 = vshrl.u32 %v1627, 7
      %v1629 = vsub.s32 %v1626, %v1628
      %v1630 = vrot.slane %v1616, %v1629
      %v1631 = vcombine.high %v1623, %v1623
      %v1632 = vcombine.high %v1630, %v1630
      %v1634 = vunpack.c.l.s4 1983009808
      %v1635 = vunpack.c.0.s8 %v1634
      %v1636 = vlaneseq
      %v1637 = vshrl.u32 %v1636, 7
      %v1638 = vsub.s32 %v1635, %v1637
      %v1639 = vrot.slane %v1503, %v1638
      %v1640 = vcombine.high %v1504, %v1504
      %v1642 = vunpack.c.l.s4 1983009808
      %v1643 = vunpack.c.0.s8 %v1642
      %v1644 = vlaneseq
      %v1645 = vshrl.u32 %v1644, 7
      %v1646 = vsub.s32 %v1643, %v1645
      %v1647 = vrot.slane %v1504, %v1646
      %v1649 = vunpack.c.l.s4 1983009808
      %v1650 = vunpack.c.0.s8 %v1649
      %v1651 = vlaneseq
      %v1652 = vshrl.u32 %v1651, 7
      %v1653 = vsub.s32 %v1650, %v1652
      %v1654 = vrot.slane %v1640, %v1653
      %v1655 = vcombine.high %v1647, %v1647
      %v1656 = vcombine.high %v1654, %v1654
      %v1657 = vcombine.high %v1505, %v1505
      %v1659 = vunpack.c.l.s4 1983009808
      %v1660 = vunpack.c.0.s8 %v1659
      %v1661 = vlaneseq
      %v1662 = vshrl.u32 %v1661, 7
      %v1663 = vsub.s32 %v1660, %v1662
      %v1664 = vrot.slane %v1505, %v1663
      %v1666 = vunpack.c.l.s4 1983009808
      %v1667 = vunpack.c.0.s8 %v1666
      %v1668 = vlaneseq
      %v1669 = vshrl.u32 %v1668, 7
      %v1670 = vsub.s32 %v1667, %v1669
      %v1671 = vrot.slane %v1657, %v1670
      %v1672 = vcombine.high %v1664, %v1664
      %v1673 = vcombine.high %v1671, %v1671
      %v1675 = vunpack.c.l.s4 1983009808
      %v1676 = vunpack.c.0.s8 %v1675
      %v1677 = vlaneseq
      %v1678 = vshrl.u32 %v1677, 7
      %v1679 = vsub.s32 %v1676, %v1678
      %v1680 = vrot.slane %v1506, %v1679
      %v1681 = vcombine.high %v1507, %v1507
      %v1683 = vunpack.c.l.s4 1983009808
      %v1684 = vunpack.c.0.s8 %v1683
      %v1685 = vlaneseq
      %v1686 = vshrl.u32 %v1685, 7
      %v1687 = vsub.s32 %v1684, %v1686
      %v1688 = vrot.slane %v1507, %v1687
      %v1690 = vunpack.c.l.s4 1983009808
      %v1691 = vunpack.c.0.s8 %v1690
      %v1692 = vlaneseq
      %v1693 = vshrl.u32 %v1692, 7
      %v1694 = vsub.s32 %v1691, %v1693
      %v1695 = vrot.slane %v1681, %v1694
      %v1696 = vcombine.high %v1688, %v1688
      %v1697 = vcombine.high %v1695, %v1695
      %v1698 = vcombine.high %v1508, %v1508
      %v1700 = vunpack.c.l.s4 1983009808
      %v1701 = vunpack.c.0.s8 %v1700
      %v1702 = vlaneseq
      %v1703 = vshrl.u32 %v1702, 7
      %v1704 = vsub.s32 %v1701, %v1703
      %v1705 = vrot.slane %v1508, %v1704
      %v1707 = vunpack.c.l.s4 1983009808
      %v1708 = vunpack.c.0.s8 %v1707
      %v1709 = vlaneseq
      %v1710 = vshrl.u32 %v1709, 7
      %v1711 = vsub.s32 %v1708, %v1710
      %v1712 = vrot.slane %v1698, %v1711
      %v1713 = vcombine.high %v1705, %v1705
      %v1714 = vcombine.high %v1712, %v1712
      %v1716 = vunpack.c.l.s4 1983009808
      %v1717 = vunpack.c.0.s8 %v1716
      %v1718 = vlaneseq
      %v1719 = vshrl.u32 %v1718, 7
      %v1720 = vsub.s32 %v1717, %v1719
      %v1721 = vrot.slane %v1509, %v1720
      %v1722 = vcombine.high %v1510, %v1510
      %v1724 = vunpack.c.l.s4 1983009808
      %v1725 = vunpack.c.0.s8 %v1724
      %v1726 = vlaneseq
      %v1727 = vshrl.u32 %v1726, 7
      %v1728 = vsub.s32 %v1725, %v1727
      %v1729 = vrot.slane %v1510, %v1728
      %v1731 = vunpack.c.l.s4 1983009808
      %v1732 = vunpack.c.0.s8 %v1731
      %v1733 = vlaneseq
      %v1734 = vshrl.u32 %v1733, 7
      %v1735 = vsub.s32 %v1732, %v1734
      %v1736 = vrot.slane %v1722, %v1735
      %v1737 = vcombine.high %v1729, %v1729
      %v1738 = vcombine.high %v1736, %v1736
      %v1739 = vcombine.high %v1511, %v1511
      %v1741 = vunpack.c.l.s4 1983009808
      %v1742 = vunpack.c.0.s8 %v1741
      %v1743 = vlaneseq
      %v1744 = vshrl.u32 %v1743, 7
      %v1745 = vsub.s32 %v1742, %v1744
      %v1746 = vrot.slane %v1511, %v1745
      %v1748 = vunpack.c.l.s4 1983009808
      %v1749 = vunpack.c.0.s8 %v1748
      %v1750 = vlaneseq
      %v1751 = vshrl.u32 %v1750, 7
      %v1752 = vsub.s32 %v1749, %v1751
      %v1753 = vrot.slane %v1739, %v1752
      %v1754 = vcombine.high %v1746, %v1746
      %v1755 = vcombine.high %v1753, %v1753
      %v1757 = vunpack.c.l.s4 1983009808
      %v1758 = vunpack.c.0.s8 %v1757
      %v1759 = vlaneseq
      %v1760 = vshrl.u32 %v1759, 7
      %v1761 = vsub.s32 %v1758, %v1760
      %v1762 = vrot.slane %v1512, %v1761
      %v1763 = vcombine.high %v1513, %v1513
      %v1765 = vunpack.c.l.s4 1983009808
      %v1766 = vunpack.c.0.s8 %v1765
      %v1767 = vlaneseq
      %v1768 = vshrl.u32 %v1767, 7
      %v1769 = vsub.s32 %v1766, %v1768
      %v1770 = vrot.slane %v1513, %v1769
      %v1772 = vunpack.c.l.s4 1983009808
      %v1773 = vunpack.c.0.s8 %v1772
      %v1774 = vlaneseq
      %v1775 = vshrl.u32 %v1774, 7
      %v1776 = vsub.s32 %v1773, %v1775
      %v1777 = vrot.slane %v1763, %v1776
      %v1778 = vcombine.high %v1770, %v1770
      %v1779 = vcombine.high %v1777, %v1777
      %v1780 = vcombine.high %v1514, %v1514
      %v1782 = vunpack.c.l.s4 1983009808
      %v1783 = vunpack.c.0.s8 %v1782
      %v1784 = vlaneseq
      %v1785 = vshrl.u32 %v1784, 7
      %v1786 = vsub.s32 %v1783, %v1785
      %v1787 = vrot.slane %v1514, %v1786
      %v1789 = vunpack.c.l.s4 1983009808
      %v1790 = vunpack.c.0.s8 %v1789
      %v1791 = vlaneseq
      %v1792 = vshrl.u32 %v1791, 7
      %v1793 = vsub.s32 %v1790, %v1792
      %v1794 = vrot.slane %v1780, %v1793
      %v1795 = vcombine.high %v1787, %v1787
      %v1796 = vcombine.high %v1794, %v1794
      %v1798 = vunpack.c.l.s4 1983009808
      %v1799 = vunpack.c.0.s8 %v1798
      %v1800 = vlaneseq
      %v1801 = vshrl.u32 %v1800, 7
      %v1802 = vsub.s32 %v1799, %v1801
      %v1803 = vrot.slane %v1515, %v1802
      %v1804 = vcombine.high %v1516, %v1516
      %v1806 = vunpack.c.l.s4 1983009808
      %v1807 = vunpack.c.0.s8 %v1806
      %v1808 = vlaneseq
      %v1809 = vshrl.u32 %v1808, 7
      %v1810 = vsub.s32 %v1807, %v1809
      %v1811 = vrot.slane %v1516, %v1810
      %v1813 = vunpack.c.l.s4 1983009808
      %v1814 = vunpack.c.0.s8 %v1813
      %v1815 = vlaneseq
      %v1816 = vshrl.u32 %v1815, 7
      %v1817 = vsub.s32 %v1814, %v1816
      %v1818 = vrot.slane %v1804, %v1817
      %v1819 = vcombine.high %v1811, %v1811
      %v1820 = vcombine.high %v1818, %v1818
      %v1821 = vcombine.high %v1517, %v1517
      %v1823 = vunpack.c.l.s4 1983009808
      %v1824 = vunpack.c.0.s8 %v1823
      %v1825 = vlaneseq
      %v1826 = vshrl.u32 %v1825, 7
      %v1827 = vsub.s32 %v1824, %v1826
      %v1828 = vrot.slane %v1517, %v1827
      %v1830 = vunpack.c.l.s4 1983009808
      %v1831 = vunpack.c.0.s8 %v1830
      %v1832 = vlaneseq
      %v1833 = vshrl.u32 %v1832, 7
      %v1834 = vsub.s32 %v1831, %v1833
      %v1835 = vrot.slane %v1821, %v1834
      %v1836 = vcombine.high %v1828, %v1828
      %v1837 = vcombine.high %v1835, %v1835
      %v1839 = vunpack.c.l.s4 1983009808
      %v1840 = vunpack.c.0.s8 %v1839
      %v1841 = vlaneseq
      %v1842 = vshrl.u32 %v1841, 7
      %v1843 = vsub.s32 %v1840, %v1842
      %v1844 = vrot.slane %v1518, %v1843
      %v1845 = vcombine.high %v1519, %v1519
      %v1847 = vunpack.c.l.s4 1983009808
      %v1848 = vunpack.c.0.s8 %v1847
      %v1849 = vlaneseq
      %v1850 = vshrl.u32 %v1849, 7
      %v1851 = vsub.s32 %v1848, %v1850
      %v1852 = vrot.slane %v1519, %v1851
      %v1854 = vunpack.c.l.s4 1983009808
      %v1855 = vunpack.c.0.s8 %v1854
      %v1856 = vlaneseq
      %v1857 = vshrl.u32 %v1856, 7
      %v1858 = vsub.s32 %v1855, %v1857
      %v1859 = vrot.slane %v1845, %v1858
      %v1860 = vcombine.high %v1852, %v1852
      %v1861 = vcombine.high %v1859, %v1859
      %v1862 = vcombine.high %v1520, %v1520
      %v1864 = vunpack.c.l.s4 1983009808
      %v1865 = vunpack.c.0.s8 %v1864
      %v1866 = vlaneseq
      %v1867 = vshrl.u32 %v1866, 7
      %v1868 = vsub.s32 %v1865, %v1867
      %v1869 = vrot.slane %v1520, %v1868
      %v1871 = vunpack.c.l.s4 1983009808
      %v1872 = vunpack.c.0.s8 %v1871
      %v1873 = vlaneseq
      %v1874 = vshrl.u32 %v1873, 7
      %v1875 = vsub.s32 %v1872, %v1874
      %v1876 = vrot.slane %v1862, %v1875
      %v1877 = vcombine.high %v1869, %v1869
      %v1878 = vcombine.high %v1876, %v1876
      %v1880 = vunpack.c.l.s4 1983009808
      %v1881 = vunpack.c.0.s8 %v1880
      %v1882 = vlaneseq
      %v1883 = vshrl.u32 %v1882, 7
      %v1884 = vsub.s32 %v1881, %v1883
      %v1885 = vrot.slane %v1521, %v1884
      %v1886 = vcombine.high %v1522, %v1522
      %v1888 = vunpack.c.l.s4 1983009808
      %v1889 = vunpack.c.0.s8 %v1888
      %v1890 = vlaneseq
      %v1891 = vshrl.u32 %v1890, 7
      %v1892 = vsub.s32 %v1889, %v1891
      %v1893 = vrot.slane %v1522, %v1892
      %v1895 = vunpack.c.l.s4 1983009808
      %v1896 = vunpack.c.0.s8 %v1895
      %v1897 = vlaneseq
      %v1898 = vshrl.u32 %v1897, 7
      %v1899 = vsub.s32 %v1896, %v1898
      %v1900 = vrot.slane %v1886, %v1899
      %v1901 = vcombine.high %v1893, %v1893
      %v1902 = vcombine.high %v1900, %v1900
      %v1903 = vcombine.high %v1523, %v1523
      %v1905 = vunpack.c.l.s4 1983009808
      %v1906 = vunpack.c.0.s8 %v1905
      %v1907 = vlaneseq
      %v1908 = vshrl.u32 %v1907, 7
      %v1909 = vsub.s32 %v1906, %v1908
      %v1910 = vrot.slane %v1523, %v1909
      %v1912 = vunpack.c.l.s4 1983009808
      %v1913 = vunpack.c.0.s8 %v1912
      %v1914 = vlaneseq
      %v1915 = vshrl.u32 %v1914, 7
      %v1916 = vsub.s32 %v1913, %v1915
      %v1917 = vrot.slane %v1903, %v1916
      %v1918 = vcombine.high %v1910, %v1910
      %v1919 = vcombine.high %v1917, %v1917
      %v1921 = vunpack.c.l.s4 1983009808
      %v1922 = vunpack.c.0.s8 %v1921
      %v1923 = vlaneseq
      %v1924 = vshrl.u32 %v1923, 7
      %v1925 = vsub.s32 %v1922, %v1924
      %v1926 = vrot.slane %v1524, %v1925
      %v1927 = vcombine.high %v1525, %v1525
      %v1929 = vunpack.c.l.s4 1983009808
      %v1930 = vunpack.c.0.s8 %v1929
      %v1931 = vlaneseq
      %v1932 = vshrl.u32 %v1931, 7
      %v1933 = vsub.s32 %v1930, %v1932
      %v1934 = vrot.slane %v1525, %v1933
      %v1936 = vunpack.c.l.s4 1983009808
      %v1937 = vunpack.c.0.s8 %v1936
      %v1938 = vlaneseq
      %v1939 = vshrl.u32 %v1938, 7
      %v1940 = vsub.s32 %v1937, %v1939
      %v1941 = vrot.slane %v1927, %v1940
      %v1942 = vcombine.high %v1934, %v1934
      %v1943 = vcombine.high %v1941, %v1941
      %v1944 = vcombine.high %v1526, %v1526
      %v1946 = vunpack.c.l.s4 1983009808
      %v1947 = vunpack.c.0.s8 %v1946
      %v1948 = vlaneseq
      %v1949 = vshrl.u32 %v1948, 7
      %v1950 = vsub.s32 %v1947, %v1949
      %v1951 = vrot.slane %v1526, %v1950
      %v1953 = vunpack.c.l.s4 1983009808
      %v1954 = vunpack.c.0.s8 %v1953
      %v1955 = vlaneseq
      %v1956 = vshrl.u32 %v1955, 7
      %v1957 = vsub.s32 %v1954, %v1956
      %v1958 = vrot.slane %v1944, %v1957
      %v1959 = vcombine.high %v1951, %v1951
      %v1960 = vcombine.high %v1958, %v1958
      %v1962 = vunpack.c.l.s4 1983009808
      %v1963 = vunpack.c.0.s8 %v1962
      %v1964 = vlaneseq
      %v1965 = vshrl.u32 %v1964, 7
      %v1966 = vsub.s32 %v1963, %v1965
      %v1967 = vrot.slane %v1527, %v1966
      %s1968 = scalar_lea.vmem [#allocation2], 24
      %v1969 = vld [vmem:[%s1968] sm:$0xff]
      %v1970 = vld [vmem:[%s1968 + $0x8] sm:$0xff]
      %v1971 = vld [vmem:[%s1968 + $0x10] sm:$0x3]
      %v1972 = vld [vmem:[%s1968 + $0x18] sm:$0xff]
      %v1973 = vld [vmem:[%s1968 + $0x20] sm:$0xff]
      %v1974 = vld [vmem:[%s1968 + $0x28] sm:$0x3]
      %v1975 = vld [vmem:[%s1968 + $0x30] sm:$0xff]
      %v1976 = vld [vmem:[%s1968 + $0x38] sm:$0xff]
      %v1977 = vld [vmem:[%s1968 + $0x40] sm:$0x3]
      %v1978 = vld [vmem:[%s1968 + $0x48] sm:$0xff]
      %v1979 = vld [vmem:[%s1968 + $0x50] sm:$0xff]
      %v1980 = vld [vmem:[%s1968 + $0x58] sm:$0x3]
      %v1981 = vld [vmem:[%s1968 + $0x60] sm:$0xff]
      %v1982 = vld [vmem:[%s1968 + $0x68] sm:$0xff]
      %v1983 = vld [vmem:[%s1968 + $0x70] sm:$0x3]
      %v1984 = vld [vmem:[%s1968 + $0x78] sm:$0xff]
      %v1985 = vld [vmem:[%s1968 + $0x80] sm:$0xff]
      %v1986 = vld [vmem:[%s1968 + $0x88] sm:$0x3]
      %v1987 = vld [vmem:[%s1968 + $0x90] sm:$0xff]
      %v1988 = vld [vmem:[%s1968 + $0x98] sm:$0xff]
      %v1989 = vld [vmem:[%s1968 + $0xa0] sm:$0x3]
      %v1990 = vld [vmem:[%s1968 + $0xa8] sm:$0xff]
      %v1991 = vld [vmem:[%s1968 + $0xb0] sm:$0xff]
      %v1992 = vld [vmem:[%s1968 + $0xb8] sm:$0x3]
      %v1993 = vld [vmem:[%s1968 + $0xc0] sm:$0xff]
      %v1994 = vld [vmem:[%s1968 + $0xc8] sm:$0xff]
      %v1995 = vld [vmem:[%s1968 + $0xd0] sm:$0x3]
      %v1996 = vld [vmem:[%s1968 + $0xd8] sm:$0xff]
      %v1997 = vld [vmem:[%s1968 + $0xe0] sm:$0xff]
      %v1998 = vld [vmem:[%s1968 + $0xe8] sm:$0x3]
      %v2029 = vcombine.high %v1969, %v1969
      %v2031 = vunpack.c.l.s4 1983009808
      %v2032 = vunpack.c.0.s8 %v2031
      %v2033 = vlaneseq
      %v2034 = vshrl.u32 %v2033, 7
      %v2035 = vsub.s32 %v2032, %v2034
      %v2036 = vrot.slane %v1969, %v2035
      %v2038 = vunpack.c.l.s4 1983009808
      %v2039 = vunpack.c.0.s8 %v2038
      %v2040 = vlaneseq
      %v2041 = vshrl.u32 %v2040, 7
      %v2042 = vsub.s32 %v2039, %v2041
      %v2043 = vrot.slane %v2029, %v2042
      %v2044 = vcombine.high %v2036, %v2036
      %v2045 = vcombine.high %v2043, %v2043
      %v2046 = vcombine.high %v1970, %v1970
      %v2048 = vunpack.c.l.s4 1983009808
      %v2049 = vunpack.c.0.s8 %v2048
      %v2050 = vlaneseq
      %v2051 = vshrl.u32 %v2050, 7
      %v2052 = vsub.s32 %v2049, %v2051
      %v2053 = vrot.slane %v1970, %v2052
      %v2055 = vunpack.c.l.s4 1983009808
      %v2056 = vunpack.c.0.s8 %v2055
      %v2057 = vlaneseq
      %v2058 = vshrl.u32 %v2057, 7
      %v2059 = vsub.s32 %v2056, %v2058
      %v2060 = vrot.slane %v2046, %v2059
      %v2061 = vcombine.high %v2053, %v2053
      %v2062 = vcombine.high %v2060, %v2060
      %v2064 = vunpack.c.l.s4 1983009808
      %v2065 = vunpack.c.0.s8 %v2064
      %v2066 = vlaneseq
      %v2067 = vshrl.u32 %v2066, 7
      %v2068 = vsub.s32 %v2065, %v2067
      %v2069 = vrot.slane %v1971, %v2068
      %v2070 = vcombine.high %v1972, %v1972
      %v2072 = vunpack.c.l.s4 1983009808
      %v2073 = vunpack.c.0.s8 %v2072
      %v2074 = vlaneseq
      %v2075 = vshrl.u32 %v2074, 7
      %v2076 = vsub.s32 %v2073, %v2075
      %v2077 = vrot.slane %v1972, %v2076
      %v2079 = vunpack.c.l.s4 1983009808
      %v2080 = vunpack.c.0.s8 %v2079
      %v2081 = vlaneseq
      %v2082 = vshrl.u32 %v2081, 7
      %v2083 = vsub.s32 %v2080, %v2082
      %v2084 = vrot.slane %v2070, %v2083
      %v2085 = vcombine.high %v2077, %v2077
      %v2086 = vcombine.high %v2084, %v2084
      %v2087 = vcombine.high %v1973, %v1973
      %v2089 = vunpack.c.l.s4 1983009808
      %v2090 = vunpack.c.0.s8 %v2089
      %v2091 = vlaneseq
      %v2092 = vshrl.u32 %v2091, 7
      %v2093 = vsub.s32 %v2090, %v2092
      %v2094 = vrot.slane %v1973, %v2093
      %v2096 = vunpack.c.l.s4 1983009808
      %v2097 = vunpack.c.0.s8 %v2096
      %v2098 = vlaneseq
      %v2099 = vshrl.u32 %v2098, 7
      %v2100 = vsub.s32 %v2097, %v2099
      %v2101 = vrot.slane %v2087, %v2100
      %v2102 = vcombine.high %v2094, %v2094
      %v2103 = vcombine.high %v2101, %v2101
      %v2105 = vunpack.c.l.s4 1983009808
      %v2106 = vunpack.c.0.s8 %v2105
      %v2107 = vlaneseq
      %v2108 = vshrl.u32 %v2107, 7
      %v2109 = vsub.s32 %v2106, %v2108
      %v2110 = vrot.slane %v1974, %v2109
      %v2111 = vcombine.high %v1975, %v1975
      %v2113 = vunpack.c.l.s4 1983009808
      %v2114 = vunpack.c.0.s8 %v2113
      %v2115 = vlaneseq
      %v2116 = vshrl.u32 %v2115, 7
      %v2117 = vsub.s32 %v2114, %v2116
      %v2118 = vrot.slane %v1975, %v2117
      %v2120 = vunpack.c.l.s4 1983009808
      %v2121 = vunpack.c.0.s8 %v2120
      %v2122 = vlaneseq
      %v2123 = vshrl.u32 %v2122, 7
      %v2124 = vsub.s32 %v2121, %v2123
      %v2125 = vrot.slane %v2111, %v2124
      %v2126 = vcombine.high %v2118, %v2118
      %v2127 = vcombine.high %v2125, %v2125
      %v2128 = vcombine.high %v1976, %v1976
      %v2130 = vunpack.c.l.s4 1983009808
      %v2131 = vunpack.c.0.s8 %v2130
      %v2132 = vlaneseq
      %v2133 = vshrl.u32 %v2132, 7
      %v2134 = vsub.s32 %v2131, %v2133
      %v2135 = vrot.slane %v1976, %v2134
      %v2137 = vunpack.c.l.s4 1983009808
      %v2138 = vunpack.c.0.s8 %v2137
      %v2139 = vlaneseq
      %v2140 = vshrl.u32 %v2139, 7
      %v2141 = vsub.s32 %v2138, %v2140
      %v2142 = vrot.slane %v2128, %v2141
      %v2143 = vcombine.high %v2135, %v2135
      %v2144 = vcombine.high %v2142, %v2142
      %v2146 = vunpack.c.l.s4 1983009808
      %v2147 = vunpack.c.0.s8 %v2146
      %v2148 = vlaneseq
      %v2149 = vshrl.u32 %v2148, 7
      %v2150 = vsub.s32 %v2147, %v2149
      %v2151 = vrot.slane %v1977, %v2150
      %v2152 = vcombine.high %v1978, %v1978
      %v2154 = vunpack.c.l.s4 1983009808
      %v2155 = vunpack.c.0.s8 %v2154
      %v2156 = vlaneseq
      %v2157 = vshrl.u32 %v2156, 7
      %v2158 = vsub.s32 %v2155, %v2157
      %v2159 = vrot.slane %v1978, %v2158
      %v2161 = vunpack.c.l.s4 1983009808
      %v2162 = vunpack.c.0.s8 %v2161
      %v2163 = vlaneseq
      %v2164 = vshrl.u32 %v2163, 7
      %v2165 = vsub.s32 %v2162, %v2164
      %v2166 = vrot.slane %v2152, %v2165
      %v2167 = vcombine.high %v2159, %v2159
      %v2168 = vcombine.high %v2166, %v2166
      %v2169 = vcombine.high %v1979, %v1979
      %v2171 = vunpack.c.l.s4 1983009808
      %v2172 = vunpack.c.0.s8 %v2171
      %v2173 = vlaneseq
      %v2174 = vshrl.u32 %v2173, 7
      %v2175 = vsub.s32 %v2172, %v2174
      %v2176 = vrot.slane %v1979, %v2175
      %v2178 = vunpack.c.l.s4 1983009808
      %v2179 = vunpack.c.0.s8 %v2178
      %v2180 = vlaneseq
      %v2181 = vshrl.u32 %v2180, 7
      %v2182 = vsub.s32 %v2179, %v2181
      %v2183 = vrot.slane %v2169, %v2182
      %v2184 = vcombine.high %v2176, %v2176
      %v2185 = vcombine.high %v2183, %v2183
      %v2187 = vunpack.c.l.s4 1983009808
      %v2188 = vunpack.c.0.s8 %v2187
      %v2189 = vlaneseq
      %v2190 = vshrl.u32 %v2189, 7
      %v2191 = vsub.s32 %v2188, %v2190
      %v2192 = vrot.slane %v1980, %v2191
      %v2193 = vcombine.high %v1981, %v1981
      %v2195 = vunpack.c.l.s4 1983009808
      %v2196 = vunpack.c.0.s8 %v2195
      %v2197 = vlaneseq
      %v2198 = vshrl.u32 %v2197, 7
      %v2199 = vsub.s32 %v2196, %v2198
      %v2200 = vrot.slane %v1981, %v2199
      %v2202 = vunpack.c.l.s4 1983009808
      %v2203 = vunpack.c.0.s8 %v2202
      %v2204 = vlaneseq
      %v2205 = vshrl.u32 %v2204, 7
      %v2206 = vsub.s32 %v2203, %v2205
      %v2207 = vrot.slane %v2193, %v2206
      %v2208 = vcombine.high %v2200, %v2200
      %v2209 = vcombine.high %v2207, %v2207
      %v2210 = vcombine.high %v1982, %v1982
      %v2212 = vunpack.c.l.s4 1983009808
      %v2213 = vunpack.c.0.s8 %v2212
      %v2214 = vlaneseq
      %v2215 = vshrl.u32 %v2214, 7
      %v2216 = vsub.s32 %v2213, %v2215
      %v2217 = vrot.slane %v1982, %v2216
      %v2219 = vunpack.c.l.s4 1983009808
      %v2220 = vunpack.c.0.s8 %v2219
      %v2221 = vlaneseq
      %v2222 = vshrl.u32 %v2221, 7
      %v2223 = vsub.s32 %v2220, %v2222
      %v2224 = vrot.slane %v2210, %v2223
      %v2225 = vcombine.high %v2217, %v2217
      %v2226 = vcombine.high %v2224, %v2224
      %v2228 = vunpack.c.l.s4 1983009808
      %v2229 = vunpack.c.0.s8 %v2228
      %v2230 = vlaneseq
      %v2231 = vshrl.u32 %v2230, 7
      %v2232 = vsub.s32 %v2229, %v2231
      %v2233 = vrot.slane %v1983, %v2232
      %v2234 = vcombine.high %v1984, %v1984
      %v2236 = vunpack.c.l.s4 1983009808
      %v2237 = vunpack.c.0.s8 %v2236
      %v2238 = vlaneseq
      %v2239 = vshrl.u32 %v2238, 7
      %v2240 = vsub.s32 %v2237, %v2239
      %v2241 = vrot.slane %v1984, %v2240
      %v2243 = vunpack.c.l.s4 1983009808
      %v2244 = vunpack.c.0.s8 %v2243
      %v2245 = vlaneseq
      %v2246 = vshrl.u32 %v2245, 7
      %v2247 = vsub.s32 %v2244, %v2246
      %v2248 = vrot.slane %v2234, %v2247
      %v2249 = vcombine.high %v2241, %v2241
      %v2250 = vcombine.high %v2248, %v2248
      %v2251 = vcombine.high %v1985, %v1985
      %v2253 = vunpack.c.l.s4 1983009808
      %v2254 = vunpack.c.0.s8 %v2253
      %v2255 = vlaneseq
      %v2256 = vshrl.u32 %v2255, 7
      %v2257 = vsub.s32 %v2254, %v2256
      %v2258 = vrot.slane %v1985, %v2257
      %v2260 = vunpack.c.l.s4 1983009808
      %v2261 = vunpack.c.0.s8 %v2260
      %v2262 = vlaneseq
      %v2263 = vshrl.u32 %v2262, 7
      %v2264 = vsub.s32 %v2261, %v2263
      %v2265 = vrot.slane %v2251, %v2264
      %v2266 = vcombine.high %v2258, %v2258
      %v2267 = vcombine.high %v2265, %v2265
      %v2269 = vunpack.c.l.s4 1983009808
      %v2270 = vunpack.c.0.s8 %v2269
      %v2271 = vlaneseq
      %v2272 = vshrl.u32 %v2271, 7
      %v2273 = vsub.s32 %v2270, %v2272
      %v2274 = vrot.slane %v1986, %v2273
      %v2275 = vcombine.high %v1987, %v1987
      %v2277 = vunpack.c.l.s4 1983009808
      %v2278 = vunpack.c.0.s8 %v2277
      %v2279 = vlaneseq
      %v2280 = vshrl.u32 %v2279, 7
      %v2281 = vsub.s32 %v2278, %v2280
      %v2282 = vrot.slane %v1987, %v2281
      %v2284 = vunpack.c.l.s4 1983009808
      %v2285 = vunpack.c.0.s8 %v2284
      %v2286 = vlaneseq
      %v2287 = vshrl.u32 %v2286, 7
      %v2288 = vsub.s32 %v2285, %v2287
      %v2289 = vrot.slane %v2275, %v2288
      %v2290 = vcombine.high %v2282, %v2282
      %v2291 = vcombine.high %v2289, %v2289
      %v2292 = vcombine.high %v1988, %v1988
      %v2294 = vunpack.c.l.s4 1983009808
      %v2295 = vunpack.c.0.s8 %v2294
      %v2296 = vlaneseq
      %v2297 = vshrl.u32 %v2296, 7
      %v2298 = vsub.s32 %v2295, %v2297
      %v2299 = vrot.slane %v1988, %v2298
      %v2301 = vunpack.c.l.s4 1983009808
      %v2302 = vunpack.c.0.s8 %v2301
      %v2303 = vlaneseq
      %v2304 = vshrl.u32 %v2303, 7
      %v2305 = vsub.s32 %v2302, %v2304
      %v2306 = vrot.slane %v2292, %v2305
      %v2307 = vcombine.high %v2299, %v2299
      %v2308 = vcombine.high %v2306, %v2306
      %v2310 = vunpack.c.l.s4 1983009808
      %v2311 = vunpack.c.0.s8 %v2310
      %v2312 = vlaneseq
      %v2313 = vshrl.u32 %v2312, 7
      %v2314 = vsub.s32 %v2311, %v2313
      %v2315 = vrot.slane %v1989, %v2314
      %v2316 = vcombine.high %v1990, %v1990
      %v2318 = vunpack.c.l.s4 1983009808
      %v2319 = vunpack.c.0.s8 %v2318
      %v2320 = vlaneseq
      %v2321 = vshrl.u32 %v2320, 7
      %v2322 = vsub.s32 %v2319, %v2321
      %v2323 = vrot.slane %v1990, %v2322
      %v2325 = vunpack.c.l.s4 1983009808
      %v2326 = vunpack.c.0.s8 %v2325
      %v2327 = vlaneseq
      %v2328 = vshrl.u32 %v2327, 7
      %v2329 = vsub.s32 %v2326, %v2328
      %v2330 = vrot.slane %v2316, %v2329
      %v2331 = vcombine.high %v2323, %v2323
      %v2332 = vcombine.high %v2330, %v2330
      %v2333 = vcombine.high %v1991, %v1991
      %v2335 = vunpack.c.l.s4 1983009808
      %v2336 = vunpack.c.0.s8 %v2335
      %v2337 = vlaneseq
      %v2338 = vshrl.u32 %v2337, 7
      %v2339 = vsub.s32 %v2336, %v2338
      %v2340 = vrot.slane %v1991, %v2339
      %v2342 = vunpack.c.l.s4 1983009808
      %v2343 = vunpack.c.0.s8 %v2342
      %v2344 = vlaneseq
      %v2345 = vshrl.u32 %v2344, 7
      %v2346 = vsub.s32 %v2343, %v2345
      %v2347 = vrot.slane %v2333, %v2346
      %v2348 = vcombine.high %v2340, %v2340
      %v2349 = vcombine.high %v2347, %v2347
      %v2351 = vunpack.c.l.s4 1983009808
      %v2352 = vunpack.c.0.s8 %v2351
      %v2353 = vlaneseq
      %v2354 = vshrl.u32 %v2353, 7
      %v2355 = vsub.s32 %v2352, %v2354
      %v2356 = vrot.slane %v1992, %v2355
      %v2357 = vcombine.high %v1993, %v1993
      %v2359 = vunpack.c.l.s4 1983009808
      %v2360 = vunpack.c.0.s8 %v2359
      %v2361 = vlaneseq
      %v2362 = vshrl.u32 %v2361, 7
      %v2363 = vsub.s32 %v2360, %v2362
      %v2364 = vrot.slane %v1993, %v2363
      %v2366 = vunpack.c.l.s4 1983009808
      %v2367 = vunpack.c.0.s8 %v2366
      %v2368 = vlaneseq
      %v2369 = vshrl.u32 %v2368, 7
      %v2370 = vsub.s32 %v2367, %v2369
      %v2371 = vrot.slane %v2357, %v2370
      %v2372 = vcombine.high %v2364, %v2364
      %v2373 = vcombine.high %v2371, %v2371
      %v2374 = vcombine.high %v1994, %v1994
      %v2376 = vunpack.c.l.s4 1983009808
      %v2377 = vunpack.c.0.s8 %v2376
      %v2378 = vlaneseq
      %v2379 = vshrl.u32 %v2378, 7
      %v2380 = vsub.s32 %v2377, %v2379
      %v2381 = vrot.slane %v1994, %v2380
      %v2383 = vunpack.c.l.s4 1983009808
      %v2384 = vunpack.c.0.s8 %v2383
      %v2385 = vlaneseq
      %v2386 = vshrl.u32 %v2385, 7
      %v2387 = vsub.s32 %v2384, %v2386
      %v2388 = vrot.slane %v2374, %v2387
      %v2389 = vcombine.high %v2381, %v2381
      %v2390 = vcombine.high %v2388, %v2388
      %v2392 = vunpack.c.l.s4 1983009808
      %v2393 = vunpack.c.0.s8 %v2392
      %v2394 = vlaneseq
      %v2395 = vshrl.u32 %v2394, 7
      %v2396 = vsub.s32 %v2393, %v2395
      %v2397 = vrot.slane %v1995, %v2396
      %v2398 = vcombine.high %v1996, %v1996
      %v2400 = vunpack.c.l.s4 1983009808
      %v2401 = vunpack.c.0.s8 %v2400
      %v2402 = vlaneseq
      %v2403 = vshrl.u32 %v2402, 7
      %v2404 = vsub.s32 %v2401, %v2403
      %v2405 = vrot.slane %v1996, %v2404
      %v2407 = vunpack.c.l.s4 1983009808
      %v2408 = vunpack.c.0.s8 %v2407
      %v2409 = vlaneseq
      %v2410 = vshrl.u32 %v2409, 7
      %v2411 = vsub.s32 %v2408, %v2410
      %v2412 = vrot.slane %v2398, %v2411
      %v2413 = vcombine.high %v2405, %v2405
      %v2414 = vcombine.high %v2412, %v2412
      %v2415 = vcombine.high %v1997, %v1997
      %v2417 = vunpack.c.l.s4 1983009808
      %v2418 = vunpack.c.0.s8 %v2417
      %v2419 = vlaneseq
      %v2420 = vshrl.u32 %v2419, 7
      %v2421 = vsub.s32 %v2418, %v2420
      %v2422 = vrot.slane %v1997, %v2421
      %v2424 = vunpack.c.l.s4 1983009808
      %v2425 = vunpack.c.0.s8 %v2424
      %v2426 = vlaneseq
      %v2427 = vshrl.u32 %v2426, 7
      %v2428 = vsub.s32 %v2425, %v2427
      %v2429 = vrot.slane %v2415, %v2428
      %v2430 = vcombine.high %v2422, %v2422
      %v2431 = vcombine.high %v2429, %v2429
      %v2433 = vunpack.c.l.s4 1983009808
      %v2434 = vunpack.c.0.s8 %v2433
      %v2435 = vlaneseq
      %v2436 = vshrl.u32 %v2435, 7
      %v2437 = vsub.s32 %v2434, %v2436
      %v2438 = vrot.slane %v1998, %v2437
      %v2439 = vld [vmem:[%s1968 + $0x1] sm:$0xff]
      %v2440 = vld [vmem:[%s1968 + $0x9] sm:$0xff]
      %v2441 = vld [vmem:[%s1968 + $0x11] sm:$0x3]
      %v2442 = vld [vmem:[%s1968 + $0x19] sm:$0xff]
      %v2443 = vld [vmem:[%s1968 + $0x21] sm:$0xff]
      %v2444 = vld [vmem:[%s1968 + $0x29] sm:$0x3]
      %v2445 = vld [vmem:[%s1968 + $0x31] sm:$0xff]
      %v2446 = vld [vmem:[%s1968 + $0x39] sm:$0xff]
      %v2447 = vld [vmem:[%s1968 + $0x41] sm:$0x3]
      %v2448 = vld [vmem:[%s1968 + $0x49] sm:$0xff]
      %v2449 = vld [vmem:[%s1968 + $0x51] sm:$0xff]
      %v2450 = vld [vmem:[%s1968 + $0x59] sm:$0x3]
      %v2451 = vld [vmem:[%s1968 + $0x61] sm:$0xff]
      %v2452 = vld [vmem:[%s1968 + $0x69] sm:$0xff]
      %v2453 = vld [vmem:[%s1968 + $0x71] sm:$0x3]
      %v2454 = vld [vmem:[%s1968 + $0x79] sm:$0xff]
      %v2455 = vld [vmem:[%s1968 + $0x81] sm:$0xff]
      %v2456 = vld [vmem:[%s1968 + $0x89] sm:$0x3]
      %v2457 = vld [vmem:[%s1968 + $0x91] sm:$0xff]
      %v2458 = vld [vmem:[%s1968 + $0x99] sm:$0xff]
      %v2459 = vld [vmem:[%s1968 + $0xa1] sm:$0x3]
      %v2460 = vld [vmem:[%s1968 + $0xa9] sm:$0xff]
      %v2461 = vld [vmem:[%s1968 + $0xb1] sm:$0xff]
      %v2462 = vld [vmem:[%s1968 + $0xb9] sm:$0x3]
      %v2463 = vld [vmem:[%s1968 + $0xc1] sm:$0xff]
      %v2464 = vld [vmem:[%s1968 + $0xc9] sm:$0xff]
      %v2465 = vld [vmem:[%s1968 + $0xd1] sm:$0x3]
      %v2466 = vld [vmem:[%s1968 + $0xd9] sm:$0xff]
      %v2467 = vld [vmem:[%s1968 + $0xe1] sm:$0xff]
      %v2468 = vld [vmem:[%s1968 + $0xe9] sm:$0x3]
      %v2499 = vcombine.high %v2439, %v2439
      %v2501 = vunpack.c.l.s4 1983009808
      %v2502 = vunpack.c.0.s8 %v2501
      %v2503 = vlaneseq
      %v2504 = vshrl.u32 %v2503, 7
      %v2505 = vsub.s32 %v2502, %v2504
      %v2506 = vrot.slane %v2439, %v2505
      %v2508 = vunpack.c.l.s4 1983009808
      %v2509 = vunpack.c.0.s8 %v2508
      %v2510 = vlaneseq
      %v2511 = vshrl.u32 %v2510, 7
      %v2512 = vsub.s32 %v2509, %v2511
      %v2513 = vrot.slane %v2499, %v2512
      %v2514 = vcombine.high %v2506, %v2506
      %v2515 = vcombine.high %v2513, %v2513
      %v2516 = vcombine.high %v2440, %v2440
      %v2518 = vunpack.c.l.s4 1983009808
      %v2519 = vunpack.c.0.s8 %v2518
      %v2520 = vlaneseq
      %v2521 = vshrl.u32 %v2520, 7
      %v2522 = vsub.s32 %v2519, %v2521
      %v2523 = vrot.slane %v2440, %v2522
      %v2525 = vunpack.c.l.s4 1983009808
      %v2526 = vunpack.c.0.s8 %v2525
      %v2527 = vlaneseq
      %v2528 = vshrl.u32 %v2527, 7
      %v2529 = vsub.s32 %v2526, %v2528
      %v2530 = vrot.slane %v2516, %v2529
      %v2531 = vcombine.high %v2523, %v2523
      %v2532 = vcombine.high %v2530, %v2530
      %v2534 = vunpack.c.l.s4 1983009808
      %v2535 = vunpack.c.0.s8 %v2534
      %v2536 = vlaneseq
      %v2537 = vshrl.u32 %v2536, 7
      %v2538 = vsub.s32 %v2535, %v2537
      %v2539 = vrot.slane %v2441, %v2538
      %v2540 = vcombine.high %v2442, %v2442
      %v2542 = vunpack.c.l.s4 1983009808
      %v2543 = vunpack.c.0.s8 %v2542
      %v2544 = vlaneseq
      %v2545 = vshrl.u32 %v2544, 7
      %v2546 = vsub.s32 %v2543, %v2545
      %v2547 = vrot.slane %v2442, %v2546
      %v2549 = vunpack.c.l.s4 1983009808
      %v2550 = vunpack.c.0.s8 %v2549
      %v2551 = vlaneseq
      %v2552 = vshrl.u32 %v2551, 7
      %v2553 = vsub.s32 %v2550, %v2552
      %v2554 = vrot.slane %v2540, %v2553
      %v2555 = vcombine.high %v2547, %v2547
      %v2556 = vcombine.high %v2554, %v2554
      %v2557 = vcombine.high %v2443, %v2443
      %v2559 = vunpack.c.l.s4 1983009808
      %v2560 = vunpack.c.0.s8 %v2559
      %v2561 = vlaneseq
      %v2562 = vshrl.u32 %v2561, 7
      %v2563 = vsub.s32 %v2560, %v2562
      %v2564 = vrot.slane %v2443, %v2563
      %v2566 = vunpack.c.l.s4 1983009808
      %v2567 = vunpack.c.0.s8 %v2566
      %v2568 = vlaneseq
      %v2569 = vshrl.u32 %v2568, 7
      %v2570 = vsub.s32 %v2567, %v2569
      %v2571 = vrot.slane %v2557, %v2570
      %v2572 = vcombine.high %v2564, %v2564
      %v2573 = vcombine.high %v2571, %v2571
      %v2575 = vunpack.c.l.s4 1983009808
      %v2576 = vunpack.c.0.s8 %v2575
      %v2577 = vlaneseq
      %v2578 = vshrl.u32 %v2577, 7
      %v2579 = vsub.s32 %v2576, %v2578
      %v2580 = vrot.slane %v2444, %v2579
      %v2581 = vcombine.high %v2445, %v2445
      %v2583 = vunpack.c.l.s4 1983009808
      %v2584 = vunpack.c.0.s8 %v2583
      %v2585 = vlaneseq
      %v2586 = vshrl.u32 %v2585, 7
      %v2587 = vsub.s32 %v2584, %v2586
      %v2588 = vrot.slane %v2445, %v2587
      %v2590 = vunpack.c.l.s4 1983009808
      %v2591 = vunpack.c.0.s8 %v2590
      %v2592 = vlaneseq
      %v2593 = vshrl.u32 %v2592, 7
      %v2594 = vsub.s32 %v2591, %v2593
      %v2595 = vrot.slane %v2581, %v2594
      %v2596 = vcombine.high %v2588, %v2588
      %v2597 = vcombine.high %v2595, %v2595
      %v2598 = vcombine.high %v2446, %v2446
      %v2600 = vunpack.c.l.s4 1983009808
      %v2601 = vunpack.c.0.s8 %v2600
      %v2602 = vlaneseq
      %v2603 = vshrl.u32 %v2602, 7
      %v2604 = vsub.s32 %v2601, %v2603
      %v2605 = vrot.slane %v2446, %v2604
      %v2607 = vunpack.c.l.s4 1983009808
      %v2608 = vunpack.c.0.s8 %v2607
      %v2609 = vlaneseq
      %v2610 = vshrl.u32 %v2609, 7
      %v2611 = vsub.s32 %v2608, %v2610
      %v2612 = vrot.slane %v2598, %v2611
      %v2613 = vcombine.high %v2605, %v2605
      %v2614 = vcombine.high %v2612, %v2612
      %v2616 = vunpack.c.l.s4 1983009808
      %v2617 = vunpack.c.0.s8 %v2616
      %v2618 = vlaneseq
      %v2619 = vshrl.u32 %v2618, 7
      %v2620 = vsub.s32 %v2617, %v2619
      %v2621 = vrot.slane %v2447, %v2620
      %v2622 = vcombine.high %v2448, %v2448
      %v2624 = vunpack.c.l.s4 1983009808
      %v2625 = vunpack.c.0.s8 %v2624
      %v2626 = vlaneseq
      %v2627 = vshrl.u32 %v2626, 7
      %v2628 = vsub.s32 %v2625, %v2627
      %v2629 = vrot.slane %v2448, %v2628
      %v2631 = vunpack.c.l.s4 1983009808
      %v2632 = vunpack.c.0.s8 %v2631
      %v2633 = vlaneseq
      %v2634 = vshrl.u32 %v2633, 7
      %v2635 = vsub.s32 %v2632, %v2634
      %v2636 = vrot.slane %v2622, %v2635
      %v2637 = vcombine.high %v2629, %v2629
      %v2638 = vcombine.high %v2636, %v2636
      %v2639 = vcombine.high %v2449, %v2449
      %v2641 = vunpack.c.l.s4 1983009808
      %v2642 = vunpack.c.0.s8 %v2641
      %v2643 = vlaneseq
      %v2644 = vshrl.u32 %v2643, 7
      %v2645 = vsub.s32 %v2642, %v2644
      %v2646 = vrot.slane %v2449, %v2645
      %v2648 = vunpack.c.l.s4 1983009808
      %v2649 = vunpack.c.0.s8 %v2648
      %v2650 = vlaneseq
      %v2651 = vshrl.u32 %v2650, 7
      %v2652 = vsub.s32 %v2649, %v2651
      %v2653 = vrot.slane %v2639, %v2652
      %v2654 = vcombine.high %v2646, %v2646
      %v2655 = vcombine.high %v2653, %v2653
      %v2657 = vunpack.c.l.s4 1983009808
      %v2658 = vunpack.c.0.s8 %v2657
      %v2659 = vlaneseq
      %v2660 = vshrl.u32 %v2659, 7
      %v2661 = vsub.s32 %v2658, %v2660
      %v2662 = vrot.slane %v2450, %v2661
      %v2663 = vcombine.high %v2451, %v2451
      %v2665 = vunpack.c.l.s4 1983009808
      %v2666 = vunpack.c.0.s8 %v2665
      %v2667 = vlaneseq
      %v2668 = vshrl.u32 %v2667, 7
      %v2669 = vsub.s32 %v2666, %v2668
      %v2670 = vrot.slane %v2451, %v2669
      %v2672 = vunpack.c.l.s4 1983009808
      %v2673 = vunpack.c.0.s8 %v2672
      %v2674 = vlaneseq
      %v2675 = vshrl.u32 %v2674, 7
      %v2676 = vsub.s32 %v2673, %v2675
      %v2677 = vrot.slane %v2663, %v2676
      %v2678 = vcombine.high %v2670, %v2670
      %v2679 = vcombine.high %v2677, %v2677
      %v2680 = vcombine.high %v2452, %v2452
      %v2682 = vunpack.c.l.s4 1983009808
      %v2683 = vunpack.c.0.s8 %v2682
      %v2684 = vlaneseq
      %v2685 = vshrl.u32 %v2684, 7
      %v2686 = vsub.s32 %v2683, %v2685
      %v2687 = vrot.slane %v2452, %v2686
      %v2689 = vunpack.c.l.s4 1983009808
      %v2690 = vunpack.c.0.s8 %v2689
      %v2691 = vlaneseq
      %v2692 = vshrl.u32 %v2691, 7
      %v2693 = vsub.s32 %v2690, %v2692
      %v2694 = vrot.slane %v2680, %v2693
      %v2695 = vcombine.high %v2687, %v2687
      %v2696 = vcombine.high %v2694, %v2694
      %v2698 = vunpack.c.l.s4 1983009808
      %v2699 = vunpack.c.0.s8 %v2698
      %v2700 = vlaneseq
      %v2701 = vshrl.u32 %v2700, 7
      %v2702 = vsub.s32 %v2699, %v2701
      %v2703 = vrot.slane %v2453, %v2702
      %v2704 = vcombine.high %v2454, %v2454
      %v2706 = vunpack.c.l.s4 1983009808
      %v2707 = vunpack.c.0.s8 %v2706
      %v2708 = vlaneseq
      %v2709 = vshrl.u32 %v2708, 7
      %v2710 = vsub.s32 %v2707, %v2709
      %v2711 = vrot.slane %v2454, %v2710
      %v2713 = vunpack.c.l.s4 1983009808
      %v2714 = vunpack.c.0.s8 %v2713
      %v2715 = vlaneseq
      %v2716 = vshrl.u32 %v2715, 7
      %v2717 = vsub.s32 %v2714, %v2716
      %v2718 = vrot.slane %v2704, %v2717
      %v2719 = vcombine.high %v2711, %v2711
      %v2720 = vcombine.high %v2718, %v2718
      %v2721 = vcombine.high %v2455, %v2455
      %v2723 = vunpack.c.l.s4 1983009808
      %v2724 = vunpack.c.0.s8 %v2723
      %v2725 = vlaneseq
      %v2726 = vshrl.u32 %v2725, 7
      %v2727 = vsub.s32 %v2724, %v2726
      %v2728 = vrot.slane %v2455, %v2727
      %v2730 = vunpack.c.l.s4 1983009808
      %v2731 = vunpack.c.0.s8 %v2730
      %v2732 = vlaneseq
      %v2733 = vshrl.u32 %v2732, 7
      %v2734 = vsub.s32 %v2731, %v2733
      %v2735 = vrot.slane %v2721, %v2734
      %v2736 = vcombine.high %v2728, %v2728
      %v2737 = vcombine.high %v2735, %v2735
      %v2739 = vunpack.c.l.s4 1983009808
      %v2740 = vunpack.c.0.s8 %v2739
      %v2741 = vlaneseq
      %v2742 = vshrl.u32 %v2741, 7
      %v2743 = vsub.s32 %v2740, %v2742
      %v2744 = vrot.slane %v2456, %v2743
      %v2745 = vcombine.high %v2457, %v2457
      %v2747 = vunpack.c.l.s4 1983009808
      %v2748 = vunpack.c.0.s8 %v2747
      %v2749 = vlaneseq
      %v2750 = vshrl.u32 %v2749, 7
      %v2751 = vsub.s32 %v2748, %v2750
      %v2752 = vrot.slane %v2457, %v2751
      %v2754 = vunpack.c.l.s4 1983009808
      %v2755 = vunpack.c.0.s8 %v2754
      %v2756 = vlaneseq
      %v2757 = vshrl.u32 %v2756, 7
      %v2758 = vsub.s32 %v2755, %v2757
      %v2759 = vrot.slane %v2745, %v2758
      %v2760 = vcombine.high %v2752, %v2752
      %v2761 = vcombine.high %v2759, %v2759
      %v2762 = vcombine.high %v2458, %v2458
      %v2764 = vunpack.c.l.s4 1983009808
      %v2765 = vunpack.c.0.s8 %v2764
      %v2766 = vlaneseq
      %v2767 = vshrl.u32 %v2766, 7
      %v2768 = vsub.s32 %v2765, %v2767
      %v2769 = vrot.slane %v2458, %v2768
      %v2771 = vunpack.c.l.s4 1983009808
      %v2772 = vunpack.c.0.s8 %v2771
      %v2773 = vlaneseq
      %v2774 = vshrl.u32 %v2773, 7
      %v2775 = vsub.s32 %v2772, %v2774
      %v2776 = vrot.slane %v2762, %v2775
      %v2777 = vcombine.high %v2769, %v2769
      %v2778 = vcombine.high %v2776, %v2776
      %v2780 = vunpack.c.l.s4 1983009808
      %v2781 = vunpack.c.0.s8 %v2780
      %v2782 = vlaneseq
      %v2783 = vshrl.u32 %v2782, 7
      %v2784 = vsub.s32 %v2781, %v2783
      %v2785 = vrot.slane %v2459, %v2784
      %v2786 = vcombine.high %v2460, %v2460
      %v2788 = vunpack.c.l.s4 1983009808
      %v2789 = vunpack.c.0.s8 %v2788
      %v2790 = vlaneseq
      %v2791 = vshrl.u32 %v2790, 7
      %v2792 = vsub.s32 %v2789, %v2791
      %v2793 = vrot.slane %v2460, %v2792
      %v2795 = vunpack.c.l.s4 1983009808
      %v2796 = vunpack.c.0.s8 %v2795
      %v2797 = vlaneseq
      %v2798 = vshrl.u32 %v2797, 7
      %v2799 = vsub.s32 %v2796, %v2798
      %v2800 = vrot.slane %v2786, %v2799
      %v2801 = vcombine.high %v2793, %v2793
      %v2802 = vcombine.high %v2800, %v2800
      %v2803 = vcombine.high %v2461, %v2461
      %v2805 = vunpack.c.l.s4 1983009808
      %v2806 = vunpack.c.0.s8 %v2805
      %v2807 = vlaneseq
      %v2808 = vshrl.u32 %v2807, 7
      %v2809 = vsub.s32 %v2806, %v2808
      %v2810 = vrot.slane %v2461, %v2809
      %v2812 = vunpack.c.l.s4 1983009808
      %v2813 = vunpack.c.0.s8 %v2812
      %v2814 = vlaneseq
      %v2815 = vshrl.u32 %v2814, 7
      %v2816 = vsub.s32 %v2813, %v2815
      %v2817 = vrot.slane %v2803, %v2816
      %v2818 = vcombine.high %v2810, %v2810
      %v2819 = vcombine.high %v2817, %v2817
      %v2821 = vunpack.c.l.s4 1983009808
      %v2822 = vunpack.c.0.s8 %v2821
      %v2823 = vlaneseq
      %v2824 = vshrl.u32 %v2823, 7
      %v2825 = vsub.s32 %v2822, %v2824
      %v2826 = vrot.slane %v2462, %v2825
      %v2827 = vcombine.high %v2463, %v2463
      %v2829 = vunpack.c.l.s4 1983009808
      %v2830 = vunpack.c.0.s8 %v2829
      %v2831 = vlaneseq
      %v2832 = vshrl.u32 %v2831, 7
      %v2833 = vsub.s32 %v2830, %v2832
      %v2834 = vrot.slane %v2463, %v2833
      %v2836 = vunpack.c.l.s4 1983009808
      %v2837 = vunpack.c.0.s8 %v2836
      %v2838 = vlaneseq
      %v2839 = vshrl.u32 %v2838, 7
      %v2840 = vsub.s32 %v2837, %v2839
      %v2841 = vrot.slane %v2827, %v2840
      %v2842 = vcombine.high %v2834, %v2834
      %v2843 = vcombine.high %v2841, %v2841
      %v2844 = vcombine.high %v2464, %v2464
      %v2846 = vunpack.c.l.s4 1983009808
      %v2847 = vunpack.c.0.s8 %v2846
      %v2848 = vlaneseq
      %v2849 = vshrl.u32 %v2848, 7
      %v2850 = vsub.s32 %v2847, %v2849
      %v2851 = vrot.slane %v2464, %v2850
      %v2853 = vunpack.c.l.s4 1983009808
      %v2854 = vunpack.c.0.s8 %v2853
      %v2855 = vlaneseq
      %v2856 = vshrl.u32 %v2855, 7
      %v2857 = vsub.s32 %v2854, %v2856
      %v2858 = vrot.slane %v2844, %v2857
      %v2859 = vcombine.high %v2851, %v2851
      %v2860 = vcombine.high %v2858, %v2858
      %v2862 = vunpack.c.l.s4 1983009808
      %v2863 = vunpack.c.0.s8 %v2862
      %v2864 = vlaneseq
      %v2865 = vshrl.u32 %v2864, 7
      %v2866 = vsub.s32 %v2863, %v2865
      %v2867 = vrot.slane %v2465, %v2866
      %v2868 = vcombine.high %v2466, %v2466
      %v2870 = vunpack.c.l.s4 1983009808
      %v2871 = vunpack.c.0.s8 %v2870
      %v2872 = vlaneseq
      %v2873 = vshrl.u32 %v2872, 7
      %v2874 = vsub.s32 %v2871, %v2873
      %v2875 = vrot.slane %v2466, %v2874
      %v2877 = vunpack.c.l.s4 1983009808
      %v2878 = vunpack.c.0.s8 %v2877
      %v2879 = vlaneseq
      %v2880 = vshrl.u32 %v2879, 7
      %v2881 = vsub.s32 %v2878, %v2880
      %v2882 = vrot.slane %v2868, %v2881
      %v2883 = vcombine.high %v2875, %v2875
      %v2884 = vcombine.high %v2882, %v2882
      %v2885 = vcombine.high %v2467, %v2467
      %v2887 = vunpack.c.l.s4 1983009808
      %v2888 = vunpack.c.0.s8 %v2887
      %v2889 = vlaneseq
      %v2890 = vshrl.u32 %v2889, 7
      %v2891 = vsub.s32 %v2888, %v2890
      %v2892 = vrot.slane %v2467, %v2891
      %v2894 = vunpack.c.l.s4 1983009808
      %v2895 = vunpack.c.0.s8 %v2894
      %v2896 = vlaneseq
      %v2897 = vshrl.u32 %v2896, 7
      %v2898 = vsub.s32 %v2895, %v2897
      %v2899 = vrot.slane %v2885, %v2898
      %v2900 = vcombine.high %v2892, %v2892
      %v2901 = vcombine.high %v2899, %v2899
      %v2903 = vunpack.c.l.s4 1983009808
      %v2904 = vunpack.c.0.s8 %v2903
      %v2905 = vlaneseq
      %v2906 = vshrl.u32 %v2905, 7
      %v2907 = vsub.s32 %v2904, %v2906
      %v2908 = vrot.slane %v2468, %v2907
      %v2909 = vld [vmem:[%s1968 + $0x2] sm:$0xff]
      %v2910 = vld [vmem:[%s1968 + $0xa] sm:$0xff]
      %v2911 = vld [vmem:[%s1968 + $0x12] sm:$0x3]
      %v2912 = vld [vmem:[%s1968 + $0x1a] sm:$0xff]
      %v2913 = vld [vmem:[%s1968 + $0x22] sm:$0xff]
      %v2914 = vld [vmem:[%s1968 + $0x2a] sm:$0x3]
      %v2915 = vld [vmem:[%s1968 + $0x32] sm:$0xff]
      %v2916 = vld [vmem:[%s1968 + $0x3a] sm:$0xff]
      %v2917 = vld [vmem:[%s1968 + $0x42] sm:$0x3]
      %v2918 = vld [vmem:[%s1968 + $0x4a] sm:$0xff]
      %v2919 = vld [vmem:[%s1968 + $0x52] sm:$0xff]
      %v2920 = vld [vmem:[%s1968 + $0x5a] sm:$0x3]
      %v2921 = vld [vmem:[%s1968 + $0x62] sm:$0xff]
      %v2922 = vld [vmem:[%s1968 + $0x6a] sm:$0xff]
      %v2923 = vld [vmem:[%s1968 + $0x72] sm:$0x3]
      %v2924 = vld [vmem:[%s1968 + $0x7a] sm:$0xff]
      %v2925 = vld [vmem:[%s1968 + $0x82] sm:$0xff]
      %v2926 = vld [vmem:[%s1968 + $0x8a] sm:$0x3]
      %v2927 = vld [vmem:[%s1968 + $0x92] sm:$0xff]
      %v2928 = vld [vmem:[%s1968 + $0x9a] sm:$0xff]
      %v2929 = vld [vmem:[%s1968 + $0xa2] sm:$0x3]
      %v2930 = vld [vmem:[%s1968 + $0xaa] sm:$0xff]
      %v2931 = vld [vmem:[%s1968 + $0xb2] sm:$0xff]
      %v2932 = vld [vmem:[%s1968 + $0xba] sm:$0x3]
      %v2933 = vld [vmem:[%s1968 + $0xc2] sm:$0xff]
      %v2934 = vld [vmem:[%s1968 + $0xca] sm:$0xff]
      %v2935 = vld [vmem:[%s1968 + $0xd2] sm:$0x3]
      %v2936 = vld [vmem:[%s1968 + $0xda] sm:$0xff]
      %v2937 = vld [vmem:[%s1968 + $0xe2] sm:$0xff]
      %v2938 = vld [vmem:[%s1968 + $0xea] sm:$0x3]
      %v2969 = vcombine.high %v2909, %v2909
      %v2971 = vunpack.c.l.s4 1983009808
      %v2972 = vunpack.c.0.s8 %v2971
      %v2973 = vlaneseq
      %v2974 = vshrl.u32 %v2973, 7
      %v2975 = vsub.s32 %v2972, %v2974
      %v2976 = vrot.slane %v2909, %v2975
      %v2978 = vunpack.c.l.s4 1983009808
      %v2979 = vunpack.c.0.s8 %v2978
      %v2980 = vlaneseq
      %v2981 = vshrl.u32 %v2980, 7
      %v2982 = vsub.s32 %v2979, %v2981
      %v2983 = vrot.slane %v2969, %v2982
      %v2984 = vcombine.high %v2976, %v2976
      %v2985 = vcombine.high %v2983, %v2983
      %v2986 = vcombine.high %v2910, %v2910
      %v2988 = vunpack.c.l.s4 1983009808
      %v2989 = vunpack.c.0.s8 %v2988
      %v2990 = vlaneseq
      %v2991 = vshrl.u32 %v2990, 7
      %v2992 = vsub.s32 %v2989, %v2991
      %v2993 = vrot.slane %v2910, %v2992
      %v2995 = vunpack.c.l.s4 1983009808
      %v2996 = vunpack.c.0.s8 %v2995
      %v2997 = vlaneseq
      %v2998 = vshrl.u32 %v2997, 7
      %v2999 = vsub.s32 %v2996, %v2998
      %v3000 = vrot.slane %v2986, %v2999
      %v3001 = vcombine.high %v2993, %v2993
      %v3002 = vcombine.high %v3000, %v3000
      %v3004 = vunpack.c.l.s4 1983009808
      %v3005 = vunpack.c.0.s8 %v3004
      %v3006 = vlaneseq
      %v3007 = vshrl.u32 %v3006, 7
      %v3008 = vsub.s32 %v3005, %v3007
      %v3009 = vrot.slane %v2911, %v3008
      %v3010 = vcombine.high %v2912, %v2912
      %v3012 = vunpack.c.l.s4 1983009808
      %v3013 = vunpack.c.0.s8 %v3012
      %v3014 = vlaneseq
      %v3015 = vshrl.u32 %v3014, 7
      %v3016 = vsub.s32 %v3013, %v3015
      %v3017 = vrot.slane %v2912, %v3016
      %v3019 = vunpack.c.l.s4 1983009808
      %v3020 = vunpack.c.0.s8 %v3019
      %v3021 = vlaneseq
      %v3022 = vshrl.u32 %v3021, 7
      %v3023 = vsub.s32 %v3020, %v3022
      %v3024 = vrot.slane %v3010, %v3023
      %v3025 = vcombine.high %v3017, %v3017
      %v3026 = vcombine.high %v3024, %v3024
      %v3027 = vcombine.high %v2913, %v2913
      %v3029 = vunpack.c.l.s4 1983009808
      %v3030 = vunpack.c.0.s8 %v3029
      %v3031 = vlaneseq
      %v3032 = vshrl.u32 %v3031, 7
      %v3033 = vsub.s32 %v3030, %v3032
      %v3034 = vrot.slane %v2913, %v3033
      %v3036 = vunpack.c.l.s4 1983009808
      %v3037 = vunpack.c.0.s8 %v3036
      %v3038 = vlaneseq
      %v3039 = vshrl.u32 %v3038, 7
      %v3040 = vsub.s32 %v3037, %v3039
      %v3041 = vrot.slane %v3027, %v3040
      %v3042 = vcombine.high %v3034, %v3034
      %v3043 = vcombine.high %v3041, %v3041
      %v3045 = vunpack.c.l.s4 1983009808
      %v3046 = vunpack.c.0.s8 %v3045
      %v3047 = vlaneseq
      %v3048 = vshrl.u32 %v3047, 7
      %v3049 = vsub.s32 %v3046, %v3048
      %v3050 = vrot.slane %v2914, %v3049
      %v3051 = vcombine.high %v2915, %v2915
      %v3053 = vunpack.c.l.s4 1983009808
      %v3054 = vunpack.c.0.s8 %v3053
      %v3055 = vlaneseq
      %v3056 = vshrl.u32 %v3055, 7
      %v3057 = vsub.s32 %v3054, %v3056
      %v3058 = vrot.slane %v2915, %v3057
      %v3060 = vunpack.c.l.s4 1983009808
      %v3061 = vunpack.c.0.s8 %v3060
      %v3062 = vlaneseq
      %v3063 = vshrl.u32 %v3062, 7
      %v3064 = vsub.s32 %v3061, %v3063
      %v3065 = vrot.slane %v3051, %v3064
      %v3066 = vcombine.high %v3058, %v3058
      %v3067 = vcombine.high %v3065, %v3065
      %v3068 = vcombine.high %v2916, %v2916
      %v3070 = vunpack.c.l.s4 1983009808
      %v3071 = vunpack.c.0.s8 %v3070
      %v3072 = vlaneseq
      %v3073 = vshrl.u32 %v3072, 7
      %v3074 = vsub.s32 %v3071, %v3073
      %v3075 = vrot.slane %v2916, %v3074
      %v3077 = vunpack.c.l.s4 1983009808
      %v3078 = vunpack.c.0.s8 %v3077
      %v3079 = vlaneseq
      %v3080 = vshrl.u32 %v3079, 7
      %v3081 = vsub.s32 %v3078, %v3080
      %v3082 = vrot.slane %v3068, %v3081
      %v3083 = vcombine.high %v3075, %v3075
      %v3084 = vcombine.high %v3082, %v3082
      %v3086 = vunpack.c.l.s4 1983009808
      %v3087 = vunpack.c.0.s8 %v3086
      %v3088 = vlaneseq
      %v3089 = vshrl.u32 %v3088, 7
      %v3090 = vsub.s32 %v3087, %v3089
      %v3091 = vrot.slane %v2917, %v3090
      %v3092 = vcombine.high %v2918, %v2918
      %v3094 = vunpack.c.l.s4 1983009808
      %v3095 = vunpack.c.0.s8 %v3094
      %v3096 = vlaneseq
      %v3097 = vshrl.u32 %v3096, 7
      %v3098 = vsub.s32 %v3095, %v3097
      %v3099 = vrot.slane %v2918, %v3098
      %v3101 = vunpack.c.l.s4 1983009808
      %v3102 = vunpack.c.0.s8 %v3101
      %v3103 = vlaneseq
      %v3104 = vshrl.u32 %v3103, 7
      %v3105 = vsub.s32 %v3102, %v3104
      %v3106 = vrot.slane %v3092, %v3105
      %v3107 = vcombine.high %v3099, %v3099
      %v3108 = vcombine.high %v3106, %v3106
      %v3109 = vcombine.high %v2919, %v2919
      %v3111 = vunpack.c.l.s4 1983009808
      %v3112 = vunpack.c.0.s8 %v3111
      %v3113 = vlaneseq
      %v3114 = vshrl.u32 %v3113, 7
      %v3115 = vsub.s32 %v3112, %v3114
      %v3116 = vrot.slane %v2919, %v3115
      %v3118 = vunpack.c.l.s4 1983009808
      %v3119 = vunpack.c.0.s8 %v3118
      %v3120 = vlaneseq
      %v3121 = vshrl.u32 %v3120, 7
      %v3122 = vsub.s32 %v3119, %v3121
      %v3123 = vrot.slane %v3109, %v3122
      %v3124 = vcombine.high %v3116, %v3116
      %v3125 = vcombine.high %v3123, %v3123
      %v3127 = vunpack.c.l.s4 1983009808
      %v3128 = vunpack.c.0.s8 %v3127
      %v3129 = vlaneseq
      %v3130 = vshrl.u32 %v3129, 7
      %v3131 = vsub.s32 %v3128, %v3130
      %v3132 = vrot.slane %v2920, %v3131
      %v3133 = vcombine.high %v2921, %v2921
      %v3135 = vunpack.c.l.s4 1983009808
      %v3136 = vunpack.c.0.s8 %v3135
      %v3137 = vlaneseq
      %v3138 = vshrl.u32 %v3137, 7
      %v3139 = vsub.s32 %v3136, %v3138
      %v3140 = vrot.slane %v2921, %v3139
      %v3142 = vunpack.c.l.s4 1983009808
      %v3143 = vunpack.c.0.s8 %v3142
      %v3144 = vlaneseq
      %v3145 = vshrl.u32 %v3144, 7
      %v3146 = vsub.s32 %v3143, %v3145
      %v3147 = vrot.slane %v3133, %v3146
      %v3148 = vcombine.high %v3140, %v3140
      %v3149 = vcombine.high %v3147, %v3147
      %v3150 = vcombine.high %v2922, %v2922
      %v3152 = vunpack.c.l.s4 1983009808
      %v3153 = vunpack.c.0.s8 %v3152
      %v3154 = vlaneseq
      %v3155 = vshrl.u32 %v3154, 7
      %v3156 = vsub.s32 %v3153, %v3155
      %v3157 = vrot.slane %v2922, %v3156
      %v3159 = vunpack.c.l.s4 1983009808
      %v3160 = vunpack.c.0.s8 %v3159
      %v3161 = vlaneseq
      %v3162 = vshrl.u32 %v3161, 7
      %v3163 = vsub.s32 %v3160, %v3162
      %v3164 = vrot.slane %v3150, %v3163
      %v3165 = vcombine.high %v3157, %v3157
      %v3166 = vcombine.high %v3164, %v3164
      %v3168 = vunpack.c.l.s4 1983009808
      %v3169 = vunpack.c.0.s8 %v3168
      %v3170 = vlaneseq
      %v3171 = vshrl.u32 %v3170, 7
      %v3172 = vsub.s32 %v3169, %v3171
      %v3173 = vrot.slane %v2923, %v3172
      %v3174 = vcombine.high %v2924, %v2924
      %v3176 = vunpack.c.l.s4 1983009808
      %v3177 = vunpack.c.0.s8 %v3176
      %v3178 = vlaneseq
      %v3179 = vshrl.u32 %v3178, 7
      %v3180 = vsub.s32 %v3177, %v3179
      %v3181 = vrot.slane %v2924, %v3180
      %v3183 = vunpack.c.l.s4 1983009808
      %v3184 = vunpack.c.0.s8 %v3183
      %v3185 = vlaneseq
      %v3186 = vshrl.u32 %v3185, 7
      %v3187 = vsub.s32 %v3184, %v3186
      %v3188 = vrot.slane %v3174, %v3187
      %v3189 = vcombine.high %v3181, %v3181
      %v3190 = vcombine.high %v3188, %v3188
      %v3191 = vcombine.high %v2925, %v2925
      %v3193 = vunpack.c.l.s4 1983009808
      %v3194 = vunpack.c.0.s8 %v3193
      %v3195 = vlaneseq
      %v3196 = vshrl.u32 %v3195, 7
      %v3197 = vsub.s32 %v3194, %v3196
      %v3198 = vrot.slane %v2925, %v3197
      %v3200 = vunpack.c.l.s4 1983009808
      %v3201 = vunpack.c.0.s8 %v3200
      %v3202 = vlaneseq
      %v3203 = vshrl.u32 %v3202, 7
      %v3204 = vsub.s32 %v3201, %v3203
      %v3205 = vrot.slane %v3191, %v3204
      %v3206 = vcombine.high %v3198, %v3198
      %v3207 = vcombine.high %v3205, %v3205
      %v3209 = vunpack.c.l.s4 1983009808
      %v3210 = vunpack.c.0.s8 %v3209
      %v3211 = vlaneseq
      %v3212 = vshrl.u32 %v3211, 7
      %v3213 = vsub.s32 %v3210, %v3212
      %v3214 = vrot.slane %v2926, %v3213
      %v3215 = vcombine.high %v2927, %v2927
      %v3217 = vunpack.c.l.s4 1983009808
      %v3218 = vunpack.c.0.s8 %v3217
      %v3219 = vlaneseq
      %v3220 = vshrl.u32 %v3219, 7
      %v3221 = vsub.s32 %v3218, %v3220
      %v3222 = vrot.slane %v2927, %v3221
      %v3224 = vunpack.c.l.s4 1983009808
      %v3225 = vunpack.c.0.s8 %v3224
      %v3226 = vlaneseq
      %v3227 = vshrl.u32 %v3226, 7
      %v3228 = vsub.s32 %v3225, %v3227
      %v3229 = vrot.slane %v3215, %v3228
      %v3230 = vcombine.high %v3222, %v3222
      %v3231 = vcombine.high %v3229, %v3229
      %v3232 = vcombine.high %v2928, %v2928
      %v3234 = vunpack.c.l.s4 1983009808
      %v3235 = vunpack.c.0.s8 %v3234
      %v3236 = vlaneseq
      %v3237 = vshrl.u32 %v3236, 7
      %v3238 = vsub.s32 %v3235, %v3237
      %v3239 = vrot.slane %v2928, %v3238
      %v3241 = vunpack.c.l.s4 1983009808
      %v3242 = vunpack.c.0.s8 %v3241
      %v3243 = vlaneseq
      %v3244 = vshrl.u32 %v3243, 7
      %v3245 = vsub.s32 %v3242, %v3244
      %v3246 = vrot.slane %v3232, %v3245
      %v3247 = vcombine.high %v3239, %v3239
      %v3248 = vcombine.high %v3246, %v3246
      %v3250 = vunpack.c.l.s4 1983009808
      %v3251 = vunpack.c.0.s8 %v3250
      %v3252 = vlaneseq
      %v3253 = vshrl.u32 %v3252, 7
      %v3254 = vsub.s32 %v3251, %v3253
      %v3255 = vrot.slane %v2929, %v3254
      %v3256 = vcombine.high %v2930, %v2930
      %v3258 = vunpack.c.l.s4 1983009808
      %v3259 = vunpack.c.0.s8 %v3258
      %v3260 = vlaneseq
      %v3261 = vshrl.u32 %v3260, 7
      %v3262 = vsub.s32 %v3259, %v3261
      %v3263 = vrot.slane %v2930, %v3262
      %v3265 = vunpack.c.l.s4 1983009808
      %v3266 = vunpack.c.0.s8 %v3265
      %v3267 = vlaneseq
      %v3268 = vshrl.u32 %v3267, 7
      %v3269 = vsub.s32 %v3266, %v3268
      %v3270 = vrot.slane %v3256, %v3269
      %v3271 = vcombine.high %v3263, %v3263
      %v3272 = vcombine.high %v3270, %v3270
      %v3273 = vcombine.high %v2931, %v2931
      %v3275 = vunpack.c.l.s4 1983009808
      %v3276 = vunpack.c.0.s8 %v3275
      %v3277 = vlaneseq
      %v3278 = vshrl.u32 %v3277, 7
      %v3279 = vsub.s32 %v3276, %v3278
      %v3280 = vrot.slane %v2931, %v3279
      %v3282 = vunpack.c.l.s4 1983009808
      %v3283 = vunpack.c.0.s8 %v3282
      %v3284 = vlaneseq
      %v3285 = vshrl.u32 %v3284, 7
      %v3286 = vsub.s32 %v3283, %v3285
      %v3287 = vrot.slane %v3273, %v3286
      %v3288 = vcombine.high %v3280, %v3280
      %v3289 = vcombine.high %v3287, %v3287
      %v3291 = vunpack.c.l.s4 1983009808
      %v3292 = vunpack.c.0.s8 %v3291
      %v3293 = vlaneseq
      %v3294 = vshrl.u32 %v3293, 7
      %v3295 = vsub.s32 %v3292, %v3294
      %v3296 = vrot.slane %v2932, %v3295
      %v3297 = vcombine.high %v2933, %v2933
      %v3299 = vunpack.c.l.s4 1983009808
      %v3300 = vunpack.c.0.s8 %v3299
      %v3301 = vlaneseq
      %v3302 = vshrl.u32 %v3301, 7
      %v3303 = vsub.s32 %v3300, %v3302
      %v3304 = vrot.slane %v2933, %v3303
      %v3306 = vunpack.c.l.s4 1983009808
      %v3307 = vunpack.c.0.s8 %v3306
      %v3308 = vlaneseq
      %v3309 = vshrl.u32 %v3308, 7
      %v3310 = vsub.s32 %v3307, %v3309
      %v3311 = vrot.slane %v3297, %v3310
      %v3312 = vcombine.high %v3304, %v3304
      %v3313 = vcombine.high %v3311, %v3311
      %v3314 = vcombine.high %v2934, %v2934
      %v3316 = vunpack.c.l.s4 1983009808
      %v3317 = vunpack.c.0.s8 %v3316
      %v3318 = vlaneseq
      %v3319 = vshrl.u32 %v3318, 7
      %v3320 = vsub.s32 %v3317, %v3319
      %v3321 = vrot.slane %v2934, %v3320
      %v3323 = vunpack.c.l.s4 1983009808
      %v3324 = vunpack.c.0.s8 %v3323
      %v3325 = vlaneseq
      %v3326 = vshrl.u32 %v3325, 7
      %v3327 = vsub.s32 %v3324, %v3326
      %v3328 = vrot.slane %v3314, %v3327
      %v3329 = vcombine.high %v3321, %v3321
      %v3330 = vcombine.high %v3328, %v3328
      %v3332 = vunpack.c.l.s4 1983009808
      %v3333 = vunpack.c.0.s8 %v3332
      %v3334 = vlaneseq
      %v3335 = vshrl.u32 %v3334, 7
      %v3336 = vsub.s32 %v3333, %v3335
      %v3337 = vrot.slane %v2935, %v3336
      %v3338 = vcombine.high %v2936, %v2936
      %v3340 = vunpack.c.l.s4 1983009808
      %v3341 = vunpack.c.0.s8 %v3340
      %v3342 = vlaneseq
      %v3343 = vshrl.u32 %v3342, 7
      %v3344 = vsub.s32 %v3341, %v3343
      %v3345 = vrot.slane %v2936, %v3344
      %v3347 = vunpack.c.l.s4 1983009808
      %v3348 = vunpack.c.0.s8 %v3347
      %v3349 = vlaneseq
      %v3350 = vshrl.u32 %v3349, 7
      %v3351 = vsub.s32 %v3348, %v3350
      %v3352 = vrot.slane %v3338, %v3351
      %v3353 = vcombine.high %v3345, %v3345
      %v3354 = vcombine.high %v3352, %v3352
      %v3355 = vcombine.high %v2937, %v2937
      %v3357 = vunpack.c.l.s4 1983009808
      %v3358 = vunpack.c.0.s8 %v3357
      %v3359 = vlaneseq
      %v3360 = vshrl.u32 %v3359, 7
      %v3361 = vsub.s32 %v3358, %v3360
      %v3362 = vrot.slane %v2937, %v3361
      %v3364 = vunpack.c.l.s4 1983009808
      %v3365 = vunpack.c.0.s8 %v3364
      %v3366 = vlaneseq
      %v3367 = vshrl.u32 %v3366, 7
      %v3368 = vsub.s32 %v3365, %v3367
      %v3369 = vrot.slane %v3355, %v3368
      %v3370 = vcombine.high %v3362, %v3362
      %v3371 = vcombine.high %v3369, %v3369
      %v3373 = vunpack.c.l.s4 1983009808
      %v3374 = vunpack.c.0.s8 %v3373
      %v3375 = vlaneseq
      %v3376 = vshrl.u32 %v3375, 7
      %v3377 = vsub.s32 %v3374, %v3376
      %v3378 = vrot.slane %v2938, %v3377
      %s3379 = scalar_lea.vmem [#allocation2], 48
      %v3380 = vld [vmem:[%s3379] sm:$0xff]
      %v3381 = vld [vmem:[%s3379 + $0x8] sm:$0xff]
      %v3382 = vld [vmem:[%s3379 + $0x10] sm:$0x3]
      %v3383 = vld [vmem:[%s3379 + $0x18] sm:$0xff]
      %v3384 = vld [vmem:[%s3379 + $0x20] sm:$0xff]
      %v3385 = vld [vmem:[%s3379 + $0x28] sm:$0x3]
      %v3386 = vld [vmem:[%s3379 + $0x30] sm:$0xff]
      %v3387 = vld [vmem:[%s3379 + $0x38] sm:$0xff]
      %v3388 = vld [vmem:[%s3379 + $0x40] sm:$0x3]
      %v3389 = vld [vmem:[%s3379 + $0x48] sm:$0xff]
      %v3390 = vld [vmem:[%s3379 + $0x50] sm:$0xff]
      %v3391 = vld [vmem:[%s3379 + $0x58] sm:$0x3]
      %v3392 = vld [vmem:[%s3379 + $0x60] sm:$0xff]
      %v3393 = vld [vmem:[%s3379 + $0x68] sm:$0xff]
      %v3394 = vld [vmem:[%s3379 + $0x70] sm:$0x3]
      %v3395 = vld [vmem:[%s3379 + $0x78] sm:$0xff]
      %v3396 = vld [vmem:[%s3379 + $0x80] sm:$0xff]
      %v3397 = vld [vmem:[%s3379 + $0x88] sm:$0x3]
      %v3398 = vld [vmem:[%s3379 + $0x90] sm:$0xff]
      %v3399 = vld [vmem:[%s3379 + $0x98] sm:$0xff]
      %v3400 = vld [vmem:[%s3379 + $0xa0] sm:$0x3]
      %v3401 = vld [vmem:[%s3379 + $0xa8] sm:$0xff]
      %v3402 = vld [vmem:[%s3379 + $0xb0] sm:$0xff]
      %v3403 = vld [vmem:[%s3379 + $0xb8] sm:$0x3]
      %v3404 = vld [vmem:[%s3379 + $0xc0] sm:$0xff]
      %v3405 = vld [vmem:[%s3379 + $0xc8] sm:$0xff]
      %v3406 = vld [vmem:[%s3379 + $0xd0] sm:$0x3]
      %v3407 = vld [vmem:[%s3379 + $0xd8] sm:$0xff]
      %v3408 = vld [vmem:[%s3379 + $0xe0] sm:$0xff]
      %v3409 = vld [vmem:[%s3379 + $0xe8] sm:$0x3]
      %v3440 = vcombine.high %v3380, %v3380
      %v3442 = vunpack.c.l.s4 1983009808
      %v3443 = vunpack.c.0.s8 %v3442
      %v3444 = vlaneseq
      %v3445 = vshrl.u32 %v3444, 7
      %v3446 = vsub.s32 %v3443, %v3445
      %v3447 = vrot.slane %v3380, %v3446
      %v3449 = vunpack.c.l.s4 1983009808
      %v3450 = vunpack.c.0.s8 %v3449
      %v3451 = vlaneseq
      %v3452 = vshrl.u32 %v3451, 7
      %v3453 = vsub.s32 %v3450, %v3452
      %v3454 = vrot.slane %v3440, %v3453
      %v3455 = vcombine.high %v3447, %v3447
      %v3456 = vcombine.high %v3454, %v3454
      %v3457 = vcombine.high %v3381, %v3381
      %v3459 = vunpack.c.l.s4 1983009808
      %v3460 = vunpack.c.0.s8 %v3459
      %v3461 = vlaneseq
      %v3462 = vshrl.u32 %v3461, 7
      %v3463 = vsub.s32 %v3460, %v3462
      %v3464 = vrot.slane %v3381, %v3463
      %v3466 = vunpack.c.l.s4 1983009808
      %v3467 = vunpack.c.0.s8 %v3466
      %v3468 = vlaneseq
      %v3469 = vshrl.u32 %v3468, 7
      %v3470 = vsub.s32 %v3467, %v3469
      %v3471 = vrot.slane %v3457, %v3470
      %v3472 = vcombine.high %v3464, %v3464
      %v3473 = vcombine.high %v3471, %v3471
      %v3475 = vunpack.c.l.s4 1983009808
      %v3476 = vunpack.c.0.s8 %v3475
      %v3477 = vlaneseq
      %v3478 = vshrl.u32 %v3477, 7
      %v3479 = vsub.s32 %v3476, %v3478
      %v3480 = vrot.slane %v3382, %v3479
      %v3481 = vcombine.high %v3383, %v3383
      %v3483 = vunpack.c.l.s4 1983009808
      %v3484 = vunpack.c.0.s8 %v3483
      %v3485 = vlaneseq
      %v3486 = vshrl.u32 %v3485, 7
      %v3487 = vsub.s32 %v3484, %v3486
      %v3488 = vrot.slane %v3383, %v3487
      %v3490 = vunpack.c.l.s4 1983009808
      %v3491 = vunpack.c.0.s8 %v3490
      %v3492 = vlaneseq
      %v3493 = vshrl.u32 %v3492, 7
      %v3494 = vsub.s32 %v3491, %v3493
      %v3495 = vrot.slane %v3481, %v3494
      %v3496 = vcombine.high %v3488, %v3488
      %v3497 = vcombine.high %v3495, %v3495
      %v3498 = vcombine.high %v3384, %v3384
      %v3500 = vunpack.c.l.s4 1983009808
      %v3501 = vunpack.c.0.s8 %v3500
      %v3502 = vlaneseq
      %v3503 = vshrl.u32 %v3502, 7
      %v3504 = vsub.s32 %v3501, %v3503
      %v3505 = vrot.slane %v3384, %v3504
      %v3507 = vunpack.c.l.s4 1983009808
      %v3508 = vunpack.c.0.s8 %v3507
      %v3509 = vlaneseq
      %v3510 = vshrl.u32 %v3509, 7
      %v3511 = vsub.s32 %v3508, %v3510
      %v3512 = vrot.slane %v3498, %v3511
      %v3513 = vcombine.high %v3505, %v3505
      %v3514 = vcombine.high %v3512, %v3512
      %v3516 = vunpack.c.l.s4 1983009808
      %v3517 = vunpack.c.0.s8 %v3516
      %v3518 = vlaneseq
      %v3519 = vshrl.u32 %v3518, 7
      %v3520 = vsub.s32 %v3517, %v3519
      %v3521 = vrot.slane %v3385, %v3520
      %v3522 = vcombine.high %v3386, %v3386
      %v3524 = vunpack.c.l.s4 1983009808
      %v3525 = vunpack.c.0.s8 %v3524
      %v3526 = vlaneseq
      %v3527 = vshrl.u32 %v3526, 7
      %v3528 = vsub.s32 %v3525, %v3527
      %v3529 = vrot.slane %v3386, %v3528
      %v3531 = vunpack.c.l.s4 1983009808
      %v3532 = vunpack.c.0.s8 %v3531
      %v3533 = vlaneseq
      %v3534 = vshrl.u32 %v3533, 7
      %v3535 = vsub.s32 %v3532, %v3534
      %v3536 = vrot.slane %v3522, %v3535
      %v3537 = vcombine.high %v3529, %v3529
      %v3538 = vcombine.high %v3536, %v3536
      %v3539 = vcombine.high %v3387, %v3387
      %v3541 = vunpack.c.l.s4 1983009808
      %v3542 = vunpack.c.0.s8 %v3541
      %v3543 = vlaneseq
      %v3544 = vshrl.u32 %v3543, 7
      %v3545 = vsub.s32 %v3542, %v3544
      %v3546 = vrot.slane %v3387, %v3545
      %v3548 = vunpack.c.l.s4 1983009808
      %v3549 = vunpack.c.0.s8 %v3548
      %v3550 = vlaneseq
      %v3551 = vshrl.u32 %v3550, 7
      %v3552 = vsub.s32 %v3549, %v3551
      %v3553 = vrot.slane %v3539, %v3552
      %v3554 = vcombine.high %v3546, %v3546
      %v3555 = vcombine.high %v3553, %v3553
      %v3557 = vunpack.c.l.s4 1983009808
      %v3558 = vunpack.c.0.s8 %v3557
      %v3559 = vlaneseq
      %v3560 = vshrl.u32 %v3559, 7
      %v3561 = vsub.s32 %v3558, %v3560
      %v3562 = vrot.slane %v3388, %v3561
      %v3563 = vcombine.high %v3389, %v3389
      %v3565 = vunpack.c.l.s4 1983009808
      %v3566 = vunpack.c.0.s8 %v3565
      %v3567 = vlaneseq
      %v3568 = vshrl.u32 %v3567, 7
      %v3569 = vsub.s32 %v3566, %v3568
      %v3570 = vrot.slane %v3389, %v3569
      %v3572 = vunpack.c.l.s4 1983009808
      %v3573 = vunpack.c.0.s8 %v3572
      %v3574 = vlaneseq
      %v3575 = vshrl.u32 %v3574, 7
      %v3576 = vsub.s32 %v3573, %v3575
      %v3577 = vrot.slane %v3563, %v3576
      %v3578 = vcombine.high %v3570, %v3570
      %v3579 = vcombine.high %v3577, %v3577
      %v3580 = vcombine.high %v3390, %v3390
      %v3582 = vunpack.c.l.s4 1983009808
      %v3583 = vunpack.c.0.s8 %v3582
      %v3584 = vlaneseq
      %v3585 = vshrl.u32 %v3584, 7
      %v3586 = vsub.s32 %v3583, %v3585
      %v3587 = vrot.slane %v3390, %v3586
      %v3589 = vunpack.c.l.s4 1983009808
      %v3590 = vunpack.c.0.s8 %v3589
      %v3591 = vlaneseq
      %v3592 = vshrl.u32 %v3591, 7
      %v3593 = vsub.s32 %v3590, %v3592
      %v3594 = vrot.slane %v3580, %v3593
      %v3595 = vcombine.high %v3587, %v3587
      %v3596 = vcombine.high %v3594, %v3594
      %v3598 = vunpack.c.l.s4 1983009808
      %v3599 = vunpack.c.0.s8 %v3598
      %v3600 = vlaneseq
      %v3601 = vshrl.u32 %v3600, 7
      %v3602 = vsub.s32 %v3599, %v3601
      %v3603 = vrot.slane %v3391, %v3602
      %v3604 = vcombine.high %v3392, %v3392
      %v3606 = vunpack.c.l.s4 1983009808
      %v3607 = vunpack.c.0.s8 %v3606
      %v3608 = vlaneseq
      %v3609 = vshrl.u32 %v3608, 7
      %v3610 = vsub.s32 %v3607, %v3609
      %v3611 = vrot.slane %v3392, %v3610
      %v3613 = vunpack.c.l.s4 1983009808
      %v3614 = vunpack.c.0.s8 %v3613
      %v3615 = vlaneseq
      %v3616 = vshrl.u32 %v3615, 7
      %v3617 = vsub.s32 %v3614, %v3616
      %v3618 = vrot.slane %v3604, %v3617
      %v3619 = vcombine.high %v3611, %v3611
      %v3620 = vcombine.high %v3618, %v3618
      %v3621 = vcombine.high %v3393, %v3393
      %v3623 = vunpack.c.l.s4 1983009808
      %v3624 = vunpack.c.0.s8 %v3623
      %v3625 = vlaneseq
      %v3626 = vshrl.u32 %v3625, 7
      %v3627 = vsub.s32 %v3624, %v3626
      %v3628 = vrot.slane %v3393, %v3627
      %v3630 = vunpack.c.l.s4 1983009808
      %v3631 = vunpack.c.0.s8 %v3630
      %v3632 = vlaneseq
      %v3633 = vshrl.u32 %v3632, 7
      %v3634 = vsub.s32 %v3631, %v3633
      %v3635 = vrot.slane %v3621, %v3634
      %v3636 = vcombine.high %v3628, %v3628
      %v3637 = vcombine.high %v3635, %v3635
      %v3639 = vunpack.c.l.s4 1983009808
      %v3640 = vunpack.c.0.s8 %v3639
      %v3641 = vlaneseq
      %v3642 = vshrl.u32 %v3641, 7
      %v3643 = vsub.s32 %v3640, %v3642
      %v3644 = vrot.slane %v3394, %v3643
      %v3645 = vcombine.high %v3395, %v3395
      %v3647 = vunpack.c.l.s4 1983009808
      %v3648 = vunpack.c.0.s8 %v3647
      %v3649 = vlaneseq
      %v3650 = vshrl.u32 %v3649, 7
      %v3651 = vsub.s32 %v3648, %v3650
      %v3652 = vrot.slane %v3395, %v3651
      %v3654 = vunpack.c.l.s4 1983009808
      %v3655 = vunpack.c.0.s8 %v3654
      %v3656 = vlaneseq
      %v3657 = vshrl.u32 %v3656, 7
      %v3658 = vsub.s32 %v3655, %v3657
      %v3659 = vrot.slane %v3645, %v3658
      %v3660 = vcombine.high %v3652, %v3652
      %v3661 = vcombine.high %v3659, %v3659
      %v3662 = vcombine.high %v3396, %v3396
      %v3664 = vunpack.c.l.s4 1983009808
      %v3665 = vunpack.c.0.s8 %v3664
      %v3666 = vlaneseq
      %v3667 = vshrl.u32 %v3666, 7
      %v3668 = vsub.s32 %v3665, %v3667
      %v3669 = vrot.slane %v3396, %v3668
      %v3671 = vunpack.c.l.s4 1983009808
      %v3672 = vunpack.c.0.s8 %v3671
      %v3673 = vlaneseq
      %v3674 = vshrl.u32 %v3673, 7
      %v3675 = vsub.s32 %v3672, %v3674
      %v3676 = vrot.slane %v3662, %v3675
      %v3677 = vcombine.high %v3669, %v3669
      %v3678 = vcombine.high %v3676, %v3676
      %v3680 = vunpack.c.l.s4 1983009808
      %v3681 = vunpack.c.0.s8 %v3680
      %v3682 = vlaneseq
      %v3683 = vshrl.u32 %v3682, 7
      %v3684 = vsub.s32 %v3681, %v3683
      %v3685 = vrot.slane %v3397, %v3684
      %v3686 = vcombine.high %v3398, %v3398
      %v3688 = vunpack.c.l.s4 1983009808
      %v3689 = vunpack.c.0.s8 %v3688
      %v3690 = vlaneseq
      %v3691 = vshrl.u32 %v3690, 7
      %v3692 = vsub.s32 %v3689, %v3691
      %v3693 = vrot.slane %v3398, %v3692
      %v3695 = vunpack.c.l.s4 1983009808
      %v3696 = vunpack.c.0.s8 %v3695
      %v3697 = vlaneseq
      %v3698 = vshrl.u32 %v3697, 7
      %v3699 = vsub.s32 %v3696, %v3698
      %v3700 = vrot.slane %v3686, %v3699
      %v3701 = vcombine.high %v3693, %v3693
      %v3702 = vcombine.high %v3700, %v3700
      %v3703 = vcombine.high %v3399, %v3399
      %v3705 = vunpack.c.l.s4 1983009808
      %v3706 = vunpack.c.0.s8 %v3705
      %v3707 = vlaneseq
      %v3708 = vshrl.u32 %v3707, 7
      %v3709 = vsub.s32 %v3706, %v3708
      %v3710 = vrot.slane %v3399, %v3709
      %v3712 = vunpack.c.l.s4 1983009808
      %v3713 = vunpack.c.0.s8 %v3712
      %v3714 = vlaneseq
      %v3715 = vshrl.u32 %v3714, 7
      %v3716 = vsub.s32 %v3713, %v3715
      %v3717 = vrot.slane %v3703, %v3716
      %v3718 = vcombine.high %v3710, %v3710
      %v3719 = vcombine.high %v3717, %v3717
      %v3721 = vunpack.c.l.s4 1983009808
      %v3722 = vunpack.c.0.s8 %v3721
      %v3723 = vlaneseq
      %v3724 = vshrl.u32 %v3723, 7
      %v3725 = vsub.s32 %v3722, %v3724
      %v3726 = vrot.slane %v3400, %v3725
      %v3727 = vcombine.high %v3401, %v3401
      %v3729 = vunpack.c.l.s4 1983009808
      %v3730 = vunpack.c.0.s8 %v3729
      %v3731 = vlaneseq
      %v3732 = vshrl.u32 %v3731, 7
      %v3733 = vsub.s32 %v3730, %v3732
      %v3734 = vrot.slane %v3401, %v3733
      %v3736 = vunpack.c.l.s4 1983009808
      %v3737 = vunpack.c.0.s8 %v3736
      %v3738 = vlaneseq
      %v3739 = vshrl.u32 %v3738, 7
      %v3740 = vsub.s32 %v3737, %v3739
      %v3741 = vrot.slane %v3727, %v3740
      %v3742 = vcombine.high %v3734, %v3734
      %v3743 = vcombine.high %v3741, %v3741
      %v3744 = vcombine.high %v3402, %v3402
      %v3746 = vunpack.c.l.s4 1983009808
      %v3747 = vunpack.c.0.s8 %v3746
      %v3748 = vlaneseq
      %v3749 = vshrl.u32 %v3748, 7
      %v3750 = vsub.s32 %v3747, %v3749
      %v3751 = vrot.slane %v3402, %v3750
      %v3753 = vunpack.c.l.s4 1983009808
      %v3754 = vunpack.c.0.s8 %v3753
      %v3755 = vlaneseq
      %v3756 = vshrl.u32 %v3755, 7
      %v3757 = vsub.s32 %v3754, %v3756
      %v3758 = vrot.slane %v3744, %v3757
      %v3759 = vcombine.high %v3751, %v3751
      %v3760 = vcombine.high %v3758, %v3758
      %v3762 = vunpack.c.l.s4 1983009808
      %v3763 = vunpack.c.0.s8 %v3762
      %v3764 = vlaneseq
      %v3765 = vshrl.u32 %v3764, 7
      %v3766 = vsub.s32 %v3763, %v3765
      %v3767 = vrot.slane %v3403, %v3766
      %v3768 = vcombine.high %v3404, %v3404
      %v3770 = vunpack.c.l.s4 1983009808
      %v3771 = vunpack.c.0.s8 %v3770
      %v3772 = vlaneseq
      %v3773 = vshrl.u32 %v3772, 7
      %v3774 = vsub.s32 %v3771, %v3773
      %v3775 = vrot.slane %v3404, %v3774
      %v3777 = vunpack.c.l.s4 1983009808
      %v3778 = vunpack.c.0.s8 %v3777
      %v3779 = vlaneseq
      %v3780 = vshrl.u32 %v3779, 7
      %v3781 = vsub.s32 %v3778, %v3780
      %v3782 = vrot.slane %v3768, %v3781
      %v3783 = vcombine.high %v3775, %v3775
      %v3784 = vcombine.high %v3782, %v3782
      %v3785 = vcombine.high %v3405, %v3405
      %v3787 = vunpack.c.l.s4 1983009808
      %v3788 = vunpack.c.0.s8 %v3787
      %v3789 = vlaneseq
      %v3790 = vshrl.u32 %v3789, 7
      %v3791 = vsub.s32 %v3788, %v3790
      %v3792 = vrot.slane %v3405, %v3791
      %v3794 = vunpack.c.l.s4 1983009808
      %v3795 = vunpack.c.0.s8 %v3794
      %v3796 = vlaneseq
      %v3797 = vshrl.u32 %v3796, 7
      %v3798 = vsub.s32 %v3795, %v3797
      %v3799 = vrot.slane %v3785, %v3798
      %v3800 = vcombine.high %v3792, %v3792
      %v3801 = vcombine.high %v3799, %v3799
      %v3803 = vunpack.c.l.s4 1983009808
      %v3804 = vunpack.c.0.s8 %v3803
      %v3805 = vlaneseq
      %v3806 = vshrl.u32 %v3805, 7
      %v3807 = vsub.s32 %v3804, %v3806
      %v3808 = vrot.slane %v3406, %v3807
      %v3809 = vcombine.high %v3407, %v3407
      %v3811 = vunpack.c.l.s4 1983009808
      %v3812 = vunpack.c.0.s8 %v3811
      %v3813 = vlaneseq
      %v3814 = vshrl.u32 %v3813, 7
      %v3815 = vsub.s32 %v3812, %v3814
      %v3816 = vrot.slane %v3407, %v3815
      %v3818 = vunpack.c.l.s4 1983009808
      %v3819 = vunpack.c.0.s8 %v3818
      %v3820 = vlaneseq
      %v3821 = vshrl.u32 %v3820, 7
      %v3822 = vsub.s32 %v3819, %v3821
      %v3823 = vrot.slane %v3809, %v3822
      %v3824 = vcombine.high %v3816, %v3816
      %v3825 = vcombine.high %v3823, %v3823
      %v3826 = vcombine.high %v3408, %v3408
      %v3828 = vunpack.c.l.s4 1983009808
      %v3829 = vunpack.c.0.s8 %v3828
      %v3830 = vlaneseq
      %v3831 = vshrl.u32 %v3830, 7
      %v3832 = vsub.s32 %v3829, %v3831
      %v3833 = vrot.slane %v3408, %v3832
      %v3835 = vunpack.c.l.s4 1983009808
      %v3836 = vunpack.c.0.s8 %v3835
      %v3837 = vlaneseq
      %v3838 = vshrl.u32 %v3837, 7
      %v3839 = vsub.s32 %v3836, %v3838
      %v3840 = vrot.slane %v3826, %v3839
      %v3841 = vcombine.high %v3833, %v3833
      %v3842 = vcombine.high %v3840, %v3840
      %v3844 = vunpack.c.l.s4 1983009808
      %v3845 = vunpack.c.0.s8 %v3844
      %v3846 = vlaneseq
      %v3847 = vshrl.u32 %v3846, 7
      %v3848 = vsub.s32 %v3845, %v3847
      %v3849 = vrot.slane %v3409, %v3848
      %v3850 = vld [vmem:[%s3379 + $0x1] sm:$0xff]
      %v3851 = vld [vmem:[%s3379 + $0x9] sm:$0xff]
      %v3852 = vld [vmem:[%s3379 + $0x11] sm:$0x3]
      %v3853 = vld [vmem:[%s3379 + $0x19] sm:$0xff]
      %v3854 = vld [vmem:[%s3379 + $0x21] sm:$0xff]
      %v3855 = vld [vmem:[%s3379 + $0x29] sm:$0x3]
      %v3856 = vld [vmem:[%s3379 + $0x31] sm:$0xff]
      %v3857 = vld [vmem:[%s3379 + $0x39] sm:$0xff]
      %v3858 = vld [vmem:[%s3379 + $0x41] sm:$0x3]
      %v3859 = vld [vmem:[%s3379 + $0x49] sm:$0xff]
      %v3860 = vld [vmem:[%s3379 + $0x51] sm:$0xff]
      %v3861 = vld [vmem:[%s3379 + $0x59] sm:$0x3]
      %v3862 = vld [vmem:[%s3379 + $0x61] sm:$0xff]
      %v3863 = vld [vmem:[%s3379 + $0x69] sm:$0xff]
      %v3864 = vld [vmem:[%s3379 + $0x71] sm:$0x3]
      %v3865 = vld [vmem:[%s3379 + $0x79] sm:$0xff]
      %v3866 = vld [vmem:[%s3379 + $0x81] sm:$0xff]
      %v3867 = vld [vmem:[%s3379 + $0x89] sm:$0x3]
      %v3868 = vld [vmem:[%s3379 + $0x91] sm:$0xff]
      %v3869 = vld [vmem:[%s3379 + $0x99] sm:$0xff]
      %v3870 = vld [vmem:[%s3379 + $0xa1] sm:$0x3]
      %v3871 = vld [vmem:[%s3379 + $0xa9] sm:$0xff]
      %v3872 = vld [vmem:[%s3379 + $0xb1] sm:$0xff]
      %v3873 = vld [vmem:[%s3379 + $0xb9] sm:$0x3]
      %v3874 = vld [vmem:[%s3379 + $0xc1] sm:$0xff]
      %v3875 = vld [vmem:[%s3379 + $0xc9] sm:$0xff]
      %v3876 = vld [vmem:[%s3379 + $0xd1] sm:$0x3]
      %v3877 = vld [vmem:[%s3379 + $0xd9] sm:$0xff]
      %v3878 = vld [vmem:[%s3379 + $0xe1] sm:$0xff]
      %v3879 = vld [vmem:[%s3379 + $0xe9] sm:$0x3]
      %v3910 = vcombine.high %v3850, %v3850
      %v3912 = vunpack.c.l.s4 1983009808
      %v3913 = vunpack.c.0.s8 %v3912
      %v3914 = vlaneseq
      %v3915 = vshrl.u32 %v3914, 7
      %v3916 = vsub.s32 %v3913, %v3915
      %v3917 = vrot.slane %v3850, %v3916
      %v3919 = vunpack.c.l.s4 1983009808
      %v3920 = vunpack.c.0.s8 %v3919
      %v3921 = vlaneseq
      %v3922 = vshrl.u32 %v3921, 7
      %v3923 = vsub.s32 %v3920, %v3922
      %v3924 = vrot.slane %v3910, %v3923
      %v3925 = vcombine.high %v3917, %v3917
      %v3926 = vcombine.high %v3924, %v3924
      %v3927 = vcombine.high %v3851, %v3851
      %v3929 = vunpack.c.l.s4 1983009808
      %v3930 = vunpack.c.0.s8 %v3929
      %v3931 = vlaneseq
      %v3932 = vshrl.u32 %v3931, 7
      %v3933 = vsub.s32 %v3930, %v3932
      %v3934 = vrot.slane %v3851, %v3933
      %v3936 = vunpack.c.l.s4 1983009808
      %v3937 = vunpack.c.0.s8 %v3936
      %v3938 = vlaneseq
      %v3939 = vshrl.u32 %v3938, 7
      %v3940 = vsub.s32 %v3937, %v3939
      %v3941 = vrot.slane %v3927, %v3940
      %v3942 = vcombine.high %v3934, %v3934
      %v3943 = vcombine.high %v3941, %v3941
      %v3945 = vunpack.c.l.s4 1983009808
      %v3946 = vunpack.c.0.s8 %v3945
      %v3947 = vlaneseq
      %v3948 = vshrl.u32 %v3947, 7
      %v3949 = vsub.s32 %v3946, %v3948
      %v3950 = vrot.slane %v3852, %v3949
      %v3951 = vcombine.high %v3853, %v3853
      %v3953 = vunpack.c.l.s4 1983009808
      %v3954 = vunpack.c.0.s8 %v3953
      %v3955 = vlaneseq
      %v3956 = vshrl.u32 %v3955, 7
      %v3957 = vsub.s32 %v3954, %v3956
      %v3958 = vrot.slane %v3853, %v3957
      %v3960 = vunpack.c.l.s4 1983009808
      %v3961 = vunpack.c.0.s8 %v3960
      %v3962 = vlaneseq
      %v3963 = vshrl.u32 %v3962, 7
      %v3964 = vsub.s32 %v3961, %v3963
      %v3965 = vrot.slane %v3951, %v3964
      %v3966 = vcombine.high %v3958, %v3958
      %v3967 = vcombine.high %v3965, %v3965
      %v3968 = vcombine.high %v3854, %v3854
      %v3970 = vunpack.c.l.s4 1983009808
      %v3971 = vunpack.c.0.s8 %v3970
      %v3972 = vlaneseq
      %v3973 = vshrl.u32 %v3972, 7
      %v3974 = vsub.s32 %v3971, %v3973
      %v3975 = vrot.slane %v3854, %v3974
      %v3977 = vunpack.c.l.s4 1983009808
      %v3978 = vunpack.c.0.s8 %v3977
      %v3979 = vlaneseq
      %v3980 = vshrl.u32 %v3979, 7
      %v3981 = vsub.s32 %v3978, %v3980
      %v3982 = vrot.slane %v3968, %v3981
      %v3983 = vcombine.high %v3975, %v3975
      %v3984 = vcombine.high %v3982, %v3982
      %v3986 = vunpack.c.l.s4 1983009808
      %v3987 = vunpack.c.0.s8 %v3986
      %v3988 = vlaneseq
      %v3989 = vshrl.u32 %v3988, 7
      %v3990 = vsub.s32 %v3987, %v3989
      %v3991 = vrot.slane %v3855, %v3990
      %v3992 = vcombine.high %v3856, %v3856
      %v3994 = vunpack.c.l.s4 1983009808
      %v3995 = vunpack.c.0.s8 %v3994
      %v3996 = vlaneseq
      %v3997 = vshrl.u32 %v3996, 7
      %v3998 = vsub.s32 %v3995, %v3997
      %v3999 = vrot.slane %v3856, %v3998
      %v4001 = vunpack.c.l.s4 1983009808
      %v4002 = vunpack.c.0.s8 %v4001
      %v4003 = vlaneseq
      %v4004 = vshrl.u32 %v4003, 7
      %v4005 = vsub.s32 %v4002, %v4004
      %v4006 = vrot.slane %v3992, %v4005
      %v4007 = vcombine.high %v3999, %v3999
      %v4008 = vcombine.high %v4006, %v4006
      %v4009 = vcombine.high %v3857, %v3857
      %v4011 = vunpack.c.l.s4 1983009808
      %v4012 = vunpack.c.0.s8 %v4011
      %v4013 = vlaneseq
      %v4014 = vshrl.u32 %v4013, 7
      %v4015 = vsub.s32 %v4012, %v4014
      %v4016 = vrot.slane %v3857, %v4015
      %v4018 = vunpack.c.l.s4 1983009808
      %v4019 = vunpack.c.0.s8 %v4018
      %v4020 = vlaneseq
      %v4021 = vshrl.u32 %v4020, 7
      %v4022 = vsub.s32 %v4019, %v4021
      %v4023 = vrot.slane %v4009, %v4022
      %v4024 = vcombine.high %v4016, %v4016
      %v4025 = vcombine.high %v4023, %v4023
      %v4027 = vunpack.c.l.s4 1983009808
      %v4028 = vunpack.c.0.s8 %v4027
      %v4029 = vlaneseq
      %v4030 = vshrl.u32 %v4029, 7
      %v4031 = vsub.s32 %v4028, %v4030
      %v4032 = vrot.slane %v3858, %v4031
      %v4033 = vcombine.high %v3859, %v3859
      %v4035 = vunpack.c.l.s4 1983009808
      %v4036 = vunpack.c.0.s8 %v4035
      %v4037 = vlaneseq
      %v4038 = vshrl.u32 %v4037, 7
      %v4039 = vsub.s32 %v4036, %v4038
      %v4040 = vrot.slane %v3859, %v4039
      %v4042 = vunpack.c.l.s4 1983009808
      %v4043 = vunpack.c.0.s8 %v4042
      %v4044 = vlaneseq
      %v4045 = vshrl.u32 %v4044, 7
      %v4046 = vsub.s32 %v4043, %v4045
      %v4047 = vrot.slane %v4033, %v4046
      %v4048 = vcombine.high %v4040, %v4040
      %v4049 = vcombine.high %v4047, %v4047
      %v4050 = vcombine.high %v3860, %v3860
      %v4052 = vunpack.c.l.s4 1983009808
      %v4053 = vunpack.c.0.s8 %v4052
      %v4054 = vlaneseq
      %v4055 = vshrl.u32 %v4054, 7
      %v4056 = vsub.s32 %v4053, %v4055
      %v4057 = vrot.slane %v3860, %v4056
      %v4059 = vunpack.c.l.s4 1983009808
      %v4060 = vunpack.c.0.s8 %v4059
      %v4061 = vlaneseq
      %v4062 = vshrl.u32 %v4061, 7
      %v4063 = vsub.s32 %v4060, %v4062
      %v4064 = vrot.slane %v4050, %v4063
      %v4065 = vcombine.high %v4057, %v4057
      %v4066 = vcombine.high %v4064, %v4064
      %v4068 = vunpack.c.l.s4 1983009808
      %v4069 = vunpack.c.0.s8 %v4068
      %v4070 = vlaneseq
      %v4071 = vshrl.u32 %v4070, 7
      %v4072 = vsub.s32 %v4069, %v4071
      %v4073 = vrot.slane %v3861, %v4072
      %v4074 = vcombine.high %v3862, %v3862
      %v4076 = vunpack.c.l.s4 1983009808
      %v4077 = vunpack.c.0.s8 %v4076
      %v4078 = vlaneseq
      %v4079 = vshrl.u32 %v4078, 7
      %v4080 = vsub.s32 %v4077, %v4079
      %v4081 = vrot.slane %v3862, %v4080
      %v4083 = vunpack.c.l.s4 1983009808
      %v4084 = vunpack.c.0.s8 %v4083
      %v4085 = vlaneseq
      %v4086 = vshrl.u32 %v4085, 7
      %v4087 = vsub.s32 %v4084, %v4086
      %v4088 = vrot.slane %v4074, %v4087
      %v4089 = vcombine.high %v4081, %v4081
      %v4090 = vcombine.high %v4088, %v4088
      %v4091 = vcombine.high %v3863, %v3863
      %v4093 = vunpack.c.l.s4 1983009808
      %v4094 = vunpack.c.0.s8 %v4093
      %v4095 = vlaneseq
      %v4096 = vshrl.u32 %v4095, 7
      %v4097 = vsub.s32 %v4094, %v4096
      %v4098 = vrot.slane %v3863, %v4097
      %v4100 = vunpack.c.l.s4 1983009808
      %v4101 = vunpack.c.0.s8 %v4100
      %v4102 = vlaneseq
      %v4103 = vshrl.u32 %v4102, 7
      %v4104 = vsub.s32 %v4101, %v4103
      %v4105 = vrot.slane %v4091, %v4104
      %v4106 = vcombine.high %v4098, %v4098
      %v4107 = vcombine.high %v4105, %v4105
      %v4109 = vunpack.c.l.s4 1983009808
      %v4110 = vunpack.c.0.s8 %v4109
      %v4111 = vlaneseq
      %v4112 = vshrl.u32 %v4111, 7
      %v4113 = vsub.s32 %v4110, %v4112
      %v4114 = vrot.slane %v3864, %v4113
      %v4115 = vcombine.high %v3865, %v3865
      %v4117 = vunpack.c.l.s4 1983009808
      %v4118 = vunpack.c.0.s8 %v4117
      %v4119 = vlaneseq
      %v4120 = vshrl.u32 %v4119, 7
      %v4121 = vsub.s32 %v4118, %v4120
      %v4122 = vrot.slane %v3865, %v4121
      %v4124 = vunpack.c.l.s4 1983009808
      %v4125 = vunpack.c.0.s8 %v4124
      %v4126 = vlaneseq
      %v4127 = vshrl.u32 %v4126, 7
      %v4128 = vsub.s32 %v4125, %v4127
      %v4129 = vrot.slane %v4115, %v4128
      %v4130 = vcombine.high %v4122, %v4122
      %v4131 = vcombine.high %v4129, %v4129
      %v4132 = vcombine.high %v3866, %v3866
      %v4134 = vunpack.c.l.s4 1983009808
      %v4135 = vunpack.c.0.s8 %v4134
      %v4136 = vlaneseq
      %v4137 = vshrl.u32 %v4136, 7
      %v4138 = vsub.s32 %v4135, %v4137
      %v4139 = vrot.slane %v3866, %v4138
      %v4141 = vunpack.c.l.s4 1983009808
      %v4142 = vunpack.c.0.s8 %v4141
      %v4143 = vlaneseq
      %v4144 = vshrl.u32 %v4143, 7
      %v4145 = vsub.s32 %v4142, %v4144
      %v4146 = vrot.slane %v4132, %v4145
      %v4147 = vcombine.high %v4139, %v4139
      %v4148 = vcombine.high %v4146, %v4146
      %v4150 = vunpack.c.l.s4 1983009808
      %v4151 = vunpack.c.0.s8 %v4150
      %v4152 = vlaneseq
      %v4153 = vshrl.u32 %v4152, 7
      %v4154 = vsub.s32 %v4151, %v4153
      %v4155 = vrot.slane %v3867, %v4154
      %v4156 = vcombine.high %v3868, %v3868
      %v4158 = vunpack.c.l.s4 1983009808
      %v4159 = vunpack.c.0.s8 %v4158
      %v4160 = vlaneseq
      %v4161 = vshrl.u32 %v4160, 7
      %v4162 = vsub.s32 %v4159, %v4161
      %v4163 = vrot.slane %v3868, %v4162
      %v4165 = vunpack.c.l.s4 1983009808
      %v4166 = vunpack.c.0.s8 %v4165
      %v4167 = vlaneseq
      %v4168 = vshrl.u32 %v4167, 7
      %v4169 = vsub.s32 %v4166, %v4168
      %v4170 = vrot.slane %v4156, %v4169
      %v4171 = vcombine.high %v4163, %v4163
      %v4172 = vcombine.high %v4170, %v4170
      %v4173 = vcombine.high %v3869, %v3869
      %v4175 = vunpack.c.l.s4 1983009808
      %v4176 = vunpack.c.0.s8 %v4175
      %v4177 = vlaneseq
      %v4178 = vshrl.u32 %v4177, 7
      %v4179 = vsub.s32 %v4176, %v4178
      %v4180 = vrot.slane %v3869, %v4179
      %v4182 = vunpack.c.l.s4 1983009808
      %v4183 = vunpack.c.0.s8 %v4182
      %v4184 = vlaneseq
      %v4185 = vshrl.u32 %v4184, 7
      %v4186 = vsub.s32 %v4183, %v4185
      %v4187 = vrot.slane %v4173, %v4186
      %v4188 = vcombine.high %v4180, %v4180
      %v4189 = vcombine.high %v4187, %v4187
      %v4191 = vunpack.c.l.s4 1983009808
      %v4192 = vunpack.c.0.s8 %v4191
      %v4193 = vlaneseq
      %v4194 = vshrl.u32 %v4193, 7
      %v4195 = vsub.s32 %v4192, %v4194
      %v4196 = vrot.slane %v3870, %v4195
      %v4197 = vcombine.high %v3871, %v3871
      %v4199 = vunpack.c.l.s4 1983009808
      %v4200 = vunpack.c.0.s8 %v4199
      %v4201 = vlaneseq
      %v4202 = vshrl.u32 %v4201, 7
      %v4203 = vsub.s32 %v4200, %v4202
      %v4204 = vrot.slane %v3871, %v4203
      %v4206 = vunpack.c.l.s4 1983009808
      %v4207 = vunpack.c.0.s8 %v4206
      %v4208 = vlaneseq
      %v4209 = vshrl.u32 %v4208, 7
      %v4210 = vsub.s32 %v4207, %v4209
      %v4211 = vrot.slane %v4197, %v4210
      %v4212 = vcombine.high %v4204, %v4204
      %v4213 = vcombine.high %v4211, %v4211
      %v4214 = vcombine.high %v3872, %v3872
      %v4216 = vunpack.c.l.s4 1983009808
      %v4217 = vunpack.c.0.s8 %v4216
      %v4218 = vlaneseq
      %v4219 = vshrl.u32 %v4218, 7
      %v4220 = vsub.s32 %v4217, %v4219
      %v4221 = vrot.slane %v3872, %v4220
      %v4223 = vunpack.c.l.s4 1983009808
      %v4224 = vunpack.c.0.s8 %v4223
      %v4225 = vlaneseq
      %v4226 = vshrl.u32 %v4225, 7
      %v4227 = vsub.s32 %v4224, %v4226
      %v4228 = vrot.slane %v4214, %v4227
      %v4229 = vcombine.high %v4221, %v4221
      %v4230 = vcombine.high %v4228, %v4228
      %v4232 = vunpack.c.l.s4 1983009808
      %v4233 = vunpack.c.0.s8 %v4232
      %v4234 = vlaneseq
      %v4235 = vshrl.u32 %v4234, 7
      %v4236 = vsub.s32 %v4233, %v4235
      %v4237 = vrot.slane %v3873, %v4236
      %v4238 = vcombine.high %v3874, %v3874
      %v4240 = vunpack.c.l.s4 1983009808
      %v4241 = vunpack.c.0.s8 %v4240
      %v4242 = vlaneseq
      %v4243 = vshrl.u32 %v4242, 7
      %v4244 = vsub.s32 %v4241, %v4243
      %v4245 = vrot.slane %v3874, %v4244
      %v4247 = vunpack.c.l.s4 1983009808
      %v4248 = vunpack.c.0.s8 %v4247
      %v4249 = vlaneseq
      %v4250 = vshrl.u32 %v4249, 7
      %v4251 = vsub.s32 %v4248, %v4250
      %v4252 = vrot.slane %v4238, %v4251
      %v4253 = vcombine.high %v4245, %v4245
      %v4254 = vcombine.high %v4252, %v4252
      %v4255 = vcombine.high %v3875, %v3875
      %v4257 = vunpack.c.l.s4 1983009808
      %v4258 = vunpack.c.0.s8 %v4257
      %v4259 = vlaneseq
      %v4260 = vshrl.u32 %v4259, 7
      %v4261 = vsub.s32 %v4258, %v4260
      %v4262 = vrot.slane %v3875, %v4261
      %v4264 = vunpack.c.l.s4 1983009808
      %v4265 = vunpack.c.0.s8 %v4264
      %v4266 = vlaneseq
      %v4267 = vshrl.u32 %v4266, 7
      %v4268 = vsub.s32 %v4265, %v4267
      %v4269 = vrot.slane %v4255, %v4268
      %v4270 = vcombine.high %v4262, %v4262
      %v4271 = vcombine.high %v4269, %v4269
      %v4273 = vunpack.c.l.s4 1983009808
      %v4274 = vunpack.c.0.s8 %v4273
      %v4275 = vlaneseq
      %v4276 = vshrl.u32 %v4275, 7
      %v4277 = vsub.s32 %v4274, %v4276
      %v4278 = vrot.slane %v3876, %v4277
      %v4279 = vcombine.high %v3877, %v3877
      %v4281 = vunpack.c.l.s4 1983009808
      %v4282 = vunpack.c.0.s8 %v4281
      %v4283 = vlaneseq
      %v4284 = vshrl.u32 %v4283, 7
      %v4285 = vsub.s32 %v4282, %v4284
      %v4286 = vrot.slane %v3877, %v4285
      %v4288 = vunpack.c.l.s4 1983009808
      %v4289 = vunpack.c.0.s8 %v4288
      %v4290 = vlaneseq
      %v4291 = vshrl.u32 %v4290, 7
      %v4292 = vsub.s32 %v4289, %v4291
      %v4293 = vrot.slane %v4279, %v4292
      %v4294 = vcombine.high %v4286, %v4286
      %v4295 = vcombine.high %v4293, %v4293
      %v4296 = vcombine.high %v3878, %v3878
      %v4298 = vunpack.c.l.s4 1983009808
      %v4299 = vunpack.c.0.s8 %v4298
      %v4300 = vlaneseq
      %v4301 = vshrl.u32 %v4300, 7
      %v4302 = vsub.s32 %v4299, %v4301
      %v4303 = vrot.slane %v3878, %v4302
      %v4305 = vunpack.c.l.s4 1983009808
      %v4306 = vunpack.c.0.s8 %v4305
      %v4307 = vlaneseq
      %v4308 = vshrl.u32 %v4307, 7
      %v4309 = vsub.s32 %v4306, %v4308
      %v4310 = vrot.slane %v4296, %v4309
      %v4311 = vcombine.high %v4303, %v4303
      %v4312 = vcombine.high %v4310, %v4310
      %v4314 = vunpack.c.l.s4 1983009808
      %v4315 = vunpack.c.0.s8 %v4314
      %v4316 = vlaneseq
      %v4317 = vshrl.u32 %v4316, 7
      %v4318 = vsub.s32 %v4315, %v4317
      %v4319 = vrot.slane %v3879, %v4318
      %v4320 = vld [vmem:[%s3379 + $0x2] sm:$0xff]
      %v4321 = vld [vmem:[%s3379 + $0xa] sm:$0xff]
      %v4322 = vld [vmem:[%s3379 + $0x12] sm:$0x3]
      %v4323 = vld [vmem:[%s3379 + $0x1a] sm:$0xff]
      %v4324 = vld [vmem:[%s3379 + $0x22] sm:$0xff]
      %v4325 = vld [vmem:[%s3379 + $0x2a] sm:$0x3]
      %v4326 = vld [vmem:[%s3379 + $0x32] sm:$0xff]
      %v4327 = vld [vmem:[%s3379 + $0x3a] sm:$0xff]
      %v4328 = vld [vmem:[%s3379 + $0x42] sm:$0x3]
      %v4329 = vld [vmem:[%s3379 + $0x4a] sm:$0xff]
      %v4330 = vld [vmem:[%s3379 + $0x52] sm:$0xff]
      %v4331 = vld [vmem:[%s3379 + $0x5a] sm:$0x3]
      %v4332 = vld [vmem:[%s3379 + $0x62] sm:$0xff]
      %v4333 = vld [vmem:[%s3379 + $0x6a] sm:$0xff]
      %v4334 = vld [vmem:[%s3379 + $0x72] sm:$0x3]
      %v4335 = vld [vmem:[%s3379 + $0x7a] sm:$0xff]
      %v4336 = vld [vmem:[%s3379 + $0x82] sm:$0xff]
      %v4337 = vld [vmem:[%s3379 + $0x8a] sm:$0x3]
      %v4338 = vld [vmem:[%s3379 + $0x92] sm:$0xff]
      %v4339 = vld [vmem:[%s3379 + $0x9a] sm:$0xff]
      %v4340 = vld [vmem:[%s3379 + $0xa2] sm:$0x3]
      %v4341 = vld [vmem:[%s3379 + $0xaa] sm:$0xff]
      %v4342 = vld [vmem:[%s3379 + $0xb2] sm:$0xff]
      %v4343 = vld [vmem:[%s3379 + $0xba] sm:$0x3]
      %v4344 = vld [vmem:[%s3379 + $0xc2] sm:$0xff]
      %v4345 = vld [vmem:[%s3379 + $0xca] sm:$0xff]
      %v4346 = vld [vmem:[%s3379 + $0xd2] sm:$0x3]
      %v4347 = vld [vmem:[%s3379 + $0xda] sm:$0xff]
      %v4348 = vld [vmem:[%s3379 + $0xe2] sm:$0xff]
      %v4349 = vld [vmem:[%s3379 + $0xea] sm:$0x3]
      %v4380 = vcombine.high %v4320, %v4320
      %v4382 = vunpack.c.l.s4 1983009808
      %v4383 = vunpack.c.0.s8 %v4382
      %v4384 = vlaneseq
      %v4385 = vshrl.u32 %v4384, 7
      %v4386 = vsub.s32 %v4383, %v4385
      %v4387 = vrot.slane %v4320, %v4386
      %v4389 = vunpack.c.l.s4 1983009808
      %v4390 = vunpack.c.0.s8 %v4389
      %v4391 = vlaneseq
      %v4392 = vshrl.u32 %v4391, 7
      %v4393 = vsub.s32 %v4390, %v4392
      %v4394 = vrot.slane %v4380, %v4393
      %v4395 = vcombine.high %v4387, %v4387
      %v4396 = vcombine.high %v4394, %v4394
      %v4397 = vcombine.high %v4321, %v4321
      %v4399 = vunpack.c.l.s4 1983009808
      %v4400 = vunpack.c.0.s8 %v4399
      %v4401 = vlaneseq
      %v4402 = vshrl.u32 %v4401, 7
      %v4403 = vsub.s32 %v4400, %v4402
      %v4404 = vrot.slane %v4321, %v4403
      %v4406 = vunpack.c.l.s4 1983009808
      %v4407 = vunpack.c.0.s8 %v4406
      %v4408 = vlaneseq
      %v4409 = vshrl.u32 %v4408, 7
      %v4410 = vsub.s32 %v4407, %v4409
      %v4411 = vrot.slane %v4397, %v4410
      %v4412 = vcombine.high %v4404, %v4404
      %v4413 = vcombine.high %v4411, %v4411
      %v4415 = vunpack.c.l.s4 1983009808
      %v4416 = vunpack.c.0.s8 %v4415
      %v4417 = vlaneseq
      %v4418 = vshrl.u32 %v4417, 7
      %v4419 = vsub.s32 %v4416, %v4418
      %v4420 = vrot.slane %v4322, %v4419
      %v4421 = vcombine.high %v4323, %v4323
      %v4423 = vunpack.c.l.s4 1983009808
      %v4424 = vunpack.c.0.s8 %v4423
      %v4425 = vlaneseq
      %v4426 = vshrl.u32 %v4425, 7
      %v4427 = vsub.s32 %v4424, %v4426
      %v4428 = vrot.slane %v4323, %v4427
      %v4430 = vunpack.c.l.s4 1983009808
      %v4431 = vunpack.c.0.s8 %v4430
      %v4432 = vlaneseq
      %v4433 = vshrl.u32 %v4432, 7
      %v4434 = vsub.s32 %v4431, %v4433
      %v4435 = vrot.slane %v4421, %v4434
      %v4436 = vcombine.high %v4428, %v4428
      %v4437 = vcombine.high %v4435, %v4435
      %v4438 = vcombine.high %v4324, %v4324
      %v4440 = vunpack.c.l.s4 1983009808
      %v4441 = vunpack.c.0.s8 %v4440
      %v4442 = vlaneseq
      %v4443 = vshrl.u32 %v4442, 7
      %v4444 = vsub.s32 %v4441, %v4443
      %v4445 = vrot.slane %v4324, %v4444
      %v4447 = vunpack.c.l.s4 1983009808
      %v4448 = vunpack.c.0.s8 %v4447
      %v4449 = vlaneseq
      %v4450 = vshrl.u32 %v4449, 7
      %v4451 = vsub.s32 %v4448, %v4450
      %v4452 = vrot.slane %v4438, %v4451
      %v4453 = vcombine.high %v4445, %v4445
      %v4454 = vcombine.high %v4452, %v4452
      %v4456 = vunpack.c.l.s4 1983009808
      %v4457 = vunpack.c.0.s8 %v4456
      %v4458 = vlaneseq
      %v4459 = vshrl.u32 %v4458, 7
      %v4460 = vsub.s32 %v4457, %v4459
      %v4461 = vrot.slane %v4325, %v4460
      %v4462 = vcombine.high %v4326, %v4326
      %v4464 = vunpack.c.l.s4 1983009808
      %v4465 = vunpack.c.0.s8 %v4464
      %v4466 = vlaneseq
      %v4467 = vshrl.u32 %v4466, 7
      %v4468 = vsub.s32 %v4465, %v4467
      %v4469 = vrot.slane %v4326, %v4468
      %v4471 = vunpack.c.l.s4 1983009808
      %v4472 = vunpack.c.0.s8 %v4471
      %v4473 = vlaneseq
      %v4474 = vshrl.u32 %v4473, 7
      %v4475 = vsub.s32 %v4472, %v4474
      %v4476 = vrot.slane %v4462, %v4475
      %v4477 = vcombine.high %v4469, %v4469
      %v4478 = vcombine.high %v4476, %v4476
      %v4479 = vcombine.high %v4327, %v4327
      %v4481 = vunpack.c.l.s4 1983009808
      %v4482 = vunpack.c.0.s8 %v4481
      %v4483 = vlaneseq
      %v4484 = vshrl.u32 %v4483, 7
      %v4485 = vsub.s32 %v4482, %v4484
      %v4486 = vrot.slane %v4327, %v4485
      %v4488 = vunpack.c.l.s4 1983009808
      %v4489 = vunpack.c.0.s8 %v4488
      %v4490 = vlaneseq
      %v4491 = vshrl.u32 %v4490, 7
      %v4492 = vsub.s32 %v4489, %v4491
      %v4493 = vrot.slane %v4479, %v4492
      %v4494 = vcombine.high %v4486, %v4486
      %v4495 = vcombine.high %v4493, %v4493
      %v4497 = vunpack.c.l.s4 1983009808
      %v4498 = vunpack.c.0.s8 %v4497
      %v4499 = vlaneseq
      %v4500 = vshrl.u32 %v4499, 7
      %v4501 = vsub.s32 %v4498, %v4500
      %v4502 = vrot.slane %v4328, %v4501
      %v4503 = vcombine.high %v4329, %v4329
      %v4505 = vunpack.c.l.s4 1983009808
      %v4506 = vunpack.c.0.s8 %v4505
      %v4507 = vlaneseq
      %v4508 = vshrl.u32 %v4507, 7
      %v4509 = vsub.s32 %v4506, %v4508
      %v4510 = vrot.slane %v4329, %v4509
      %v4512 = vunpack.c.l.s4 1983009808
      %v4513 = vunpack.c.0.s8 %v4512
      %v4514 = vlaneseq
      %v4515 = vshrl.u32 %v4514, 7
      %v4516 = vsub.s32 %v4513, %v4515
      %v4517 = vrot.slane %v4503, %v4516
      %v4518 = vcombine.high %v4510, %v4510
      %v4519 = vcombine.high %v4517, %v4517
      %v4520 = vcombine.high %v4330, %v4330
      %v4522 = vunpack.c.l.s4 1983009808
      %v4523 = vunpack.c.0.s8 %v4522
      %v4524 = vlaneseq
      %v4525 = vshrl.u32 %v4524, 7
      %v4526 = vsub.s32 %v4523, %v4525
      %v4527 = vrot.slane %v4330, %v4526
      %v4529 = vunpack.c.l.s4 1983009808
      %v4530 = vunpack.c.0.s8 %v4529
      %v4531 = vlaneseq
      %v4532 = vshrl.u32 %v4531, 7
      %v4533 = vsub.s32 %v4530, %v4532
      %v4534 = vrot.slane %v4520, %v4533
      %v4535 = vcombine.high %v4527, %v4527
      %v4536 = vcombine.high %v4534, %v4534
      %v4538 = vunpack.c.l.s4 1983009808
      %v4539 = vunpack.c.0.s8 %v4538
      %v4540 = vlaneseq
      %v4541 = vshrl.u32 %v4540, 7
      %v4542 = vsub.s32 %v4539, %v4541
      %v4543 = vrot.slane %v4331, %v4542
      %v4544 = vcombine.high %v4332, %v4332
      %v4546 = vunpack.c.l.s4 1983009808
      %v4547 = vunpack.c.0.s8 %v4546
      %v4548 = vlaneseq
      %v4549 = vshrl.u32 %v4548, 7
      %v4550 = vsub.s32 %v4547, %v4549
      %v4551 = vrot.slane %v4332, %v4550
      %v4553 = vunpack.c.l.s4 1983009808
      %v4554 = vunpack.c.0.s8 %v4553
      %v4555 = vlaneseq
      %v4556 = vshrl.u32 %v4555, 7
      %v4557 = vsub.s32 %v4554, %v4556
      %v4558 = vrot.slane %v4544, %v4557
      %v4559 = vcombine.high %v4551, %v4551
      %v4560 = vcombine.high %v4558, %v4558
      %v4561 = vcombine.high %v4333, %v4333
      %v4563 = vunpack.c.l.s4 1983009808
      %v4564 = vunpack.c.0.s8 %v4563
      %v4565 = vlaneseq
      %v4566 = vshrl.u32 %v4565, 7
      %v4567 = vsub.s32 %v4564, %v4566
      %v4568 = vrot.slane %v4333, %v4567
      %v4570 = vunpack.c.l.s4 1983009808
      %v4571 = vunpack.c.0.s8 %v4570
      %v4572 = vlaneseq
      %v4573 = vshrl.u32 %v4572, 7
      %v4574 = vsub.s32 %v4571, %v4573
      %v4575 = vrot.slane %v4561, %v4574
      %v4576 = vcombine.high %v4568, %v4568
      %v4577 = vcombine.high %v4575, %v4575
      %v4579 = vunpack.c.l.s4 1983009808
      %v4580 = vunpack.c.0.s8 %v4579
      %v4581 = vlaneseq
      %v4582 = vshrl.u32 %v4581, 7
      %v4583 = vsub.s32 %v4580, %v4582
      %v4584 = vrot.slane %v4334, %v4583
      %v4585 = vcombine.high %v4335, %v4335
      %v4587 = vunpack.c.l.s4 1983009808
      %v4588 = vunpack.c.0.s8 %v4587
      %v4589 = vlaneseq
      %v4590 = vshrl.u32 %v4589, 7
      %v4591 = vsub.s32 %v4588, %v4590
      %v4592 = vrot.slane %v4335, %v4591
      %v4594 = vunpack.c.l.s4 1983009808
      %v4595 = vunpack.c.0.s8 %v4594
      %v4596 = vlaneseq
      %v4597 = vshrl.u32 %v4596, 7
      %v4598 = vsub.s32 %v4595, %v4597
      %v4599 = vrot.slane %v4585, %v4598
      %v4600 = vcombine.high %v4592, %v4592
      %v4601 = vcombine.high %v4599, %v4599
      %v4602 = vcombine.high %v4336, %v4336
      %v4604 = vunpack.c.l.s4 1983009808
      %v4605 = vunpack.c.0.s8 %v4604
      %v4606 = vlaneseq
      %v4607 = vshrl.u32 %v4606, 7
      %v4608 = vsub.s32 %v4605, %v4607
      %v4609 = vrot.slane %v4336, %v4608
      %v4611 = vunpack.c.l.s4 1983009808
      %v4612 = vunpack.c.0.s8 %v4611
      %v4613 = vlaneseq
      %v4614 = vshrl.u32 %v4613, 7
      %v4615 = vsub.s32 %v4612, %v4614
      %v4616 = vrot.slane %v4602, %v4615
      %v4617 = vcombine.high %v4609, %v4609
      %v4618 = vcombine.high %v4616, %v4616
      %v4620 = vunpack.c.l.s4 1983009808
      %v4621 = vunpack.c.0.s8 %v4620
      %v4622 = vlaneseq
      %v4623 = vshrl.u32 %v4622, 7
      %v4624 = vsub.s32 %v4621, %v4623
      %v4625 = vrot.slane %v4337, %v4624
      %v4626 = vcombine.high %v4338, %v4338
      %v4628 = vunpack.c.l.s4 1983009808
      %v4629 = vunpack.c.0.s8 %v4628
      %v4630 = vlaneseq
      %v4631 = vshrl.u32 %v4630, 7
      %v4632 = vsub.s32 %v4629, %v4631
      %v4633 = vrot.slane %v4338, %v4632
      %v4635 = vunpack.c.l.s4 1983009808
      %v4636 = vunpack.c.0.s8 %v4635
      %v4637 = vlaneseq
      %v4638 = vshrl.u32 %v4637, 7
      %v4639 = vsub.s32 %v4636, %v4638
      %v4640 = vrot.slane %v4626, %v4639
      %v4641 = vcombine.high %v4633, %v4633
      %v4642 = vcombine.high %v4640, %v4640
      %v4643 = vcombine.high %v4339, %v4339
      %v4645 = vunpack.c.l.s4 1983009808
      %v4646 = vunpack.c.0.s8 %v4645
      %v4647 = vlaneseq
      %v4648 = vshrl.u32 %v4647, 7
      %v4649 = vsub.s32 %v4646, %v4648
      %v4650 = vrot.slane %v4339, %v4649
      %v4652 = vunpack.c.l.s4 1983009808
      %v4653 = vunpack.c.0.s8 %v4652
      %v4654 = vlaneseq
      %v4655 = vshrl.u32 %v4654, 7
      %v4656 = vsub.s32 %v4653, %v4655
      %v4657 = vrot.slane %v4643, %v4656
      %v4658 = vcombine.high %v4650, %v4650
      %v4659 = vcombine.high %v4657, %v4657
      %v4661 = vunpack.c.l.s4 1983009808
      %v4662 = vunpack.c.0.s8 %v4661
      %v4663 = vlaneseq
      %v4664 = vshrl.u32 %v4663, 7
      %v4665 = vsub.s32 %v4662, %v4664
      %v4666 = vrot.slane %v4340, %v4665
      %v4667 = vcombine.high %v4341, %v4341
      %v4669 = vunpack.c.l.s4 1983009808
      %v4670 = vunpack.c.0.s8 %v4669
      %v4671 = vlaneseq
      %v4672 = vshrl.u32 %v4671, 7
      %v4673 = vsub.s32 %v4670, %v4672
      %v4674 = vrot.slane %v4341, %v4673
      %v4676 = vunpack.c.l.s4 1983009808
      %v4677 = vunpack.c.0.s8 %v4676
      %v4678 = vlaneseq
      %v4679 = vshrl.u32 %v4678, 7
      %v4680 = vsub.s32 %v4677, %v4679
      %v4681 = vrot.slane %v4667, %v4680
      %v4682 = vcombine.high %v4674, %v4674
      %v4683 = vcombine.high %v4681, %v4681
      %v4684 = vcombine.high %v4342, %v4342
      %v4686 = vunpack.c.l.s4 1983009808
      %v4687 = vunpack.c.0.s8 %v4686
      %v4688 = vlaneseq
      %v4689 = vshrl.u32 %v4688, 7
      %v4690 = vsub.s32 %v4687, %v4689
      %v4691 = vrot.slane %v4342, %v4690
      %v4693 = vunpack.c.l.s4 1983009808
      %v4694 = vunpack.c.0.s8 %v4693
      %v4695 = vlaneseq
      %v4696 = vshrl.u32 %v4695, 7
      %v4697 = vsub.s32 %v4694, %v4696
      %v4698 = vrot.slane %v4684, %v4697
      %v4699 = vcombine.high %v4691, %v4691
      %v4700 = vcombine.high %v4698, %v4698
      %v4702 = vunpack.c.l.s4 1983009808
      %v4703 = vunpack.c.0.s8 %v4702
      %v4704 = vlaneseq
      %v4705 = vshrl.u32 %v4704, 7
      %v4706 = vsub.s32 %v4703, %v4705
      %v4707 = vrot.slane %v4343, %v4706
      %v4708 = vcombine.high %v4344, %v4344
      %v4710 = vunpack.c.l.s4 1983009808
      %v4711 = vunpack.c.0.s8 %v4710
      %v4712 = vlaneseq
      %v4713 = vshrl.u32 %v4712, 7
      %v4714 = vsub.s32 %v4711, %v4713
      %v4715 = vrot.slane %v4344, %v4714
      %v4717 = vunpack.c.l.s4 1983009808
      %v4718 = vunpack.c.0.s8 %v4717
      %v4719 = vlaneseq
      %v4720 = vshrl.u32 %v4719, 7
      %v4721 = vsub.s32 %v4718, %v4720
      %v4722 = vrot.slane %v4708, %v4721
      %v4723 = vcombine.high %v4715, %v4715
      %v4724 = vcombine.high %v4722, %v4722
      %v4725 = vcombine.high %v4345, %v4345
      %v4727 = vunpack.c.l.s4 1983009808
      %v4728 = vunpack.c.0.s8 %v4727
      %v4729 = vlaneseq
      %v4730 = vshrl.u32 %v4729, 7
      %v4731 = vsub.s32 %v4728, %v4730
      %v4732 = vrot.slane %v4345, %v4731
      %v4734 = vunpack.c.l.s4 1983009808
      %v4735 = vunpack.c.0.s8 %v4734
      %v4736 = vlaneseq
      %v4737 = vshrl.u32 %v4736, 7
      %v4738 = vsub.s32 %v4735, %v4737
      %v4739 = vrot.slane %v4725, %v4738
      %v4740 = vcombine.high %v4732, %v4732
      %v4741 = vcombine.high %v4739, %v4739
      %v4743 = vunpack.c.l.s4 1983009808
      %v4744 = vunpack.c.0.s8 %v4743
      %v4745 = vlaneseq
      %v4746 = vshrl.u32 %v4745, 7
      %v4747 = vsub.s32 %v4744, %v4746
      %v4748 = vrot.slane %v4346, %v4747
      %v4749 = vcombine.high %v4347, %v4347
      %v4751 = vunpack.c.l.s4 1983009808
      %v4752 = vunpack.c.0.s8 %v4751
      %v4753 = vlaneseq
      %v4754 = vshrl.u32 %v4753, 7
      %v4755 = vsub.s32 %v4752, %v4754
      %v4756 = vrot.slane %v4347, %v4755
      %v4758 = vunpack.c.l.s4 1983009808
      %v4759 = vunpack.c.0.s8 %v4758
      %v4760 = vlaneseq
      %v4761 = vshrl.u32 %v4760, 7
      %v4762 = vsub.s32 %v4759, %v4761
      %v4763 = vrot.slane %v4749, %v4762
      %v4764 = vcombine.high %v4756, %v4756
      %v4765 = vcombine.high %v4763, %v4763
      %v4766 = vcombine.high %v4348, %v4348
      %v4768 = vunpack.c.l.s4 1983009808
      %v4769 = vunpack.c.0.s8 %v4768
      %v4770 = vlaneseq
      %v4771 = vshrl.u32 %v4770, 7
      %v4772 = vsub.s32 %v4769, %v4771
      %v4773 = vrot.slane %v4348, %v4772
      %v4775 = vunpack.c.l.s4 1983009808
      %v4776 = vunpack.c.0.s8 %v4775
      %v4777 = vlaneseq
      %v4778 = vshrl.u32 %v4777, 7
      %v4779 = vsub.s32 %v4776, %v4778
      %v4780 = vrot.slane %v4766, %v4779
      %v4781 = vcombine.high %v4773, %v4773
      %v4782 = vcombine.high %v4780, %v4780
      %v4784 = vunpack.c.l.s4 1983009808
      %v4785 = vunpack.c.0.s8 %v4784
      %v4786 = vlaneseq
      %v4787 = vshrl.u32 %v4786, 7
      %v4788 = vsub.s32 %v4785, %v4787
      %v4789 = vrot.slane %v4349, %v4788
      %v4790 = vcombine.low %v625, %v633
      %v4791 = vcombine.low %v632, %v634
      %v4793 = vunpack.c.l.s4 1983009808
      %v4794 = vunpack.c.0.s8 %v4793
      %v4795 = vlaneseq
      %v4796 = vshrl.u32 %v4795, 7
      %v4797 = vsub.s32 %v4794, %v4796
      %v4798 = vrot.slane %v4790, %v4797
      %v4800 = vunpack.c.l.s4 1983009808
      %v4801 = vunpack.c.0.s8 %v4800
      %v4802 = vlaneseq
      %v4803 = vshrl.u32 %v4802, 7
      %v4804 = vsub.s32 %v4801, %v4803
      %v4805 = vrot.slane %v4791, %v4804
      %v4806 = vcombine.low %v4798, %v4805
      %v4807 = vcombine.low %v642, %v650
      %v4808 = vcombine.low %v649, %v651
      %v4810 = vunpack.c.l.s4 1983009808
      %v4811 = vunpack.c.0.s8 %v4810
      %v4812 = vlaneseq
      %v4813 = vshrl.u32 %v4812, 7
      %v4814 = vsub.s32 %v4811, %v4813
      %v4815 = vrot.slane %v4807, %v4814
      %v4817 = vunpack.c.l.s4 1983009808
      %v4818 = vunpack.c.0.s8 %v4817
      %v4819 = vlaneseq
      %v4820 = vshrl.u32 %v4819, 7
      %v4821 = vsub.s32 %v4818, %v4820
      %v4822 = vrot.slane %v4808, %v4821
      %v4823 = vcombine.low %v4815, %v4822
      %v4824 = vcombine.low %v658, %v666
      %v4825 = vcombine.low %v674, %v673
      %v4827 = vunpack.c.l.s4 1983009808
      %v4828 = vunpack.c.0.s8 %v4827
      %v4829 = vlaneseq
      %v4830 = vshrl.u32 %v4829, 7
      %v4831 = vsub.s32 %v4828, %v4830
      %v4832 = vrot.slane %v4824, %v4831
      %v4834 = vunpack.c.l.s4 1983009808
      %v4835 = vunpack.c.0.s8 %v4834
      %v4836 = vlaneseq
      %v4837 = vshrl.u32 %v4836, 7
      %v4838 = vsub.s32 %v4835, %v4837
      %v4839 = vrot.slane %v4825, %v4838
      %v4840 = vcombine.low %v4832, %v4839
      %v4841 = vcombine.low %v675, %v683
      %v4842 = vcombine.low %v691, %v690
      %v4844 = vunpack.c.l.s4 1983009808
      %v4845 = vunpack.c.0.s8 %v4844
      %v4846 = vlaneseq
      %v4847 = vshrl.u32 %v4846, 7
      %v4848 = vsub.s32 %v4845, %v4847
      %v4849 = vrot.slane %v4841, %v4848
      %v4851 = vunpack.c.l.s4 1983009808
      %v4852 = vunpack.c.0.s8 %v4851
      %v4853 = vlaneseq
      %v4854 = vshrl.u32 %v4853, 7
      %v4855 = vsub.s32 %v4852, %v4854
      %v4856 = vrot.slane %v4842, %v4855
      %v4857 = vcombine.low %v4849, %v4856
      %v4858 = vcombine.low %v692, %v699
      %v4859 = vcombine.low %v707, %v715
      %v4861 = vunpack.c.l.s4 1983009808
      %v4862 = vunpack.c.0.s8 %v4861
      %v4863 = vlaneseq
      %v4864 = vshrl.u32 %v4863, 7
      %v4865 = vsub.s32 %v4862, %v4864
      %v4866 = vrot.slane %v4858, %v4865
      %v4868 = vunpack.c.l.s4 1983009808
      %v4869 = vunpack.c.0.s8 %v4868
      %v4870 = vlaneseq
      %v4871 = vshrl.u32 %v4870, 7
      %v4872 = vsub.s32 %v4869, %v4871
      %v4873 = vrot.slane %v4859, %v4872
      %v4874 = vcombine.low %v4866, %v4873
      %v4875 = vcombine.low %v714, %v716
      %v4876 = vcombine.low %v724, %v732
      %v4878 = vunpack.c.l.s4 1983009808
      %v4879 = vunpack.c.0.s8 %v4878
      %v4880 = vlaneseq
      %v4881 = vshrl.u32 %v4880, 7
      %v4882 = vsub.s32 %v4879, %v4881
      %v4883 = vrot.slane %v4875, %v4882
      %v4885 = vunpack.c.l.s4 1983009808
      %v4886 = vunpack.c.0.s8 %v4885
      %v4887 = vlaneseq
      %v4888 = vshrl.u32 %v4887, 7
      %v4889 = vsub.s32 %v4886, %v4888
      %v4890 = vrot.slane %v4876, %v4889
      %v4891 = vcombine.low %v4883, %v4890
      %v4892 = vcombine.low %v731, %v733
      %v4893 = vcombine.low %v740, %v748
      %v4895 = vunpack.c.l.s4 1983009808
      %v4896 = vunpack.c.0.s8 %v4895
      %v4897 = vlaneseq
      %v4898 = vshrl.u32 %v4897, 7
      %v4899 = vsub.s32 %v4896, %v4898
      %v4900 = vrot.slane %v4892, %v4899
      %v4902 = vunpack.c.l.s4 1983009808
      %v4903 = vunpack.c.0.s8 %v4902
      %v4904 = vlaneseq
      %v4905 = vshrl.u32 %v4904, 7
      %v4906 = vsub.s32 %v4903, %v4905
      %v4907 = vrot.slane %v4893, %v4906
      %v4908 = vcombine.low %v4900, %v4907
      %v4909 = vcombine.low %v756, %v755
      %v4910 = vcombine.low %v757, %v765
      %v4912 = vunpack.c.l.s4 1983009808
      %v4913 = vunpack.c.0.s8 %v4912
      %v4914 = vlaneseq
      %v4915 = vshrl.u32 %v4914, 7
      %v4916 = vsub.s32 %v4913, %v4915
      %v4917 = vrot.slane %v4909, %v4916
      %v4919 = vunpack.c.l.s4 1983009808
      %v4920 = vunpack.c.0.s8 %v4919
      %v4921 = vlaneseq
      %v4922 = vshrl.u32 %v4921, 7
      %v4923 = vsub.s32 %v4920, %v4922
      %v4924 = vrot.slane %v4910, %v4923
      %v4925 = vcombine.low %v4917, %v4924
      %v4926 = vcombine.low %v773, %v772
      %v4927 = vcombine.low %v774, %v781
      %v4929 = vunpack.c.l.s4 1983009808
      %v4930 = vunpack.c.0.s8 %v4929
      %v4931 = vlaneseq
      %v4932 = vshrl.u32 %v4931, 7
      %v4933 = vsub.s32 %v4930, %v4932
      %v4934 = vrot.slane %v4926, %v4933
      %v4936 = vunpack.c.l.s4 1983009808
      %v4937 = vunpack.c.0.s8 %v4936
      %v4938 = vlaneseq
      %v4939 = vshrl.u32 %v4938, 7
      %v4940 = vsub.s32 %v4937, %v4939
      %v4941 = vrot.slane %v4927, %v4940
      %v4942 = vcombine.low %v4934, %v4941
      %v4943 = vcombine.low %v789, %v797
      %v4944 = vcombine.low %v796, %v798
      %v4946 = vunpack.c.l.s4 1983009808
      %v4947 = vunpack.c.0.s8 %v4946
      %v4948 = vlaneseq
      %v4949 = vshrl.u32 %v4948, 7
      %v4950 = vsub.s32 %v4947, %v4949
      %v4951 = vrot.slane %v4943, %v4950
      %v4953 = vunpack.c.l.s4 1983009808
      %v4954 = vunpack.c.0.s8 %v4953
      %v4955 = vlaneseq
      %v4956 = vshrl.u32 %v4955, 7
      %v4957 = vsub.s32 %v4954, %v4956
      %v4958 = vrot.slane %v4944, %v4957
      %v4959 = vcombine.low %v4951, %v4958
      %v4960 = vcombine.low %v806, %v814
      %v4961 = vcombine.low %v813, %v815
      %v4963 = vunpack.c.l.s4 1983009808
      %v4964 = vunpack.c.0.s8 %v4963
      %v4965 = vlaneseq
      %v4966 = vshrl.u32 %v4965, 7
      %v4967 = vsub.s32 %v4964, %v4966
      %v4968 = vrot.slane %v4960, %v4967
      %v4970 = vunpack.c.l.s4 1983009808
      %v4971 = vunpack.c.0.s8 %v4970
      %v4972 = vlaneseq
      %v4973 = vshrl.u32 %v4972, 7
      %v4974 = vsub.s32 %v4971, %v4973
      %v4975 = vrot.slane %v4961, %v4974
      %v4976 = vcombine.low %v4968, %v4975
      %v4977 = vcombine.low %v822, %v830
      %v4978 = vcombine.low %v838, %v837
      %v4980 = vunpack.c.l.s4 1983009808
      %v4981 = vunpack.c.0.s8 %v4980
      %v4982 = vlaneseq
      %v4983 = vshrl.u32 %v4982, 7
      %v4984 = vsub.s32 %v4981, %v4983
      %v4985 = vrot.slane %v4977, %v4984
      %v4987 = vunpack.c.l.s4 1983009808
      %v4988 = vunpack.c.0.s8 %v4987
      %v4989 = vlaneseq
      %v4990 = vshrl.u32 %v4989, 7
      %v4991 = vsub.s32 %v4988, %v4990
      %v4992 = vrot.slane %v4978, %v4991
      %v4993 = vcombine.low %v4985, %v4992
      %v4994 = vcombine.low %v839, %v847
      %v4995 = vcombine.low %v855, %v854
      %v4997 = vunpack.c.l.s4 1983009808
      %v4998 = vunpack.c.0.s8 %v4997
      %v4999 = vlaneseq
      %v5000 = vshrl.u32 %v4999, 7
      %v5001 = vsub.s32 %v4998, %v5000
      %v5002 = vrot.slane %v4994, %v5001
      %v5004 = vunpack.c.l.s4 1983009808
      %v5005 = vunpack.c.0.s8 %v5004
      %v5006 = vlaneseq
      %v5007 = vshrl.u32 %v5006, 7
      %v5008 = vsub.s32 %v5005, %v5007
      %v5009 = vrot.slane %v4995, %v5008
      %v5010 = vcombine.low %v5002, %v5009
      %v5011 = vcombine.low %v856, %v863
      %v5012 = vcombine.low %v871, %v879
      %v5014 = vunpack.c.l.s4 1983009808
      %v5015 = vunpack.c.0.s8 %v5014
      %v5016 = vlaneseq
      %v5017 = vshrl.u32 %v5016, 7
      %v5018 = vsub.s32 %v5015, %v5017
      %v5019 = vrot.slane %v5011, %v5018
      %v5021 = vunpack.c.l.s4 1983009808
      %v5022 = vunpack.c.0.s8 %v5021
      %v5023 = vlaneseq
      %v5024 = vshrl.u32 %v5023, 7
      %v5025 = vsub.s32 %v5022, %v5024
      %v5026 = vrot.slane %v5012, %v5025
      %v5027 = vcombine.low %v5019, %v5026
      %v5028 = vcombine.low %v878, %v880
      %v5029 = vcombine.low %v888, %v896
      %v5031 = vunpack.c.l.s4 1983009808
      %v5032 = vunpack.c.0.s8 %v5031
      %v5033 = vlaneseq
      %v5034 = vshrl.u32 %v5033, 7
      %v5035 = vsub.s32 %v5032, %v5034
      %v5036 = vrot.slane %v5028, %v5035
      %v5038 = vunpack.c.l.s4 1983009808
      %v5039 = vunpack.c.0.s8 %v5038
      %v5040 = vlaneseq
      %v5041 = vshrl.u32 %v5040, 7
      %v5042 = vsub.s32 %v5039, %v5041
      %v5043 = vrot.slane %v5029, %v5042
      %v5044 = vcombine.low %v5036, %v5043
      %v5045 = vcombine.low %v895, %v897
      %v5046 = vcombine.low %v904, %v912
      %v5048 = vunpack.c.l.s4 1983009808
      %v5049 = vunpack.c.0.s8 %v5048
      %v5050 = vlaneseq
      %v5051 = vshrl.u32 %v5050, 7
      %v5052 = vsub.s32 %v5049, %v5051
      %v5053 = vrot.slane %v5045, %v5052
      %v5055 = vunpack.c.l.s4 1983009808
      %v5056 = vunpack.c.0.s8 %v5055
      %v5057 = vlaneseq
      %v5058 = vshrl.u32 %v5057, 7
      %v5059 = vsub.s32 %v5056, %v5058
      %v5060 = vrot.slane %v5046, %v5059
      %v5061 = vcombine.low %v5053, %v5060
      %v5062 = vcombine.low %v920, %v919
      %v5063 = vcombine.low %v921, %v929
      %v5065 = vunpack.c.l.s4 1983009808
      %v5066 = vunpack.c.0.s8 %v5065
      %v5067 = vlaneseq
      %v5068 = vshrl.u32 %v5067, 7
      %v5069 = vsub.s32 %v5066, %v5068
      %v5070 = vrot.slane %v5062, %v5069
      %v5072 = vunpack.c.l.s4 1983009808
      %v5073 = vunpack.c.0.s8 %v5072
      %v5074 = vlaneseq
      %v5075 = vshrl.u32 %v5074, 7
      %v5076 = vsub.s32 %v5073, %v5075
      %v5077 = vrot.slane %v5063, %v5076
      %v5078 = vcombine.low %v5070, %v5077
      %v5079 = vcombine.low %v937, %v936
      %v5080 = vcombine.low %v938, %v945
      %v5082 = vunpack.c.l.s4 1983009808
      %v5083 = vunpack.c.0.s8 %v5082
      %v5084 = vlaneseq
      %v5085 = vshrl.u32 %v5084, 7
      %v5086 = vsub.s32 %v5083, %v5085
      %v5087 = vrot.slane %v5079, %v5086
      %v5089 = vunpack.c.l.s4 1983009808
      %v5090 = vunpack.c.0.s8 %v5089
      %v5091 = vlaneseq
      %v5092 = vshrl.u32 %v5091, 7
      %v5093 = vsub.s32 %v5090, %v5092
      %v5094 = vrot.slane %v5080, %v5093
      %v5095 = vcombine.low %v5087, %v5094
      %v5096 = vcombine.low %v953, %v961
      %v5097 = vcombine.low %v960, %v962
      %v5099 = vunpack.c.l.s4 1983009808
      %v5100 = vunpack.c.0.s8 %v5099
      %v5101 = vlaneseq
      %v5102 = vshrl.u32 %v5101, 7
      %v5103 = vsub.s32 %v5100, %v5102
      %v5104 = vrot.slane %v5096, %v5103
      %v5106 = vunpack.c.l.s4 1983009808
      %v5107 = vunpack.c.0.s8 %v5106
      %v5108 = vlaneseq
      %v5109 = vshrl.u32 %v5108, 7
      %v5110 = vsub.s32 %v5107, %v5109
      %v5111 = vrot.slane %v5097, %v5110
      %v5112 = vcombine.low %v5104, %v5111
      %v5113 = vcombine.low %v970, %v978
      %v5114 = vcombine.low %v977, %v979
      %v5116 = vunpack.c.l.s4 1983009808
      %v5117 = vunpack.c.0.s8 %v5116
      %v5118 = vlaneseq
      %v5119 = vshrl.u32 %v5118, 7
      %v5120 = vsub.s32 %v5117, %v5119
      %v5121 = vrot.slane %v5113, %v5120
      %v5123 = vunpack.c.l.s4 1983009808
      %v5124 = vunpack.c.0.s8 %v5123
      %v5125 = vlaneseq
      %v5126 = vshrl.u32 %v5125, 7
      %v5127 = vsub.s32 %v5124, %v5126
      %v5128 = vrot.slane %v5114, %v5127
      %v5129 = vcombine.low %v5121, %v5128
      %v5130 = vcombine.low %v986, %v994
      %v5131 = vcombine.low %v1002, %v1001
      %v5133 = vunpack.c.l.s4 1983009808
      %v5134 = vunpack.c.0.s8 %v5133
      %v5135 = vlaneseq
      %v5136 = vshrl.u32 %v5135, 7
      %v5137 = vsub.s32 %v5134, %v5136
      %v5138 = vrot.slane %v5130, %v5137
      %v5140 = vunpack.c.l.s4 1983009808
      %v5141 = vunpack.c.0.s8 %v5140
      %v5142 = vlaneseq
      %v5143 = vshrl.u32 %v5142, 7
      %v5144 = vsub.s32 %v5141, %v5143
      %v5145 = vrot.slane %v5131, %v5144
      %v5146 = vcombine.low %v5138, %v5145
      %v5147 = vcombine.low %v1003, %v1011
      %v5148 = vcombine.low %v1019, %v1018
      %v5150 = vunpack.c.l.s4 1983009808
      %v5151 = vunpack.c.0.s8 %v5150
      %v5152 = vlaneseq
      %v5153 = vshrl.u32 %v5152, 7
      %v5154 = vsub.s32 %v5151, %v5153
      %v5155 = vrot.slane %v5147, %v5154
      %v5157 = vunpack.c.l.s4 1983009808
      %v5158 = vunpack.c.0.s8 %v5157
      %v5159 = vlaneseq
      %v5160 = vshrl.u32 %v5159, 7
      %v5161 = vsub.s32 %v5158, %v5160
      %v5162 = vrot.slane %v5148, %v5161
      %v5163 = vcombine.low %v5155, %v5162
      %v5164 = vcombine.low %v1020, %v1027
      %v5166 = vunpack.c.l.s4 1983009808
      %v5167 = vunpack.c.0.s8 %v5166
      %v5168 = vlaneseq
      %v5169 = vshrl.u32 %v5168, 7
      %v5170 = vsub.s32 %v5167, %v5169
      %v5171 = vrot.slane %v5164, %v5170
      %v5195 = vcombine.low %v1095, %v1103
      %v5196 = vcombine.low %v1102, %v1104
      %v5198 = vunpack.c.l.s4 1983009808
      %v5199 = vunpack.c.0.s8 %v5198
      %v5200 = vlaneseq
      %v5201 = vshrl.u32 %v5200, 7
      %v5202 = vsub.s32 %v5199, %v5201
      %v5203 = vrot.slane %v5195, %v5202
      %v5205 = vunpack.c.l.s4 1983009808
      %v5206 = vunpack.c.0.s8 %v5205
      %v5207 = vlaneseq
      %v5208 = vshrl.u32 %v5207, 7
      %v5209 = vsub.s32 %v5206, %v5208
      %v5210 = vrot.slane %v5196, %v5209
      %v5211 = vcombine.low %v5203, %v5210
      %v5212 = vcombine.low %v1112, %v1120
      %v5213 = vcombine.low %v1119, %v1121
      %v5215 = vunpack.c.l.s4 1983009808
      %v5216 = vunpack.c.0.s8 %v5215
      %v5217 = vlaneseq
      %v5218 = vshrl.u32 %v5217, 7
      %v5219 = vsub.s32 %v5216, %v5218
      %v5220 = vrot.slane %v5212, %v5219
      %v5222 = vunpack.c.l.s4 1983009808
      %v5223 = vunpack.c.0.s8 %v5222
      %v5224 = vlaneseq
      %v5225 = vshrl.u32 %v5224, 7
      %v5226 = vsub.s32 %v5223, %v5225
      %v5227 = vrot.slane %v5213, %v5226
      %v5228 = vcombine.low %v5220, %v5227
      %v5229 = vcombine.low %v1128, %v1136
      %v5230 = vcombine.low %v1144, %v1143
      %v5232 = vunpack.c.l.s4 1983009808
      %v5233 = vunpack.c.0.s8 %v5232
      %v5234 = vlaneseq
      %v5235 = vshrl.u32 %v5234, 7
      %v5236 = vsub.s32 %v5233, %v5235
      %v5237 = vrot.slane %v5229, %v5236
      %v5239 = vunpack.c.l.s4 1983009808
      %v5240 = vunpack.c.0.s8 %v5239
      %v5241 = vlaneseq
      %v5242 = vshrl.u32 %v5241, 7
      %v5243 = vsub.s32 %v5240, %v5242
      %v5244 = vrot.slane %v5230, %v5243
      %v5245 = vcombine.low %v5237, %v5244
      %v5246 = vcombine.low %v1145, %v1153
      %v5247 = vcombine.low %v1161, %v1160
      %v5249 = vunpack.c.l.s4 1983009808
      %v5250 = vunpack.c.0.s8 %v5249
      %v5251 = vlaneseq
      %v5252 = vshrl.u32 %v5251, 7
      %v5253 = vsub.s32 %v5250, %v5252
      %v5254 = vrot.slane %v5246, %v5253
      %v5256 = vunpack.c.l.s4 1983009808
      %v5257 = vunpack.c.0.s8 %v5256
      %v5258 = vlaneseq
      %v5259 = vshrl.u32 %v5258, 7
      %v5260 = vsub.s32 %v5257, %v5259
      %v5261 = vrot.slane %v5247, %v5260
      %v5262 = vcombine.low %v5254, %v5261
      %v5263 = vcombine.low %v1162, %v1169
      %v5264 = vcombine.low %v1177, %v1185
      %v5266 = vunpack.c.l.s4 1983009808
      %v5267 = vunpack.c.0.s8 %v5266
      %v5268 = vlaneseq
      %v5269 = vshrl.u32 %v5268, 7
      %v5270 = vsub.s32 %v5267, %v5269
      %v5271 = vrot.slane %v5263, %v5270
      %v5273 = vunpack.c.l.s4 1983009808
      %v5274 = vunpack.c.0.s8 %v5273
      %v5275 = vlaneseq
      %v5276 = vshrl.u32 %v5275, 7
      %v5277 = vsub.s32 %v5274, %v5276
      %v5278 = vrot.slane %v5264, %v5277
      %v5279 = vcombine.low %v5271, %v5278
      %v5280 = vcombine.low %v1184, %v1186
      %v5281 = vcombine.low %v1194, %v1202
      %v5283 = vunpack.c.l.s4 1983009808
      %v5284 = vunpack.c.0.s8 %v5283
      %v5285 = vlaneseq
      %v5286 = vshrl.u32 %v5285, 7
      %v5287 = vsub.s32 %v5284, %v5286
      %v5288 = vrot.slane %v5280, %v5287
      %v5290 = vunpack.c.l.s4 1983009808
      %v5291 = vunpack.c.0.s8 %v5290
      %v5292 = vlaneseq
      %v5293 = vshrl.u32 %v5292, 7
      %v5294 = vsub.s32 %v5291, %v5293
      %v5295 = vrot.slane %v5281, %v5294
      %v5296 = vcombine.low %v5288, %v5295
      %v5297 = vcombine.low %v1201, %v1203
      %v5298 = vcombine.low %v1210, %v1218
      %v5300 = vunpack.c.l.s4 1983009808
      %v5301 = vunpack.c.0.s8 %v5300
      %v5302 = vlaneseq
      %v5303 = vshrl.u32 %v5302, 7
      %v5304 = vsub.s32 %v5301, %v5303
      %v5305 = vrot.slane %v5297, %v5304
      %v5307 = vunpack.c.l.s4 1983009808
      %v5308 = vunpack.c.0.s8 %v5307
      %v5309 = vlaneseq
      %v5310 = vshrl.u32 %v5309, 7
      %v5311 = vsub.s32 %v5308, %v5310
      %v5312 = vrot.slane %v5298, %v5311
      %v5313 = vcombine.low %v5305, %v5312
      %v5314 = vcombine.low %v1226, %v1225
      %v5315 = vcombine.low %v1227, %v1235
      %v5317 = vunpack.c.l.s4 1983009808
      %v5318 = vunpack.c.0.s8 %v5317
      %v5319 = vlaneseq
      %v5320 = vshrl.u32 %v5319, 7
      %v5321 = vsub.s32 %v5318, %v5320
      %v5322 = vrot.slane %v5314, %v5321
      %v5324 = vunpack.c.l.s4 1983009808
      %v5325 = vunpack.c.0.s8 %v5324
      %v5326 = vlaneseq
      %v5327 = vshrl.u32 %v5326, 7
      %v5328 = vsub.s32 %v5325, %v5327
      %v5329 = vrot.slane %v5315, %v5328
      %v5330 = vcombine.low %v5322, %v5329
      %v5331 = vcombine.low %v1243, %v1242
      %v5332 = vcombine.low %v1244, %v1251
      %v5334 = vunpack.c.l.s4 1983009808
      %v5335 = vunpack.c.0.s8 %v5334
      %v5336 = vlaneseq
      %v5337 = vshrl.u32 %v5336, 7
      %v5338 = vsub.s32 %v5335, %v5337
      %v5339 = vrot.slane %v5331, %v5338
      %v5341 = vunpack.c.l.s4 1983009808
      %v5342 = vunpack.c.0.s8 %v5341
      %v5343 = vlaneseq
      %v5344 = vshrl.u32 %v5343, 7
      %v5345 = vsub.s32 %v5342, %v5344
      %v5346 = vrot.slane %v5332, %v5345
      %v5347 = vcombine.low %v5339, %v5346
      %v5348 = vcombine.low %v1259, %v1267
      %v5349 = vcombine.low %v1266, %v1268
      %v5351 = vunpack.c.l.s4 1983009808
      %v5352 = vunpack.c.0.s8 %v5351
      %v5353 = vlaneseq
      %v5354 = vshrl.u32 %v5353, 7
      %v5355 = vsub.s32 %v5352, %v5354
      %v5356 = vrot.slane %v5348, %v5355
      %v5358 = vunpack.c.l.s4 1983009808
      %v5359 = vunpack.c.0.s8 %v5358
      %v5360 = vlaneseq
      %v5361 = vshrl.u32 %v5360, 7
      %v5362 = vsub.s32 %v5359, %v5361
      %v5363 = vrot.slane %v5349, %v5362
      %v5364 = vcombine.low %v5356, %v5363
      %v5365 = vcombine.low %v1276, %v1284
      %v5366 = vcombine.low %v1283, %v1285
      %v5368 = vunpack.c.l.s4 1983009808
      %v5369 = vunpack.c.0.s8 %v5368
      %v5370 = vlaneseq
      %v5371 = vshrl.u32 %v5370, 7
      %v5372 = vsub.s32 %v5369, %v5371
      %v5373 = vrot.slane %v5365, %v5372
      %v5375 = vunpack.c.l.s4 1983009808
      %v5376 = vunpack.c.0.s8 %v5375
      %v5377 = vlaneseq
      %v5378 = vshrl.u32 %v5377, 7
      %v5379 = vsub.s32 %v5376, %v5378
      %v5380 = vrot.slane %v5366, %v5379
      %v5381 = vcombine.low %v5373, %v5380
      %v5382 = vcombine.low %v1292, %v1300
      %v5383 = vcombine.low %v1308, %v1307
      %v5385 = vunpack.c.l.s4 1983009808
      %v5386 = vunpack.c.0.s8 %v5385
      %v5387 = vlaneseq
      %v5388 = vshrl.u32 %v5387, 7
      %v5389 = vsub.s32 %v5386, %v5388
      %v5390 = vrot.slane %v5382, %v5389
      %v5392 = vunpack.c.l.s4 1983009808
      %v5393 = vunpack.c.0.s8 %v5392
      %v5394 = vlaneseq
      %v5395 = vshrl.u32 %v5394, 7
      %v5396 = vsub.s32 %v5393, %v5395
      %v5397 = vrot.slane %v5383, %v5396
      %v5398 = vcombine.low %v5390, %v5397
      %v5399 = vcombine.low %v1309, %v1317
      %v5400 = vcombine.low %v1325, %v1324
      %v5402 = vunpack.c.l.s4 1983009808
      %v5403 = vunpack.c.0.s8 %v5402
      %v5404 = vlaneseq
      %v5405 = vshrl.u32 %v5404, 7
      %v5406 = vsub.s32 %v5403, %v5405
      %v5407 = vrot.slane %v5399, %v5406
      %v5409 = vunpack.c.l.s4 1983009808
      %v5410 = vunpack.c.0.s8 %v5409
      %v5411 = vlaneseq
      %v5412 = vshrl.u32 %v5411, 7
      %v5413 = vsub.s32 %v5410, %v5412
      %v5414 = vrot.slane %v5400, %v5413
      %v5415 = vcombine.low %v5407, %v5414
      %v5416 = vcombine.low %v1326, %v1333
      %v5417 = vcombine.low %v1341, %v1349
      %v5419 = vunpack.c.l.s4 1983009808
      %v5420 = vunpack.c.0.s8 %v5419
      %v5421 = vlaneseq
      %v5422 = vshrl.u32 %v5421, 7
      %v5423 = vsub.s32 %v5420, %v5422
      %v5424 = vrot.slane %v5416, %v5423
      %v5426 = vunpack.c.l.s4 1983009808
      %v5427 = vunpack.c.0.s8 %v5426
      %v5428 = vlaneseq
      %v5429 = vshrl.u32 %v5428, 7
      %v5430 = vsub.s32 %v5427, %v5429
      %v5431 = vrot.slane %v5417, %v5430
      %v5432 = vcombine.low %v5424, %v5431
      %v5433 = vcombine.low %v1348, %v1350
      %v5434 = vcombine.low %v1358, %v1366
      %v5436 = vunpack.c.l.s4 1983009808
      %v5437 = vunpack.c.0.s8 %v5436
      %v5438 = vlaneseq
      %v5439 = vshrl.u32 %v5438, 7
      %v5440 = vsub.s32 %v5437, %v5439
      %v5441 = vrot.slane %v5433, %v5440
      %v5443 = vunpack.c.l.s4 1983009808
      %v5444 = vunpack.c.0.s8 %v5443
      %v5445 = vlaneseq
      %v5446 = vshrl.u32 %v5445, 7
      %v5447 = vsub.s32 %v5444, %v5446
      %v5448 = vrot.slane %v5434, %v5447
      %v5449 = vcombine.low %v5441, %v5448
      %v5450 = vcombine.low %v1365, %v1367
      %v5451 = vcombine.low %v1374, %v1382
      %v5453 = vunpack.c.l.s4 1983009808
      %v5454 = vunpack.c.0.s8 %v5453
      %v5455 = vlaneseq
      %v5456 = vshrl.u32 %v5455, 7
      %v5457 = vsub.s32 %v5454, %v5456
      %v5458 = vrot.slane %v5450, %v5457
      %v5460 = vunpack.c.l.s4 1983009808
      %v5461 = vunpack.c.0.s8 %v5460
      %v5462 = vlaneseq
      %v5463 = vshrl.u32 %v5462, 7
      %v5464 = vsub.s32 %v5461, %v5463
      %v5465 = vrot.slane %v5451, %v5464
      %v5466 = vcombine.low %v5458, %v5465
      %v5467 = vcombine.low %v1390, %v1389
      %v5468 = vcombine.low %v1391, %v1399
      %v5470 = vunpack.c.l.s4 1983009808
      %v5471 = vunpack.c.0.s8 %v5470
      %v5472 = vlaneseq
      %v5473 = vshrl.u32 %v5472, 7
      %v5474 = vsub.s32 %v5471, %v5473
      %v5475 = vrot.slane %v5467, %v5474
      %v5477 = vunpack.c.l.s4 1983009808
      %v5478 = vunpack.c.0.s8 %v5477
      %v5479 = vlaneseq
      %v5480 = vshrl.u32 %v5479, 7
      %v5481 = vsub.s32 %v5478, %v5480
      %v5482 = vrot.slane %v5468, %v5481
      %v5483 = vcombine.low %v5475, %v5482
      %v5484 = vcombine.low %v1407, %v1406
      %v5485 = vcombine.low %v1408, %v1415
      %v5487 = vunpack.c.l.s4 1983009808
      %v5488 = vunpack.c.0.s8 %v5487
      %v5489 = vlaneseq
      %v5490 = vshrl.u32 %v5489, 7
      %v5491 = vsub.s32 %v5488, %v5490
      %v5492 = vrot.slane %v5484, %v5491
      %v5494 = vunpack.c.l.s4 1983009808
      %v5495 = vunpack.c.0.s8 %v5494
      %v5496 = vlaneseq
      %v5497 = vshrl.u32 %v5496, 7
      %v5498 = vsub.s32 %v5495, %v5497
      %v5499 = vrot.slane %v5485, %v5498
      %v5500 = vcombine.low %v5492, %v5499
      %v5501 = vcombine.low %v1423, %v1431
      %v5502 = vcombine.low %v1430, %v1432
      %v5504 = vunpack.c.l.s4 1983009808
      %v5505 = vunpack.c.0.s8 %v5504
      %v5506 = vlaneseq
      %v5507 = vshrl.u32 %v5506, 7
      %v5508 = vsub.s32 %v5505, %v5507
      %v5509 = vrot.slane %v5501, %v5508
      %v5511 = vunpack.c.l.s4 1983009808
      %v5512 = vunpack.c.0.s8 %v5511
      %v5513 = vlaneseq
      %v5514 = vshrl.u32 %v5513, 7
      %v5515 = vsub.s32 %v5512, %v5514
      %v5516 = vrot.slane %v5502, %v5515
      %v5517 = vcombine.low %v5509, %v5516
      %v5518 = vcombine.low %v1440, %v1448
      %v5519 = vcombine.low %v1447, %v1449
      %v5521 = vunpack.c.l.s4 1983009808
      %v5522 = vunpack.c.0.s8 %v5521
      %v5523 = vlaneseq
      %v5524 = vshrl.u32 %v5523, 7
      %v5525 = vsub.s32 %v5522, %v5524
      %v5526 = vrot.slane %v5518, %v5525
      %v5528 = vunpack.c.l.s4 1983009808
      %v5529 = vunpack.c.0.s8 %v5528
      %v5530 = vlaneseq
      %v5531 = vshrl.u32 %v5530, 7
      %v5532 = vsub.s32 %v5529, %v5531
      %v5533 = vrot.slane %v5519, %v5532
      %v5534 = vcombine.low %v5526, %v5533
      %v5535 = vcombine.low %v1456, %v1464
      %v5536 = vcombine.low %v1472, %v1471
      %v5538 = vunpack.c.l.s4 1983009808
      %v5539 = vunpack.c.0.s8 %v5538
      %v5540 = vlaneseq
      %v5541 = vshrl.u32 %v5540, 7
      %v5542 = vsub.s32 %v5539, %v5541
      %v5543 = vrot.slane %v5535, %v5542
      %v5545 = vunpack.c.l.s4 1983009808
      %v5546 = vunpack.c.0.s8 %v5545
      %v5547 = vlaneseq
      %v5548 = vshrl.u32 %v5547, 7
      %v5549 = vsub.s32 %v5546, %v5548
      %v5550 = vrot.slane %v5536, %v5549
      %v5551 = vcombine.low %v5543, %v5550
      %v5552 = vcombine.low %v1473, %v1481
      %v5553 = vcombine.low %v1489, %v1488
      %v5555 = vunpack.c.l.s4 1983009808
      %v5556 = vunpack.c.0.s8 %v5555
      %v5557 = vlaneseq
      %v5558 = vshrl.u32 %v5557, 7
      %v5559 = vsub.s32 %v5556, %v5558
      %v5560 = vrot.slane %v5552, %v5559
      %v5562 = vunpack.c.l.s4 1983009808
      %v5563 = vunpack.c.0.s8 %v5562
      %v5564 = vlaneseq
      %v5565 = vshrl.u32 %v5564, 7
      %v5566 = vsub.s32 %v5563, %v5565
      %v5567 = vrot.slane %v5553, %v5566
      %v5568 = vcombine.low %v5560, %v5567
      %v5569 = vcombine.low %v1490, %v1497
      %v5571 = vunpack.c.l.s4 1983009808
      %v5572 = vunpack.c.0.s8 %v5571
      %v5573 = vlaneseq
      %v5574 = vshrl.u32 %v5573, 7
      %v5575 = vsub.s32 %v5572, %v5574
      %v5576 = vrot.slane %v5569, %v5575
      %v5600 = vcombine.low %v1565, %v1573
      %v5601 = vcombine.low %v1572, %v1574
      %v5603 = vunpack.c.l.s4 1983009808
      %v5604 = vunpack.c.0.s8 %v5603
      %v5605 = vlaneseq
      %v5606 = vshrl.u32 %v5605, 7
      %v5607 = vsub.s32 %v5604, %v5606
      %v5608 = vrot.slane %v5600, %v5607
      %v5610 = vunpack.c.l.s4 1983009808
      %v5611 = vunpack.c.0.s8 %v5610
      %v5612 = vlaneseq
      %v5613 = vshrl.u32 %v5612, 7
      %v5614 = vsub.s32 %v5611, %v5613
      %v5615 = vrot.slane %v5601, %v5614
      %v5616 = vcombine.low %v5608, %v5615
      %v5617 = vcombine.low %v1582, %v1590
      %v5618 = vcombine.low %v1589, %v1591
      %v5620 = vunpack.c.l.s4 1983009808
      %v5621 = vunpack.c.0.s8 %v5620
      %v5622 = vlaneseq
      %v5623 = vshrl.u32 %v5622, 7
      %v5624 = vsub.s32 %v5621, %v5623
      %v5625 = vrot.slane %v5617, %v5624
      %v5627 = vunpack.c.l.s4 1983009808
      %v5628 = vunpack.c.0.s8 %v5627
      %v5629 = vlaneseq
      %v5630 = vshrl.u32 %v5629, 7
      %v5631 = vsub.s32 %v5628, %v5630
      %v5632 = vrot.slane %v5618, %v5631
      %v5633 = vcombine.low %v5625, %v5632
      %v5634 = vcombine.low %v1598, %v1606
      %v5635 = vcombine.low %v1614, %v1613
      %v5637 = vunpack.c.l.s4 1983009808
      %v5638 = vunpack.c.0.s8 %v5637
      %v5639 = vlaneseq
      %v5640 = vshrl.u32 %v5639, 7
      %v5641 = vsub.s32 %v5638, %v5640
      %v5642 = vrot.slane %v5634, %v5641
      %v5644 = vunpack.c.l.s4 1983009808
      %v5645 = vunpack.c.0.s8 %v5644
      %v5646 = vlaneseq
      %v5647 = vshrl.u32 %v5646, 7
      %v5648 = vsub.s32 %v5645, %v5647
      %v5649 = vrot.slane %v5635, %v5648
      %v5650 = vcombine.low %v5642, %v5649
      %v5651 = vcombine.low %v1615, %v1623
      %v5652 = vcombine.low %v1631, %v1630
      %v5654 = vunpack.c.l.s4 1983009808
      %v5655 = vunpack.c.0.s8 %v5654
      %v5656 = vlaneseq
      %v5657 = vshrl.u32 %v5656, 7
      %v5658 = vsub.s32 %v5655, %v5657
      %v5659 = vrot.slane %v5651, %v5658
      %v5661 = vunpack.c.l.s4 1983009808
      %v5662 = vunpack.c.0.s8 %v5661
      %v5663 = vlaneseq
      %v5664 = vshrl.u32 %v5663, 7
      %v5665 = vsub.s32 %v5662, %v5664
      %v5666 = vrot.slane %v5652, %v5665
      %v5667 = vcombine.low %v5659, %v5666
      %v5668 = vcombine.low %v1632, %v1639
      %v5669 = vcombine.low %v1647, %v1655
      %v5671 = vunpack.c.l.s4 1983009808
      %v5672 = vunpack.c.0.s8 %v5671
      %v5673 = vlaneseq
      %v5674 = vshrl.u32 %v5673, 7
      %v5675 = vsub.s32 %v5672, %v5674
      %v5676 = vrot.slane %v5668, %v5675
      %v5678 = vunpack.c.l.s4 1983009808
      %v5679 = vunpack.c.0.s8 %v5678
      %v5680 = vlaneseq
      %v5681 = vshrl.u32 %v5680, 7
      %v5682 = vsub.s32 %v5679, %v5681
      %v5683 = vrot.slane %v5669, %v5682
      %v5684 = vcombine.low %v5676, %v5683
      %v5685 = vcombine.low %v1654, %v1656
      %v5686 = vcombine.low %v1664, %v1672
      %v5688 = vunpack.c.l.s4 1983009808
      %v5689 = vunpack.c.0.s8 %v5688
      %v5690 = vlaneseq
      %v5691 = vshrl.u32 %v5690, 7
      %v5692 = vsub.s32 %v5689, %v5691
      %v5693 = vrot.slane %v5685, %v5692
      %v5695 = vunpack.c.l.s4 1983009808
      %v5696 = vunpack.c.0.s8 %v5695
      %v5697 = vlaneseq
      %v5698 = vshrl.u32 %v5697, 7
      %v5699 = vsub.s32 %v5696, %v5698
      %v5700 = vrot.slane %v5686, %v5699
      %v5701 = vcombine.low %v5693, %v5700
      %v5702 = vcombine.low %v1671, %v1673
      %v5703 = vcombine.low %v1680, %v1688
      %v5705 = vunpack.c.l.s4 1983009808
      %v5706 = vunpack.c.0.s8 %v5705
      %v5707 = vlaneseq
      %v5708 = vshrl.u32 %v5707, 7
      %v5709 = vsub.s32 %v5706, %v5708
      %v5710 = vrot.slane %v5702, %v5709
      %v5712 = vunpack.c.l.s4 1983009808
      %v5713 = vunpack.c.0.s8 %v5712
      %v5714 = vlaneseq
      %v5715 = vshrl.u32 %v5714, 7
      %v5716 = vsub.s32 %v5713, %v5715
      %v5717 = vrot.slane %v5703, %v5716
      %v5718 = vcombine.low %v5710, %v5717
      %v5719 = vcombine.low %v1696, %v1695
      %v5720 = vcombine.low %v1697, %v1705
      %v5722 = vunpack.c.l.s4 1983009808
      %v5723 = vunpack.c.0.s8 %v5722
      %v5724 = vlaneseq
      %v5725 = vshrl.u32 %v5724, 7
      %v5726 = vsub.s32 %v5723, %v5725
      %v5727 = vrot.slane %v5719, %v5726
      %v5729 = vunpack.c.l.s4 1983009808
      %v5730 = vunpack.c.0.s8 %v5729
      %v5731 = vlaneseq
      %v5732 = vshrl.u32 %v5731, 7
      %v5733 = vsub.s32 %v5730, %v5732
      %v5734 = vrot.slane %v5720, %v5733
      %v5735 = vcombine.low %v5727, %v5734
      %v5736 = vcombine.low %v1713, %v1712
      %v5737 = vcombine.low %v1714, %v1721
      %v5739 = vunpack.c.l.s4 1983009808
      %v5740 = vunpack.c.0.s8 %v5739
      %v5741 = vlaneseq
      %v5742 = vshrl.u32 %v5741, 7
      %v5743 = vsub.s32 %v5740, %v5742
      %v5744 = vrot.slane %v5736, %v5743
      %v5746 = vunpack.c.l.s4 1983009808
      %v5747 = vunpack.c.0.s8 %v5746
      %v5748 = vlaneseq
      %v5749 = vshrl.u32 %v5748, 7
      %v5750 = vsub.s32 %v5747, %v5749
      %v5751 = vrot.slane %v5737, %v5750
      %v5752 = vcombine.low %v5744, %v5751
      %v5753 = vcombine.low %v1729, %v1737
      %v5754 = vcombine.low %v1736, %v1738
      %v5756 = vunpack.c.l.s4 1983009808
      %v5757 = vunpack.c.0.s8 %v5756
      %v5758 = vlaneseq
      %v5759 = vshrl.u32 %v5758, 7
      %v5760 = vsub.s32 %v5757, %v5759
      %v5761 = vrot.slane %v5753, %v5760
      %v5763 = vunpack.c.l.s4 1983009808
      %v5764 = vunpack.c.0.s8 %v5763
      %v5765 = vlaneseq
      %v5766 = vshrl.u32 %v5765, 7
      %v5767 = vsub.s32 %v5764, %v5766
      %v5768 = vrot.slane %v5754, %v5767
      %v5769 = vcombine.low %v5761, %v5768
      %v5770 = vcombine.low %v1746, %v1754
      %v5771 = vcombine.low %v1753, %v1755
      %v5773 = vunpack.c.l.s4 1983009808
      %v5774 = vunpack.c.0.s8 %v5773
      %v5775 = vlaneseq
      %v5776 = vshrl.u32 %v5775, 7
      %v5777 = vsub.s32 %v5774, %v5776
      %v5778 = vrot.slane %v5770, %v5777
      %v5780 = vunpack.c.l.s4 1983009808
      %v5781 = vunpack.c.0.s8 %v5780
      %v5782 = vlaneseq
      %v5783 = vshrl.u32 %v5782, 7
      %v5784 = vsub.s32 %v5781, %v5783
      %v5785 = vrot.slane %v5771, %v5784
      %v5786 = vcombine.low %v5778, %v5785
      %v5787 = vcombine.low %v1762, %v1770
      %v5788 = vcombine.low %v1778, %v1777
      %v5790 = vunpack.c.l.s4 1983009808
      %v5791 = vunpack.c.0.s8 %v5790
      %v5792 = vlaneseq
      %v5793 = vshrl.u32 %v5792, 7
      %v5794 = vsub.s32 %v5791, %v5793
      %v5795 = vrot.slane %v5787, %v5794
      %v5797 = vunpack.c.l.s4 1983009808
      %v5798 = vunpack.c.0.s8 %v5797
      %v5799 = vlaneseq
      %v5800 = vshrl.u32 %v5799, 7
      %v5801 = vsub.s32 %v5798, %v5800
      %v5802 = vrot.slane %v5788, %v5801
      %v5803 = vcombine.low %v5795, %v5802
      %v5804 = vcombine.low %v1779, %v1787
      %v5805 = vcombine.low %v1795, %v1794
      %v5807 = vunpack.c.l.s4 1983009808
      %v5808 = vunpack.c.0.s8 %v5807
      %v5809 = vlaneseq
      %v5810 = vshrl.u32 %v5809, 7
      %v5811 = vsub.s32 %v5808, %v5810
      %v5812 = vrot.slane %v5804, %v5811
      %v5814 = vunpack.c.l.s4 1983009808
      %v5815 = vunpack.c.0.s8 %v5814
      %v5816 = vlaneseq
      %v5817 = vshrl.u32 %v5816, 7
      %v5818 = vsub.s32 %v5815, %v5817
      %v5819 = vrot.slane %v5805, %v5818
      %v5820 = vcombine.low %v5812, %v5819
      %v5821 = vcombine.low %v1796, %v1803
      %v5822 = vcombine.low %v1811, %v1819
      %v5824 = vunpack.c.l.s4 1983009808
      %v5825 = vunpack.c.0.s8 %v5824
      %v5826 = vlaneseq
      %v5827 = vshrl.u32 %v5826, 7
      %v5828 = vsub.s32 %v5825, %v5827
      %v5829 = vrot.slane %v5821, %v5828
      %v5831 = vunpack.c.l.s4 1983009808
      %v5832 = vunpack.c.0.s8 %v5831
      %v5833 = vlaneseq
      %v5834 = vshrl.u32 %v5833, 7
      %v5835 = vsub.s32 %v5832, %v5834
      %v5836 = vrot.slane %v5822, %v5835
      %v5837 = vcombine.low %v5829, %v5836
      %v5838 = vcombine.low %v1818, %v1820
      %v5839 = vcombine.low %v1828, %v1836
      %v5841 = vunpack.c.l.s4 1983009808
      %v5842 = vunpack.c.0.s8 %v5841
      %v5843 = vlaneseq
      %v5844 = vshrl.u32 %v5843, 7
      %v5845 = vsub.s32 %v5842, %v5844
      %v5846 = vrot.slane %v5838, %v5845
      %v5848 = vunpack.c.l.s4 1983009808
      %v5849 = vunpack.c.0.s8 %v5848
      %v5850 = vlaneseq
      %v5851 = vshrl.u32 %v5850, 7
      %v5852 = vsub.s32 %v5849, %v5851
      %v5853 = vrot.slane %v5839, %v5852
      %v5854 = vcombine.low %v5846, %v5853
      %v5855 = vcombine.low %v1835, %v1837
      %v5856 = vcombine.low %v1844, %v1852
      %v5858 = vunpack.c.l.s4 1983009808
      %v5859 = vunpack.c.0.s8 %v5858
      %v5860 = vlaneseq
      %v5861 = vshrl.u32 %v5860, 7
      %v5862 = vsub.s32 %v5859, %v5861
      %v5863 = vrot.slane %v5855, %v5862
      %v5865 = vunpack.c.l.s4 1983009808
      %v5866 = vunpack.c.0.s8 %v5865
      %v5867 = vlaneseq
      %v5868 = vshrl.u32 %v5867, 7
      %v5869 = vsub.s32 %v5866, %v5868
      %v5870 = vrot.slane %v5856, %v5869
      %v5871 = vcombine.low %v5863, %v5870
      %v5872 = vcombine.low %v1860, %v1859
      %v5873 = vcombine.low %v1861, %v1869
      %v5875 = vunpack.c.l.s4 1983009808
      %v5876 = vunpack.c.0.s8 %v5875
      %v5877 = vlaneseq
      %v5878 = vshrl.u32 %v5877, 7
      %v5879 = vsub.s32 %v5876, %v5878
      %v5880 = vrot.slane %v5872, %v5879
      %v5882 = vunpack.c.l.s4 1983009808
      %v5883 = vunpack.c.0.s8 %v5882
      %v5884 = vlaneseq
      %v5885 = vshrl.u32 %v5884, 7
      %v5886 = vsub.s32 %v5883, %v5885
      %v5887 = vrot.slane %v5873, %v5886
      %v5888 = vcombine.low %v5880, %v5887
      %v5889 = vcombine.low %v1877, %v1876
      %v5890 = vcombine.low %v1878, %v1885
      %v5892 = vunpack.c.l.s4 1983009808
      %v5893 = vunpack.c.0.s8 %v5892
      %v5894 = vlaneseq
      %v5895 = vshrl.u32 %v5894, 7
      %v5896 = vsub.s32 %v5893, %v5895
      %v5897 = vrot.slane %v5889, %v5896
      %v5899 = vunpack.c.l.s4 1983009808
      %v5900 = vunpack.c.0.s8 %v5899
      %v5901 = vlaneseq
      %v5902 = vshrl.u32 %v5901, 7
      %v5903 = vsub.s32 %v5900, %v5902
      %v5904 = vrot.slane %v5890, %v5903
      %v5905 = vcombine.low %v5897, %v5904
      %v5906 = vcombine.low %v1893, %v1901
      %v5907 = vcombine.low %v1900, %v1902
      %v5909 = vunpack.c.l.s4 1983009808
      %v5910 = vunpack.c.0.s8 %v5909
      %v5911 = vlaneseq
      %v5912 = vshrl.u32 %v5911, 7
      %v5913 = vsub.s32 %v5910, %v5912
      %v5914 = vrot.slane %v5906, %v5913
      %v5916 = vunpack.c.l.s4 1983009808
      %v5917 = vunpack.c.0.s8 %v5916
      %v5918 = vlaneseq
      %v5919 = vshrl.u32 %v5918, 7
      %v5920 = vsub.s32 %v5917, %v5919
      %v5921 = vrot.slane %v5907, %v5920
      %v5922 = vcombine.low %v5914, %v5921
      %v5923 = vcombine.low %v1910, %v1918
      %v5924 = vcombine.low %v1917, %v1919
      %v5926 = vunpack.c.l.s4 1983009808
      %v5927 = vunpack.c.0.s8 %v5926
      %v5928 = vlaneseq
      %v5929 = vshrl.u32 %v5928, 7
      %v5930 = vsub.s32 %v5927, %v5929
      %v5931 = vrot.slane %v5923, %v5930
      %v5933 = vunpack.c.l.s4 1983009808
      %v5934 = vunpack.c.0.s8 %v5933
      %v5935 = vlaneseq
      %v5936 = vshrl.u32 %v5935, 7
      %v5937 = vsub.s32 %v5934, %v5936
      %v5938 = vrot.slane %v5924, %v5937
      %v5939 = vcombine.low %v5931, %v5938
      %v5940 = vcombine.low %v1926, %v1934
      %v5941 = vcombine.low %v1942, %v1941
      %v5943 = vunpack.c.l.s4 1983009808
      %v5944 = vunpack.c.0.s8 %v5943
      %v5945 = vlaneseq
      %v5946 = vshrl.u32 %v5945, 7
      %v5947 = vsub.s32 %v5944, %v5946
      %v5948 = vrot.slane %v5940, %v5947
      %v5950 = vunpack.c.l.s4 1983009808
      %v5951 = vunpack.c.0.s8 %v5950
      %v5952 = vlaneseq
      %v5953 = vshrl.u32 %v5952, 7
      %v5954 = vsub.s32 %v5951, %v5953
      %v5955 = vrot.slane %v5941, %v5954
      %v5956 = vcombine.low %v5948, %v5955
      %v5957 = vcombine.low %v1943, %v1951
      %v5958 = vcombine.low %v1959, %v1958
      %v5960 = vunpack.c.l.s4 1983009808
      %v5961 = vunpack.c.0.s8 %v5960
      %v5962 = vlaneseq
      %v5963 = vshrl.u32 %v5962, 7
      %v5964 = vsub.s32 %v5961, %v5963
      %v5965 = vrot.slane %v5957, %v5964
      %v5967 = vunpack.c.l.s4 1983009808
      %v5968 = vunpack.c.0.s8 %v5967
      %v5969 = vlaneseq
      %v5970 = vshrl.u32 %v5969, 7
      %v5971 = vsub.s32 %v5968, %v5970
      %v5972 = vrot.slane %v5958, %v5971
      %v5973 = vcombine.low %v5965, %v5972
      %v5974 = vcombine.low %v1960, %v1967
      %v5976 = vunpack.c.l.s4 1983009808
      %v5977 = vunpack.c.0.s8 %v5976
      %v5978 = vlaneseq
      %v5979 = vshrl.u32 %v5978, 7
      %v5980 = vsub.s32 %v5977, %v5979
      %v5981 = vrot.slane %v5974, %v5980
      %v6005 = vcombine.low %v2036, %v2044
      %v6006 = vcombine.low %v2043, %v2045
      %v6008 = vunpack.c.l.s4 1983009808
      %v6009 = vunpack.c.0.s8 %v6008
      %v6010 = vlaneseq
      %v6011 = vshrl.u32 %v6010, 7
      %v6012 = vsub.s32 %v6009, %v6011
      %v6013 = vrot.slane %v6005, %v6012
      %v6015 = vunpack.c.l.s4 1983009808
      %v6016 = vunpack.c.0.s8 %v6015
      %v6017 = vlaneseq
      %v6018 = vshrl.u32 %v6017, 7
      %v6019 = vsub.s32 %v6016, %v6018
      %v6020 = vrot.slane %v6006, %v6019
      %v6021 = vcombine.low %v6013, %v6020
      %v6022 = vcombine.low %v2053, %v2061
      %v6023 = vcombine.low %v2060, %v2062
      %v6025 = vunpack.c.l.s4 1983009808
      %v6026 = vunpack.c.0.s8 %v6025
      %v6027 = vlaneseq
      %v6028 = vshrl.u32 %v6027, 7
      %v6029 = vsub.s32 %v6026, %v6028
      %v6030 = vrot.slane %v6022, %v6029
      %v6032 = vunpack.c.l.s4 1983009808
      %v6033 = vunpack.c.0.s8 %v6032
      %v6034 = vlaneseq
      %v6035 = vshrl.u32 %v6034, 7
      %v6036 = vsub.s32 %v6033, %v6035
      %v6037 = vrot.slane %v6023, %v6036
      %v6038 = vcombine.low %v6030, %v6037
      %v6039 = vcombine.low %v2069, %v2077
      %v6040 = vcombine.low %v2085, %v2084
      %v6042 = vunpack.c.l.s4 1983009808
      %v6043 = vunpack.c.0.s8 %v6042
      %v6044 = vlaneseq
      %v6045 = vshrl.u32 %v6044, 7
      %v6046 = vsub.s32 %v6043, %v6045
      %v6047 = vrot.slane %v6039, %v6046
      %v6049 = vunpack.c.l.s4 1983009808
      %v6050 = vunpack.c.0.s8 %v6049
      %v6051 = vlaneseq
      %v6052 = vshrl.u32 %v6051, 7
      %v6053 = vsub.s32 %v6050, %v6052
      %v6054 = vrot.slane %v6040, %v6053
      %v6055 = vcombine.low %v6047, %v6054
      %v6056 = vcombine.low %v2086, %v2094
      %v6057 = vcombine.low %v2102, %v2101
      %v6059 = vunpack.c.l.s4 1983009808
      %v6060 = vunpack.c.0.s8 %v6059
      %v6061 = vlaneseq
      %v6062 = vshrl.u32 %v6061, 7
      %v6063 = vsub.s32 %v6060, %v6062
      %v6064 = vrot.slane %v6056, %v6063
      %v6066 = vunpack.c.l.s4 1983009808
      %v6067 = vunpack.c.0.s8 %v6066
      %v6068 = vlaneseq
      %v6069 = vshrl.u32 %v6068, 7
      %v6070 = vsub.s32 %v6067, %v6069
      %v6071 = vrot.slane %v6057, %v6070
      %v6072 = vcombine.low %v6064, %v6071
      %v6073 = vcombine.low %v2103, %v2110
      %v6074 = vcombine.low %v2118, %v2126
      %v6076 = vunpack.c.l.s4 1983009808
      %v6077 = vunpack.c.0.s8 %v6076
      %v6078 = vlaneseq
      %v6079 = vshrl.u32 %v6078, 7
      %v6080 = vsub.s32 %v6077, %v6079
      %v6081 = vrot.slane %v6073, %v6080
      %v6083 = vunpack.c.l.s4 1983009808
      %v6084 = vunpack.c.0.s8 %v6083
      %v6085 = vlaneseq
      %v6086 = vshrl.u32 %v6085, 7
      %v6087 = vsub.s32 %v6084, %v6086
      %v6088 = vrot.slane %v6074, %v6087
      %v6089 = vcombine.low %v6081, %v6088
      %v6090 = vcombine.low %v2125, %v2127
      %v6091 = vcombine.low %v2135, %v2143
      %v6093 = vunpack.c.l.s4 1983009808
      %v6094 = vunpack.c.0.s8 %v6093
      %v6095 = vlaneseq
      %v6096 = vshrl.u32 %v6095, 7
      %v6097 = vsub.s32 %v6094, %v6096
      %v6098 = vrot.slane %v6090, %v6097
      %v6100 = vunpack.c.l.s4 1983009808
      %v6101 = vunpack.c.0.s8 %v6100
      %v6102 = vlaneseq
      %v6103 = vshrl.u32 %v6102, 7
      %v6104 = vsub.s32 %v6101, %v6103
      %v6105 = vrot.slane %v6091, %v6104
      %v6106 = vcombine.low %v6098, %v6105
      %v6107 = vcombine.low %v2142, %v2144
      %v6108 = vcombine.low %v2151, %v2159
      %v6110 = vunpack.c.l.s4 1983009808
      %v6111 = vunpack.c.0.s8 %v6110
      %v6112 = vlaneseq
      %v6113 = vshrl.u32 %v6112, 7
      %v6114 = vsub.s32 %v6111, %v6113
      %v6115 = vrot.slane %v6107, %v6114
      %v6117 = vunpack.c.l.s4 1983009808
      %v6118 = vunpack.c.0.s8 %v6117
      %v6119 = vlaneseq
      %v6120 = vshrl.u32 %v6119, 7
      %v6121 = vsub.s32 %v6118, %v6120
      %v6122 = vrot.slane %v6108, %v6121
      %v6123 = vcombine.low %v6115, %v6122
      %v6124 = vcombine.low %v2167, %v2166
      %v6125 = vcombine.low %v2168, %v2176
      %v6127 = vunpack.c.l.s4 1983009808
      %v6128 = vunpack.c.0.s8 %v6127
      %v6129 = vlaneseq
      %v6130 = vshrl.u32 %v6129, 7
      %v6131 = vsub.s32 %v6128, %v6130
      %v6132 = vrot.slane %v6124, %v6131
      %v6134 = vunpack.c.l.s4 1983009808
      %v6135 = vunpack.c.0.s8 %v6134
      %v6136 = vlaneseq
      %v6137 = vshrl.u32 %v6136, 7
      %v6138 = vsub.s32 %v6135, %v6137
      %v6139 = vrot.slane %v6125, %v6138
      %v6140 = vcombine.low %v6132, %v6139
      %v6141 = vcombine.low %v2184, %v2183
      %v6142 = vcombine.low %v2185, %v2192
      %v6144 = vunpack.c.l.s4 1983009808
      %v6145 = vunpack.c.0.s8 %v6144
      %v6146 = vlaneseq
      %v6147 = vshrl.u32 %v6146, 7
      %v6148 = vsub.s32 %v6145, %v6147
      %v6149 = vrot.slane %v6141, %v6148
      %v6151 = vunpack.c.l.s4 1983009808
      %v6152 = vunpack.c.0.s8 %v6151
      %v6153 = vlaneseq
      %v6154 = vshrl.u32 %v6153, 7
      %v6155 = vsub.s32 %v6152, %v6154
      %v6156 = vrot.slane %v6142, %v6155
      %v6157 = vcombine.low %v6149, %v6156
      %v6158 = vcombine.low %v2200, %v2208
      %v6159 = vcombine.low %v2207, %v2209
      %v6161 = vunpack.c.l.s4 1983009808
      %v6162 = vunpack.c.0.s8 %v6161
      %v6163 = vlaneseq
      %v6164 = vshrl.u32 %v6163, 7
      %v6165 = vsub.s32 %v6162, %v6164
      %v6166 = vrot.slane %v6158, %v6165
      %v6168 = vunpack.c.l.s4 1983009808
      %v6169 = vunpack.c.0.s8 %v6168
      %v6170 = vlaneseq
      %v6171 = vshrl.u32 %v6170, 7
      %v6172 = vsub.s32 %v6169, %v6171
      %v6173 = vrot.slane %v6159, %v6172
      %v6174 = vcombine.low %v6166, %v6173
      %v6175 = vcombine.low %v2217, %v2225
      %v6176 = vcombine.low %v2224, %v2226
      %v6178 = vunpack.c.l.s4 1983009808
      %v6179 = vunpack.c.0.s8 %v6178
      %v6180 = vlaneseq
      %v6181 = vshrl.u32 %v6180, 7
      %v6182 = vsub.s32 %v6179, %v6181
      %v6183 = vrot.slane %v6175, %v6182
      %v6185 = vunpack.c.l.s4 1983009808
      %v6186 = vunpack.c.0.s8 %v6185
      %v6187 = vlaneseq
      %v6188 = vshrl.u32 %v6187, 7
      %v6189 = vsub.s32 %v6186, %v6188
      %v6190 = vrot.slane %v6176, %v6189
      %v6191 = vcombine.low %v6183, %v6190
      %v6192 = vcombine.low %v2233, %v2241
      %v6193 = vcombine.low %v2249, %v2248
      %v6195 = vunpack.c.l.s4 1983009808
      %v6196 = vunpack.c.0.s8 %v6195
      %v6197 = vlaneseq
      %v6198 = vshrl.u32 %v6197, 7
      %v6199 = vsub.s32 %v6196, %v6198
      %v6200 = vrot.slane %v6192, %v6199
      %v6202 = vunpack.c.l.s4 1983009808
      %v6203 = vunpack.c.0.s8 %v6202
      %v6204 = vlaneseq
      %v6205 = vshrl.u32 %v6204, 7
      %v6206 = vsub.s32 %v6203, %v6205
      %v6207 = vrot.slane %v6193, %v6206
      %v6208 = vcombine.low %v6200, %v6207
      %v6209 = vcombine.low %v2250, %v2258
      %v6210 = vcombine.low %v2266, %v2265
      %v6212 = vunpack.c.l.s4 1983009808
      %v6213 = vunpack.c.0.s8 %v6212
      %v6214 = vlaneseq
      %v6215 = vshrl.u32 %v6214, 7
      %v6216 = vsub.s32 %v6213, %v6215
      %v6217 = vrot.slane %v6209, %v6216
      %v6219 = vunpack.c.l.s4 1983009808
      %v6220 = vunpack.c.0.s8 %v6219
      %v6221 = vlaneseq
      %v6222 = vshrl.u32 %v6221, 7
      %v6223 = vsub.s32 %v6220, %v6222
      %v6224 = vrot.slane %v6210, %v6223
      %v6225 = vcombine.low %v6217, %v6224
      %v6226 = vcombine.low %v2267, %v2274
      %v6227 = vcombine.low %v2282, %v2290
      %v6229 = vunpack.c.l.s4 1983009808
      %v6230 = vunpack.c.0.s8 %v6229
      %v6231 = vlaneseq
      %v6232 = vshrl.u32 %v6231, 7
      %v6233 = vsub.s32 %v6230, %v6232
      %v6234 = vrot.slane %v6226, %v6233
      %v6236 = vunpack.c.l.s4 1983009808
      %v6237 = vunpack.c.0.s8 %v6236
      %v6238 = vlaneseq
      %v6239 = vshrl.u32 %v6238, 7
      %v6240 = vsub.s32 %v6237, %v6239
      %v6241 = vrot.slane %v6227, %v6240
      %v6242 = vcombine.low %v6234, %v6241
      %v6243 = vcombine.low %v2289, %v2291
      %v6244 = vcombine.low %v2299, %v2307
      %v6246 = vunpack.c.l.s4 1983009808
      %v6247 = vunpack.c.0.s8 %v6246
      %v6248 = vlaneseq
      %v6249 = vshrl.u32 %v6248, 7
      %v6250 = vsub.s32 %v6247, %v6249
      %v6251 = vrot.slane %v6243, %v6250
      %v6253 = vunpack.c.l.s4 1983009808
      %v6254 = vunpack.c.0.s8 %v6253
      %v6255 = vlaneseq
      %v6256 = vshrl.u32 %v6255, 7
      %v6257 = vsub.s32 %v6254, %v6256
      %v6258 = vrot.slane %v6244, %v6257
      %v6259 = vcombine.low %v6251, %v6258
      %v6260 = vcombine.low %v2306, %v2308
      %v6261 = vcombine.low %v2315, %v2323
      %v6263 = vunpack.c.l.s4 1983009808
      %v6264 = vunpack.c.0.s8 %v6263
      %v6265 = vlaneseq
      %v6266 = vshrl.u32 %v6265, 7
      %v6267 = vsub.s32 %v6264, %v6266
      %v6268 = vrot.slane %v6260, %v6267
      %v6270 = vunpack.c.l.s4 1983009808
      %v6271 = vunpack.c.0.s8 %v6270
      %v6272 = vlaneseq
      %v6273 = vshrl.u32 %v6272, 7
      %v6274 = vsub.s32 %v6271, %v6273
      %v6275 = vrot.slane %v6261, %v6274
      %v6276 = vcombine.low %v6268, %v6275
      %v6277 = vcombine.low %v2331, %v2330
      %v6278 = vcombine.low %v2332, %v2340
      %v6280 = vunpack.c.l.s4 1983009808
      %v6281 = vunpack.c.0.s8 %v6280
      %v6282 = vlaneseq
      %v6283 = vshrl.u32 %v6282, 7
      %v6284 = vsub.s32 %v6281, %v6283
      %v6285 = vrot.slane %v6277, %v6284
      %v6287 = vunpack.c.l.s4 1983009808
      %v6288 = vunpack.c.0.s8 %v6287
      %v6289 = vlaneseq
      %v6290 = vshrl.u32 %v6289, 7
      %v6291 = vsub.s32 %v6288, %v6290
      %v6292 = vrot.slane %v6278, %v6291
      %v6293 = vcombine.low %v6285, %v6292
      %v6294 = vcombine.low %v2348, %v2347
      %v6295 = vcombine.low %v2349, %v2356
      %v6297 = vunpack.c.l.s4 1983009808
      %v6298 = vunpack.c.0.s8 %v6297
      %v6299 = vlaneseq
      %v6300 = vshrl.u32 %v6299, 7
      %v6301 = vsub.s32 %v6298, %v6300
      %v6302 = vrot.slane %v6294, %v6301
      %v6304 = vunpack.c.l.s4 1983009808
      %v6305 = vunpack.c.0.s8 %v6304
      %v6306 = vlaneseq
      %v6307 = vshrl.u32 %v6306, 7
      %v6308 = vsub.s32 %v6305, %v6307
      %v6309 = vrot.slane %v6295, %v6308
      %v6310 = vcombine.low %v6302, %v6309
      %v6311 = vcombine.low %v2364, %v2372
      %v6312 = vcombine.low %v2371, %v2373
      %v6314 = vunpack.c.l.s4 1983009808
      %v6315 = vunpack.c.0.s8 %v6314
      %v6316 = vlaneseq
      %v6317 = vshrl.u32 %v6316, 7
      %v6318 = vsub.s32 %v6315, %v6317
      %v6319 = vrot.slane %v6311, %v6318
      %v6321 = vunpack.c.l.s4 1983009808
      %v6322 = vunpack.c.0.s8 %v6321
      %v6323 = vlaneseq
      %v6324 = vshrl.u32 %v6323, 7
      %v6325 = vsub.s32 %v6322, %v6324
      %v6326 = vrot.slane %v6312, %v6325
      %v6327 = vcombine.low %v6319, %v6326
      %v6328 = vcombine.low %v2381, %v2389
      %v6329 = vcombine.low %v2388, %v2390
      %v6331 = vunpack.c.l.s4 1983009808
      %v6332 = vunpack.c.0.s8 %v6331
      %v6333 = vlaneseq
      %v6334 = vshrl.u32 %v6333, 7
      %v6335 = vsub.s32 %v6332, %v6334
      %v6336 = vrot.slane %v6328, %v6335
      %v6338 = vunpack.c.l.s4 1983009808
      %v6339 = vunpack.c.0.s8 %v6338
      %v6340 = vlaneseq
      %v6341 = vshrl.u32 %v6340, 7
      %v6342 = vsub.s32 %v6339, %v6341
      %v6343 = vrot.slane %v6329, %v6342
      %v6344 = vcombine.low %v6336, %v6343
      %v6345 = vcombine.low %v2397, %v2405
      %v6346 = vcombine.low %v2413, %v2412
      %v6348 = vunpack.c.l.s4 1983009808
      %v6349 = vunpack.c.0.s8 %v6348
      %v6350 = vlaneseq
      %v6351 = vshrl.u32 %v6350, 7
      %v6352 = vsub.s32 %v6349, %v6351
      %v6353 = vrot.slane %v6345, %v6352
      %v6355 = vunpack.c.l.s4 1983009808
      %v6356 = vunpack.c.0.s8 %v6355
      %v6357 = vlaneseq
      %v6358 = vshrl.u32 %v6357, 7
      %v6359 = vsub.s32 %v6356, %v6358
      %v6360 = vrot.slane %v6346, %v6359
      %v6361 = vcombine.low %v6353, %v6360
      %v6362 = vcombine.low %v2414, %v2422
      %v6363 = vcombine.low %v2430, %v2429
      %v6365 = vunpack.c.l.s4 1983009808
      %v6366 = vunpack.c.0.s8 %v6365
      %v6367 = vlaneseq
      %v6368 = vshrl.u32 %v6367, 7
      %v6369 = vsub.s32 %v6366, %v6368
      %v6370 = vrot.slane %v6362, %v6369
      %v6372 = vunpack.c.l.s4 1983009808
      %v6373 = vunpack.c.0.s8 %v6372
      %v6374 = vlaneseq
      %v6375 = vshrl.u32 %v6374, 7
      %v6376 = vsub.s32 %v6373, %v6375
      %v6377 = vrot.slane %v6363, %v6376
      %v6378 = vcombine.low %v6370, %v6377
      %v6379 = vcombine.low %v2431, %v2438
      %v6381 = vunpack.c.l.s4 1983009808
      %v6382 = vunpack.c.0.s8 %v6381
      %v6383 = vlaneseq
      %v6384 = vshrl.u32 %v6383, 7
      %v6385 = vsub.s32 %v6382, %v6384
      %v6386 = vrot.slane %v6379, %v6385
      %v6410 = vcombine.low %v2506, %v2514
      %v6411 = vcombine.low %v2513, %v2515
      %v6413 = vunpack.c.l.s4 1983009808
      %v6414 = vunpack.c.0.s8 %v6413
      %v6415 = vlaneseq
      %v6416 = vshrl.u32 %v6415, 7
      %v6417 = vsub.s32 %v6414, %v6416
      %v6418 = vrot.slane %v6410, %v6417
      %v6420 = vunpack.c.l.s4 1983009808
      %v6421 = vunpack.c.0.s8 %v6420
      %v6422 = vlaneseq
      %v6423 = vshrl.u32 %v6422, 7
      %v6424 = vsub.s32 %v6421, %v6423
      %v6425 = vrot.slane %v6411, %v6424
      %v6426 = vcombine.low %v6418, %v6425
      %v6427 = vcombine.low %v2523, %v2531
      %v6428 = vcombine.low %v2530, %v2532
      %v6430 = vunpack.c.l.s4 1983009808
      %v6431 = vunpack.c.0.s8 %v6430
      %v6432 = vlaneseq
      %v6433 = vshrl.u32 %v6432, 7
      %v6434 = vsub.s32 %v6431, %v6433
      %v6435 = vrot.slane %v6427, %v6434
      %v6437 = vunpack.c.l.s4 1983009808
      %v6438 = vunpack.c.0.s8 %v6437
      %v6439 = vlaneseq
      %v6440 = vshrl.u32 %v6439, 7
      %v6441 = vsub.s32 %v6438, %v6440
      %v6442 = vrot.slane %v6428, %v6441
      %v6443 = vcombine.low %v6435, %v6442
      %v6444 = vcombine.low %v2539, %v2547
      %v6445 = vcombine.low %v2555, %v2554
      %v6447 = vunpack.c.l.s4 1983009808
      %v6448 = vunpack.c.0.s8 %v6447
      %v6449 = vlaneseq
      %v6450 = vshrl.u32 %v6449, 7
      %v6451 = vsub.s32 %v6448, %v6450
      %v6452 = vrot.slane %v6444, %v6451
      %v6454 = vunpack.c.l.s4 1983009808
      %v6455 = vunpack.c.0.s8 %v6454
      %v6456 = vlaneseq
      %v6457 = vshrl.u32 %v6456, 7
      %v6458 = vsub.s32 %v6455, %v6457
      %v6459 = vrot.slane %v6445, %v6458
      %v6460 = vcombine.low %v6452, %v6459
      %v6461 = vcombine.low %v2556, %v2564
      %v6462 = vcombine.low %v2572, %v2571
      %v6464 = vunpack.c.l.s4 1983009808
      %v6465 = vunpack.c.0.s8 %v6464
      %v6466 = vlaneseq
      %v6467 = vshrl.u32 %v6466, 7
      %v6468 = vsub.s32 %v6465, %v6467
      %v6469 = vrot.slane %v6461, %v6468
      %v6471 = vunpack.c.l.s4 1983009808
      %v6472 = vunpack.c.0.s8 %v6471
      %v6473 = vlaneseq
      %v6474 = vshrl.u32 %v6473, 7
      %v6475 = vsub.s32 %v6472, %v6474
      %v6476 = vrot.slane %v6462, %v6475
      %v6477 = vcombine.low %v6469, %v6476
      %v6478 = vcombine.low %v2573, %v2580
      %v6479 = vcombine.low %v2588, %v2596
      %v6481 = vunpack.c.l.s4 1983009808
      %v6482 = vunpack.c.0.s8 %v6481
      %v6483 = vlaneseq
      %v6484 = vshrl.u32 %v6483, 7
      %v6485 = vsub.s32 %v6482, %v6484
      %v6486 = vrot.slane %v6478, %v6485
      %v6488 = vunpack.c.l.s4 1983009808
      %v6489 = vunpack.c.0.s8 %v6488
      %v6490 = vlaneseq
      %v6491 = vshrl.u32 %v6490, 7
      %v6492 = vsub.s32 %v6489, %v6491
      %v6493 = vrot.slane %v6479, %v6492
      %v6494 = vcombine.low %v6486, %v6493
      %v6495 = vcombine.low %v2595, %v2597
      %v6496 = vcombine.low %v2605, %v2613
      %v6498 = vunpack.c.l.s4 1983009808
      %v6499 = vunpack.c.0.s8 %v6498
      %v6500 = vlaneseq
      %v6501 = vshrl.u32 %v6500, 7
      %v6502 = vsub.s32 %v6499, %v6501
      %v6503 = vrot.slane %v6495, %v6502
      %v6505 = vunpack.c.l.s4 1983009808
      %v6506 = vunpack.c.0.s8 %v6505
      %v6507 = vlaneseq
      %v6508 = vshrl.u32 %v6507, 7
      %v6509 = vsub.s32 %v6506, %v6508
      %v6510 = vrot.slane %v6496, %v6509
      %v6511 = vcombine.low %v6503, %v6510
      %v6512 = vcombine.low %v2612, %v2614
      %v6513 = vcombine.low %v2621, %v2629
      %v6515 = vunpack.c.l.s4 1983009808
      %v6516 = vunpack.c.0.s8 %v6515
      %v6517 = vlaneseq
      %v6518 = vshrl.u32 %v6517, 7
      %v6519 = vsub.s32 %v6516, %v6518
      %v6520 = vrot.slane %v6512, %v6519
      %v6522 = vunpack.c.l.s4 1983009808
      %v6523 = vunpack.c.0.s8 %v6522
      %v6524 = vlaneseq
      %v6525 = vshrl.u32 %v6524, 7
      %v6526 = vsub.s32 %v6523, %v6525
      %v6527 = vrot.slane %v6513, %v6526
      %v6528 = vcombine.low %v6520, %v6527
      %v6529 = vcombine.low %v2637, %v2636
      %v6530 = vcombine.low %v2638, %v2646
      %v6532 = vunpack.c.l.s4 1983009808
      %v6533 = vunpack.c.0.s8 %v6532
      %v6534 = vlaneseq
      %v6535 = vshrl.u32 %v6534, 7
      %v6536 = vsub.s32 %v6533, %v6535
      %v6537 = vrot.slane %v6529, %v6536
      %v6539 = vunpack.c.l.s4 1983009808
      %v6540 = vunpack.c.0.s8 %v6539
      %v6541 = vlaneseq
      %v6542 = vshrl.u32 %v6541, 7
      %v6543 = vsub.s32 %v6540, %v6542
      %v6544 = vrot.slane %v6530, %v6543
      %v6545 = vcombine.low %v6537, %v6544
      %v6546 = vcombine.low %v2654, %v2653
      %v6547 = vcombine.low %v2655, %v2662
      %v6549 = vunpack.c.l.s4 1983009808
      %v6550 = vunpack.c.0.s8 %v6549
      %v6551 = vlaneseq
      %v6552 = vshrl.u32 %v6551, 7
      %v6553 = vsub.s32 %v6550, %v6552
      %v6554 = vrot.slane %v6546, %v6553
      %v6556 = vunpack.c.l.s4 1983009808
      %v6557 = vunpack.c.0.s8 %v6556
      %v6558 = vlaneseq
      %v6559 = vshrl.u32 %v6558, 7
      %v6560 = vsub.s32 %v6557, %v6559
      %v6561 = vrot.slane %v6547, %v6560
      %v6562 = vcombine.low %v6554, %v6561
      %v6563 = vcombine.low %v2670, %v2678
      %v6564 = vcombine.low %v2677, %v2679
      %v6566 = vunpack.c.l.s4 1983009808
      %v6567 = vunpack.c.0.s8 %v6566
      %v6568 = vlaneseq
      %v6569 = vshrl.u32 %v6568, 7
      %v6570 = vsub.s32 %v6567, %v6569
      %v6571 = vrot.slane %v6563, %v6570
      %v6573 = vunpack.c.l.s4 1983009808
      %v6574 = vunpack.c.0.s8 %v6573
      %v6575 = vlaneseq
      %v6576 = vshrl.u32 %v6575, 7
      %v6577 = vsub.s32 %v6574, %v6576
      %v6578 = vrot.slane %v6564, %v6577
      %v6579 = vcombine.low %v6571, %v6578
      %v6580 = vcombine.low %v2687, %v2695
      %v6581 = vcombine.low %v2694, %v2696
      %v6583 = vunpack.c.l.s4 1983009808
      %v6584 = vunpack.c.0.s8 %v6583
      %v6585 = vlaneseq
      %v6586 = vshrl.u32 %v6585, 7
      %v6587 = vsub.s32 %v6584, %v6586
      %v6588 = vrot.slane %v6580, %v6587
      %v6590 = vunpack.c.l.s4 1983009808
      %v6591 = vunpack.c.0.s8 %v6590
      %v6592 = vlaneseq
      %v6593 = vshrl.u32 %v6592, 7
      %v6594 = vsub.s32 %v6591, %v6593
      %v6595 = vrot.slane %v6581, %v6594
      %v6596 = vcombine.low %v6588, %v6595
      %v6597 = vcombine.low %v2703, %v2711
      %v6598 = vcombine.low %v2719, %v2718
      %v6600 = vunpack.c.l.s4 1983009808
      %v6601 = vunpack.c.0.s8 %v6600
      %v6602 = vlaneseq
      %v6603 = vshrl.u32 %v6602, 7
      %v6604 = vsub.s32 %v6601, %v6603
      %v6605 = vrot.slane %v6597, %v6604
      %v6607 = vunpack.c.l.s4 1983009808
      %v6608 = vunpack.c.0.s8 %v6607
      %v6609 = vlaneseq
      %v6610 = vshrl.u32 %v6609, 7
      %v6611 = vsub.s32 %v6608, %v6610
      %v6612 = vrot.slane %v6598, %v6611
      %v6613 = vcombine.low %v6605, %v6612
      %v6614 = vcombine.low %v2720, %v2728
      %v6615 = vcombine.low %v2736, %v2735
      %v6617 = vunpack.c.l.s4 1983009808
      %v6618 = vunpack.c.0.s8 %v6617
      %v6619 = vlaneseq
      %v6620 = vshrl.u32 %v6619, 7
      %v6621 = vsub.s32 %v6618, %v6620
      %v6622 = vrot.slane %v6614, %v6621
      %v6624 = vunpack.c.l.s4 1983009808
      %v6625 = vunpack.c.0.s8 %v6624
      %v6626 = vlaneseq
      %v6627 = vshrl.u32 %v6626, 7
      %v6628 = vsub.s32 %v6625, %v6627
      %v6629 = vrot.slane %v6615, %v6628
      %v6630 = vcombine.low %v6622, %v6629
      %v6631 = vcombine.low %v2737, %v2744
      %v6632 = vcombine.low %v2752, %v2760
      %v6634 = vunpack.c.l.s4 1983009808
      %v6635 = vunpack.c.0.s8 %v6634
      %v6636 = vlaneseq
      %v6637 = vshrl.u32 %v6636, 7
      %v6638 = vsub.s32 %v6635, %v6637
      %v6639 = vrot.slane %v6631, %v6638
      %v6641 = vunpack.c.l.s4 1983009808
      %v6642 = vunpack.c.0.s8 %v6641
      %v6643 = vlaneseq
      %v6644 = vshrl.u32 %v6643, 7
      %v6645 = vsub.s32 %v6642, %v6644
      %v6646 = vrot.slane %v6632, %v6645
      %v6647 = vcombine.low %v6639, %v6646
      %v6648 = vcombine.low %v2759, %v2761
      %v6649 = vcombine.low %v2769, %v2777
      %v6651 = vunpack.c.l.s4 1983009808
      %v6652 = vunpack.c.0.s8 %v6651
      %v6653 = vlaneseq
      %v6654 = vshrl.u32 %v6653, 7
      %v6655 = vsub.s32 %v6652, %v6654
      %v6656 = vrot.slane %v6648, %v6655
      %v6658 = vunpack.c.l.s4 1983009808
      %v6659 = vunpack.c.0.s8 %v6658
      %v6660 = vlaneseq
      %v6661 = vshrl.u32 %v6660, 7
      %v6662 = vsub.s32 %v6659, %v6661
      %v6663 = vrot.slane %v6649, %v6662
      %v6664 = vcombine.low %v6656, %v6663
      %v6665 = vcombine.low %v2776, %v2778
      %v6666 = vcombine.low %v2785, %v2793
      %v6668 = vunpack.c.l.s4 1983009808
      %v6669 = vunpack.c.0.s8 %v6668
      %v6670 = vlaneseq
      %v6671 = vshrl.u32 %v6670, 7
      %v6672 = vsub.s32 %v6669, %v6671
      %v6673 = vrot.slane %v6665, %v6672
      %v6675 = vunpack.c.l.s4 1983009808
      %v6676 = vunpack.c.0.s8 %v6675
      %v6677 = vlaneseq
      %v6678 = vshrl.u32 %v6677, 7
      %v6679 = vsub.s32 %v6676, %v6678
      %v6680 = vrot.slane %v6666, %v6679
      %v6681 = vcombine.low %v6673, %v6680
      %v6682 = vcombine.low %v2801, %v2800
      %v6683 = vcombine.low %v2802, %v2810
      %v6685 = vunpack.c.l.s4 1983009808
      %v6686 = vunpack.c.0.s8 %v6685
      %v6687 = vlaneseq
      %v6688 = vshrl.u32 %v6687, 7
      %v6689 = vsub.s32 %v6686, %v6688
      %v6690 = vrot.slane %v6682, %v6689
      %v6692 = vunpack.c.l.s4 1983009808
      %v6693 = vunpack.c.0.s8 %v6692
      %v6694 = vlaneseq
      %v6695 = vshrl.u32 %v6694, 7
      %v6696 = vsub.s32 %v6693, %v6695
      %v6697 = vrot.slane %v6683, %v6696
      %v6698 = vcombine.low %v6690, %v6697
      %v6699 = vcombine.low %v2818, %v2817
      %v6700 = vcombine.low %v2819, %v2826
      %v6702 = vunpack.c.l.s4 1983009808
      %v6703 = vunpack.c.0.s8 %v6702
      %v6704 = vlaneseq
      %v6705 = vshrl.u32 %v6704, 7
      %v6706 = vsub.s32 %v6703, %v6705
      %v6707 = vrot.slane %v6699, %v6706
      %v6709 = vunpack.c.l.s4 1983009808
      %v6710 = vunpack.c.0.s8 %v6709
      %v6711 = vlaneseq
      %v6712 = vshrl.u32 %v6711, 7
      %v6713 = vsub.s32 %v6710, %v6712
      %v6714 = vrot.slane %v6700, %v6713
      %v6715 = vcombine.low %v6707, %v6714
      %v6716 = vcombine.low %v2834, %v2842
      %v6717 = vcombine.low %v2841, %v2843
      %v6719 = vunpack.c.l.s4 1983009808
      %v6720 = vunpack.c.0.s8 %v6719
      %v6721 = vlaneseq
      %v6722 = vshrl.u32 %v6721, 7
      %v6723 = vsub.s32 %v6720, %v6722
      %v6724 = vrot.slane %v6716, %v6723
      %v6726 = vunpack.c.l.s4 1983009808
      %v6727 = vunpack.c.0.s8 %v6726
      %v6728 = vlaneseq
      %v6729 = vshrl.u32 %v6728, 7
      %v6730 = vsub.s32 %v6727, %v6729
      %v6731 = vrot.slane %v6717, %v6730
      %v6732 = vcombine.low %v6724, %v6731
      %v6733 = vcombine.low %v2851, %v2859
      %v6734 = vcombine.low %v2858, %v2860
      %v6736 = vunpack.c.l.s4 1983009808
      %v6737 = vunpack.c.0.s8 %v6736
      %v6738 = vlaneseq
      %v6739 = vshrl.u32 %v6738, 7
      %v6740 = vsub.s32 %v6737, %v6739
      %v6741 = vrot.slane %v6733, %v6740
      %v6743 = vunpack.c.l.s4 1983009808
      %v6744 = vunpack.c.0.s8 %v6743
      %v6745 = vlaneseq
      %v6746 = vshrl.u32 %v6745, 7
      %v6747 = vsub.s32 %v6744, %v6746
      %v6748 = vrot.slane %v6734, %v6747
      %v6749 = vcombine.low %v6741, %v6748
      %v6750 = vcombine.low %v2867, %v2875
      %v6751 = vcombine.low %v2883, %v2882
      %v6753 = vunpack.c.l.s4 1983009808
      %v6754 = vunpack.c.0.s8 %v6753
      %v6755 = vlaneseq
      %v6756 = vshrl.u32 %v6755, 7
      %v6757 = vsub.s32 %v6754, %v6756
      %v6758 = vrot.slane %v6750, %v6757
      %v6760 = vunpack.c.l.s4 1983009808
      %v6761 = vunpack.c.0.s8 %v6760
      %v6762 = vlaneseq
      %v6763 = vshrl.u32 %v6762, 7
      %v6764 = vsub.s32 %v6761, %v6763
      %v6765 = vrot.slane %v6751, %v6764
      %v6766 = vcombine.low %v6758, %v6765
      %v6767 = vcombine.low %v2884, %v2892
      %v6768 = vcombine.low %v2900, %v2899
      %v6770 = vunpack.c.l.s4 1983009808
      %v6771 = vunpack.c.0.s8 %v6770
      %v6772 = vlaneseq
      %v6773 = vshrl.u32 %v6772, 7
      %v6774 = vsub.s32 %v6771, %v6773
      %v6775 = vrot.slane %v6767, %v6774
      %v6777 = vunpack.c.l.s4 1983009808
      %v6778 = vunpack.c.0.s8 %v6777
      %v6779 = vlaneseq
      %v6780 = vshrl.u32 %v6779, 7
      %v6781 = vsub.s32 %v6778, %v6780
      %v6782 = vrot.slane %v6768, %v6781
      %v6783 = vcombine.low %v6775, %v6782
      %v6784 = vcombine.low %v2901, %v2908
      %v6786 = vunpack.c.l.s4 1983009808
      %v6787 = vunpack.c.0.s8 %v6786
      %v6788 = vlaneseq
      %v6789 = vshrl.u32 %v6788, 7
      %v6790 = vsub.s32 %v6787, %v6789
      %v6791 = vrot.slane %v6784, %v6790
      %v6815 = vcombine.low %v2976, %v2984
      %v6816 = vcombine.low %v2983, %v2985
      %v6818 = vunpack.c.l.s4 1983009808
      %v6819 = vunpack.c.0.s8 %v6818
      %v6820 = vlaneseq
      %v6821 = vshrl.u32 %v6820, 7
      %v6822 = vsub.s32 %v6819, %v6821
      %v6823 = vrot.slane %v6815, %v6822
      %v6825 = vunpack.c.l.s4 1983009808
      %v6826 = vunpack.c.0.s8 %v6825
      %v6827 = vlaneseq
      %v6828 = vshrl.u32 %v6827, 7
      %v6829 = vsub.s32 %v6826, %v6828
      %v6830 = vrot.slane %v6816, %v6829
      %v6831 = vcombine.low %v6823, %v6830
      %v6832 = vcombine.low %v2993, %v3001
      %v6833 = vcombine.low %v3000, %v3002
      %v6835 = vunpack.c.l.s4 1983009808
      %v6836 = vunpack.c.0.s8 %v6835
      %v6837 = vlaneseq
      %v6838 = vshrl.u32 %v6837, 7
      %v6839 = vsub.s32 %v6836, %v6838
      %v6840 = vrot.slane %v6832, %v6839
      %v6842 = vunpack.c.l.s4 1983009808
      %v6843 = vunpack.c.0.s8 %v6842
      %v6844 = vlaneseq
      %v6845 = vshrl.u32 %v6844, 7
      %v6846 = vsub.s32 %v6843, %v6845
      %v6847 = vrot.slane %v6833, %v6846
      %v6848 = vcombine.low %v6840, %v6847
      %v6849 = vcombine.low %v3009, %v3017
      %v6850 = vcombine.low %v3025, %v3024
      %v6852 = vunpack.c.l.s4 1983009808
      %v6853 = vunpack.c.0.s8 %v6852
      %v6854 = vlaneseq
      %v6855 = vshrl.u32 %v6854, 7
      %v6856 = vsub.s32 %v6853, %v6855
      %v6857 = vrot.slane %v6849, %v6856
      %v6859 = vunpack.c.l.s4 1983009808
      %v6860 = vunpack.c.0.s8 %v6859
      %v6861 = vlaneseq
      %v6862 = vshrl.u32 %v6861, 7
      %v6863 = vsub.s32 %v6860, %v6862
      %v6864 = vrot.slane %v6850, %v6863
      %v6865 = vcombine.low %v6857, %v6864
      %v6866 = vcombine.low %v3026, %v3034
      %v6867 = vcombine.low %v3042, %v3041
      %v6869 = vunpack.c.l.s4 1983009808
      %v6870 = vunpack.c.0.s8 %v6869
      %v6871 = vlaneseq
      %v6872 = vshrl.u32 %v6871, 7
      %v6873 = vsub.s32 %v6870, %v6872
      %v6874 = vrot.slane %v6866, %v6873
      %v6876 = vunpack.c.l.s4 1983009808
      %v6877 = vunpack.c.0.s8 %v6876
      %v6878 = vlaneseq
      %v6879 = vshrl.u32 %v6878, 7
      %v6880 = vsub.s32 %v6877, %v6879
      %v6881 = vrot.slane %v6867, %v6880
      %v6882 = vcombine.low %v6874, %v6881
      %v6883 = vcombine.low %v3043, %v3050
      %v6884 = vcombine.low %v3058, %v3066
      %v6886 = vunpack.c.l.s4 1983009808
      %v6887 = vunpack.c.0.s8 %v6886
      %v6888 = vlaneseq
      %v6889 = vshrl.u32 %v6888, 7
      %v6890 = vsub.s32 %v6887, %v6889
      %v6891 = vrot.slane %v6883, %v6890
      %v6893 = vunpack.c.l.s4 1983009808
      %v6894 = vunpack.c.0.s8 %v6893
      %v6895 = vlaneseq
      %v6896 = vshrl.u32 %v6895, 7
      %v6897 = vsub.s32 %v6894, %v6896
      %v6898 = vrot.slane %v6884, %v6897
      %v6899 = vcombine.low %v6891, %v6898
      %v6900 = vcombine.low %v3065, %v3067
      %v6901 = vcombine.low %v3075, %v3083
      %v6903 = vunpack.c.l.s4 1983009808
      %v6904 = vunpack.c.0.s8 %v6903
      %v6905 = vlaneseq
      %v6906 = vshrl.u32 %v6905, 7
      %v6907 = vsub.s32 %v6904, %v6906
      %v6908 = vrot.slane %v6900, %v6907
      %v6910 = vunpack.c.l.s4 1983009808
      %v6911 = vunpack.c.0.s8 %v6910
      %v6912 = vlaneseq
      %v6913 = vshrl.u32 %v6912, 7
      %v6914 = vsub.s32 %v6911, %v6913
      %v6915 = vrot.slane %v6901, %v6914
      %v6916 = vcombine.low %v6908, %v6915
      %v6917 = vcombine.low %v3082, %v3084
      %v6918 = vcombine.low %v3091, %v3099
      %v6920 = vunpack.c.l.s4 1983009808
      %v6921 = vunpack.c.0.s8 %v6920
      %v6922 = vlaneseq
      %v6923 = vshrl.u32 %v6922, 7
      %v6924 = vsub.s32 %v6921, %v6923
      %v6925 = vrot.slane %v6917, %v6924
      %v6927 = vunpack.c.l.s4 1983009808
      %v6928 = vunpack.c.0.s8 %v6927
      %v6929 = vlaneseq
      %v6930 = vshrl.u32 %v6929, 7
      %v6931 = vsub.s32 %v6928, %v6930
      %v6932 = vrot.slane %v6918, %v6931
      %v6933 = vcombine.low %v6925, %v6932
      %v6934 = vcombine.low %v3107, %v3106
      %v6935 = vcombine.low %v3108, %v3116
      %v6937 = vunpack.c.l.s4 1983009808
      %v6938 = vunpack.c.0.s8 %v6937
      %v6939 = vlaneseq
      %v6940 = vshrl.u32 %v6939, 7
      %v6941 = vsub.s32 %v6938, %v6940
      %v6942 = vrot.slane %v6934, %v6941
      %v6944 = vunpack.c.l.s4 1983009808
      %v6945 = vunpack.c.0.s8 %v6944
      %v6946 = vlaneseq
      %v6947 = vshrl.u32 %v6946, 7
      %v6948 = vsub.s32 %v6945, %v6947
      %v6949 = vrot.slane %v6935, %v6948
      %v6950 = vcombine.low %v6942, %v6949
      %v6951 = vcombine.low %v3124, %v3123
      %v6952 = vcombine.low %v3125, %v3132
      %v6954 = vunpack.c.l.s4 1983009808
      %v6955 = vunpack.c.0.s8 %v6954
      %v6956 = vlaneseq
      %v6957 = vshrl.u32 %v6956, 7
      %v6958 = vsub.s32 %v6955, %v6957
      %v6959 = vrot.slane %v6951, %v6958
      %v6961 = vunpack.c.l.s4 1983009808
      %v6962 = vunpack.c.0.s8 %v6961
      %v6963 = vlaneseq
      %v6964 = vshrl.u32 %v6963, 7
      %v6965 = vsub.s32 %v6962, %v6964
      %v6966 = vrot.slane %v6952, %v6965
      %v6967 = vcombine.low %v6959, %v6966
      %v6968 = vcombine.low %v3140, %v3148
      %v6969 = vcombine.low %v3147, %v3149
      %v6971 = vunpack.c.l.s4 1983009808
      %v6972 = vunpack.c.0.s8 %v6971
      %v6973 = vlaneseq
      %v6974 = vshrl.u32 %v6973, 7
      %v6975 = vsub.s32 %v6972, %v6974
      %v6976 = vrot.slane %v6968, %v6975
      %v6978 = vunpack.c.l.s4 1983009808
      %v6979 = vunpack.c.0.s8 %v6978
      %v6980 = vlaneseq
      %v6981 = vshrl.u32 %v6980, 7
      %v6982 = vsub.s32 %v6979, %v6981
      %v6983 = vrot.slane %v6969, %v6982
      %v6984 = vcombine.low %v6976, %v6983
      %v6985 = vcombine.low %v3157, %v3165
      %v6986 = vcombine.low %v3164, %v3166
      %v6988 = vunpack.c.l.s4 1983009808
      %v6989 = vunpack.c.0.s8 %v6988
      %v6990 = vlaneseq
      %v6991 = vshrl.u32 %v6990, 7
      %v6992 = vsub.s32 %v6989, %v6991
      %v6993 = vrot.slane %v6985, %v6992
      %v6995 = vunpack.c.l.s4 1983009808
      %v6996 = vunpack.c.0.s8 %v6995
      %v6997 = vlaneseq
      %v6998 = vshrl.u32 %v6997, 7
      %v6999 = vsub.s32 %v6996, %v6998
      %v7000 = vrot.slane %v6986, %v6999
      %v7001 = vcombine.low %v6993, %v7000
      %v7002 = vcombine.low %v3173, %v3181
      %v7003 = vcombine.low %v3189, %v3188
      %v7005 = vunpack.c.l.s4 1983009808
      %v7006 = vunpack.c.0.s8 %v7005
      %v7007 = vlaneseq
      %v7008 = vshrl.u32 %v7007, 7
      %v7009 = vsub.s32 %v7006, %v7008
      %v7010 = vrot.slane %v7002, %v7009
      %v7012 = vunpack.c.l.s4 1983009808
      %v7013 = vunpack.c.0.s8 %v7012
      %v7014 = vlaneseq
      %v7015 = vshrl.u32 %v7014, 7
      %v7016 = vsub.s32 %v7013, %v7015
      %v7017 = vrot.slane %v7003, %v7016
      %v7018 = vcombine.low %v7010, %v7017
      %v7019 = vcombine.low %v3190, %v3198
      %v7020 = vcombine.low %v3206, %v3205
      %v7022 = vunpack.c.l.s4 1983009808
      %v7023 = vunpack.c.0.s8 %v7022
      %v7024 = vlaneseq
      %v7025 = vshrl.u32 %v7024, 7
      %v7026 = vsub.s32 %v7023, %v7025
      %v7027 = vrot.slane %v7019, %v7026
      %v7029 = vunpack.c.l.s4 1983009808
      %v7030 = vunpack.c.0.s8 %v7029
      %v7031 = vlaneseq
      %v7032 = vshrl.u32 %v7031, 7
      %v7033 = vsub.s32 %v7030, %v7032
      %v7034 = vrot.slane %v7020, %v7033
      %v7035 = vcombine.low %v7027, %v7034
      %v7036 = vcombine.low %v3207, %v3214
      %v7037 = vcombine.low %v3222, %v3230
      %v7039 = vunpack.c.l.s4 1983009808
      %v7040 = vunpack.c.0.s8 %v7039
      %v7041 = vlaneseq
      %v7042 = vshrl.u32 %v7041, 7
      %v7043 = vsub.s32 %v7040, %v7042
      %v7044 = vrot.slane %v7036, %v7043
      %v7046 = vunpack.c.l.s4 1983009808
      %v7047 = vunpack.c.0.s8 %v7046
      %v7048 = vlaneseq
      %v7049 = vshrl.u32 %v7048, 7
      %v7050 = vsub.s32 %v7047, %v7049
      %v7051 = vrot.slane %v7037, %v7050
      %v7052 = vcombine.low %v7044, %v7051
      %v7053 = vcombine.low %v3229, %v3231
      %v7054 = vcombine.low %v3239, %v3247
      %v7056 = vunpack.c.l.s4 1983009808
      %v7057 = vunpack.c.0.s8 %v7056
      %v7058 = vlaneseq
      %v7059 = vshrl.u32 %v7058, 7
      %v7060 = vsub.s32 %v7057, %v7059
      %v7061 = vrot.slane %v7053, %v7060
      %v7063 = vunpack.c.l.s4 1983009808
      %v7064 = vunpack.c.0.s8 %v7063
      %v7065 = vlaneseq
      %v7066 = vshrl.u32 %v7065, 7
      %v7067 = vsub.s32 %v7064, %v7066
      %v7068 = vrot.slane %v7054, %v7067
      %v7069 = vcombine.low %v7061, %v7068
      %v7070 = vcombine.low %v3246, %v3248
      %v7071 = vcombine.low %v3255, %v3263
      %v7073 = vunpack.c.l.s4 1983009808
      %v7074 = vunpack.c.0.s8 %v7073
      %v7075 = vlaneseq
      %v7076 = vshrl.u32 %v7075, 7
      %v7077 = vsub.s32 %v7074, %v7076
      %v7078 = vrot.slane %v7070, %v7077
      %v7080 = vunpack.c.l.s4 1983009808
      %v7081 = vunpack.c.0.s8 %v7080
      %v7082 = vlaneseq
      %v7083 = vshrl.u32 %v7082, 7
      %v7084 = vsub.s32 %v7081, %v7083
      %v7085 = vrot.slane %v7071, %v7084
      %v7086 = vcombine.low %v7078, %v7085
      %v7087 = vcombine.low %v3271, %v3270
      %v7088 = vcombine.low %v3272, %v3280
      %v7090 = vunpack.c.l.s4 1983009808
      %v7091 = vunpack.c.0.s8 %v7090
      %v7092 = vlaneseq
      %v7093 = vshrl.u32 %v7092, 7
      %v7094 = vsub.s32 %v7091, %v7093
      %v7095 = vrot.slane %v7087, %v7094
      %v7097 = vunpack.c.l.s4 1983009808
      %v7098 = vunpack.c.0.s8 %v7097
      %v7099 = vlaneseq
      %v7100 = vshrl.u32 %v7099, 7
      %v7101 = vsub.s32 %v7098, %v7100
      %v7102 = vrot.slane %v7088, %v7101
      %v7103 = vcombine.low %v7095, %v7102
      %v7104 = vcombine.low %v3288, %v3287
      %v7105 = vcombine.low %v3289, %v3296
      %v7107 = vunpack.c.l.s4 1983009808
      %v7108 = vunpack.c.0.s8 %v7107
      %v7109 = vlaneseq
      %v7110 = vshrl.u32 %v7109, 7
      %v7111 = vsub.s32 %v7108, %v7110
      %v7112 = vrot.slane %v7104, %v7111
      %v7114 = vunpack.c.l.s4 1983009808
      %v7115 = vunpack.c.0.s8 %v7114
      %v7116 = vlaneseq
      %v7117 = vshrl.u32 %v7116, 7
      %v7118 = vsub.s32 %v7115, %v7117
      %v7119 = vrot.slane %v7105, %v7118
      %v7120 = vcombine.low %v7112, %v7119
      %v7121 = vcombine.low %v3304, %v3312
      %v7122 = vcombine.low %v3311, %v3313
      %v7124 = vunpack.c.l.s4 1983009808
      %v7125 = vunpack.c.0.s8 %v7124
      %v7126 = vlaneseq
      %v7127 = vshrl.u32 %v7126, 7
      %v7128 = vsub.s32 %v7125, %v7127
      %v7129 = vrot.slane %v7121, %v7128
      %v7131 = vunpack.c.l.s4 1983009808
      %v7132 = vunpack.c.0.s8 %v7131
      %v7133 = vlaneseq
      %v7134 = vshrl.u32 %v7133, 7
      %v7135 = vsub.s32 %v7132, %v7134
      %v7136 = vrot.slane %v7122, %v7135
      %v7137 = vcombine.low %v7129, %v7136
      %v7138 = vcombine.low %v3321, %v3329
      %v7139 = vcombine.low %v3328, %v3330
      %v7141 = vunpack.c.l.s4 1983009808
      %v7142 = vunpack.c.0.s8 %v7141
      %v7143 = vlaneseq
      %v7144 = vshrl.u32 %v7143, 7
      %v7145 = vsub.s32 %v7142, %v7144
      %v7146 = vrot.slane %v7138, %v7145
      %v7148 = vunpack.c.l.s4 1983009808
      %v7149 = vunpack.c.0.s8 %v7148
      %v7150 = vlaneseq
      %v7151 = vshrl.u32 %v7150, 7
      %v7152 = vsub.s32 %v7149, %v7151
      %v7153 = vrot.slane %v7139, %v7152
      %v7154 = vcombine.low %v7146, %v7153
      %v7155 = vcombine.low %v3337, %v3345
      %v7156 = vcombine.low %v3353, %v3352
      %v7158 = vunpack.c.l.s4 1983009808
      %v7159 = vunpack.c.0.s8 %v7158
      %v7160 = vlaneseq
      %v7161 = vshrl.u32 %v7160, 7
      %v7162 = vsub.s32 %v7159, %v7161
      %v7163 = vrot.slane %v7155, %v7162
      %v7165 = vunpack.c.l.s4 1983009808
      %v7166 = vunpack.c.0.s8 %v7165
      %v7167 = vlaneseq
      %v7168 = vshrl.u32 %v7167, 7
      %v7169 = vsub.s32 %v7166, %v7168
      %v7170 = vrot.slane %v7156, %v7169
      %v7171 = vcombine.low %v7163, %v7170
      %v7172 = vcombine.low %v3354, %v3362
      %v7173 = vcombine.low %v3370, %v3369
      %v7175 = vunpack.c.l.s4 1983009808
      %v7176 = vunpack.c.0.s8 %v7175
      %v7177 = vlaneseq
      %v7178 = vshrl.u32 %v7177, 7
      %v7179 = vsub.s32 %v7176, %v7178
      %v7180 = vrot.slane %v7172, %v7179
      %v7182 = vunpack.c.l.s4 1983009808
      %v7183 = vunpack.c.0.s8 %v7182
      %v7184 = vlaneseq
      %v7185 = vshrl.u32 %v7184, 7
      %v7186 = vsub.s32 %v7183, %v7185
      %v7187 = vrot.slane %v7173, %v7186
      %v7188 = vcombine.low %v7180, %v7187
      %v7189 = vcombine.low %v3371, %v3378
      %v7191 = vunpack.c.l.s4 1983009808
      %v7192 = vunpack.c.0.s8 %v7191
      %v7193 = vlaneseq
      %v7194 = vshrl.u32 %v7193, 7
      %v7195 = vsub.s32 %v7192, %v7194
      %v7196 = vrot.slane %v7189, %v7195
      %v7220 = vcombine.low %v3447, %v3455
      %v7221 = vcombine.low %v3454, %v3456
      %v7223 = vunpack.c.l.s4 1983009808
      %v7224 = vunpack.c.0.s8 %v7223
      %v7225 = vlaneseq
      %v7226 = vshrl.u32 %v7225, 7
      %v7227 = vsub.s32 %v7224, %v7226
      %v7228 = vrot.slane %v7220, %v7227
      %v7230 = vunpack.c.l.s4 1983009808
      %v7231 = vunpack.c.0.s8 %v7230
      %v7232 = vlaneseq
      %v7233 = vshrl.u32 %v7232, 7
      %v7234 = vsub.s32 %v7231, %v7233
      %v7235 = vrot.slane %v7221, %v7234
      %v7236 = vcombine.low %v7228, %v7235
      %v7237 = vcombine.low %v3464, %v3472
      %v7238 = vcombine.low %v3471, %v3473
      %v7240 = vunpack.c.l.s4 1983009808
      %v7241 = vunpack.c.0.s8 %v7240
      %v7242 = vlaneseq
      %v7243 = vshrl.u32 %v7242, 7
      %v7244 = vsub.s32 %v7241, %v7243
      %v7245 = vrot.slane %v7237, %v7244
      %v7247 = vunpack.c.l.s4 1983009808
      %v7248 = vunpack.c.0.s8 %v7247
      %v7249 = vlaneseq
      %v7250 = vshrl.u32 %v7249, 7
      %v7251 = vsub.s32 %v7248, %v7250
      %v7252 = vrot.slane %v7238, %v7251
      %v7253 = vcombine.low %v7245, %v7252
      %v7254 = vcombine.low %v3480, %v3488
      %v7255 = vcombine.low %v3496, %v3495
      %v7257 = vunpack.c.l.s4 1983009808
      %v7258 = vunpack.c.0.s8 %v7257
      %v7259 = vlaneseq
      %v7260 = vshrl.u32 %v7259, 7
      %v7261 = vsub.s32 %v7258, %v7260
      %v7262 = vrot.slane %v7254, %v7261
      %v7264 = vunpack.c.l.s4 1983009808
      %v7265 = vunpack.c.0.s8 %v7264
      %v7266 = vlaneseq
      %v7267 = vshrl.u32 %v7266, 7
      %v7268 = vsub.s32 %v7265, %v7267
      %v7269 = vrot.slane %v7255, %v7268
      %v7270 = vcombine.low %v7262, %v7269
      %v7271 = vcombine.low %v3497, %v3505
      %v7272 = vcombine.low %v3513, %v3512
      %v7274 = vunpack.c.l.s4 1983009808
      %v7275 = vunpack.c.0.s8 %v7274
      %v7276 = vlaneseq
      %v7277 = vshrl.u32 %v7276, 7
      %v7278 = vsub.s32 %v7275, %v7277
      %v7279 = vrot.slane %v7271, %v7278
      %v7281 = vunpack.c.l.s4 1983009808
      %v7282 = vunpack.c.0.s8 %v7281
      %v7283 = vlaneseq
      %v7284 = vshrl.u32 %v7283, 7
      %v7285 = vsub.s32 %v7282, %v7284
      %v7286 = vrot.slane %v7272, %v7285
      %v7287 = vcombine.low %v7279, %v7286
      %v7288 = vcombine.low %v3514, %v3521
      %v7289 = vcombine.low %v3529, %v3537
      %v7291 = vunpack.c.l.s4 1983009808
      %v7292 = vunpack.c.0.s8 %v7291
      %v7293 = vlaneseq
      %v7294 = vshrl.u32 %v7293, 7
      %v7295 = vsub.s32 %v7292, %v7294
      %v7296 = vrot.slane %v7288, %v7295
      %v7298 = vunpack.c.l.s4 1983009808
      %v7299 = vunpack.c.0.s8 %v7298
      %v7300 = vlaneseq
      %v7301 = vshrl.u32 %v7300, 7
      %v7302 = vsub.s32 %v7299, %v7301
      %v7303 = vrot.slane %v7289, %v7302
      %v7304 = vcombine.low %v7296, %v7303
      %v7305 = vcombine.low %v3536, %v3538
      %v7306 = vcombine.low %v3546, %v3554
      %v7308 = vunpack.c.l.s4 1983009808
      %v7309 = vunpack.c.0.s8 %v7308
      %v7310 = vlaneseq
      %v7311 = vshrl.u32 %v7310, 7
      %v7312 = vsub.s32 %v7309, %v7311
      %v7313 = vrot.slane %v7305, %v7312
      %v7315 = vunpack.c.l.s4 1983009808
      %v7316 = vunpack.c.0.s8 %v7315
      %v7317 = vlaneseq
      %v7318 = vshrl.u32 %v7317, 7
      %v7319 = vsub.s32 %v7316, %v7318
      %v7320 = vrot.slane %v7306, %v7319
      %v7321 = vcombine.low %v7313, %v7320
      %v7322 = vcombine.low %v3553, %v3555
      %v7323 = vcombine.low %v3562, %v3570
      %v7325 = vunpack.c.l.s4 1983009808
      %v7326 = vunpack.c.0.s8 %v7325
      %v7327 = vlaneseq
      %v7328 = vshrl.u32 %v7327, 7
      %v7329 = vsub.s32 %v7326, %v7328
      %v7330 = vrot.slane %v7322, %v7329
      %v7332 = vunpack.c.l.s4 1983009808
      %v7333 = vunpack.c.0.s8 %v7332
      %v7334 = vlaneseq
      %v7335 = vshrl.u32 %v7334, 7
      %v7336 = vsub.s32 %v7333, %v7335
      %v7337 = vrot.slane %v7323, %v7336
      %v7338 = vcombine.low %v7330, %v7337
      %v7339 = vcombine.low %v3578, %v3577
      %v7340 = vcombine.low %v3579, %v3587
      %v7342 = vunpack.c.l.s4 1983009808
      %v7343 = vunpack.c.0.s8 %v7342
      %v7344 = vlaneseq
      %v7345 = vshrl.u32 %v7344, 7
      %v7346 = vsub.s32 %v7343, %v7345
      %v7347 = vrot.slane %v7339, %v7346
      %v7349 = vunpack.c.l.s4 1983009808
      %v7350 = vunpack.c.0.s8 %v7349
      %v7351 = vlaneseq
      %v7352 = vshrl.u32 %v7351, 7
      %v7353 = vsub.s32 %v7350, %v7352
      %v7354 = vrot.slane %v7340, %v7353
      %v7355 = vcombine.low %v7347, %v7354
      %v7356 = vcombine.low %v3595, %v3594
      %v7357 = vcombine.low %v3596, %v3603
      %v7359 = vunpack.c.l.s4 1983009808
      %v7360 = vunpack.c.0.s8 %v7359
      %v7361 = vlaneseq
      %v7362 = vshrl.u32 %v7361, 7
      %v7363 = vsub.s32 %v7360, %v7362
      %v7364 = vrot.slane %v7356, %v7363
      %v7366 = vunpack.c.l.s4 1983009808
      %v7367 = vunpack.c.0.s8 %v7366
      %v7368 = vlaneseq
      %v7369 = vshrl.u32 %v7368, 7
      %v7370 = vsub.s32 %v7367, %v7369
      %v7371 = vrot.slane %v7357, %v7370
      %v7372 = vcombine.low %v7364, %v7371
      %v7373 = vcombine.low %v3611, %v3619
      %v7374 = vcombine.low %v3618, %v3620
      %v7376 = vunpack.c.l.s4 1983009808
      %v7377 = vunpack.c.0.s8 %v7376
      %v7378 = vlaneseq
      %v7379 = vshrl.u32 %v7378, 7
      %v7380 = vsub.s32 %v7377, %v7379
      %v7381 = vrot.slane %v7373, %v7380
      %v7383 = vunpack.c.l.s4 1983009808
      %v7384 = vunpack.c.0.s8 %v7383
      %v7385 = vlaneseq
      %v7386 = vshrl.u32 %v7385, 7
      %v7387 = vsub.s32 %v7384, %v7386
      %v7388 = vrot.slane %v7374, %v7387
      %v7389 = vcombine.low %v7381, %v7388
      %v7390 = vcombine.low %v3628, %v3636
      %v7391 = vcombine.low %v3635, %v3637
      %v7393 = vunpack.c.l.s4 1983009808
      %v7394 = vunpack.c.0.s8 %v7393
      %v7395 = vlaneseq
      %v7396 = vshrl.u32 %v7395, 7
      %v7397 = vsub.s32 %v7394, %v7396
      %v7398 = vrot.slane %v7390, %v7397
      %v7400 = vunpack.c.l.s4 1983009808
      %v7401 = vunpack.c.0.s8 %v7400
      %v7402 = vlaneseq
      %v7403 = vshrl.u32 %v7402, 7
      %v7404 = vsub.s32 %v7401, %v7403
      %v7405 = vrot.slane %v7391, %v7404
      %v7406 = vcombine.low %v7398, %v7405
      %v7407 = vcombine.low %v3644, %v3652
      %v7408 = vcombine.low %v3660, %v3659
      %v7410 = vunpack.c.l.s4 1983009808
      %v7411 = vunpack.c.0.s8 %v7410
      %v7412 = vlaneseq
      %v7413 = vshrl.u32 %v7412, 7
      %v7414 = vsub.s32 %v7411, %v7413
      %v7415 = vrot.slane %v7407, %v7414
      %v7417 = vunpack.c.l.s4 1983009808
      %v7418 = vunpack.c.0.s8 %v7417
      %v7419 = vlaneseq
      %v7420 = vshrl.u32 %v7419, 7
      %v7421 = vsub.s32 %v7418, %v7420
      %v7422 = vrot.slane %v7408, %v7421
      %v7423 = vcombine.low %v7415, %v7422
      %v7424 = vcombine.low %v3661, %v3669
      %v7425 = vcombine.low %v3677, %v3676
      %v7427 = vunpack.c.l.s4 1983009808
      %v7428 = vunpack.c.0.s8 %v7427
      %v7429 = vlaneseq
      %v7430 = vshrl.u32 %v7429, 7
      %v7431 = vsub.s32 %v7428, %v7430
      %v7432 = vrot.slane %v7424, %v7431
      %v7434 = vunpack.c.l.s4 1983009808
      %v7435 = vunpack.c.0.s8 %v7434
      %v7436 = vlaneseq
      %v7437 = vshrl.u32 %v7436, 7
      %v7438 = vsub.s32 %v7435, %v7437
      %v7439 = vrot.slane %v7425, %v7438
      %v7440 = vcombine.low %v7432, %v7439
      %v7441 = vcombine.low %v3678, %v3685
      %v7442 = vcombine.low %v3693, %v3701
      %v7444 = vunpack.c.l.s4 1983009808
      %v7445 = vunpack.c.0.s8 %v7444
      %v7446 = vlaneseq
      %v7447 = vshrl.u32 %v7446, 7
      %v7448 = vsub.s32 %v7445, %v7447
      %v7449 = vrot.slane %v7441, %v7448
      %v7451 = vunpack.c.l.s4 1983009808
      %v7452 = vunpack.c.0.s8 %v7451
      %v7453 = vlaneseq
      %v7454 = vshrl.u32 %v7453, 7
      %v7455 = vsub.s32 %v7452, %v7454
      %v7456 = vrot.slane %v7442, %v7455
      %v7457 = vcombine.low %v7449, %v7456
      %v7458 = vcombine.low %v3700, %v3702
      %v7459 = vcombine.low %v3710, %v3718
      %v7461 = vunpack.c.l.s4 1983009808
      %v7462 = vunpack.c.0.s8 %v7461
      %v7463 = vlaneseq
      %v7464 = vshrl.u32 %v7463, 7
      %v7465 = vsub.s32 %v7462, %v7464
      %v7466 = vrot.slane %v7458, %v7465
      %v7468 = vunpack.c.l.s4 1983009808
      %v7469 = vunpack.c.0.s8 %v7468
      %v7470 = vlaneseq
      %v7471 = vshrl.u32 %v7470, 7
      %v7472 = vsub.s32 %v7469, %v7471
      %v7473 = vrot.slane %v7459, %v7472
      %v7474 = vcombine.low %v7466, %v7473
      %v7475 = vcombine.low %v3717, %v3719
      %v7476 = vcombine.low %v3726, %v3734
      %v7478 = vunpack.c.l.s4 1983009808
      %v7479 = vunpack.c.0.s8 %v7478
      %v7480 = vlaneseq
      %v7481 = vshrl.u32 %v7480, 7
      %v7482 = vsub.s32 %v7479, %v7481
      %v7483 = vrot.slane %v7475, %v7482
      %v7485 = vunpack.c.l.s4 1983009808
      %v7486 = vunpack.c.0.s8 %v7485
      %v7487 = vlaneseq
      %v7488 = vshrl.u32 %v7487, 7
      %v7489 = vsub.s32 %v7486, %v7488
      %v7490 = vrot.slane %v7476, %v7489
      %v7491 = vcombine.low %v7483, %v7490
      %v7492 = vcombine.low %v3742, %v3741
      %v7493 = vcombine.low %v3743, %v3751
      %v7495 = vunpack.c.l.s4 1983009808
      %v7496 = vunpack.c.0.s8 %v7495
      %v7497 = vlaneseq
      %v7498 = vshrl.u32 %v7497, 7
      %v7499 = vsub.s32 %v7496, %v7498
      %v7500 = vrot.slane %v7492, %v7499
      %v7502 = vunpack.c.l.s4 1983009808
      %v7503 = vunpack.c.0.s8 %v7502
      %v7504 = vlaneseq
      %v7505 = vshrl.u32 %v7504, 7
      %v7506 = vsub.s32 %v7503, %v7505
      %v7507 = vrot.slane %v7493, %v7506
      %v7508 = vcombine.low %v7500, %v7507
      %v7509 = vcombine.low %v3759, %v3758
      %v7510 = vcombine.low %v3760, %v3767
      %v7512 = vunpack.c.l.s4 1983009808
      %v7513 = vunpack.c.0.s8 %v7512
      %v7514 = vlaneseq
      %v7515 = vshrl.u32 %v7514, 7
      %v7516 = vsub.s32 %v7513, %v7515
      %v7517 = vrot.slane %v7509, %v7516
      %v7519 = vunpack.c.l.s4 1983009808
      %v7520 = vunpack.c.0.s8 %v7519
      %v7521 = vlaneseq
      %v7522 = vshrl.u32 %v7521, 7
      %v7523 = vsub.s32 %v7520, %v7522
      %v7524 = vrot.slane %v7510, %v7523
      %v7525 = vcombine.low %v7517, %v7524
      %v7526 = vcombine.low %v3775, %v3783
      %v7527 = vcombine.low %v3782, %v3784
      %v7529 = vunpack.c.l.s4 1983009808
      %v7530 = vunpack.c.0.s8 %v7529
      %v7531 = vlaneseq
      %v7532 = vshrl.u32 %v7531, 7
      %v7533 = vsub.s32 %v7530, %v7532
      %v7534 = vrot.slane %v7526, %v7533
      %v7536 = vunpack.c.l.s4 1983009808
      %v7537 = vunpack.c.0.s8 %v7536
      %v7538 = vlaneseq
      %v7539 = vshrl.u32 %v7538, 7
      %v7540 = vsub.s32 %v7537, %v7539
      %v7541 = vrot.slane %v7527, %v7540
      %v7542 = vcombine.low %v7534, %v7541
      %v7543 = vcombine.low %v3792, %v3800
      %v7544 = vcombine.low %v3799, %v3801
      %v7546 = vunpack.c.l.s4 1983009808
      %v7547 = vunpack.c.0.s8 %v7546
      %v7548 = vlaneseq
      %v7549 = vshrl.u32 %v7548, 7
      %v7550 = vsub.s32 %v7547, %v7549
      %v7551 = vrot.slane %v7543, %v7550
      %v7553 = vunpack.c.l.s4 1983009808
      %v7554 = vunpack.c.0.s8 %v7553
      %v7555 = vlaneseq
      %v7556 = vshrl.u32 %v7555, 7
      %v7557 = vsub.s32 %v7554, %v7556
      %v7558 = vrot.slane %v7544, %v7557
      %v7559 = vcombine.low %v7551, %v7558
      %v7560 = vcombine.low %v3808, %v3816
      %v7561 = vcombine.low %v3824, %v3823
      %v7563 = vunpack.c.l.s4 1983009808
      %v7564 = vunpack.c.0.s8 %v7563
      %v7565 = vlaneseq
      %v7566 = vshrl.u32 %v7565, 7
      %v7567 = vsub.s32 %v7564, %v7566
      %v7568 = vrot.slane %v7560, %v7567
      %v7570 = vunpack.c.l.s4 1983009808
      %v7571 = vunpack.c.0.s8 %v7570
      %v7572 = vlaneseq
      %v7573 = vshrl.u32 %v7572, 7
      %v7574 = vsub.s32 %v7571, %v7573
      %v7575 = vrot.slane %v7561, %v7574
      %v7576 = vcombine.low %v7568, %v7575
      %v7577 = vcombine.low %v3825, %v3833
      %v7578 = vcombine.low %v3841, %v3840
      %v7580 = vunpack.c.l.s4 1983009808
      %v7581 = vunpack.c.0.s8 %v7580
      %v7582 = vlaneseq
      %v7583 = vshrl.u32 %v7582, 7
      %v7584 = vsub.s32 %v7581, %v7583
      %v7585 = vrot.slane %v7577, %v7584
      %v7587 = vunpack.c.l.s4 1983009808
      %v7588 = vunpack.c.0.s8 %v7587
      %v7589 = vlaneseq
      %v7590 = vshrl.u32 %v7589, 7
      %v7591 = vsub.s32 %v7588, %v7590
      %v7592 = vrot.slane %v7578, %v7591
      %v7593 = vcombine.low %v7585, %v7592
      %v7594 = vcombine.low %v3842, %v3849
      %v7596 = vunpack.c.l.s4 1983009808
      %v7597 = vunpack.c.0.s8 %v7596
      %v7598 = vlaneseq
      %v7599 = vshrl.u32 %v7598, 7
      %v7600 = vsub.s32 %v7597, %v7599
      %v7601 = vrot.slane %v7594, %v7600
      %v7625 = vcombine.low %v3917, %v3925
      %v7626 = vcombine.low %v3924, %v3926
      %v7628 = vunpack.c.l.s4 1983009808
      %v7629 = vunpack.c.0.s8 %v7628
      %v7630 = vlaneseq
      %v7631 = vshrl.u32 %v7630, 7
      %v7632 = vsub.s32 %v7629, %v7631
      %v7633 = vrot.slane %v7625, %v7632
      %v7635 = vunpack.c.l.s4 1983009808
      %v7636 = vunpack.c.0.s8 %v7635
      %v7637 = vlaneseq
      %v7638 = vshrl.u32 %v7637, 7
      %v7639 = vsub.s32 %v7636, %v7638
      %v7640 = vrot.slane %v7626, %v7639
      %v7641 = vcombine.low %v7633, %v7640
      %v7642 = vcombine.low %v3934, %v3942
      %v7643 = vcombine.low %v3941, %v3943
      %v7645 = vunpack.c.l.s4 1983009808
      %v7646 = vunpack.c.0.s8 %v7645
      %v7647 = vlaneseq
      %v7648 = vshrl.u32 %v7647, 7
      %v7649 = vsub.s32 %v7646, %v7648
      %v7650 = vrot.slane %v7642, %v7649
      %v7652 = vunpack.c.l.s4 1983009808
      %v7653 = vunpack.c.0.s8 %v7652
      %v7654 = vlaneseq
      %v7655 = vshrl.u32 %v7654, 7
      %v7656 = vsub.s32 %v7653, %v7655
      %v7657 = vrot.slane %v7643, %v7656
      %v7658 = vcombine.low %v7650, %v7657
      %v7659 = vcombine.low %v3950, %v3958
      %v7660 = vcombine.low %v3966, %v3965
      %v7662 = vunpack.c.l.s4 1983009808
      %v7663 = vunpack.c.0.s8 %v7662
      %v7664 = vlaneseq
      %v7665 = vshrl.u32 %v7664, 7
      %v7666 = vsub.s32 %v7663, %v7665
      %v7667 = vrot.slane %v7659, %v7666
      %v7669 = vunpack.c.l.s4 1983009808
      %v7670 = vunpack.c.0.s8 %v7669
      %v7671 = vlaneseq
      %v7672 = vshrl.u32 %v7671, 7
      %v7673 = vsub.s32 %v7670, %v7672
      %v7674 = vrot.slane %v7660, %v7673
      %v7675 = vcombine.low %v7667, %v7674
      %v7676 = vcombine.low %v3967, %v3975
      %v7677 = vcombine.low %v3983, %v3982
      %v7679 = vunpack.c.l.s4 1983009808
      %v7680 = vunpack.c.0.s8 %v7679
      %v7681 = vlaneseq
      %v7682 = vshrl.u32 %v7681, 7
      %v7683 = vsub.s32 %v7680, %v7682
      %v7684 = vrot.slane %v7676, %v7683
      %v7686 = vunpack.c.l.s4 1983009808
      %v7687 = vunpack.c.0.s8 %v7686
      %v7688 = vlaneseq
      %v7689 = vshrl.u32 %v7688, 7
      %v7690 = vsub.s32 %v7687, %v7689
      %v7691 = vrot.slane %v7677, %v7690
      %v7692 = vcombine.low %v7684, %v7691
      %v7693 = vcombine.low %v3984, %v3991
      %v7694 = vcombine.low %v3999, %v4007
      %v7696 = vunpack.c.l.s4 1983009808
      %v7697 = vunpack.c.0.s8 %v7696
      %v7698 = vlaneseq
      %v7699 = vshrl.u32 %v7698, 7
      %v7700 = vsub.s32 %v7697, %v7699
      %v7701 = vrot.slane %v7693, %v7700
      %v7703 = vunpack.c.l.s4 1983009808
      %v7704 = vunpack.c.0.s8 %v7703
      %v7705 = vlaneseq
      %v7706 = vshrl.u32 %v7705, 7
      %v7707 = vsub.s32 %v7704, %v7706
      %v7708 = vrot.slane %v7694, %v7707
      %v7709 = vcombine.low %v7701, %v7708
      %v7710 = vcombine.low %v4006, %v4008
      %v7711 = vcombine.low %v4016, %v4024
      %v7713 = vunpack.c.l.s4 1983009808
      %v7714 = vunpack.c.0.s8 %v7713
      %v7715 = vlaneseq
      %v7716 = vshrl.u32 %v7715, 7
      %v7717 = vsub.s32 %v7714, %v7716
      %v7718 = vrot.slane %v7710, %v7717
      %v7720 = vunpack.c.l.s4 1983009808
      %v7721 = vunpack.c.0.s8 %v7720
      %v7722 = vlaneseq
      %v7723 = vshrl.u32 %v7722, 7
      %v7724 = vsub.s32 %v7721, %v7723
      %v7725 = vrot.slane %v7711, %v7724
      %v7726 = vcombine.low %v7718, %v7725
      %v7727 = vcombine.low %v4023, %v4025
      %v7728 = vcombine.low %v4032, %v4040
      %v7730 = vunpack.c.l.s4 1983009808
      %v7731 = vunpack.c.0.s8 %v7730
      %v7732 = vlaneseq
      %v7733 = vshrl.u32 %v7732, 7
      %v7734 = vsub.s32 %v7731, %v7733
      %v7735 = vrot.slane %v7727, %v7734
      %v7737 = vunpack.c.l.s4 1983009808
      %v7738 = vunpack.c.0.s8 %v7737
      %v7739 = vlaneseq
      %v7740 = vshrl.u32 %v7739, 7
      %v7741 = vsub.s32 %v7738, %v7740
      %v7742 = vrot.slane %v7728, %v7741
      %v7743 = vcombine.low %v7735, %v7742
      %v7744 = vcombine.low %v4048, %v4047
      %v7745 = vcombine.low %v4049, %v4057
      %v7747 = vunpack.c.l.s4 1983009808
      %v7748 = vunpack.c.0.s8 %v7747
      %v7749 = vlaneseq
      %v7750 = vshrl.u32 %v7749, 7
      %v7751 = vsub.s32 %v7748, %v7750
      %v7752 = vrot.slane %v7744, %v7751
      %v7754 = vunpack.c.l.s4 1983009808
      %v7755 = vunpack.c.0.s8 %v7754
      %v7756 = vlaneseq
      %v7757 = vshrl.u32 %v7756, 7
      %v7758 = vsub.s32 %v7755, %v7757
      %v7759 = vrot.slane %v7745, %v7758
      %v7760 = vcombine.low %v7752, %v7759
      %v7761 = vcombine.low %v4065, %v4064
      %v7762 = vcombine.low %v4066, %v4073
      %v7764 = vunpack.c.l.s4 1983009808
      %v7765 = vunpack.c.0.s8 %v7764
      %v7766 = vlaneseq
      %v7767 = vshrl.u32 %v7766, 7
      %v7768 = vsub.s32 %v7765, %v7767
      %v7769 = vrot.slane %v7761, %v7768
      %v7771 = vunpack.c.l.s4 1983009808
      %v7772 = vunpack.c.0.s8 %v7771
      %v7773 = vlaneseq
      %v7774 = vshrl.u32 %v7773, 7
      %v7775 = vsub.s32 %v7772, %v7774
      %v7776 = vrot.slane %v7762, %v7775
      %v7777 = vcombine.low %v7769, %v7776
      %v7778 = vcombine.low %v4081, %v4089
      %v7779 = vcombine.low %v4088, %v4090
      %v7781 = vunpack.c.l.s4 1983009808
      %v7782 = vunpack.c.0.s8 %v7781
      %v7783 = vlaneseq
      %v7784 = vshrl.u32 %v7783, 7
      %v7785 = vsub.s32 %v7782, %v7784
      %v7786 = vrot.slane %v7778, %v7785
      %v7788 = vunpack.c.l.s4 1983009808
      %v7789 = vunpack.c.0.s8 %v7788
      %v7790 = vlaneseq
      %v7791 = vshrl.u32 %v7790, 7
      %v7792 = vsub.s32 %v7789, %v7791
      %v7793 = vrot.slane %v7779, %v7792
      %v7794 = vcombine.low %v7786, %v7793
      %v7795 = vcombine.low %v4098, %v4106
      %v7796 = vcombine.low %v4105, %v4107
      %v7798 = vunpack.c.l.s4 1983009808
      %v7799 = vunpack.c.0.s8 %v7798
      %v7800 = vlaneseq
      %v7801 = vshrl.u32 %v7800, 7
      %v7802 = vsub.s32 %v7799, %v7801
      %v7803 = vrot.slane %v7795, %v7802
      %v7805 = vunpack.c.l.s4 1983009808
      %v7806 = vunpack.c.0.s8 %v7805
      %v7807 = vlaneseq
      %v7808 = vshrl.u32 %v7807, 7
      %v7809 = vsub.s32 %v7806, %v7808
      %v7810 = vrot.slane %v7796, %v7809
      %v7811 = vcombine.low %v7803, %v7810
      %v7812 = vcombine.low %v4114, %v4122
      %v7813 = vcombine.low %v4130, %v4129
      %v7815 = vunpack.c.l.s4 1983009808
      %v7816 = vunpack.c.0.s8 %v7815
      %v7817 = vlaneseq
      %v7818 = vshrl.u32 %v7817, 7
      %v7819 = vsub.s32 %v7816, %v7818
      %v7820 = vrot.slane %v7812, %v7819
      %v7822 = vunpack.c.l.s4 1983009808
      %v7823 = vunpack.c.0.s8 %v7822
      %v7824 = vlaneseq
      %v7825 = vshrl.u32 %v7824, 7
      %v7826 = vsub.s32 %v7823, %v7825
      %v7827 = vrot.slane %v7813, %v7826
      %v7828 = vcombine.low %v7820, %v7827
      %v7829 = vcombine.low %v4131, %v4139
      %v7830 = vcombine.low %v4147, %v4146
      %v7832 = vunpack.c.l.s4 1983009808
      %v7833 = vunpack.c.0.s8 %v7832
      %v7834 = vlaneseq
      %v7835 = vshrl.u32 %v7834, 7
      %v7836 = vsub.s32 %v7833, %v7835
      %v7837 = vrot.slane %v7829, %v7836
      %v7839 = vunpack.c.l.s4 1983009808
      %v7840 = vunpack.c.0.s8 %v7839
      %v7841 = vlaneseq
      %v7842 = vshrl.u32 %v7841, 7
      %v7843 = vsub.s32 %v7840, %v7842
      %v7844 = vrot.slane %v7830, %v7843
      %v7845 = vcombine.low %v7837, %v7844
      %v7846 = vcombine.low %v4148, %v4155
      %v7847 = vcombine.low %v4163, %v4171
      %v7849 = vunpack.c.l.s4 1983009808
      %v7850 = vunpack.c.0.s8 %v7849
      %v7851 = vlaneseq
      %v7852 = vshrl.u32 %v7851, 7
      %v7853 = vsub.s32 %v7850, %v7852
      %v7854 = vrot.slane %v7846, %v7853
      %v7856 = vunpack.c.l.s4 1983009808
      %v7857 = vunpack.c.0.s8 %v7856
      %v7858 = vlaneseq
      %v7859 = vshrl.u32 %v7858, 7
      %v7860 = vsub.s32 %v7857, %v7859
      %v7861 = vrot.slane %v7847, %v7860
      %v7862 = vcombine.low %v7854, %v7861
      %v7863 = vcombine.low %v4170, %v4172
      %v7864 = vcombine.low %v4180, %v4188
      %v7866 = vunpack.c.l.s4 1983009808
      %v7867 = vunpack.c.0.s8 %v7866
      %v7868 = vlaneseq
      %v7869 = vshrl.u32 %v7868, 7
      %v7870 = vsub.s32 %v7867, %v7869
      %v7871 = vrot.slane %v7863, %v7870
      %v7873 = vunpack.c.l.s4 1983009808
      %v7874 = vunpack.c.0.s8 %v7873
      %v7875 = vlaneseq
      %v7876 = vshrl.u32 %v7875, 7
      %v7877 = vsub.s32 %v7874, %v7876
      %v7878 = vrot.slane %v7864, %v7877
      %v7879 = vcombine.low %v7871, %v7878
      %v7880 = vcombine.low %v4187, %v4189
      %v7881 = vcombine.low %v4196, %v4204
      %v7883 = vunpack.c.l.s4 1983009808
      %v7884 = vunpack.c.0.s8 %v7883
      %v7885 = vlaneseq
      %v7886 = vshrl.u32 %v7885, 7
      %v7887 = vsub.s32 %v7884, %v7886
      %v7888 = vrot.slane %v7880, %v7887
      %v7890 = vunpack.c.l.s4 1983009808
      %v7891 = vunpack.c.0.s8 %v7890
      %v7892 = vlaneseq
      %v7893 = vshrl.u32 %v7892, 7
      %v7894 = vsub.s32 %v7891, %v7893
      %v7895 = vrot.slane %v7881, %v7894
      %v7896 = vcombine.low %v7888, %v7895
      %v7897 = vcombine.low %v4212, %v4211
      %v7898 = vcombine.low %v4213, %v4221
      %v7900 = vunpack.c.l.s4 1983009808
      %v7901 = vunpack.c.0.s8 %v7900
      %v7902 = vlaneseq
      %v7903 = vshrl.u32 %v7902, 7
      %v7904 = vsub.s32 %v7901, %v7903
      %v7905 = vrot.slane %v7897, %v7904
      %v7907 = vunpack.c.l.s4 1983009808
      %v7908 = vunpack.c.0.s8 %v7907
      %v7909 = vlaneseq
      %v7910 = vshrl.u32 %v7909, 7
      %v7911 = vsub.s32 %v7908, %v7910
      %v7912 = vrot.slane %v7898, %v7911
      %v7913 = vcombine.low %v7905, %v7912
      %v7914 = vcombine.low %v4229, %v4228
      %v7915 = vcombine.low %v4230, %v4237
      %v7917 = vunpack.c.l.s4 1983009808
      %v7918 = vunpack.c.0.s8 %v7917
      %v7919 = vlaneseq
      %v7920 = vshrl.u32 %v7919, 7
      %v7921 = vsub.s32 %v7918, %v7920
      %v7922 = vrot.slane %v7914, %v7921
      %v7924 = vunpack.c.l.s4 1983009808
      %v7925 = vunpack.c.0.s8 %v7924
      %v7926 = vlaneseq
      %v7927 = vshrl.u32 %v7926, 7
      %v7928 = vsub.s32 %v7925, %v7927
      %v7929 = vrot.slane %v7915, %v7928
      %v7930 = vcombine.low %v7922, %v7929
      %v7931 = vcombine.low %v4245, %v4253
      %v7932 = vcombine.low %v4252, %v4254
      %v7934 = vunpack.c.l.s4 1983009808
      %v7935 = vunpack.c.0.s8 %v7934
      %v7936 = vlaneseq
      %v7937 = vshrl.u32 %v7936, 7
      %v7938 = vsub.s32 %v7935, %v7937
      %v7939 = vrot.slane %v7931, %v7938
      %v7941 = vunpack.c.l.s4 1983009808
      %v7942 = vunpack.c.0.s8 %v7941
      %v7943 = vlaneseq
      %v7944 = vshrl.u32 %v7943, 7
      %v7945 = vsub.s32 %v7942, %v7944
      %v7946 = vrot.slane %v7932, %v7945
      %v7947 = vcombine.low %v7939, %v7946
      %v7948 = vcombine.low %v4262, %v4270
      %v7949 = vcombine.low %v4269, %v4271
      %v7951 = vunpack.c.l.s4 1983009808
      %v7952 = vunpack.c.0.s8 %v7951
      %v7953 = vlaneseq
      %v7954 = vshrl.u32 %v7953, 7
      %v7955 = vsub.s32 %v7952, %v7954
      %v7956 = vrot.slane %v7948, %v7955
      %v7958 = vunpack.c.l.s4 1983009808
      %v7959 = vunpack.c.0.s8 %v7958
      %v7960 = vlaneseq
      %v7961 = vshrl.u32 %v7960, 7
      %v7962 = vsub.s32 %v7959, %v7961
      %v7963 = vrot.slane %v7949, %v7962
      %v7964 = vcombine.low %v7956, %v7963
      %v7965 = vcombine.low %v4278, %v4286
      %v7966 = vcombine.low %v4294, %v4293
      %v7968 = vunpack.c.l.s4 1983009808
      %v7969 = vunpack.c.0.s8 %v7968
      %v7970 = vlaneseq
      %v7971 = vshrl.u32 %v7970, 7
      %v7972 = vsub.s32 %v7969, %v7971
      %v7973 = vrot.slane %v7965, %v7972
      %v7975 = vunpack.c.l.s4 1983009808
      %v7976 = vunpack.c.0.s8 %v7975
      %v7977 = vlaneseq
      %v7978 = vshrl.u32 %v7977, 7
      %v7979 = vsub.s32 %v7976, %v7978
      %v7980 = vrot.slane %v7966, %v7979
      %v7981 = vcombine.low %v7973, %v7980
      %v7982 = vcombine.low %v4295, %v4303
      %v7983 = vcombine.low %v4311, %v4310
      %v7985 = vunpack.c.l.s4 1983009808
      %v7986 = vunpack.c.0.s8 %v7985
      %v7987 = vlaneseq
      %v7988 = vshrl.u32 %v7987, 7
      %v7989 = vsub.s32 %v7986, %v7988
      %v7990 = vrot.slane %v7982, %v7989
      %v7992 = vunpack.c.l.s4 1983009808
      %v7993 = vunpack.c.0.s8 %v7992
      %v7994 = vlaneseq
      %v7995 = vshrl.u32 %v7994, 7
      %v7996 = vsub.s32 %v7993, %v7995
      %v7997 = vrot.slane %v7983, %v7996
      %v7998 = vcombine.low %v7990, %v7997
      %v7999 = vcombine.low %v4312, %v4319
      %v8001 = vunpack.c.l.s4 1983009808
      %v8002 = vunpack.c.0.s8 %v8001
      %v8003 = vlaneseq
      %v8004 = vshrl.u32 %v8003, 7
      %v8005 = vsub.s32 %v8002, %v8004
      %v8006 = vrot.slane %v7999, %v8005
      %v8030 = vcombine.low %v4387, %v4395
      %v8031 = vcombine.low %v4394, %v4396
      %v8033 = vunpack.c.l.s4 1983009808
      %v8034 = vunpack.c.0.s8 %v8033
      %v8035 = vlaneseq
      %v8036 = vshrl.u32 %v8035, 7
      %v8037 = vsub.s32 %v8034, %v8036
      %v8038 = vrot.slane %v8030, %v8037
      %v8040 = vunpack.c.l.s4 1983009808
      %v8041 = vunpack.c.0.s8 %v8040
      %v8042 = vlaneseq
      %v8043 = vshrl.u32 %v8042, 7
      %v8044 = vsub.s32 %v8041, %v8043
      %v8045 = vrot.slane %v8031, %v8044
      %v8046 = vcombine.low %v8038, %v8045
      %v8047 = vcombine.low %v4404, %v4412
      %v8048 = vcombine.low %v4411, %v4413
      %v8050 = vunpack.c.l.s4 1983009808
      %v8051 = vunpack.c.0.s8 %v8050
      %v8052 = vlaneseq
      %v8053 = vshrl.u32 %v8052, 7
      %v8054 = vsub.s32 %v8051, %v8053
      %v8055 = vrot.slane %v8047, %v8054
      %v8057 = vunpack.c.l.s4 1983009808
      %v8058 = vunpack.c.0.s8 %v8057
      %v8059 = vlaneseq
      %v8060 = vshrl.u32 %v8059, 7
      %v8061 = vsub.s32 %v8058, %v8060
      %v8062 = vrot.slane %v8048, %v8061
      %v8063 = vcombine.low %v8055, %v8062
      %v8064 = vcombine.low %v4420, %v4428
      %v8065 = vcombine.low %v4436, %v4435
      %v8067 = vunpack.c.l.s4 1983009808
      %v8068 = vunpack.c.0.s8 %v8067
      %v8069 = vlaneseq
      %v8070 = vshrl.u32 %v8069, 7
      %v8071 = vsub.s32 %v8068, %v8070
      %v8072 = vrot.slane %v8064, %v8071
      %v8074 = vunpack.c.l.s4 1983009808
      %v8075 = vunpack.c.0.s8 %v8074
      %v8076 = vlaneseq
      %v8077 = vshrl.u32 %v8076, 7
      %v8078 = vsub.s32 %v8075, %v8077
      %v8079 = vrot.slane %v8065, %v8078
      %v8080 = vcombine.low %v8072, %v8079
      %v8081 = vcombine.low %v4437, %v4445
      %v8082 = vcombine.low %v4453, %v4452
      %v8084 = vunpack.c.l.s4 1983009808
      %v8085 = vunpack.c.0.s8 %v8084
      %v8086 = vlaneseq
      %v8087 = vshrl.u32 %v8086, 7
      %v8088 = vsub.s32 %v8085, %v8087
      %v8089 = vrot.slane %v8081, %v8088
      %v8091 = vunpack.c.l.s4 1983009808
      %v8092 = vunpack.c.0.s8 %v8091
      %v8093 = vlaneseq
      %v8094 = vshrl.u32 %v8093, 7
      %v8095 = vsub.s32 %v8092, %v8094
      %v8096 = vrot.slane %v8082, %v8095
      %v8097 = vcombine.low %v8089, %v8096
      %v8098 = vcombine.low %v4454, %v4461
      %v8099 = vcombine.low %v4469, %v4477
      %v8101 = vunpack.c.l.s4 1983009808
      %v8102 = vunpack.c.0.s8 %v8101
      %v8103 = vlaneseq
      %v8104 = vshrl.u32 %v8103, 7
      %v8105 = vsub.s32 %v8102, %v8104
      %v8106 = vrot.slane %v8098, %v8105
      %v8108 = vunpack.c.l.s4 1983009808
      %v8109 = vunpack.c.0.s8 %v8108
      %v8110 = vlaneseq
      %v8111 = vshrl.u32 %v8110, 7
      %v8112 = vsub.s32 %v8109, %v8111
      %v8113 = vrot.slane %v8099, %v8112
      %v8114 = vcombine.low %v8106, %v8113
      %v8115 = vcombine.low %v4476, %v4478
      %v8116 = vcombine.low %v4486, %v4494
      %v8118 = vunpack.c.l.s4 1983009808
      %v8119 = vunpack.c.0.s8 %v8118
      %v8120 = vlaneseq
      %v8121 = vshrl.u32 %v8120, 7
      %v8122 = vsub.s32 %v8119, %v8121
      %v8123 = vrot.slane %v8115, %v8122
      %v8125 = vunpack.c.l.s4 1983009808
      %v8126 = vunpack.c.0.s8 %v8125
      %v8127 = vlaneseq
      %v8128 = vshrl.u32 %v8127, 7
      %v8129 = vsub.s32 %v8126, %v8128
      %v8130 = vrot.slane %v8116, %v8129
      %v8131 = vcombine.low %v8123, %v8130
      %v8132 = vcombine.low %v4493, %v4495
      %v8133 = vcombine.low %v4502, %v4510
      %v8135 = vunpack.c.l.s4 1983009808
      %v8136 = vunpack.c.0.s8 %v8135
      %v8137 = vlaneseq
      %v8138 = vshrl.u32 %v8137, 7
      %v8139 = vsub.s32 %v8136, %v8138
      %v8140 = vrot.slane %v8132, %v8139
      %v8142 = vunpack.c.l.s4 1983009808
      %v8143 = vunpack.c.0.s8 %v8142
      %v8144 = vlaneseq
      %v8145 = vshrl.u32 %v8144, 7
      %v8146 = vsub.s32 %v8143, %v8145
      %v8147 = vrot.slane %v8133, %v8146
      %v8148 = vcombine.low %v8140, %v8147
      %v8149 = vcombine.low %v4518, %v4517
      %v8150 = vcombine.low %v4519, %v4527
      %v8152 = vunpack.c.l.s4 1983009808
      %v8153 = vunpack.c.0.s8 %v8152
      %v8154 = vlaneseq
      %v8155 = vshrl.u32 %v8154, 7
      %v8156 = vsub.s32 %v8153, %v8155
      %v8157 = vrot.slane %v8149, %v8156
      %v8159 = vunpack.c.l.s4 1983009808
      %v8160 = vunpack.c.0.s8 %v8159
      %v8161 = vlaneseq
      %v8162 = vshrl.u32 %v8161, 7
      %v8163 = vsub.s32 %v8160, %v8162
      %v8164 = vrot.slane %v8150, %v8163
      %v8165 = vcombine.low %v8157, %v8164
      %v8166 = vcombine.low %v4535, %v4534
      %v8167 = vcombine.low %v4536, %v4543
      %v8169 = vunpack.c.l.s4 1983009808
      %v8170 = vunpack.c.0.s8 %v8169
      %v8171 = vlaneseq
      %v8172 = vshrl.u32 %v8171, 7
      %v8173 = vsub.s32 %v8170, %v8172
      %v8174 = vrot.slane %v8166, %v8173
      %v8176 = vunpack.c.l.s4 1983009808
      %v8177 = vunpack.c.0.s8 %v8176
      %v8178 = vlaneseq
      %v8179 = vshrl.u32 %v8178, 7
      %v8180 = vsub.s32 %v8177, %v8179
      %v8181 = vrot.slane %v8167, %v8180
      %v8182 = vcombine.low %v8174, %v8181
      %v8183 = vcombine.low %v4551, %v4559
      %v8184 = vcombine.low %v4558, %v4560
      %v8186 = vunpack.c.l.s4 1983009808
      %v8187 = vunpack.c.0.s8 %v8186
      %v8188 = vlaneseq
      %v8189 = vshrl.u32 %v8188, 7
      %v8190 = vsub.s32 %v8187, %v8189
      %v8191 = vrot.slane %v8183, %v8190
      %v8193 = vunpack.c.l.s4 1983009808
      %v8194 = vunpack.c.0.s8 %v8193
      %v8195 = vlaneseq
      %v8196 = vshrl.u32 %v8195, 7
      %v8197 = vsub.s32 %v8194, %v8196
      %v8198 = vrot.slane %v8184, %v8197
      %v8199 = vcombine.low %v8191, %v8198
      %v8200 = vcombine.low %v4568, %v4576
      %v8201 = vcombine.low %v4575, %v4577
      %v8203 = vunpack.c.l.s4 1983009808
      %v8204 = vunpack.c.0.s8 %v8203
      %v8205 = vlaneseq
      %v8206 = vshrl.u32 %v8205, 7
      %v8207 = vsub.s32 %v8204, %v8206
      %v8208 = vrot.slane %v8200, %v8207
      %v8210 = vunpack.c.l.s4 1983009808
      %v8211 = vunpack.c.0.s8 %v8210
      %v8212 = vlaneseq
      %v8213 = vshrl.u32 %v8212, 7
      %v8214 = vsub.s32 %v8211, %v8213
      %v8215 = vrot.slane %v8201, %v8214
      %v8216 = vcombine.low %v8208, %v8215
      %v8217 = vcombine.low %v4584, %v4592
      %v8218 = vcombine.low %v4600, %v4599
      %v8220 = vunpack.c.l.s4 1983009808
      %v8221 = vunpack.c.0.s8 %v8220
      %v8222 = vlaneseq
      %v8223 = vshrl.u32 %v8222, 7
      %v8224 = vsub.s32 %v8221, %v8223
      %v8225 = vrot.slane %v8217, %v8224
      %v8227 = vunpack.c.l.s4 1983009808
      %v8228 = vunpack.c.0.s8 %v8227
      %v8229 = vlaneseq
      %v8230 = vshrl.u32 %v8229, 7
      %v8231 = vsub.s32 %v8228, %v8230
      %v8232 = vrot.slane %v8218, %v8231
      %v8233 = vcombine.low %v8225, %v8232
      %v8234 = vcombine.low %v4601, %v4609
      %v8235 = vcombine.low %v4617, %v4616
      %v8237 = vunpack.c.l.s4 1983009808
      %v8238 = vunpack.c.0.s8 %v8237
      %v8239 = vlaneseq
      %v8240 = vshrl.u32 %v8239, 7
      %v8241 = vsub.s32 %v8238, %v8240
      %v8242 = vrot.slane %v8234, %v8241
      %v8244 = vunpack.c.l.s4 1983009808
      %v8245 = vunpack.c.0.s8 %v8244
      %v8246 = vlaneseq
      %v8247 = vshrl.u32 %v8246, 7
      %v8248 = vsub.s32 %v8245, %v8247
      %v8249 = vrot.slane %v8235, %v8248
      %v8250 = vcombine.low %v8242, %v8249
      %v8251 = vcombine.low %v4618, %v4625
      %v8252 = vcombine.low %v4633, %v4641
      %v8254 = vunpack.c.l.s4 1983009808
      %v8255 = vunpack.c.0.s8 %v8254
      %v8256 = vlaneseq
      %v8257 = vshrl.u32 %v8256, 7
      %v8258 = vsub.s32 %v8255, %v8257
      %v8259 = vrot.slane %v8251, %v8258
      %v8261 = vunpack.c.l.s4 1983009808
      %v8262 = vunpack.c.0.s8 %v8261
      %v8263 = vlaneseq
      %v8264 = vshrl.u32 %v8263, 7
      %v8265 = vsub.s32 %v8262, %v8264
      %v8266 = vrot.slane %v8252, %v8265
      %v8267 = vcombine.low %v8259, %v8266
      %v8268 = vcombine.low %v4640, %v4642
      %v8269 = vcombine.low %v4650, %v4658
      %v8271 = vunpack.c.l.s4 1983009808
      %v8272 = vunpack.c.0.s8 %v8271
      %v8273 = vlaneseq
      %v8274 = vshrl.u32 %v8273, 7
      %v8275 = vsub.s32 %v8272, %v8274
      %v8276 = vrot.slane %v8268, %v8275
      %v8278 = vunpack.c.l.s4 1983009808
      %v8279 = vunpack.c.0.s8 %v8278
      %v8280 = vlaneseq
      %v8281 = vshrl.u32 %v8280, 7
      %v8282 = vsub.s32 %v8279, %v8281
      %v8283 = vrot.slane %v8269, %v8282
      %v8284 = vcombine.low %v8276, %v8283
      %v8285 = vcombine.low %v4657, %v4659
      %v8286 = vcombine.low %v4666, %v4674
      %v8288 = vunpack.c.l.s4 1983009808
      %v8289 = vunpack.c.0.s8 %v8288
      %v8290 = vlaneseq
      %v8291 = vshrl.u32 %v8290, 7
      %v8292 = vsub.s32 %v8289, %v8291
      %v8293 = vrot.slane %v8285, %v8292
      %v8295 = vunpack.c.l.s4 1983009808
      %v8296 = vunpack.c.0.s8 %v8295
      %v8297 = vlaneseq
      %v8298 = vshrl.u32 %v8297, 7
      %v8299 = vsub.s32 %v8296, %v8298
      %v8300 = vrot.slane %v8286, %v8299
      %v8301 = vcombine.low %v8293, %v8300
      %v8302 = vcombine.low %v4682, %v4681
      %v8303 = vcombine.low %v4683, %v4691
      %v8305 = vunpack.c.l.s4 1983009808
      %v8306 = vunpack.c.0.s8 %v8305
      %v8307 = vlaneseq
      %v8308 = vshrl.u32 %v8307, 7
      %v8309 = vsub.s32 %v8306, %v8308
      %v8310 = vrot.slane %v8302, %v8309
      %v8312 = vunpack.c.l.s4 1983009808
      %v8313 = vunpack.c.0.s8 %v8312
      %v8314 = vlaneseq
      %v8315 = vshrl.u32 %v8314, 7
      %v8316 = vsub.s32 %v8313, %v8315
      %v8317 = vrot.slane %v8303, %v8316
      %v8318 = vcombine.low %v8310, %v8317
      %v8319 = vcombine.low %v4699, %v4698
      %v8320 = vcombine.low %v4700, %v4707
      %v8322 = vunpack.c.l.s4 1983009808
      %v8323 = vunpack.c.0.s8 %v8322
      %v8324 = vlaneseq
      %v8325 = vshrl.u32 %v8324, 7
      %v8326 = vsub.s32 %v8323, %v8325
      %v8327 = vrot.slane %v8319, %v8326
      %v8329 = vunpack.c.l.s4 1983009808
      %v8330 = vunpack.c.0.s8 %v8329
      %v8331 = vlaneseq
      %v8332 = vshrl.u32 %v8331, 7
      %v8333 = vsub.s32 %v8330, %v8332
      %v8334 = vrot.slane %v8320, %v8333
      %v8335 = vcombine.low %v8327, %v8334
      %v8336 = vcombine.low %v4715, %v4723
      %v8337 = vcombine.low %v4722, %v4724
      %v8339 = vunpack.c.l.s4 1983009808
      %v8340 = vunpack.c.0.s8 %v8339
      %v8341 = vlaneseq
      %v8342 = vshrl.u32 %v8341, 7
      %v8343 = vsub.s32 %v8340, %v8342
      %v8344 = vrot.slane %v8336, %v8343
      %v8346 = vunpack.c.l.s4 1983009808
      %v8347 = vunpack.c.0.s8 %v8346
      %v8348 = vlaneseq
      %v8349 = vshrl.u32 %v8348, 7
      %v8350 = vsub.s32 %v8347, %v8349
      %v8351 = vrot.slane %v8337, %v8350
      %v8352 = vcombine.low %v8344, %v8351
      %v8353 = vcombine.low %v4732, %v4740
      %v8354 = vcombine.low %v4739, %v4741
      %v8356 = vunpack.c.l.s4 1983009808
      %v8357 = vunpack.c.0.s8 %v8356
      %v8358 = vlaneseq
      %v8359 = vshrl.u32 %v8358, 7
      %v8360 = vsub.s32 %v8357, %v8359
      %v8361 = vrot.slane %v8353, %v8360
      %v8363 = vunpack.c.l.s4 1983009808
      %v8364 = vunpack.c.0.s8 %v8363
      %v8365 = vlaneseq
      %v8366 = vshrl.u32 %v8365, 7
      %v8367 = vsub.s32 %v8364, %v8366
      %v8368 = vrot.slane %v8354, %v8367
      %v8369 = vcombine.low %v8361, %v8368
      %v8370 = vcombine.low %v4748, %v4756
      %v8371 = vcombine.low %v4764, %v4763
      %v8373 = vunpack.c.l.s4 1983009808
      %v8374 = vunpack.c.0.s8 %v8373
      %v8375 = vlaneseq
      %v8376 = vshrl.u32 %v8375, 7
      %v8377 = vsub.s32 %v8374, %v8376
      %v8378 = vrot.slane %v8370, %v8377
      %v8380 = vunpack.c.l.s4 1983009808
      %v8381 = vunpack.c.0.s8 %v8380
      %v8382 = vlaneseq
      %v8383 = vshrl.u32 %v8382, 7
      %v8384 = vsub.s32 %v8381, %v8383
      %v8385 = vrot.slane %v8371, %v8384
      %v8386 = vcombine.low %v8378, %v8385
      %v8387 = vcombine.low %v4765, %v4773
      %v8388 = vcombine.low %v4781, %v4780
      %v8390 = vunpack.c.l.s4 1983009808
      %v8391 = vunpack.c.0.s8 %v8390
      %v8392 = vlaneseq
      %v8393 = vshrl.u32 %v8392, 7
      %v8394 = vsub.s32 %v8391, %v8393
      %v8395 = vrot.slane %v8387, %v8394
      %v8397 = vunpack.c.l.s4 1983009808
      %v8398 = vunpack.c.0.s8 %v8397
      %v8399 = vlaneseq
      %v8400 = vshrl.u32 %v8399, 7
      %v8401 = vsub.s32 %v8398, %v8400
      %v8402 = vrot.slane %v8388, %v8401
      %v8403 = vcombine.low %v8395, %v8402
      %v8404 = vcombine.low %v4782, %v4789
      %v8406 = vunpack.c.l.s4 1983009808
      %v8407 = vunpack.c.0.s8 %v8406
      %v8408 = vlaneseq
      %v8409 = vshrl.u32 %v8408, 7
      %v8410 = vsub.s32 %v8407, %v8409
      %v8411 = vrot.slane %v8404, %v8410
      %8435 = vmatprep.subr.mxu0 0.0
      %8436 = vmatpush1.msra.mxu0 %v429
      %8437 = vmatprep.subr.mxu0 0.0
      %8438 = vmatpush1.msra.mxu0 %v428
      %8439 = vmatprep.subr.mxu0 0.0
      %8440 = vmatpush1.msra.mxu0 %v427
      %8441 = vmatprep.subr.mxu0 0.0
      %8442 = vmatpush1.msra.mxu0 %v426
      %8443 = vmatprep.subr.mxu0 0.0
      %8444 = vmatpush1.msra.mxu0 %v425
      %8445 = vmatprep.subr.mxu0 0.0
      %8446 = vmatpush1.msra.mxu0 %v424
      %8447 = vmatprep.subr.mxu0 0.0
      %8448 = vmatpush1.msra.mxu0 %v423
      %8449 = vmatprep.subr.mxu0 0.0
      %8450 = vmatpush1.msra.mxu0 %v422
      %8451 = vmatprep.subr.mxu0 0.0
      %8452 = vmatpush1.msra.mxu0 %v421
      %8453 = vmatprep.subr.mxu0 0.0
      %8454 = vmatpush1.msra.mxu0 %v420
      %8455 = vmatprep.subr.mxu0 0.0
      %8456 = vmatpush1.msra.mxu0 %v419
      %8457 = vmatprep.subr.mxu0 0.0
      %8458 = vmatpush1.msra.mxu0 %v418
      %8459 = vmatprep.subr.mxu0 0.0
      %8460 = vmatpush1.msra.mxu0 %v417
      %8461 = vmatprep.subr.mxu0 0.0
      %8462 = vmatpush1.msra.mxu0 %v416
      %8463 = vmatprep.subr.mxu0 0.0
      %8464 = vmatpush1.msra.mxu0 %v415
      %8465 = vmatprep.subr.mxu0 0.0
      %8466 = vmatpush1.msra.mxu0 %v414
      %8467 = vmatprep.subr.mxu0 0.0
      %8468 = vmatpush2.msra.mxu0 %v445
      %8469 = vmatprep.subr.mxu0 0.0
      %8470 = vmatpush2.msra.mxu0 %v444
      %8471 = vmatprep.subr.mxu0 0.0
      %8472 = vmatpush2.msra.mxu0 %v443
      %8473 = vmatprep.subr.mxu0 0.0
      %8474 = vmatpush2.msra.mxu0 %v442
      %8475 = vmatprep.subr.mxu0 0.0
      %8476 = vmatpush2.msra.mxu0 %v441
      %8477 = vmatprep.subr.mxu0 0.0
      %8478 = vmatpush2.msra.mxu0 %v440
      %8479 = vmatprep.subr.mxu0 0.0
      %8480 = vmatpush2.msra.mxu0 %v439
      %8481 = vmatprep.subr.mxu0 0.0
      %8482 = vmatpush2.msra.mxu0 %v438
      %8483 = vmatprep.subr.mxu0 0.0
      %8484 = vmatpush2.msra.mxu0 %v437
      %8485 = vmatprep.subr.mxu0 0.0
      %8486 = vmatpush2.msra.mxu0 %v436
      %8487 = vmatprep.subr.mxu0 0.0
      %8488 = vmatpush2.msra.mxu0 %v435
      %8489 = vmatprep.subr.mxu0 0.0
      %8490 = vmatpush2.msra.mxu0 %v434
      %8491 = vmatprep.subr.mxu0 0.0
      %8492 = vmatpush2.msra.mxu0 %v433
      %8493 = vmatprep.subr.mxu0 0.0
      %8494 = vmatpush2.msra.mxu0 %v432
      %8495 = vmatprep.subr.mxu0 0.0
      %8496 = vmatpush2.msra.mxu0 %v431
      %8497 = vmatprep.subr.mxu0 0.0
      %8498 = vmatpush2.msra.mxu0 %v430
      %8499 = vmatprep.mubr.f32.mxu0 %v5211
      %8500 = vmatmul.mubr.f32.gmra.mxu0 %v4806
      %v8501 = vpop.f32.mrf.mxu0
      %v8502 = vadd.f32 0.0, %v8501
      %v8503 = vpop.f32.mrf.mxu0
      %8504 = vmatprep.mubr.f32.mxu0 %v5228
      %8505 = vmatmul.mubr.f32.gmra.mxu0 %v4823
      %v8506 = vpop.f32.mrf.mxu0
      %v8507 = vadd.f32 0.0, %v8506
      %v8508 = vpop.f32.mrf.mxu0
      %8509 = vmatprep.mubr.f32.mxu0 %v5245
      %8510 = vmatmul.mubr.f32.gmra.mxu0 %v4840
      %v8511 = vpop.f32.mrf.mxu0
      %v8512 = vadd.f32 0.0, %v8511
      %v8513 = vpop.f32.mrf.mxu0
      %8514 = vmatprep.mubr.f32.mxu0 %v5262
      %8515 = vmatmul.mubr.f32.gmra.mxu0 %v4857
      %v8516 = vpop.f32.mrf.mxu0
      %v8517 = vadd.f32 0.0, %v8516
      %v8518 = vpop.f32.mrf.mxu0
      %8519 = vmatprep.mubr.f32.mxu0 %v5279
      %8520 = vmatmul.mubr.f32.gmra.mxu0 %v4874
      %v8521 = vpop.f32.mrf.mxu0
      %v8522 = vadd.f32 0.0, %v8521
      %v8523 = vpop.f32.mrf.mxu0
      %8524 = vmatprep.mubr.f32.mxu0 %v5296
      %8525 = vmatmul.mubr.f32.gmra.mxu0 %v4891
      %v8526 = vpop.f32.mrf.mxu0
      %v8527 = vadd.f32 0.0, %v8526
      %v8528 = vpop.f32.mrf.mxu0
      %8529 = vmatprep.mubr.f32.mxu0 %v5313
      %8530 = vmatmul.mubr.f32.gmra.mxu0 %v4908
      %v8531 = vpop.f32.mrf.mxu0
      %v8532 = vadd.f32 0.0, %v8531
      %v8533 = vpop.f32.mrf.mxu0
      %8534 = vmatprep.mubr.f32.mxu0 %v5330
      %8535 = vmatmul.mubr.f32.gmra.mxu0 %v4925
      %v8536 = vpop.f32.mrf.mxu0
      %v8537 = vadd.f32 0.0, %v8536
      %v8538 = vpop.f32.mrf.mxu0
      %8539 = vmatprep.mubr.f32.mxu0 %v5347
      %8540 = vmatmul.mubr.f32.gmra.mxu0 %v4942
      %v8541 = vpop.f32.mrf.mxu0
      %v8542 = vadd.f32 0.0, %v8541
      %v8543 = vpop.f32.mrf.mxu0
      %8544 = vmatprep.mubr.f32.mxu0 %v5364
      %8545 = vmatmul.mubr.f32.gmra.mxu0 %v4959
      %v8546 = vpop.f32.mrf.mxu0
      %v8547 = vadd.f32 0.0, %v8546
      %v8548 = vpop.f32.mrf.mxu0
      %8549 = vmatprep.mubr.f32.mxu0 %v5381
      %8550 = vmatmul.mubr.f32.gmra.mxu0 %v4976
      %v8551 = vpop.f32.mrf.mxu0
      %v8552 = vadd.f32 0.0, %v8551
      %v8553 = vpop.f32.mrf.mxu0
      %8554 = vmatprep.mubr.f32.mxu0 %v5398
      %8555 = vmatmul.mubr.f32.gmra.mxu0 %v4993
      %v8556 = vpop.f32.mrf.mxu0
      %v8557 = vadd.f32 0.0, %v8556
      %v8558 = vpop.f32.mrf.mxu0
      %8559 = vmatprep.mubr.f32.mxu0 %v5415
      %8560 = vmatmul.mubr.f32.gmra.mxu0 %v5010
      %v8561 = vpop.f32.mrf.mxu0
      %v8562 = vadd.f32 0.0, %v8561
      %v8563 = vpop.f32.mrf.mxu0
      %8564 = vmatprep.mubr.f32.mxu0 %v5432
      %8565 = vmatmul.mubr.f32.gmra.mxu0 %v5027
      %v8566 = vpop.f32.mrf.mxu0
      %v8567 = vadd.f32 0.0, %v8566
      %v8568 = vpop.f32.mrf.mxu0
      %8569 = vmatprep.mubr.f32.mxu0 %v5449
      %8570 = vmatmul.mubr.f32.gmra.mxu0 %v5044
      %v8571 = vpop.f32.mrf.mxu0
      %v8572 = vadd.f32 0.0, %v8571
      %v8573 = vpop.f32.mrf.mxu0
      %8574 = vmatprep.mubr.f32.mxu0 %v5466
      %8575 = vmatmul.mubr.f32.gmra.mxu0 %v5061
      %v8576 = vpop.f32.mrf.mxu0
      %v8577 = vadd.f32 0.0, %v8576
      %v8578 = vpop.f32.mrf.mxu0
      %8579 = vmatprep.mubr.f32.mxu0 %v5483
      %8580 = vmatmul.mubr.f32.gmra.mxu0 %v5078
      %v8581 = vpop.f32.mrf.mxu0
      %v8582 = vadd.f32 0.0, %v8581
      %v8583 = vpop.f32.mrf.mxu0
      %8584 = vmatprep.mubr.f32.mxu0 %v5500
      %8585 = vmatmul.mubr.f32.gmra.mxu0 %v5095
      %v8586 = vpop.f32.mrf.mxu0
      %v8587 = vadd.f32 0.0, %v8586
      %v8588 = vpop.f32.mrf.mxu0
      %8589 = vmatprep.mubr.f32.mxu0 %v5517
      %8590 = vmatmul.mubr.f32.gmra.mxu0 %v5112
      %v8591 = vpop.f32.mrf.mxu0
      %v8592 = vadd.f32 0.0, %v8591
      %v8593 = vpop.f32.mrf.mxu0
      %8594 = vmatprep.mubr.f32.mxu0 %v5534
      %8595 = vmatmul.mubr.f32.gmra.mxu0 %v5129
      %v8596 = vpop.f32.mrf.mxu0
      %v8597 = vadd.f32 0.0, %v8596
      %v8598 = vpop.f32.mrf.mxu0
      %8599 = vmatprep.mubr.f32.mxu0 %v5551
      %8600 = vmatmul.mubr.f32.gmra.mxu0 %v5146
      %v8601 = vpop.f32.mrf.mxu0
      %v8602 = vadd.f32 0.0, %v8601
      %v8603 = vpop.f32.mrf.mxu0
      %8604 = vmatprep.mubr.f32.mxu0 %v5568
      %8605 = vmatmul.mubr.f32.gmra.mxu0 %v5163
      %v8606 = vpop.f32.mrf.mxu0
      %v8607 = vadd.f32 0.0, %v8606
      %v8608 = vpop.f32.mrf.mxu0
      %8609 = vmatprep.mubr.f32.mxu0 %v5576
      %8610 = vmatmul.mubr.f32.gmra.mxu0 %v5171
      %v8611 = vpop.f32.mrf.mxu0
      %v8612 = vadd.f32 0.0, %v8611
      %v8613 = vpop.f32.mrf.mxu0
      %8614 = vdwg.mxu0
      %8615 = vmatprep.subr.mxu0 0.0
      %8616 = vmatpush1.msra.mxu0 %v461
      %8617 = vmatprep.subr.mxu0 0.0
      %8618 = vmatpush1.msra.mxu0 %v460
      %8619 = vmatprep.subr.mxu0 0.0
      %8620 = vmatpush1.msra.mxu0 %v459
      %8621 = vmatprep.subr.mxu0 0.0
      %8622 = vmatpush1.msra.mxu0 %v458
      %8623 = vmatprep.subr.mxu0 0.0
      %8624 = vmatpush1.msra.mxu0 %v457
      %8625 = vmatprep.subr.mxu0 0.0
      %8626 = vmatpush1.msra.mxu0 %v456
      %8627 = vmatprep.subr.mxu0 0.0
      %8628 = vmatpush1.msra.mxu0 %v455
      %8629 = vmatprep.subr.mxu0 0.0
      %8630 = vmatpush1.msra.mxu0 %v454
      %8631 = vmatprep.subr.mxu0 0.0
      %8632 = vmatpush1.msra.mxu0 %v453
      %8633 = vmatprep.subr.mxu0 0.0
      %8634 = vmatpush1.msra.mxu0 %v452
      %8635 = vmatprep.subr.mxu0 0.0
      %8636 = vmatpush1.msra.mxu0 %v451
      %8637 = vmatprep.subr.mxu0 0.0
      %8638 = vmatpush1.msra.mxu0 %v450
      %8639 = vmatprep.subr.mxu0 0.0
      %8640 = vmatpush1.msra.mxu0 %v449
      %8641 = vmatprep.subr.mxu0 0.0
      %8642 = vmatpush1.msra.mxu0 %v448
      %8643 = vmatprep.subr.mxu0 0.0
      %8644 = vmatpush1.msra.mxu0 %v447
      %8645 = vmatprep.subr.mxu0 0.0
      %8646 = vmatpush1.msra.mxu0 %v446
      %8647 = vmatprep.subr.mxu0 0.0
      %8648 = vmatpush2.msra.mxu0 %v477
      %8649 = vmatprep.subr.mxu0 0.0
      %8650 = vmatpush2.msra.mxu0 %v476
      %8651 = vmatprep.subr.mxu0 0.0
      %8652 = vmatpush2.msra.mxu0 %v475
      %8653 = vmatprep.subr.mxu0 0.0
      %8654 = vmatpush2.msra.mxu0 %v474
      %8655 = vmatprep.subr.mxu0 0.0
      %8656 = vmatpush2.msra.mxu0 %v473
      %8657 = vmatprep.subr.mxu0 0.0
      %8658 = vmatpush2.msra.mxu0 %v472
      %8659 = vmatprep.subr.mxu0 0.0
      %8660 = vmatpush2.msra.mxu0 %v471
      %8661 = vmatprep.subr.mxu0 0.0
      %8662 = vmatpush2.msra.mxu0 %v470
      %8663 = vmatprep.subr.mxu0 0.0
      %8664 = vmatpush2.msra.mxu0 %v469
      %8665 = vmatprep.subr.mxu0 0.0
      %8666 = vmatpush2.msra.mxu0 %v468
      %8667 = vmatprep.subr.mxu0 0.0
      %8668 = vmatpush2.msra.mxu0 %v467
      %8669 = vmatprep.subr.mxu0 0.0
      %8670 = vmatpush2.msra.mxu0 %v466
      %8671 = vmatprep.subr.mxu0 0.0
      %8672 = vmatpush2.msra.mxu0 %v465
      %8673 = vmatprep.subr.mxu0 0.0
      %8674 = vmatpush2.msra.mxu0 %v464
      %8675 = vmatprep.subr.mxu0 0.0
      %8676 = vmatpush2.msra.mxu0 %v463
      %8677 = vmatprep.subr.mxu0 0.0
      %8678 = vmatpush2.msra.mxu0 %v462
      %8679 = vmatprep.mubr.f32.mxu0 %v6021
      %8680 = vmatmul.mubr.f32.gmra.mxu0 %v5616
      %v8681 = vpop.f32.mrf.mxu0
      %v8682 = vadd.f32 %v8502, %v8681
      %v8683 = vpop.f32.mrf.mxu0
      %8684 = vmatprep.mubr.f32.mxu0 %v6038
      %8685 = vmatmul.mubr.f32.gmra.mxu0 %v5633
      %v8686 = vpop.f32.mrf.mxu0
      %v8687 = vadd.f32 %v8507, %v8686
      %v8688 = vpop.f32.mrf.mxu0
      %8689 = vmatprep.mubr.f32.mxu0 %v6055
      %8690 = vmatmul.mubr.f32.gmra.mxu0 %v5650
      %v8691 = vpop.f32.mrf.mxu0
      %v8692 = vadd.f32 %v8512, %v8691
      %v8693 = vpop.f32.mrf.mxu0
      %8694 = vmatprep.mubr.f32.mxu0 %v6072
      %8695 = vmatmul.mubr.f32.gmra.mxu0 %v5667
      %v8696 = vpop.f32.mrf.mxu0
      %v8697 = vadd.f32 %v8517, %v8696
      %v8698 = vpop.f32.mrf.mxu0
      %8699 = vmatprep.mubr.f32.mxu0 %v6089
      %8700 = vmatmul.mubr.f32.gmra.mxu0 %v5684
      %v8701 = vpop.f32.mrf.mxu0
      %v8702 = vadd.f32 %v8522, %v8701
      %v8703 = vpop.f32.mrf.mxu0
      %8704 = vmatprep.mubr.f32.mxu0 %v6106
      %8705 = vmatmul.mubr.f32.gmra.mxu0 %v5701
      %v8706 = vpop.f32.mrf.mxu0
      %v8707 = vadd.f32 %v8527, %v8706
      %v8708 = vpop.f32.mrf.mxu0
      %8709 = vmatprep.mubr.f32.mxu0 %v6123
      %8710 = vmatmul.mubr.f32.gmra.mxu0 %v5718
      %v8711 = vpop.f32.mrf.mxu0
      %v8712 = vadd.f32 %v8532, %v8711
      %v8713 = vpop.f32.mrf.mxu0
      %8714 = vmatprep.mubr.f32.mxu0 %v6140
      %8715 = vmatmul.mubr.f32.gmra.mxu0 %v5735
      %v8716 = vpop.f32.mrf.mxu0
      %v8717 = vadd.f32 %v8537, %v8716
      %v8718 = vpop.f32.mrf.mxu0
      %8719 = vmatprep.mubr.f32.mxu0 %v6157
      %8720 = vmatmul.mubr.f32.gmra.mxu0 %v5752
      %v8721 = vpop.f32.mrf.mxu0
      %v8722 = vadd.f32 %v8542, %v8721
      %v8723 = vpop.f32.mrf.mxu0
      %8724 = vmatprep.mubr.f32.mxu0 %v6174
      %8725 = vmatmul.mubr.f32.gmra.mxu0 %v5769
      %v8726 = vpop.f32.mrf.mxu0
      %v8727 = vadd.f32 %v8547, %v8726
      %v8728 = vpop.f32.mrf.mxu0
      %8729 = vmatprep.mubr.f32.mxu0 %v6191
      %8730 = vmatmul.mubr.f32.gmra.mxu0 %v5786
      %v8731 = vpop.f32.mrf.mxu0
      %v8732 = vadd.f32 %v8552, %v8731
      %v8733 = vpop.f32.mrf.mxu0
      %8734 = vmatprep.mubr.f32.mxu0 %v6208
      %8735 = vmatmul.mubr.f32.gmra.mxu0 %v5803
      %v8736 = vpop.f32.mrf.mxu0
      %v8737 = vadd.f32 %v8557, %v8736
      %v8738 = vpop.f32.mrf.mxu0
      %8739 = vmatprep.mubr.f32.mxu0 %v6225
      %8740 = vmatmul.mubr.f32.gmra.mxu0 %v5820
      %v8741 = vpop.f32.mrf.mxu0
      %v8742 = vadd.f32 %v8562, %v8741
      %v8743 = vpop.f32.mrf.mxu0
      %8744 = vmatprep.mubr.f32.mxu0 %v6242
      %8745 = vmatmul.mubr.f32.gmra.mxu0 %v5837
      %v8746 = vpop.f32.mrf.mxu0
      %v8747 = vadd.f32 %v8567, %v8746
      %v8748 = vpop.f32.mrf.mxu0
      %8749 = vmatprep.mubr.f32.mxu0 %v6259
      %8750 = vmatmul.mubr.f32.gmra.mxu0 %v5854
      %v8751 = vpop.f32.mrf.mxu0
      %v8752 = vadd.f32 %v8572, %v8751
      %v8753 = vpop.f32.mrf.mxu0
      %8754 = vmatprep.mubr.f32.mxu0 %v6276
      %8755 = vmatmul.mubr.f32.gmra.mxu0 %v5871
      %v8756 = vpop.f32.mrf.mxu0
      %v8757 = vadd.f32 %v8577, %v8756
      %v8758 = vpop.f32.mrf.mxu0
      %8759 = vmatprep.mubr.f32.mxu0 %v6293
      %8760 = vmatmul.mubr.f32.gmra.mxu0 %v5888
      %v8761 = vpop.f32.mrf.mxu0
      %v8762 = vadd.f32 %v8582, %v8761
      %v8763 = vpop.f32.mrf.mxu0
      %8764 = vmatprep.mubr.f32.mxu0 %v6310
      %8765 = vmatmul.mubr.f32.gmra.mxu0 %v5905
      %v8766 = vpop.f32.mrf.mxu0
      %v8767 = vadd.f32 %v8587, %v8766
      %v8768 = vpop.f32.mrf.mxu0
      %8769 = vmatprep.mubr.f32.mxu0 %v6327
      %8770 = vmatmul.mubr.f32.gmra.mxu0 %v5922
      %v8771 = vpop.f32.mrf.mxu0
      %v8772 = vadd.f32 %v8592, %v8771
      %v8773 = vpop.f32.mrf.mxu0
      %8774 = vmatprep.mubr.f32.mxu0 %v6344
      %8775 = vmatmul.mubr.f32.gmra.mxu0 %v5939
      %v8776 = vpop.f32.mrf.mxu0
      %v8777 = vadd.f32 %v8597, %v8776
      %v8778 = vpop.f32.mrf.mxu0
      %8779 = vmatprep.mubr.f32.mxu0 %v6361
      %8780 = vmatmul.mubr.f32.gmra.mxu0 %v5956
      %v8781 = vpop.f32.mrf.mxu0
      %v8782 = vadd.f32 %v8602, %v8781
      %v8783 = vpop.f32.mrf.mxu0
      %8784 = vmatprep.mubr.f32.mxu0 %v6378
      %8785 = vmatmul.mubr.f32.gmra.mxu0 %v5973
      %v8786 = vpop.f32.mrf.mxu0
      %v8787 = vadd.f32 %v8607, %v8786
      %v8788 = vpop.f32.mrf.mxu0
      %8789 = vmatprep.mubr.f32.mxu0 %v6386
      %8790 = vmatmul.mubr.f32.gmra.mxu0 %v5981
      %v8791 = vpop.f32.mrf.mxu0
      %v8792 = vadd.f32 %v8612, %v8791
      %v8793 = vpop.f32.mrf.mxu0
      %8794 = vdwg.mxu0
      %8795 = vmatprep.subr.mxu0 0.0
      %8796 = vmatpush1.msra.mxu0 %v493
      %8797 = vmatprep.subr.mxu0 0.0
      %8798 = vmatpush1.msra.mxu0 %v492
      %8799 = vmatprep.subr.mxu0 0.0
      %8800 = vmatpush1.msra.mxu0 %v491
      %8801 = vmatprep.subr.mxu0 0.0
      %8802 = vmatpush1.msra.mxu0 %v490
      %8803 = vmatprep.subr.mxu0 0.0
      %8804 = vmatpush1.msra.mxu0 %v489
      %8805 = vmatprep.subr.mxu0 0.0
      %8806 = vmatpush1.msra.mxu0 %v488
      %8807 = vmatprep.subr.mxu0 0.0
      %8808 = vmatpush1.msra.mxu0 %v487
      %8809 = vmatprep.subr.mxu0 0.0
      %8810 = vmatpush1.msra.mxu0 %v486
      %8811 = vmatprep.subr.mxu0 0.0
      %8812 = vmatpush1.msra.mxu0 %v485
      %8813 = vmatprep.subr.mxu0 0.0
      %8814 = vmatpush1.msra.mxu0 %v484
      %8815 = vmatprep.subr.mxu0 0.0
      %8816 = vmatpush1.msra.mxu0 %v483
      %8817 = vmatprep.subr.mxu0 0.0
      %8818 = vmatpush1.msra.mxu0 %v482
      %8819 = vmatprep.subr.mxu0 0.0
      %8820 = vmatpush1.msra.mxu0 %v481
      %8821 = vmatprep.subr.mxu0 0.0
      %8822 = vmatpush1.msra.mxu0 %v480
      %8823 = vmatprep.subr.mxu0 0.0
      %8824 = vmatpush1.msra.mxu0 %v479
      %8825 = vmatprep.subr.mxu0 0.0
      %8826 = vmatpush1.msra.mxu0 %v478
      %8827 = vmatprep.subr.mxu0 0.0
      %8828 = vmatpush2.msra.mxu0 %v509
      %8829 = vmatprep.subr.mxu0 0.0
      %8830 = vmatpush2.msra.mxu0 %v508
      %8831 = vmatprep.subr.mxu0 0.0
      %8832 = vmatpush2.msra.mxu0 %v507
      %8833 = vmatprep.subr.mxu0 0.0
      %8834 = vmatpush2.msra.mxu0 %v506
      %8835 = vmatprep.subr.mxu0 0.0
      %8836 = vmatpush2.msra.mxu0 %v505
      %8837 = vmatprep.subr.mxu0 0.0
      %8838 = vmatpush2.msra.mxu0 %v504
      %8839 = vmatprep.subr.mxu0 0.0
      %8840 = vmatpush2.msra.mxu0 %v503
      %8841 = vmatprep.subr.mxu0 0.0
      %8842 = vmatpush2.msra.mxu0 %v502
      %8843 = vmatprep.subr.mxu0 0.0
      %8844 = vmatpush2.msra.mxu0 %v501
      %8845 = vmatprep.subr.mxu0 0.0
      %8846 = vmatpush2.msra.mxu0 %v500
      %8847 = vmatprep.subr.mxu0 0.0
      %8848 = vmatpush2.msra.mxu0 %v499
      %8849 = vmatprep.subr.mxu0 0.0
      %8850 = vmatpush2.msra.mxu0 %v498
      %8851 = vmatprep.subr.mxu0 0.0
      %8852 = vmatpush2.msra.mxu0 %v497
      %8853 = vmatprep.subr.mxu0 0.0
      %8854 = vmatpush2.msra.mxu0 %v496
      %8855 = vmatprep.subr.mxu0 0.0
      %8856 = vmatpush2.msra.mxu0 %v495
      %8857 = vmatprep.subr.mxu0 0.0
      %8858 = vmatpush2.msra.mxu0 %v494
      %8859 = vmatprep.mubr.f32.mxu0 %v6831
      %8860 = vmatmul.mubr.f32.gmra.mxu0 %v6426
      %v8861 = vpop.f32.mrf.mxu0
      %v8862 = vadd.f32 %v8682, %v8861
      %v8863 = vpop.f32.mrf.mxu0
      %8864 = vmatprep.mubr.f32.mxu0 %v6848
      %8865 = vmatmul.mubr.f32.gmra.mxu0 %v6443
      %v8866 = vpop.f32.mrf.mxu0
      %v8867 = vadd.f32 %v8687, %v8866
      %v8868 = vpop.f32.mrf.mxu0
      %8869 = vmatprep.mubr.f32.mxu0 %v6865
      %8870 = vmatmul.mubr.f32.gmra.mxu0 %v6460
      %v8871 = vpop.f32.mrf.mxu0
      %v8872 = vadd.f32 %v8692, %v8871
      %v8873 = vpop.f32.mrf.mxu0
      %8874 = vmatprep.mubr.f32.mxu0 %v6882
      %8875 = vmatmul.mubr.f32.gmra.mxu0 %v6477
      %v8876 = vpop.f32.mrf.mxu0
      %v8877 = vadd.f32 %v8697, %v8876
      %v8878 = vpop.f32.mrf.mxu0
      %8879 = vmatprep.mubr.f32.mxu0 %v6899
      %8880 = vmatmul.mubr.f32.gmra.mxu0 %v6494
      %v8881 = vpop.f32.mrf.mxu0
      %v8882 = vadd.f32 %v8702, %v8881
      %v8883 = vpop.f32.mrf.mxu0
      %8884 = vmatprep.mubr.f32.mxu0 %v6916
      %8885 = vmatmul.mubr.f32.gmra.mxu0 %v6511
      %v8886 = vpop.f32.mrf.mxu0
      %v8887 = vadd.f32 %v8707, %v8886
      %v8888 = vpop.f32.mrf.mxu0
      %8889 = vmatprep.mubr.f32.mxu0 %v6933
      %8890 = vmatmul.mubr.f32.gmra.mxu0 %v6528
      %v8891 = vpop.f32.mrf.mxu0
      %v8892 = vadd.f32 %v8712, %v8891
      %v8893 = vpop.f32.mrf.mxu0
      %8894 = vmatprep.mubr.f32.mxu0 %v6950
      %8895 = vmatmul.mubr.f32.gmra.mxu0 %v6545
      %v8896 = vpop.f32.mrf.mxu0
      %v8897 = vadd.f32 %v8717, %v8896
      %v8898 = vpop.f32.mrf.mxu0
      %8899 = vmatprep.mubr.f32.mxu0 %v6967
      %8900 = vmatmul.mubr.f32.gmra.mxu0 %v6562
      %v8901 = vpop.f32.mrf.mxu0
      %v8902 = vadd.f32 %v8722, %v8901
      %v8903 = vpop.f32.mrf.mxu0
      %8904 = vmatprep.mubr.f32.mxu0 %v6984
      %8905 = vmatmul.mubr.f32.gmra.mxu0 %v6579
      %v8906 = vpop.f32.mrf.mxu0
      %v8907 = vadd.f32 %v8727, %v8906
      %v8908 = vpop.f32.mrf.mxu0
      %8909 = vmatprep.mubr.f32.mxu0 %v7001
      %8910 = vmatmul.mubr.f32.gmra.mxu0 %v6596
      %v8911 = vpop.f32.mrf.mxu0
      %v8912 = vadd.f32 %v8732, %v8911
      %v8913 = vpop.f32.mrf.mxu0
      %8914 = vmatprep.mubr.f32.mxu0 %v7018
      %8915 = vmatmul.mubr.f32.gmra.mxu0 %v6613
      %v8916 = vpop.f32.mrf.mxu0
      %v8917 = vadd.f32 %v8737, %v8916
      %v8918 = vpop.f32.mrf.mxu0
      %8919 = vmatprep.mubr.f32.mxu0 %v7035
      %8920 = vmatmul.mubr.f32.gmra.mxu0 %v6630
      %v8921 = vpop.f32.mrf.mxu0
      %v8922 = vadd.f32 %v8742, %v8921
      %v8923 = vpop.f32.mrf.mxu0
      %8924 = vmatprep.mubr.f32.mxu0 %v7052
      %8925 = vmatmul.mubr.f32.gmra.mxu0 %v6647
      %v8926 = vpop.f32.mrf.mxu0
      %v8927 = vadd.f32 %v8747, %v8926
      %v8928 = vpop.f32.mrf.mxu0
      %8929 = vmatprep.mubr.f32.mxu0 %v7069
      %8930 = vmatmul.mubr.f32.gmra.mxu0 %v6664
      %v8931 = vpop.f32.mrf.mxu0
      %v8932 = vadd.f32 %v8752, %v8931
      %v8933 = vpop.f32.mrf.mxu0
      %8934 = vmatprep.mubr.f32.mxu0 %v7086
      %8935 = vmatmul.mubr.f32.gmra.mxu0 %v6681
      %v8936 = vpop.f32.mrf.mxu0
      %v8937 = vadd.f32 %v8757, %v8936
      %v8938 = vpop.f32.mrf.mxu0
      %8939 = vmatprep.mubr.f32.mxu0 %v7103
      %8940 = vmatmul.mubr.f32.gmra.mxu0 %v6698
      %v8941 = vpop.f32.mrf.mxu0
      %v8942 = vadd.f32 %v8762, %v8941
      %v8943 = vpop.f32.mrf.mxu0
      %8944 = vmatprep.mubr.f32.mxu0 %v7120
      %8945 = vmatmul.mubr.f32.gmra.mxu0 %v6715
      %v8946 = vpop.f32.mrf.mxu0
      %v8947 = vadd.f32 %v8767, %v8946
      %v8948 = vpop.f32.mrf.mxu0
      %8949 = vmatprep.mubr.f32.mxu0 %v7137
      %8950 = vmatmul.mubr.f32.gmra.mxu0 %v6732
      %v8951 = vpop.f32.mrf.mxu0
      %v8952 = vadd.f32 %v8772, %v8951
      %v8953 = vpop.f32.mrf.mxu0
      %8954 = vmatprep.mubr.f32.mxu0 %v7154
      %8955 = vmatmul.mubr.f32.gmra.mxu0 %v6749
      %v8956 = vpop.f32.mrf.mxu0
      %v8957 = vadd.f32 %v8777, %v8956
      %v8958 = vpop.f32.mrf.mxu0
      %8959 = vmatprep.mubr.f32.mxu0 %v7171
      %8960 = vmatmul.mubr.f32.gmra.mxu0 %v6766
      %v8961 = vpop.f32.mrf.mxu0
      %v8962 = vadd.f32 %v8782, %v8961
      %v8963 = vpop.f32.mrf.mxu0
      %8964 = vmatprep.mubr.f32.mxu0 %v7188
      %8965 = vmatmul.mubr.f32.gmra.mxu0 %v6783
      %v8966 = vpop.f32.mrf.mxu0
      %v8967 = vadd.f32 %v8787, %v8966
      %v8968 = vpop.f32.mrf.mxu0
      %8969 = vmatprep.mubr.f32.mxu0 %v7196
      %8970 = vmatmul.mubr.f32.gmra.mxu0 %v6791
      %v8971 = vpop.f32.mrf.mxu0
      %v8972 = vadd.f32 %v8792, %v8971
      %v8973 = vpop.f32.mrf.mxu0
      %8974 = vdwg.mxu0
      %8975 = vmatprep.subr.mxu0 0.0
      %8976 = vmatpush1.msra.mxu0 %v525
      %8977 = vmatprep.subr.mxu0 0.0
      %8978 = vmatpush1.msra.mxu0 %v524
      %8979 = vmatprep.subr.mxu0 0.0
      %8980 = vmatpush1.msra.mxu0 %v523
      %8981 = vmatprep.subr.mxu0 0.0
      %8982 = vmatpush1.msra.mxu0 %v522
      %8983 = vmatprep.subr.mxu0 0.0
      %8984 = vmatpush1.msra.mxu0 %v521
      %8985 = vmatprep.subr.mxu0 0.0
      %8986 = vmatpush1.msra.mxu0 %v520
      %8987 = vmatprep.subr.mxu0 0.0
      %8988 = vmatpush1.msra.mxu0 %v519
      %8989 = vmatprep.subr.mxu0 0.0
      %8990 = vmatpush1.msra.mxu0 %v518
      %8991 = vmatprep.subr.mxu0 0.0
      %8992 = vmatpush1.msra.mxu0 %v517
      %8993 = vmatprep.subr.mxu0 0.0
      %8994 = vmatpush1.msra.mxu0 %v516
      %8995 = vmatprep.subr.mxu0 0.0
      %8996 = vmatpush1.msra.mxu0 %v515
      %8997 = vmatprep.subr.mxu0 0.0
      %8998 = vmatpush1.msra.mxu0 %v514
      %8999 = vmatprep.subr.mxu0 0.0
      %9000 = vmatpush1.msra.mxu0 %v513
      %9001 = vmatprep.subr.mxu0 0.0
      %9002 = vmatpush1.msra.mxu0 %v512
      %9003 = vmatprep.subr.mxu0 0.0
      %9004 = vmatpush1.msra.mxu0 %v511
      %9005 = vmatprep.subr.mxu0 0.0
      %9006 = vmatpush1.msra.mxu0 %v510
      %9007 = vmatprep.subr.mxu0 0.0
      %9008 = vmatpush2.msra.mxu0 %v541
      %9009 = vmatprep.subr.mxu0 0.0
      %9010 = vmatpush2.msra.mxu0 %v540
      %9011 = vmatprep.subr.mxu0 0.0
      %9012 = vmatpush2.msra.mxu0 %v539
      %9013 = vmatprep.subr.mxu0 0.0
      %9014 = vmatpush2.msra.mxu0 %v538
      %9015 = vmatprep.subr.mxu0 0.0
      %9016 = vmatpush2.msra.mxu0 %v537
      %9017 = vmatprep.subr.mxu0 0.0
      %9018 = vmatpush2.msra.mxu0 %v536
      %9019 = vmatprep.subr.mxu0 0.0
      %9020 = vmatpush2.msra.mxu0 %v535
      %9021 = vmatprep.subr.mxu0 0.0
      %9022 = vmatpush2.msra.mxu0 %v534
      %9023 = vmatprep.subr.mxu0 0.0
      %9024 = vmatpush2.msra.mxu0 %v533
      %9025 = vmatprep.subr.mxu0 0.0
      %9026 = vmatpush2.msra.mxu0 %v532
      %9027 = vmatprep.subr.mxu0 0.0
      %9028 = vmatpush2.msra.mxu0 %v531
      %9029 = vmatprep.subr.mxu0 0.0
      %9030 = vmatpush2.msra.mxu0 %v530
      %9031 = vmatprep.subr.mxu0 0.0
      %9032 = vmatpush2.msra.mxu0 %v529
      %9033 = vmatprep.subr.mxu0 0.0
      %9034 = vmatpush2.msra.mxu0 %v528
      %9035 = vmatprep.subr.mxu0 0.0
      %9036 = vmatpush2.msra.mxu0 %v527
      %9037 = vmatprep.subr.mxu0 0.0
      %9038 = vmatpush2.msra.mxu0 %v526
      %9039 = vmatprep.mubr.f32.mxu0 %v7641
      %9040 = vmatmul.mubr.f32.gmra.mxu0 %v7236
      %v9041 = vpop.f32.mrf.mxu0
      %v9042 = vadd.f32 %v8862, %v9041
      %v9043 = vpop.f32.mrf.mxu0
      %9044 = vmatprep.mubr.f32.mxu0 %v7658
      %9045 = vmatmul.mubr.f32.gmra.mxu0 %v7253
      %v9046 = vpop.f32.mrf.mxu0
      %v9047 = vadd.f32 %v8867, %v9046
      %v9048 = vpop.f32.mrf.mxu0
      %9049 = vmatprep.mubr.f32.mxu0 %v7675
      %9050 = vmatmul.mubr.f32.gmra.mxu0 %v7270
      %v9051 = vpop.f32.mrf.mxu0
      %v9052 = vadd.f32 %v8872, %v9051
      %v9053 = vpop.f32.mrf.mxu0
      %9054 = vmatprep.mubr.f32.mxu0 %v7692
      %9055 = vmatmul.mubr.f32.gmra.mxu0 %v7287
      %v9056 = vpop.f32.mrf.mxu0
      %v9057 = vadd.f32 %v8877, %v9056
      %v9058 = vpop.f32.mrf.mxu0
      %9059 = vmatprep.mubr.f32.mxu0 %v7709
      %9060 = vmatmul.mubr.f32.gmra.mxu0 %v7304
      %v9061 = vpop.f32.mrf.mxu0
      %v9062 = vadd.f32 %v8882, %v9061
      %v9063 = vpop.f32.mrf.mxu0
      %9064 = vmatprep.mubr.f32.mxu0 %v7726
      %9065 = vmatmul.mubr.f32.gmra.mxu0 %v7321
      %v9066 = vpop.f32.mrf.mxu0
      %v9067 = vadd.f32 %v8887, %v9066
      %v9068 = vpop.f32.mrf.mxu0
      %9069 = vmatprep.mubr.f32.mxu0 %v7743
      %9070 = vmatmul.mubr.f32.gmra.mxu0 %v7338
      %v9071 = vpop.f32.mrf.mxu0
      %v9072 = vadd.f32 %v8892, %v9071
      %v9073 = vpop.f32.mrf.mxu0
      %9074 = vmatprep.mubr.f32.mxu0 %v7760
      %9075 = vmatmul.mubr.f32.gmra.mxu0 %v7355
      %v9076 = vpop.f32.mrf.mxu0
      %v9077 = vadd.f32 %v8897, %v9076
      %v9078 = vpop.f32.mrf.mxu0
      %9079 = vmatprep.mubr.f32.mxu0 %v7777
      %9080 = vmatmul.mubr.f32.gmra.mxu0 %v7372
      %v9081 = vpop.f32.mrf.mxu0
      %v9082 = vadd.f32 %v8902, %v9081
      %v9083 = vpop.f32.mrf.mxu0
      %9084 = vmatprep.mubr.f32.mxu0 %v7794
      %9085 = vmatmul.mubr.f32.gmra.mxu0 %v7389
      %v9086 = vpop.f32.mrf.mxu0
      %v9087 = vadd.f32 %v8907, %v9086
      %v9088 = vpop.f32.mrf.mxu0
      %9089 = vmatprep.mubr.f32.mxu0 %v7811
      %9090 = vmatmul.mubr.f32.gmra.mxu0 %v7406
      %v9091 = vpop.f32.mrf.mxu0
      %v9092 = vadd.f32 %v8912, %v9091
      %v9093 = vpop.f32.mrf.mxu0
      %9094 = vmatprep.mubr.f32.mxu0 %v7828
      %9095 = vmatmul.mubr.f32.gmra.mxu0 %v7423
      %v9096 = vpop.f32.mrf.mxu0
      %v9097 = vadd.f32 %v8917, %v9096
      %v9098 = vpop.f32.mrf.mxu0
      %9099 = vmatprep.mubr.f32.mxu0 %v7845
      %9100 = vmatmul.mubr.f32.gmra.mxu0 %v7440
      %v9101 = vpop.f32.mrf.mxu0
      %v9102 = vadd.f32 %v8922, %v9101
      %v9103 = vpop.f32.mrf.mxu0
      %9104 = vmatprep.mubr.f32.mxu0 %v7862
      %9105 = vmatmul.mubr.f32.gmra.mxu0 %v7457
      %v9106 = vpop.f32.mrf.mxu0
      %v9107 = vadd.f32 %v8927, %v9106
      %v9108 = vpop.f32.mrf.mxu0
      %9109 = vmatprep.mubr.f32.mxu0 %v7879
      %9110 = vmatmul.mubr.f32.gmra.mxu0 %v7474
      %v9111 = vpop.f32.mrf.mxu0
      %v9112 = vadd.f32 %v8932, %v9111
      %v9113 = vpop.f32.mrf.mxu0
      %9114 = vmatprep.mubr.f32.mxu0 %v7896
      %9115 = vmatmul.mubr.f32.gmra.mxu0 %v7491
      %v9116 = vpop.f32.mrf.mxu0
      %v9117 = vadd.f32 %v8937, %v9116
      %v9118 = vpop.f32.mrf.mxu0
      %9119 = vmatprep.mubr.f32.mxu0 %v7913
      %9120 = vmatmul.mubr.f32.gmra.mxu0 %v7508
      %v9121 = vpop.f32.mrf.mxu0
      %v9122 = vadd.f32 %v8942, %v9121
      %v9123 = vpop.f32.mrf.mxu0
      %9124 = vmatprep.mubr.f32.mxu0 %v7930
      %9125 = vmatmul.mubr.f32.gmra.mxu0 %v7525
      %v9126 = vpop.f32.mrf.mxu0
      %v9127 = vadd.f32 %v8947, %v9126
      %v9128 = vpop.f32.mrf.mxu0
      %9129 = vmatprep.mubr.f32.mxu0 %v7947
      %9130 = vmatmul.mubr.f32.gmra.mxu0 %v7542
      %v9131 = vpop.f32.mrf.mxu0
      %v9132 = vadd.f32 %v8952, %v9131
      %v9133 = vpop.f32.mrf.mxu0
      %9134 = vmatprep.mubr.f32.mxu0 %v7964
      %9135 = vmatmul.mubr.f32.gmra.mxu0 %v7559
      %v9136 = vpop.f32.mrf.mxu0
      %v9137 = vadd.f32 %v8957, %v9136
      %v9138 = vpop.f32.mrf.mxu0
      %9139 = vmatprep.mubr.f32.mxu0 %v7981
      %9140 = vmatmul.mubr.f32.gmra.mxu0 %v7576
      %v9141 = vpop.f32.mrf.mxu0
      %v9142 = vadd.f32 %v8962, %v9141
      %v9143 = vpop.f32.mrf.mxu0
      %9144 = vmatprep.mubr.f32.mxu0 %v7998
      %9145 = vmatmul.mubr.f32.gmra.mxu0 %v7593
      %v9146 = vpop.f32.mrf.mxu0
      %v9147 = vadd.f32 %v8967, %v9146
      %v9148 = vpop.f32.mrf.mxu0
      %9149 = vmatprep.mubr.f32.mxu0 %v8006
      %9150 = vmatmul.mubr.f32.gmra.mxu0 %v7601
      %v9151 = vpop.f32.mrf.mxu0
      %v9152 = vadd.f32 %v8972, %v9151
      %v9153 = vpop.f32.mrf.mxu0
      %9154 = vdwg.mxu0
      %9155 = vmatprep.subr.mxu0 0.0
      %9156 = vmatpush1.msra.mxu0 %v557
      %9157 = vmatprep.subr.mxu0 0.0
      %9158 = vmatpush1.msra.mxu0 %v556
      %9159 = vmatprep.subr.mxu0 0.0
      %9160 = vmatpush1.msra.mxu0 %v555
      %9161 = vmatprep.subr.mxu0 0.0
      %9162 = vmatpush1.msra.mxu0 %v554
      %9163 = vmatprep.subr.mxu0 0.0
      %9164 = vmatpush1.msra.mxu0 %v553
      %9165 = vmatprep.subr.mxu0 0.0
      %9166 = vmatpush1.msra.mxu0 %v552
      %9167 = vmatprep.subr.mxu0 0.0
      %9168 = vmatpush1.msra.mxu0 %v551
      %9169 = vmatprep.subr.mxu0 0.0
      %9170 = vmatpush1.msra.mxu0 %v550
      %9171 = vmatprep.subr.mxu0 0.0
      %9172 = vmatpush1.msra.mxu0 %v549
      %9173 = vmatprep.subr.mxu0 0.0
      %9174 = vmatpush1.msra.mxu0 %v548
      %9175 = vmatprep.subr.mxu0 0.0
      %9176 = vmatpush1.msra.mxu0 %v547
      %9177 = vmatprep.subr.mxu0 0.0
      %9178 = vmatpush1.msra.mxu0 %v546
      %9179 = vmatprep.subr.mxu0 0.0
      %9180 = vmatpush1.msra.mxu0 %v545
      %9181 = vmatprep.subr.mxu0 0.0
      %9182 = vmatpush1.msra.mxu0 %v544
      %9183 = vmatprep.subr.mxu0 0.0
      %9184 = vmatpush1.msra.mxu0 %v543
      %9185 = vmatprep.subr.mxu0 0.0
      %9186 = vmatpush1.msra.mxu0 %v542
      %9187 = vmatprep.subr.mxu0 0.0
      %9188 = vmatpush2.msra.mxu0 0.0
      %9189 = vmatprep.subr.mxu0 0.0
      %9190 = vmatpush2.msra.mxu0 0.0
      %9191 = vmatprep.subr.mxu0 0.0
      %9192 = vmatpush2.msra.mxu0 0.0
      %9193 = vmatprep.subr.mxu0 0.0
      %9194 = vmatpush2.msra.mxu0 0.0
      %9195 = vmatprep.subr.mxu0 0.0
      %9196 = vmatpush2.msra.mxu0 0.0
      %9197 = vmatprep.subr.mxu0 0.0
      %9198 = vmatpush2.msra.mxu0 0.0
      %9199 = vmatprep.subr.mxu0 0.0
      %9200 = vmatpush2.msra.mxu0 0.0
      %9201 = vmatprep.subr.mxu0 0.0
      %9202 = vmatpush2.msra.mxu0 0.0
      %9203 = vmatprep.subr.mxu0 0.0
      %9204 = vmatpush2.msra.mxu0 0.0
      %9205 = vmatprep.subr.mxu0 0.0
      %9206 = vmatpush2.msra.mxu0 0.0
      %9207 = vmatprep.subr.mxu0 0.0
      %9208 = vmatpush2.msra.mxu0 0.0
      %9209 = vmatprep.subr.mxu0 0.0
      %9210 = vmatpush2.msra.mxu0 0.0
      %9211 = vmatprep.subr.mxu0 0.0
      %9212 = vmatpush2.msra.mxu0 0.0
      %9213 = vmatprep.subr.mxu0 0.0
      %9214 = vmatpush2.msra.mxu0 0.0
      %9215 = vmatprep.subr.mxu0 0.0
      %9216 = vmatpush2.msra.mxu0 0.0
      %9217 = vmatprep.subr.mxu0 0.0
      %9218 = vmatpush2.msra.mxu0 0.0
      %9219 = vmatprep.mubr.f32.mxu0 0.0
      %9220 = vmatmul.mubr.f32.gmra.mxu0 %v8046
      %v9221 = vpop.f32.mrf.mxu0
      %v9222 = vadd.f32 %v9042, %v9221
      %v9223 = vpop.f32.mrf.mxu0
      %9224 = vmatprep.mubr.f32.mxu0 0.0
      %9225 = vmatmul.mubr.f32.gmra.mxu0 %v8063
      %v9226 = vpop.f32.mrf.mxu0
      %v9227 = vadd.f32 %v9047, %v9226
      %v9228 = vpop.f32.mrf.mxu0
      %9229 = vmatprep.mubr.f32.mxu0 0.0
      %9230 = vmatmul.mubr.f32.gmra.mxu0 %v8080
      %v9231 = vpop.f32.mrf.mxu0
      %v9232 = vadd.f32 %v9052, %v9231
      %v9233 = vpop.f32.mrf.mxu0
      %9234 = vmatprep.mubr.f32.mxu0 0.0
      %9235 = vmatmul.mubr.f32.gmra.mxu0 %v8097
      %v9236 = vpop.f32.mrf.mxu0
      %v9237 = vadd.f32 %v9057, %v9236
      %v9238 = vpop.f32.mrf.mxu0
      %9239 = vmatprep.mubr.f32.mxu0 0.0
      %9240 = vmatmul.mubr.f32.gmra.mxu0 %v8114
      %v9241 = vpop.f32.mrf.mxu0
      %v9242 = vadd.f32 %v9062, %v9241
      %v9243 = vpop.f32.mrf.mxu0
      %9244 = vmatprep.mubr.f32.mxu0 0.0
      %9245 = vmatmul.mubr.f32.gmra.mxu0 %v8131
      %v9246 = vpop.f32.mrf.mxu0
      %v9247 = vadd.f32 %v9067, %v9246
      %v9248 = vpop.f32.mrf.mxu0
      %9249 = vmatprep.mubr.f32.mxu0 0.0
      %9250 = vmatmul.mubr.f32.gmra.mxu0 %v8148
      %v9251 = vpop.f32.mrf.mxu0
      %v9252 = vadd.f32 %v9072, %v9251
      %v9253 = vpop.f32.mrf.mxu0
      %9254 = vmatprep.mubr.f32.mxu0 0.0
      %9255 = vmatmul.mubr.f32.gmra.mxu0 %v8165
      %v9256 = vpop.f32.mrf.mxu0
      %v9257 = vadd.f32 %v9077, %v9256
      %v9258 = vpop.f32.mrf.mxu0
      %9259 = vmatprep.mubr.f32.mxu0 0.0
      %9260 = vmatmul.mubr.f32.gmra.mxu0 %v8182
      %v9261 = vpop.f32.mrf.mxu0
      %v9262 = vadd.f32 %v9082, %v9261
      %v9263 = vpop.f32.mrf.mxu0
      %9264 = vmatprep.mubr.f32.mxu0 0.0
      %9265 = vmatmul.mubr.f32.gmra.mxu0 %v8199
      %v9266 = vpop.f32.mrf.mxu0
      %v9267 = vadd.f32 %v9087, %v9266
      %v9268 = vpop.f32.mrf.mxu0
      %9269 = vmatprep.mubr.f32.mxu0 0.0
      %9270 = vmatmul.mubr.f32.gmra.mxu0 %v8216
      %v9271 = vpop.f32.mrf.mxu0
      %v9272 = vadd.f32 %v9092, %v9271
      %v9273 = vpop.f32.mrf.mxu0
      %9274 = vmatprep.mubr.f32.mxu0 0.0
      %9275 = vmatmul.mubr.f32.gmra.mxu0 %v8233
      %v9276 = vpop.f32.mrf.mxu0
      %v9277 = vadd.f32 %v9097, %v9276
      %v9278 = vpop.f32.mrf.mxu0
      %9279 = vmatprep.mubr.f32.mxu0 0.0
      %9280 = vmatmul.mubr.f32.gmra.mxu0 %v8250
      %v9281 = vpop.f32.mrf.mxu0
      %v9282 = vadd.f32 %v9102, %v9281
      %v9283 = vpop.f32.mrf.mxu0
      %9284 = vmatprep.mubr.f32.mxu0 0.0
      %9285 = vmatmul.mubr.f32.gmra.mxu0 %v8267
      %v9286 = vpop.f32.mrf.mxu0
      %v9287 = vadd.f32 %v9107, %v9286
      %v9288 = vpop.f32.mrf.mxu0
      %9289 = vmatprep.mubr.f32.mxu0 0.0
      %9290 = vmatmul.mubr.f32.gmra.mxu0 %v8284
      %v9291 = vpop.f32.mrf.mxu0
      %v9292 = vadd.f32 %v9112, %v9291
      %v9293 = vpop.f32.mrf.mxu0
      %9294 = vmatprep.mubr.f32.mxu0 0.0
      %9295 = vmatmul.mubr.f32.gmra.mxu0 %v8301
      %v9296 = vpop.f32.mrf.mxu0
      %v9297 = vadd.f32 %v9117, %v9296
      %v9298 = vpop.f32.mrf.mxu0
      %9299 = vmatprep.mubr.f32.mxu0 0.0
      %9300 = vmatmul.mubr.f32.gmra.mxu0 %v8318
      %v9301 = vpop.f32.mrf.mxu0
      %v9302 = vadd.f32 %v9122, %v9301
      %v9303 = vpop.f32.mrf.mxu0
      %9304 = vmatprep.mubr.f32.mxu0 0.0
      %9305 = vmatmul.mubr.f32.gmra.mxu0 %v8335
      %v9306 = vpop.f32.mrf.mxu0
      %v9307 = vadd.f32 %v9127, %v9306
      %v9308 = vpop.f32.mrf.mxu0
      %9309 = vmatprep.mubr.f32.mxu0 0.0
      %9310 = vmatmul.mubr.f32.gmra.mxu0 %v8352
      %v9311 = vpop.f32.mrf.mxu0
      %v9312 = vadd.f32 %v9132, %v9311
      %v9313 = vpop.f32.mrf.mxu0
      %9314 = vmatprep.mubr.f32.mxu0 0.0
      %9315 = vmatmul.mubr.f32.gmra.mxu0 %v8369
      %v9316 = vpop.f32.mrf.mxu0
      %v9317 = vadd.f32 %v9137, %v9316
      %v9318 = vpop.f32.mrf.mxu0
      %9319 = vmatprep.mubr.f32.mxu0 0.0
      %9320 = vmatmul.mubr.f32.gmra.mxu0 %v8386
      %v9321 = vpop.f32.mrf.mxu0
      %v9322 = vadd.f32 %v9142, %v9321
      %v9323 = vpop.f32.mrf.mxu0
      %9324 = vmatprep.mubr.f32.mxu0 0.0
      %9325 = vmatmul.mubr.f32.gmra.mxu0 %v8403
      %v9326 = vpop.f32.mrf.mxu0
      %v9327 = vadd.f32 %v9147, %v9326
      %v9328 = vpop.f32.mrf.mxu0
      %9329 = vmatprep.mubr.f32.mxu0 0.0
      %9330 = vmatmul.mubr.f32.gmra.mxu0 %v8411
      %v9331 = vpop.f32.mrf.mxu0
      %v9332 = vadd.f32 %v9152, %v9331
      %v9333 = vpop.f32.mrf.mxu0
      %9334 = vdwg.mxu0
      %v9335 = vld [vmem:[%s2] sm:$0x1]
      %v9337 = vlaneseq
      %v9338 = vshrl.u32 %v9337, 7
      %v9339 = vsub.s32 0, %v9338
      %v9340 = vrot.slane %v9335, %v9339
      %v9342 = vmul.f32 %v9222, %v9340
      %v9343 = vmul.f32 %v9227, %v9340
      %v9344 = vmul.f32 %v9232, %v9340
      %v9345 = vmul.f32 %v9237, %v9340
      %v9346 = vmul.f32 %v9242, %v9340
      %v9347 = vmul.f32 %v9247, %v9340
      %v9348 = vmul.f32 %v9252, %v9340
      %v9349 = vmul.f32 %v9257, %v9340
      %v9350 = vmul.f32 %v9262, %v9340
      %v9351 = vmul.f32 %v9267, %v9340
      %v9352 = vmul.f32 %v9272, %v9340
      %v9353 = vmul.f32 %v9277, %v9340
      %v9354 = vmul.f32 %v9282, %v9340
      %v9355 = vmul.f32 %v9287, %v9340
      %v9356 = vmul.f32 %v9292, %v9340
      %v9357 = vmul.f32 %v9297, %v9340
      %v9358 = vmul.f32 %v9302, %v9340
      %v9359 = vmul.f32 %v9307, %v9340
      %v9360 = vmul.f32 %v9312, %v9340
      %v9361 = vmul.f32 %v9317, %v9340
      %v9362 = vmul.f32 %v9322, %v9340
      %v9363 = vmul.f32 %v9327, %v9340
      %v9364 = vmul.f32 %v9332, %v9340
      %v9365 = vld [vmem:[%s3] sm:$0x1]
      %v9367 = vlaneseq
      %v9368 = vshrl.u32 %v9367, 7
      %v9369 = vsub.s32 0, %v9368
      %v9370 = vrot.slane %v9365, %v9369
      %v9372 = vadd.f32 %v9342, %v9370
      %v9373 = vadd.f32 %v9343, %v9370
      %v9374 = vadd.f32 %v9344, %v9370
      %v9375 = vadd.f32 %v9345, %v9370
      %v9376 = vadd.f32 %v9346, %v9370
      %v9377 = vadd.f32 %v9347, %v9370
      %v9378 = vadd.f32 %v9348, %v9370
      %v9379 = vadd.f32 %v9349, %v9370
      %v9380 = vadd.f32 %v9350, %v9370
      %v9381 = vadd.f32 %v9351, %v9370
      %v9382 = vadd.f32 %v9352, %v9370
      %v9383 = vadd.f32 %v9353, %v9370
      %v9384 = vadd.f32 %v9354, %v9370
      %v9385 = vadd.f32 %v9355, %v9370
      %v9386 = vadd.f32 %v9356, %v9370
      %v9387 = vadd.f32 %v9357, %v9370
      %v9388 = vadd.f32 %v9358, %v9370
      %v9389 = vadd.f32 %v9359, %v9370
      %v9390 = vadd.f32 %v9360, %v9370
      %v9391 = vadd.f32 %v9361, %v9370
      %v9392 = vadd.f32 %v9362, %v9370
      %v9393 = vadd.f32 %v9363, %v9370
      %v9394 = vadd.f32 %v9364, %v9370
      %v9395 = vmax.f32 %v9372, 0.0
      %v9396 = vmax.f32 %v9373, 0.0
      %v9397 = vmax.f32 %v9374, 0.0
      %v9398 = vmax.f32 %v9375, 0.0
      %v9399 = vmax.f32 %v9376, 0.0
      %v9400 = vmax.f32 %v9377, 0.0
      %v9401 = vmax.f32 %v9378, 0.0
      %v9402 = vmax.f32 %v9379, 0.0
      %v9403 = vmax.f32 %v9380, 0.0
      %v9404 = vmax.f32 %v9381, 0.0
      %v9405 = vmax.f32 %v9382, 0.0
      %v9406 = vmax.f32 %v9383, 0.0
      %v9407 = vmax.f32 %v9384, 0.0
      %v9408 = vmax.f32 %v9385, 0.0
      %v9409 = vmax.f32 %v9386, 0.0
      %v9410 = vmax.f32 %v9387, 0.0
      %v9411 = vmax.f32 %v9388, 0.0
      %v9412 = vmax.f32 %v9389, 0.0
      %v9413 = vmax.f32 %v9390, 0.0
      %v9414 = vmax.f32 %v9391, 0.0
      %v9415 = vmax.f32 %v9392, 0.0
      %v9416 = vmax.f32 %v9393, 0.0
      %v9417 = vmax.f32 %v9394, 0.0
      %v9441 = vcombine.high %v9395, %v9395
      %v9443 = vunpack.c.l.s4 1983009808
      %v9444 = vunpack.c.0.s8 %v9443
      %v9445 = vlaneseq
      %v9446 = vshrl.u32 %v9445, 7
      %v9447 = vsub.s32 %v9444, %v9446
      %v9448 = vrot.slane %v9395, %v9447
      %v9450 = vunpack.c.l.s4 1983009808
      %v9451 = vunpack.c.0.s8 %v9450
      %v9452 = vlaneseq
      %v9453 = vshrl.u32 %v9452, 7
      %v9454 = vsub.s32 %v9451, %v9453
      %v9455 = vrot.slane %v9441, %v9454
      %v9456 = vcombine.high %v9448, %v9448
      %v9457 = vcombine.high %v9455, %v9455
      %v9458 = vcombine.high %v9396, %v9396
      %v9460 = vunpack.c.l.s4 1983009808
      %v9461 = vunpack.c.0.s8 %v9460
      %v9462 = vlaneseq
      %v9463 = vshrl.u32 %v9462, 7
      %v9464 = vsub.s32 %v9461, %v9463
      %v9465 = vrot.slane %v9396, %v9464
      %v9467 = vunpack.c.l.s4 1983009808
      %v9468 = vunpack.c.0.s8 %v9467
      %v9469 = vlaneseq
      %v9470 = vshrl.u32 %v9469, 7
      %v9471 = vsub.s32 %v9468, %v9470
      %v9472 = vrot.slane %v9458, %v9471
      %v9473 = vcombine.high %v9465, %v9465
      %v9474 = vcombine.high %v9472, %v9472
      %v9475 = vcombine.high %v9397, %v9397
      %v9477 = vunpack.c.l.s4 1983009808
      %v9478 = vunpack.c.0.s8 %v9477
      %v9479 = vlaneseq
      %v9480 = vshrl.u32 %v9479, 7
      %v9481 = vsub.s32 %v9478, %v9480
      %v9482 = vrot.slane %v9397, %v9481
      %v9484 = vunpack.c.l.s4 1983009808
      %v9485 = vunpack.c.0.s8 %v9484
      %v9486 = vlaneseq
      %v9487 = vshrl.u32 %v9486, 7
      %v9488 = vsub.s32 %v9485, %v9487
      %v9489 = vrot.slane %v9475, %v9488
      %v9490 = vcombine.high %v9482, %v9482
      %v9491 = vcombine.high %v9489, %v9489
      %v9492 = vcombine.high %v9398, %v9398
      %v9494 = vunpack.c.l.s4 1983009808
      %v9495 = vunpack.c.0.s8 %v9494
      %v9496 = vlaneseq
      %v9497 = vshrl.u32 %v9496, 7
      %v9498 = vsub.s32 %v9495, %v9497
      %v9499 = vrot.slane %v9398, %v9498
      %v9501 = vunpack.c.l.s4 1983009808
      %v9502 = vunpack.c.0.s8 %v9501
      %v9503 = vlaneseq
      %v9504 = vshrl.u32 %v9503, 7
      %v9505 = vsub.s32 %v9502, %v9504
      %v9506 = vrot.slane %v9492, %v9505
      %v9507 = vcombine.high %v9499, %v9499
      %v9508 = vcombine.high %v9506, %v9506
      %v9509 = vcombine.high %v9399, %v9399
      %v9511 = vunpack.c.l.s4 1983009808
      %v9512 = vunpack.c.0.s8 %v9511
      %v9513 = vlaneseq
      %v9514 = vshrl.u32 %v9513, 7
      %v9515 = vsub.s32 %v9512, %v9514
      %v9516 = vrot.slane %v9399, %v9515
      %v9518 = vunpack.c.l.s4 1983009808
      %v9519 = vunpack.c.0.s8 %v9518
      %v9520 = vlaneseq
      %v9521 = vshrl.u32 %v9520, 7
      %v9522 = vsub.s32 %v9519, %v9521
      %v9523 = vrot.slane %v9509, %v9522
      %v9524 = vcombine.high %v9516, %v9516
      %v9525 = vcombine.high %v9523, %v9523
      %v9526 = vcombine.high %v9400, %v9400
      %v9528 = vunpack.c.l.s4 1983009808
      %v9529 = vunpack.c.0.s8 %v9528
      %v9530 = vlaneseq
      %v9531 = vshrl.u32 %v9530, 7
      %v9532 = vsub.s32 %v9529, %v9531
      %v9533 = vrot.slane %v9400, %v9532
      %v9535 = vunpack.c.l.s4 1983009808
      %v9536 = vunpack.c.0.s8 %v9535
      %v9537 = vlaneseq
      %v9538 = vshrl.u32 %v9537, 7
      %v9539 = vsub.s32 %v9536, %v9538
      %v9540 = vrot.slane %v9526, %v9539
      %v9541 = vcombine.high %v9533, %v9533
      %v9542 = vcombine.high %v9540, %v9540
      %v9543 = vcombine.high %v9401, %v9401
      %v9545 = vunpack.c.l.s4 1983009808
      %v9546 = vunpack.c.0.s8 %v9545
      %v9547 = vlaneseq
      %v9548 = vshrl.u32 %v9547, 7
      %v9549 = vsub.s32 %v9546, %v9548
      %v9550 = vrot.slane %v9401, %v9549
      %v9552 = vunpack.c.l.s4 1983009808
      %v9553 = vunpack.c.0.s8 %v9552
      %v9554 = vlaneseq
      %v9555 = vshrl.u32 %v9554, 7
      %v9556 = vsub.s32 %v9553, %v9555
      %v9557 = vrot.slane %v9543, %v9556
      %v9558 = vcombine.high %v9550, %v9550
      %v9559 = vcombine.high %v9557, %v9557
      %v9560 = vcombine.high %v9402, %v9402
      %v9562 = vunpack.c.l.s4 1983009808
      %v9563 = vunpack.c.0.s8 %v9562
      %v9564 = vlaneseq
      %v9565 = vshrl.u32 %v9564, 7
      %v9566 = vsub.s32 %v9563, %v9565
      %v9567 = vrot.slane %v9402, %v9566
      %v9569 = vunpack.c.l.s4 1983009808
      %v9570 = vunpack.c.0.s8 %v9569
      %v9571 = vlaneseq
      %v9572 = vshrl.u32 %v9571, 7
      %v9573 = vsub.s32 %v9570, %v9572
      %v9574 = vrot.slane %v9560, %v9573
      %v9575 = vcombine.high %v9567, %v9567
      %v9576 = vcombine.high %v9574, %v9574
      %v9577 = vcombine.high %v9403, %v9403
      %v9579 = vunpack.c.l.s4 1983009808
      %v9580 = vunpack.c.0.s8 %v9579
      %v9581 = vlaneseq
      %v9582 = vshrl.u32 %v9581, 7
      %v9583 = vsub.s32 %v9580, %v9582
      %v9584 = vrot.slane %v9403, %v9583
      %v9586 = vunpack.c.l.s4 1983009808
      %v9587 = vunpack.c.0.s8 %v9586
      %v9588 = vlaneseq
      %v9589 = vshrl.u32 %v9588, 7
      %v9590 = vsub.s32 %v9587, %v9589
      %v9591 = vrot.slane %v9577, %v9590
      %v9592 = vcombine.high %v9584, %v9584
      %v9593 = vcombine.high %v9591, %v9591
      %v9594 = vcombine.high %v9404, %v9404
      %v9596 = vunpack.c.l.s4 1983009808
      %v9597 = vunpack.c.0.s8 %v9596
      %v9598 = vlaneseq
      %v9599 = vshrl.u32 %v9598, 7
      %v9600 = vsub.s32 %v9597, %v9599
      %v9601 = vrot.slane %v9404, %v9600
      %v9603 = vunpack.c.l.s4 1983009808
      %v9604 = vunpack.c.0.s8 %v9603
      %v9605 = vlaneseq
      %v9606 = vshrl.u32 %v9605, 7
      %v9607 = vsub.s32 %v9604, %v9606
      %v9608 = vrot.slane %v9594, %v9607
      %v9609 = vcombine.high %v9601, %v9601
      %v9610 = vcombine.high %v9608, %v9608
      %v9611 = vcombine.high %v9405, %v9405
      %v9613 = vunpack.c.l.s4 1983009808
      %v9614 = vunpack.c.0.s8 %v9613
      %v9615 = vlaneseq
      %v9616 = vshrl.u32 %v9615, 7
      %v9617 = vsub.s32 %v9614, %v9616
      %v9618 = vrot.slane %v9405, %v9617
      %v9620 = vunpack.c.l.s4 1983009808
      %v9621 = vunpack.c.0.s8 %v9620
      %v9622 = vlaneseq
      %v9623 = vshrl.u32 %v9622, 7
      %v9624 = vsub.s32 %v9621, %v9623
      %v9625 = vrot.slane %v9611, %v9624
      %v9626 = vcombine.high %v9618, %v9618
      %v9627 = vcombine.high %v9625, %v9625
      %v9628 = vcombine.high %v9406, %v9406
      %v9630 = vunpack.c.l.s4 1983009808
      %v9631 = vunpack.c.0.s8 %v9630
      %v9632 = vlaneseq
      %v9633 = vshrl.u32 %v9632, 7
      %v9634 = vsub.s32 %v9631, %v9633
      %v9635 = vrot.slane %v9406, %v9634
      %v9637 = vunpack.c.l.s4 1983009808
      %v9638 = vunpack.c.0.s8 %v9637
      %v9639 = vlaneseq
      %v9640 = vshrl.u32 %v9639, 7
      %v9641 = vsub.s32 %v9638, %v9640
      %v9642 = vrot.slane %v9628, %v9641
      %v9643 = vcombine.high %v9635, %v9635
      %v9644 = vcombine.high %v9642, %v9642
      %v9645 = vcombine.high %v9407, %v9407
      %v9647 = vunpack.c.l.s4 1983009808
      %v9648 = vunpack.c.0.s8 %v9647
      %v9649 = vlaneseq
      %v9650 = vshrl.u32 %v9649, 7
      %v9651 = vsub.s32 %v9648, %v9650
      %v9652 = vrot.slane %v9407, %v9651
      %v9654 = vunpack.c.l.s4 1983009808
      %v9655 = vunpack.c.0.s8 %v9654
      %v9656 = vlaneseq
      %v9657 = vshrl.u32 %v9656, 7
      %v9658 = vsub.s32 %v9655, %v9657
      %v9659 = vrot.slane %v9645, %v9658
      %v9660 = vcombine.high %v9652, %v9652
      %v9661 = vcombine.high %v9659, %v9659
      %v9662 = vcombine.high %v9408, %v9408
      %v9664 = vunpack.c.l.s4 1983009808
      %v9665 = vunpack.c.0.s8 %v9664
      %v9666 = vlaneseq
      %v9667 = vshrl.u32 %v9666, 7
      %v9668 = vsub.s32 %v9665, %v9667
      %v9669 = vrot.slane %v9408, %v9668
      %v9671 = vunpack.c.l.s4 1983009808
      %v9672 = vunpack.c.0.s8 %v9671
      %v9673 = vlaneseq
      %v9674 = vshrl.u32 %v9673, 7
      %v9675 = vsub.s32 %v9672, %v9674
      %v9676 = vrot.slane %v9662, %v9675
      %v9677 = vcombine.high %v9669, %v9669
      %v9678 = vcombine.high %v9676, %v9676
      %v9679 = vcombine.high %v9409, %v9409
      %v9681 = vunpack.c.l.s4 1983009808
      %v9682 = vunpack.c.0.s8 %v9681
      %v9683 = vlaneseq
      %v9684 = vshrl.u32 %v9683, 7
      %v9685 = vsub.s32 %v9682, %v9684
      %v9686 = vrot.slane %v9409, %v9685
      %v9688 = vunpack.c.l.s4 1983009808
      %v9689 = vunpack.c.0.s8 %v9688
      %v9690 = vlaneseq
      %v9691 = vshrl.u32 %v9690, 7
      %v9692 = vsub.s32 %v9689, %v9691
      %v9693 = vrot.slane %v9679, %v9692
      %v9694 = vcombine.high %v9686, %v9686
      %v9695 = vcombine.high %v9693, %v9693
      %v9696 = vcombine.high %v9410, %v9410
      %v9698 = vunpack.c.l.s4 1983009808
      %v9699 = vunpack.c.0.s8 %v9698
      %v9700 = vlaneseq
      %v9701 = vshrl.u32 %v9700, 7
      %v9702 = vsub.s32 %v9699, %v9701
      %v9703 = vrot.slane %v9410, %v9702
      %v9705 = vunpack.c.l.s4 1983009808
      %v9706 = vunpack.c.0.s8 %v9705
      %v9707 = vlaneseq
      %v9708 = vshrl.u32 %v9707, 7
      %v9709 = vsub.s32 %v9706, %v9708
      %v9710 = vrot.slane %v9696, %v9709
      %v9711 = vcombine.high %v9703, %v9703
      %v9712 = vcombine.high %v9710, %v9710
      %v9713 = vcombine.high %v9411, %v9411
      %v9715 = vunpack.c.l.s4 1983009808
      %v9716 = vunpack.c.0.s8 %v9715
      %v9717 = vlaneseq
      %v9718 = vshrl.u32 %v9717, 7
      %v9719 = vsub.s32 %v9716, %v9718
      %v9720 = vrot.slane %v9411, %v9719
      %v9722 = vunpack.c.l.s4 1983009808
      %v9723 = vunpack.c.0.s8 %v9722
      %v9724 = vlaneseq
      %v9725 = vshrl.u32 %v9724, 7
      %v9726 = vsub.s32 %v9723, %v9725
      %v9727 = vrot.slane %v9713, %v9726
      %v9728 = vcombine.high %v9720, %v9720
      %v9729 = vcombine.high %v9727, %v9727
      %v9730 = vcombine.high %v9412, %v9412
      %v9732 = vunpack.c.l.s4 1983009808
      %v9733 = vunpack.c.0.s8 %v9732
      %v9734 = vlaneseq
      %v9735 = vshrl.u32 %v9734, 7
      %v9736 = vsub.s32 %v9733, %v9735
      %v9737 = vrot.slane %v9412, %v9736
      %v9739 = vunpack.c.l.s4 1983009808
      %v9740 = vunpack.c.0.s8 %v9739
      %v9741 = vlaneseq
      %v9742 = vshrl.u32 %v9741, 7
      %v9743 = vsub.s32 %v9740, %v9742
      %v9744 = vrot.slane %v9730, %v9743
      %v9745 = vcombine.high %v9737, %v9737
      %v9746 = vcombine.high %v9744, %v9744
      %v9747 = vcombine.high %v9413, %v9413
      %v9749 = vunpack.c.l.s4 1983009808
      %v9750 = vunpack.c.0.s8 %v9749
      %v9751 = vlaneseq
      %v9752 = vshrl.u32 %v9751, 7
      %v9753 = vsub.s32 %v9750, %v9752
      %v9754 = vrot.slane %v9413, %v9753
      %v9756 = vunpack.c.l.s4 1983009808
      %v9757 = vunpack.c.0.s8 %v9756
      %v9758 = vlaneseq
      %v9759 = vshrl.u32 %v9758, 7
      %v9760 = vsub.s32 %v9757, %v9759
      %v9761 = vrot.slane %v9747, %v9760
      %v9762 = vcombine.high %v9754, %v9754
      %v9763 = vcombine.high %v9761, %v9761
      %v9764 = vcombine.high %v9414, %v9414
      %v9766 = vunpack.c.l.s4 1983009808
      %v9767 = vunpack.c.0.s8 %v9766
      %v9768 = vlaneseq
      %v9769 = vshrl.u32 %v9768, 7
      %v9770 = vsub.s32 %v9767, %v9769
      %v9771 = vrot.slane %v9414, %v9770
      %v9773 = vunpack.c.l.s4 1983009808
      %v9774 = vunpack.c.0.s8 %v9773
      %v9775 = vlaneseq
      %v9776 = vshrl.u32 %v9775, 7
      %v9777 = vsub.s32 %v9774, %v9776
      %v9778 = vrot.slane %v9764, %v9777
      %v9779 = vcombine.high %v9771, %v9771
      %v9780 = vcombine.high %v9778, %v9778
      %v9781 = vcombine.high %v9415, %v9415
      %v9783 = vunpack.c.l.s4 1983009808
      %v9784 = vunpack.c.0.s8 %v9783
      %v9785 = vlaneseq
      %v9786 = vshrl.u32 %v9785, 7
      %v9787 = vsub.s32 %v9784, %v9786
      %v9788 = vrot.slane %v9415, %v9787
      %v9790 = vunpack.c.l.s4 1983009808
      %v9791 = vunpack.c.0.s8 %v9790
      %v9792 = vlaneseq
      %v9793 = vshrl.u32 %v9792, 7
      %v9794 = vsub.s32 %v9791, %v9793
      %v9795 = vrot.slane %v9781, %v9794
      %v9796 = vcombine.high %v9788, %v9788
      %v9797 = vcombine.high %v9795, %v9795
      %v9798 = vcombine.high %v9416, %v9416
      %v9800 = vunpack.c.l.s4 1983009808
      %v9801 = vunpack.c.0.s8 %v9800
      %v9802 = vlaneseq
      %v9803 = vshrl.u32 %v9802, 7
      %v9804 = vsub.s32 %v9801, %v9803
      %v9805 = vrot.slane %v9416, %v9804
      %v9807 = vunpack.c.l.s4 1983009808
      %v9808 = vunpack.c.0.s8 %v9807
      %v9809 = vlaneseq
      %v9810 = vshrl.u32 %v9809, 7
      %v9811 = vsub.s32 %v9808, %v9810
      %v9812 = vrot.slane %v9798, %v9811
      %v9813 = vcombine.high %v9805, %v9805
      %v9814 = vcombine.high %v9812, %v9812
      %v9816 = vunpack.c.l.s4 1983009808
      %v9817 = vunpack.c.0.s8 %v9816
      %v9818 = vlaneseq
      %v9819 = vshrl.u32 %v9818, 7
      %v9820 = vsub.s32 %v9817, %v9819
      %v9821 = vrot.slane %v9417, %v9820
      %v9822 = vcombine.high %v9821, %v9821
      %s9823 = ssub.s32 %s258, 1
      %v9824 = vstv %s9823
      %v9825 = vadd.s32 %v9824, 1
      %v9826 = vadd.s32 %v9824, 2
      %v9827 = vadd.s32 %v9824, 3
      %v9828 = vadd.s32 %v9824, 4
      %v9829 = vadd.s32 %v9824, 5
      %v9830 = vadd.s32 %v9824, 6
      %v9831 = vadd.s32 %v9824, 7
      %v9832 = vadd.s32 %v9824, 8
      %v9833 = vadd.s32 %v9824, 9
      %v9834 = vlaneseq
      %v9835 = vshrl.u32 %v9834, 7
      %v9836 = vadd.s32 %v9835, 8
      %v9837 = vadd.s32 %v9835, 16
      %v9838 = vadd.s32 %v9835, 4294967295
      %v9839 = vadd.s32 %v9836, 4294967295
      %v9840 = vadd.s32 %v9837, 4294967295
      %vm9841 = vcmp.ge.s32.totalorder %v9824, 0
      %vm9842 = vcmp.ge.s32.totalorder %v9825, 0
      %vm9843 = vcmp.ge.s32.totalorder %v9826, 0
      %vm9844 = vcmp.ge.s32.totalorder %v9827, 0
      %vm9845 = vcmp.ge.s32.totalorder %v9828, 0
      %vm9846 = vcmp.ge.s32.totalorder %v9829, 0
      %vm9847 = vcmp.ge.s32.totalorder %v9830, 0
      %vm9848 = vcmp.ge.s32.totalorder %v9831, 0
      %vm9849 = vcmp.ge.s32.totalorder %v9832, 0
      %vm9850 = vcmp.ge.s32.totalorder %v9833, 0
      %vm9851 = vcmp.lt.s32.totalorder %v9824, 16
      %vm9852 = vcmp.lt.s32.totalorder %v9825, 16
      %vm9853 = vcmp.lt.s32.totalorder %v9826, 16
      %vm9854 = vcmp.lt.s32.totalorder %v9827, 16
      %vm9855 = vcmp.lt.s32.totalorder %v9828, 16
      %vm9856 = vcmp.lt.s32.totalorder %v9829, 16
      %vm9857 = vcmp.lt.s32.totalorder %v9830, 16
      %vm9858 = vcmp.lt.s32.totalorder %v9831, 16
      %vm9859 = vcmp.lt.s32.totalorder %v9832, 16
      %vm9860 = vcmp.lt.s32.totalorder %v9833, 16
      %vm9861 = vmand %vm9841, %vm9851
      %vm9862 = vmand %vm9842, %vm9852
      %vm9863 = vmand %vm9843, %vm9853
      %vm9864 = vmand %vm9844, %vm9854
      %vm9865 = vmand %vm9845, %vm9855
      %vm9866 = vmand %vm9846, %vm9856
      %vm9867 = vmand %vm9847, %vm9857
      %vm9868 = vmand %vm9848, %vm9858
      %vm9869 = vmand %vm9849, %vm9859
      %vm9870 = vmand %vm9850, %vm9860
      %vm9871 = vcmp.ge.s32.totalorder %v9838, 0
      %vm9872 = vcmp.ge.s32.totalorder %v9839, 0
      %vm9873 = vcmp.ge.s32.totalorder %v9840, 0
      %vm9874 = vmand %vm9861, %vm9871
      %vm9875 = vmand %vm9861, %vm9872
      %vm9876 = vmand %vm9861, %vm9873
      %vm9877 = vmand %vm9862, %vm9871
      %vm9878 = vmand %vm9862, %vm9872
      %vm9879 = vmand %vm9862, %vm9873
      %vm9880 = vmand %vm9863, %vm9871
      %vm9881 = vmand %vm9863, %vm9872
      %vm9882 = vmand %vm9863, %vm9873
      %vm9883 = vmand %vm9864, %vm9871
      %vm9884 = vmand %vm9864, %vm9872
      %vm9885 = vmand %vm9864, %vm9873
      %vm9886 = vmand %vm9865, %vm9871
      %vm9887 = vmand %vm9865, %vm9872
      %vm9888 = vmand %vm9865, %vm9873
      %vm9889 = vmand %vm9866, %vm9871
      %vm9890 = vmand %vm9866, %vm9872
      %vm9891 = vmand %vm9866, %vm9873
      %vm9892 = vmand %vm9867, %vm9871
      %vm9893 = vmand %vm9867, %vm9872
      %vm9894 = vmand %vm9867, %vm9873
      %vm9895 = vmand %vm9868, %vm9871
      %vm9896 = vmand %vm9868, %vm9872
      %vm9897 = vmand %vm9868, %vm9873
      %vm9898 = vmand %vm9869, %vm9871
      %vm9899 = vmand %vm9869, %vm9872
      %vm9900 = vmand %vm9869, %vm9873
      %vm9901 = vmand %vm9870, %vm9871
      %vm9902 = vmand %vm9870, %vm9872
      %vm9903 = vmand %vm9870, %vm9873
      %vm9904 = vcmp.lt.s32.totalorder %v9838, 16
      %vm9905 = vcmp.lt.s32.totalorder %v9839, 16
      %vm9906 = vcmp.lt.s32.totalorder %v9840, 16
      %vm9907 = vmand %vm9874, %vm9904
      %vm9908 = vmand %vm9875, %vm9905
      %vm9909 = vmand %vm9876, %vm9906
      %vm9910 = vmand %vm9877, %vm9904
      %vm9911 = vmand %vm9878, %vm9905
      %vm9912 = vmand %vm9879, %vm9906
      %vm9913 = vmand %vm9880, %vm9904
      %vm9914 = vmand %vm9881, %vm9905
      %vm9915 = vmand %vm9882, %vm9906
      %vm9916 = vmand %vm9883, %vm9904
      %vm9917 = vmand %vm9884, %vm9905
      %vm9918 = vmand %vm9885, %vm9906
      %vm9919 = vmand %vm9886, %vm9904
      %vm9920 = vmand %vm9887, %vm9905
      %vm9921 = vmand %vm9888, %vm9906
      %vm9922 = vmand %vm9889, %vm9904
      %vm9923 = vmand %vm9890, %vm9905
      %vm9924 = vmand %vm9891, %vm9906
      %vm9925 = vmand %vm9892, %vm9904
      %vm9926 = vmand %vm9893, %vm9905
      %vm9927 = vmand %vm9894, %vm9906
      %vm9928 = vmand %vm9895, %vm9904
      %vm9929 = vmand %vm9896, %vm9905
      %vm9930 = vmand %vm9897, %vm9906
      %vm9931 = vmand %vm9898, %vm9904
      %vm9932 = vmand %vm9899, %vm9905
      %vm9933 = vmand %vm9900, %vm9906
      %vm9934 = vmand %vm9901, %vm9904
      %vm9935 = vmand %vm9902, %vm9905
      %vm9936 = vmand %vm9903, %vm9906
      %v9937 = vsel %vm9907, 1, 0
      %v9938 = vsel %vm9908, 1, 0
      %v9939 = vsel %vm9909, 1, 0
      %v9940 = vsel %vm9910, 1, 0
      %v9941 = vsel %vm9911, 1, 0
      %v9942 = vsel %vm9912, 1, 0
      %v9943 = vsel %vm9913, 1, 0
      %v9944 = vsel %vm9914, 1, 0
      %v9945 = vsel %vm9915, 1, 0
      %v9946 = vsel %vm9916, 1, 0
      %v9947 = vsel %vm9917, 1, 0
      %v9948 = vsel %vm9918, 1, 0
      %v9949 = vsel %vm9919, 1, 0
      %v9950 = vsel %vm9920, 1, 0
      %v9951 = vsel %vm9921, 1, 0
      %v9952 = vsel %vm9922, 1, 0
      %v9953 = vsel %vm9923, 1, 0
      %v9954 = vsel %vm9924, 1, 0
      %v9955 = vsel %vm9925, 1, 0
      %v9956 = vsel %vm9926, 1, 0
      %v9957 = vsel %vm9927, 1, 0
      %v9958 = vsel %vm9928, 1, 0
      %v9959 = vsel %vm9929, 1, 0
      %v9960 = vsel %vm9930, 1, 0
      %v9961 = vsel %vm9931, 1, 0
      %v9962 = vsel %vm9932, 1, 0
      %v9963 = vsel %vm9933, 1, 0
      %v9964 = vsel %vm9934, 1, 0
      %v9965 = vsel %vm9935, 1, 0
      %v9966 = vsel %vm9936, 1, 0
      %vm9967 = vcmp.eq.s32.totalorder %v9937, 1
      %vm9968 = vcmp.eq.s32.totalorder %v9938, 1
      %vm9969 = vcmp.eq.s32.totalorder %v9939, 1
      %vm9970 = vcmp.eq.s32.totalorder %v9940, 1
      %vm9971 = vcmp.eq.s32.totalorder %v9941, 1
      %vm9972 = vcmp.eq.s32.totalorder %v9942, 1
      %vm9973 = vcmp.eq.s32.totalorder %v9943, 1
      %vm9974 = vcmp.eq.s32.totalorder %v9944, 1
      %vm9975 = vcmp.eq.s32.totalorder %v9945, 1
      %vm9976 = vcmp.eq.s32.totalorder %v9946, 1
      %vm9977 = vcmp.eq.s32.totalorder %v9947, 1
      %vm9978 = vcmp.eq.s32.totalorder %v9948, 1
      %vm9979 = vcmp.eq.s32.totalorder %v9949, 1
      %vm9980 = vcmp.eq.s32.totalorder %v9950, 1
      %vm9981 = vcmp.eq.s32.totalorder %v9951, 1
      %vm9982 = vcmp.eq.s32.totalorder %v9952, 1
      %vm9983 = vcmp.eq.s32.totalorder %v9953, 1
      %vm9984 = vcmp.eq.s32.totalorder %v9954, 1
      %vm9985 = vcmp.eq.s32.totalorder %v9955, 1
      %vm9986 = vcmp.eq.s32.totalorder %v9956, 1
      %vm9987 = vcmp.eq.s32.totalorder %v9957, 1
      %vm9988 = vcmp.eq.s32.totalorder %v9958, 1
      %vm9989 = vcmp.eq.s32.totalorder %v9959, 1
      %vm9990 = vcmp.eq.s32.totalorder %v9960, 1
      %vm9991 = vcmp.eq.s32.totalorder %v9961, 1
      %vm9992 = vcmp.eq.s32.totalorder %v9962, 1
      %vm9993 = vcmp.eq.s32.totalorder %v9963, 1
      %vm9994 = vcmp.eq.s32.totalorder %v9964, 1
      %vm9995 = vcmp.eq.s32.totalorder %v9965, 1
      %vm9996 = vcmp.eq.s32.totalorder %v9966, 1
      %v9997 = vcombine.low %v9448, %v9456
      %v9998 = vcombine.low %v9455, %v9457
      %v10000 = vunpack.c.l.s4 1983009808
      %v10001 = vunpack.c.0.s8 %v10000
      %v10002 = vlaneseq
      %v10003 = vshrl.u32 %v10002, 7
      %v10004 = vsub.s32 %v10001, %v10003
      %v10005 = vrot.slane %v9997, %v10004
      %v10007 = vunpack.c.l.s4 1983009808
      %v10008 = vunpack.c.0.s8 %v10007
      %v10009 = vlaneseq
      %v10010 = vshrl.u32 %v10009, 7
      %v10011 = vsub.s32 %v10008, %v10010
      %v10012 = vrot.slane %v9998, %v10011
      %v10013 = vcombine.low %v10005, %v10012
      %v10014 = vcombine.low %v9465, %v9473
      %v10015 = vcombine.low %v9472, %v9474
      %v10017 = vunpack.c.l.s4 1983009808
      %v10018 = vunpack.c.0.s8 %v10017
      %v10019 = vlaneseq
      %v10020 = vshrl.u32 %v10019, 7
      %v10021 = vsub.s32 %v10018, %v10020
      %v10022 = vrot.slane %v10014, %v10021
      %v10024 = vunpack.c.l.s4 1983009808
      %v10025 = vunpack.c.0.s8 %v10024
      %v10026 = vlaneseq
      %v10027 = vshrl.u32 %v10026, 7
      %v10028 = vsub.s32 %v10025, %v10027
      %v10029 = vrot.slane %v10015, %v10028
      %v10030 = vcombine.low %v10022, %v10029
      %v10032 = vunpack.c.l.s4 1983009808
      %v10033 = vunpack.c.0.s8 %v10032
      %v10034 = vlaneseq
      %v10035 = vshrl.u32 %v10034, 7
      %v10036 = vsub.s32 %v10033, %v10035
      %v10037 = vrot.slane %v9482, %v10036
      %v10038 = vcombine.low %v9490, %v9489
      %v10039 = vcombine.low %v9491, %v9499
      %v10041 = vunpack.c.l.s4 1983009808
      %v10042 = vunpack.c.0.s8 %v10041
      %v10043 = vlaneseq
      %v10044 = vshrl.u32 %v10043, 7
      %v10045 = vsub.s32 %v10042, %v10044
      %v10046 = vrot.slane %v10038, %v10045
      %v10048 = vunpack.c.l.s4 1983009808
      %v10049 = vunpack.c.0.s8 %v10048
      %v10050 = vlaneseq
      %v10051 = vshrl.u32 %v10050, 7
      %v10052 = vsub.s32 %v10049, %v10051
      %v10053 = vrot.slane %v10039, %v10052
      %v10054 = vcombine.low %v10046, %v10053
      %v10055 = vcombine.low %v9507, %v9506
      %v10056 = vcombine.low %v9508, %v9516
      %v10058 = vunpack.c.l.s4 1983009808
      %v10059 = vunpack.c.0.s8 %v10058
      %v10060 = vlaneseq
      %v10061 = vshrl.u32 %v10060, 7
      %v10062 = vsub.s32 %v10059, %v10061
      %v10063 = vrot.slane %v10055, %v10062
      %v10065 = vunpack.c.l.s4 1983009808
      %v10066 = vunpack.c.0.s8 %v10065
      %v10067 = vlaneseq
      %v10068 = vshrl.u32 %v10067, 7
      %v10069 = vsub.s32 %v10066, %v10068
      %v10070 = vrot.slane %v10056, %v10069
      %v10071 = vcombine.low %v10063, %v10070
      %v10073 = vunpack.c.l.s4 1983009808
      %v10074 = vunpack.c.0.s8 %v10073
      %v10075 = vlaneseq
      %v10076 = vshrl.u32 %v10075, 7
      %v10077 = vsub.s32 %v10074, %v10076
      %v10078 = vrot.slane %v9524, %v10077
      %v10079 = vcombine.low %v9523, %v9525
      %v10080 = vcombine.low %v9533, %v9541
      %v10082 = vunpack.c.l.s4 1983009808
      %v10083 = vunpack.c.0.s8 %v10082
      %v10084 = vlaneseq
      %v10085 = vshrl.u32 %v10084, 7
      %v10086 = vsub.s32 %v10083, %v10085
      %v10087 = vrot.slane %v10079, %v10086
      %v10089 = vunpack.c.l.s4 1983009808
      %v10090 = vunpack.c.0.s8 %v10089
      %v10091 = vlaneseq
      %v10092 = vshrl.u32 %v10091, 7
      %v10093 = vsub.s32 %v10090, %v10092
      %v10094 = vrot.slane %v10080, %v10093
      %v10095 = vcombine.low %v10087, %v10094
      %v10096 = vcombine.low %v9540, %v9542
      %v10097 = vcombine.low %v9550, %v9558
      %v10099 = vunpack.c.l.s4 1983009808
      %v10100 = vunpack.c.0.s8 %v10099
      %v10101 = vlaneseq
      %v10102 = vshrl.u32 %v10101, 7
      %v10103 = vsub.s32 %v10100, %v10102
      %v10104 = vrot.slane %v10096, %v10103
      %v10106 = vunpack.c.l.s4 1983009808
      %v10107 = vunpack.c.0.s8 %v10106
      %v10108 = vlaneseq
      %v10109 = vshrl.u32 %v10108, 7
      %v10110 = vsub.s32 %v10107, %v10109
      %v10111 = vrot.slane %v10097, %v10110
      %v10112 = vcombine.low %v10104, %v10111
      %v10114 = vunpack.c.l.s4 1983009808
      %v10115 = vunpack.c.0.s8 %v10114
      %v10116 = vlaneseq
      %v10117 = vshrl.u32 %v10116, 7
      %v10118 = vsub.s32 %v10115, %v10117
      %v10119 = vrot.slane %v9557, %v10118
      %v10120 = vcombine.low %v9559, %v9567
      %v10121 = vcombine.low %v9575, %v9574
      %v10123 = vunpack.c.l.s4 1983009808
      %v10124 = vunpack.c.0.s8 %v10123
      %v10125 = vlaneseq
      %v10126 = vshrl.u32 %v10125, 7
      %v10127 = vsub.s32 %v10124, %v10126
      %v10128 = vrot.slane %v10120, %v10127
      %v10130 = vunpack.c.l.s4 1983009808
      %v10131 = vunpack.c.0.s8 %v10130
      %v10132 = vlaneseq
      %v10133 = vshrl.u32 %v10132, 7
      %v10134 = vsub.s32 %v10131, %v10133
      %v10135 = vrot.slane %v10121, %v10134
      %v10136 = vcombine.low %v10128, %v10135
      %v10137 = vcombine.low %v9576, %v9584
      %v10138 = vcombine.low %v9592, %v9591
      %v10140 = vunpack.c.l.s4 1983009808
      %v10141 = vunpack.c.0.s8 %v10140
      %v10142 = vlaneseq
      %v10143 = vshrl.u32 %v10142, 7
      %v10144 = vsub.s32 %v10141, %v10143
      %v10145 = vrot.slane %v10137, %v10144
      %v10147 = vunpack.c.l.s4 1983009808
      %v10148 = vunpack.c.0.s8 %v10147
      %v10149 = vlaneseq
      %v10150 = vshrl.u32 %v10149, 7
      %v10151 = vsub.s32 %v10148, %v10150
      %v10152 = vrot.slane %v10138, %v10151
      %v10153 = vcombine.low %v10145, %v10152
      %v10155 = vunpack.c.l.s4 1983009808
      %v10156 = vunpack.c.0.s8 %v10155
      %v10157 = vlaneseq
      %v10158 = vshrl.u32 %v10157, 7
      %v10159 = vsub.s32 %v10156, %v10158
      %v10160 = vrot.slane %v9593, %v10159
      %v10161 = vcombine.low %v9601, %v9609
      %v10162 = vcombine.low %v9608, %v9610
      %v10164 = vunpack.c.l.s4 1983009808
      %v10165 = vunpack.c.0.s8 %v10164
      %v10166 = vlaneseq
      %v10167 = vshrl.u32 %v10166, 7
      %v10168 = vsub.s32 %v10165, %v10167
      %v10169 = vrot.slane %v10161, %v10168
      %v10171 = vunpack.c.l.s4 1983009808
      %v10172 = vunpack.c.0.s8 %v10171
      %v10173 = vlaneseq
      %v10174 = vshrl.u32 %v10173, 7
      %v10175 = vsub.s32 %v10172, %v10174
      %v10176 = vrot.slane %v10162, %v10175
      %v10177 = vcombine.low %v10169, %v10176
      %v10178 = vcombine.low %v9618, %v9626
      %v10179 = vcombine.low %v9625, %v9627
      %v10181 = vunpack.c.l.s4 1983009808
      %v10182 = vunpack.c.0.s8 %v10181
      %v10183 = vlaneseq
      %v10184 = vshrl.u32 %v10183, 7
      %v10185 = vsub.s32 %v10182, %v10184
      %v10186 = vrot.slane %v10178, %v10185
      %v10188 = vunpack.c.l.s4 1983009808
      %v10189 = vunpack.c.0.s8 %v10188
      %v10190 = vlaneseq
      %v10191 = vshrl.u32 %v10190, 7
      %v10192 = vsub.s32 %v10189, %v10191
      %v10193 = vrot.slane %v10179, %v10192
      %v10194 = vcombine.low %v10186, %v10193
      %v10196 = vunpack.c.l.s4 1983009808
      %v10197 = vunpack.c.0.s8 %v10196
      %v10198 = vlaneseq
      %v10199 = vshrl.u32 %v10198, 7
      %v10200 = vsub.s32 %v10197, %v10199
      %v10201 = vrot.slane %v9635, %v10200
      %v10202 = vcombine.low %v9643, %v9642
      %v10203 = vcombine.low %v9644, %v9652
      %v10205 = vunpack.c.l.s4 1983009808
      %v10206 = vunpack.c.0.s8 %v10205
      %v10207 = vlaneseq
      %v10208 = vshrl.u32 %v10207, 7
      %v10209 = vsub.s32 %v10206, %v10208
      %v10210 = vrot.slane %v10202, %v10209
      %v10212 = vunpack.c.l.s4 1983009808
      %v10213 = vunpack.c.0.s8 %v10212
      %v10214 = vlaneseq
      %v10215 = vshrl.u32 %v10214, 7
      %v10216 = vsub.s32 %v10213, %v10215
      %v10217 = vrot.slane %v10203, %v10216
      %v10218 = vcombine.low %v10210, %v10217
      %v10219 = vcombine.low %v9660, %v9659
      %v10220 = vcombine.low %v9661, %v9669
      %v10222 = vunpack.c.l.s4 1983009808
      %v10223 = vunpack.c.0.s8 %v10222
      %v10224 = vlaneseq
      %v10225 = vshrl.u32 %v10224, 7
      %v10226 = vsub.s32 %v10223, %v10225
      %v10227 = vrot.slane %v10219, %v10226
      %v10229 = vunpack.c.l.s4 1983009808
      %v10230 = vunpack.c.0.s8 %v10229
      %v10231 = vlaneseq
      %v10232 = vshrl.u32 %v10231, 7
      %v10233 = vsub.s32 %v10230, %v10232
      %v10234 = vrot.slane %v10220, %v10233
      %v10235 = vcombine.low %v10227, %v10234
      %v10237 = vunpack.c.l.s4 1983009808
      %v10238 = vunpack.c.0.s8 %v10237
      %v10239 = vlaneseq
      %v10240 = vshrl.u32 %v10239, 7
      %v10241 = vsub.s32 %v10238, %v10240
      %v10242 = vrot.slane %v9677, %v10241
      %v10243 = vcombine.low %v9676, %v9678
      %v10244 = vcombine.low %v9686, %v9694
      %v10246 = vunpack.c.l.s4 1983009808
      %v10247 = vunpack.c.0.s8 %v10246
      %v10248 = vlaneseq
      %v10249 = vshrl.u32 %v10248, 7
      %v10250 = vsub.s32 %v10247, %v10249
      %v10251 = vrot.slane %v10243, %v10250
      %v10253 = vunpack.c.l.s4 1983009808
      %v10254 = vunpack.c.0.s8 %v10253
      %v10255 = vlaneseq
      %v10256 = vshrl.u32 %v10255, 7
      %v10257 = vsub.s32 %v10254, %v10256
      %v10258 = vrot.slane %v10244, %v10257
      %v10259 = vcombine.low %v10251, %v10258
      %v10260 = vcombine.low %v9693, %v9695
      %v10261 = vcombine.low %v9703, %v9711
      %v10263 = vunpack.c.l.s4 1983009808
      %v10264 = vunpack.c.0.s8 %v10263
      %v10265 = vlaneseq
      %v10266 = vshrl.u32 %v10265, 7
      %v10267 = vsub.s32 %v10264, %v10266
      %v10268 = vrot.slane %v10260, %v10267
      %v10270 = vunpack.c.l.s4 1983009808
      %v10271 = vunpack.c.0.s8 %v10270
      %v10272 = vlaneseq
      %v10273 = vshrl.u32 %v10272, 7
      %v10274 = vsub.s32 %v10271, %v10273
      %v10275 = vrot.slane %v10261, %v10274
      %v10276 = vcombine.low %v10268, %v10275
      %v10278 = vunpack.c.l.s4 1983009808
      %v10279 = vunpack.c.0.s8 %v10278
      %v10280 = vlaneseq
      %v10281 = vshrl.u32 %v10280, 7
      %v10282 = vsub.s32 %v10279, %v10281
      %v10283 = vrot.slane %v9710, %v10282
      %v10284 = vcombine.low %v9712, %v9720
      %v10285 = vcombine.low %v9728, %v9727
      %v10287 = vunpack.c.l.s4 1983009808
      %v10288 = vunpack.c.0.s8 %v10287
      %v10289 = vlaneseq
      %v10290 = vshrl.u32 %v10289, 7
      %v10291 = vsub.s32 %v10288, %v10290
      %v10292 = vrot.slane %v10284, %v10291
      %v10294 = vunpack.c.l.s4 1983009808
      %v10295 = vunpack.c.0.s8 %v10294
      %v10296 = vlaneseq
      %v10297 = vshrl.u32 %v10296, 7
      %v10298 = vsub.s32 %v10295, %v10297
      %v10299 = vrot.slane %v10285, %v10298
      %v10300 = vcombine.low %v10292, %v10299
      %v10301 = vcombine.low %v9729, %v9737
      %v10302 = vcombine.low %v9745, %v9744
      %v10304 = vunpack.c.l.s4 1983009808
      %v10305 = vunpack.c.0.s8 %v10304
      %v10306 = vlaneseq
      %v10307 = vshrl.u32 %v10306, 7
      %v10308 = vsub.s32 %v10305, %v10307
      %v10309 = vrot.slane %v10301, %v10308
      %v10311 = vunpack.c.l.s4 1983009808
      %v10312 = vunpack.c.0.s8 %v10311
      %v10313 = vlaneseq
      %v10314 = vshrl.u32 %v10313, 7
      %v10315 = vsub.s32 %v10312, %v10314
      %v10316 = vrot.slane %v10302, %v10315
      %v10317 = vcombine.low %v10309, %v10316
      %v10319 = vunpack.c.l.s4 1983009808
      %v10320 = vunpack.c.0.s8 %v10319
      %v10321 = vlaneseq
      %v10322 = vshrl.u32 %v10321, 7
      %v10323 = vsub.s32 %v10320, %v10322
      %v10324 = vrot.slane %v9746, %v10323
      %v10325 = vcombine.low %v9754, %v9762
      %v10326 = vcombine.low %v9761, %v9763
      %v10328 = vunpack.c.l.s4 1983009808
      %v10329 = vunpack.c.0.s8 %v10328
      %v10330 = vlaneseq
      %v10331 = vshrl.u32 %v10330, 7
      %v10332 = vsub.s32 %v10329, %v10331
      %v10333 = vrot.slane %v10325, %v10332
      %v10335 = vunpack.c.l.s4 1983009808
      %v10336 = vunpack.c.0.s8 %v10335
      %v10337 = vlaneseq
      %v10338 = vshrl.u32 %v10337, 7
      %v10339 = vsub.s32 %v10336, %v10338
      %v10340 = vrot.slane %v10326, %v10339
      %v10341 = vcombine.low %v10333, %v10340
      %v10342 = vcombine.low %v9771, %v9779
      %v10343 = vcombine.low %v9778, %v9780
      %v10345 = vunpack.c.l.s4 1983009808
      %v10346 = vunpack.c.0.s8 %v10345
      %v10347 = vlaneseq
      %v10348 = vshrl.u32 %v10347, 7
      %v10349 = vsub.s32 %v10346, %v10348
      %v10350 = vrot.slane %v10342, %v10349
      %v10352 = vunpack.c.l.s4 1983009808
      %v10353 = vunpack.c.0.s8 %v10352
      %v10354 = vlaneseq
      %v10355 = vshrl.u32 %v10354, 7
      %v10356 = vsub.s32 %v10353, %v10355
      %v10357 = vrot.slane %v10343, %v10356
      %v10358 = vcombine.low %v10350, %v10357
      %v10360 = vunpack.c.l.s4 1983009808
      %v10361 = vunpack.c.0.s8 %v10360
      %v10362 = vlaneseq
      %v10363 = vshrl.u32 %v10362, 7
      %v10364 = vsub.s32 %v10361, %v10363
      %v10365 = vrot.slane %v9788, %v10364
      %v10366 = vcombine.low %v9796, %v9795
      %v10367 = vcombine.low %v9797, %v9805
      %v10369 = vunpack.c.l.s4 1983009808
      %v10370 = vunpack.c.0.s8 %v10369
      %v10371 = vlaneseq
      %v10372 = vshrl.u32 %v10371, 7
      %v10373 = vsub.s32 %v10370, %v10372
      %v10374 = vrot.slane %v10366, %v10373
      %v10376 = vunpack.c.l.s4 1983009808
      %v10377 = vunpack.c.0.s8 %v10376
      %v10378 = vlaneseq
      %v10379 = vshrl.u32 %v10378, 7
      %v10380 = vsub.s32 %v10377, %v10379
      %v10381 = vrot.slane %v10367, %v10380
      %v10382 = vcombine.low %v10374, %v10381
      %v10383 = vcombine.low %v9813, %v9812
      %v10384 = vcombine.low %v9814, %v9821
      %v10386 = vunpack.c.l.s4 1983009808
      %v10387 = vunpack.c.0.s8 %v10386
      %v10388 = vlaneseq
      %v10389 = vshrl.u32 %v10388, 7
      %v10390 = vsub.s32 %v10387, %v10389
      %v10391 = vrot.slane %v10383, %v10390
      %v10393 = vunpack.c.l.s4 1983009808
      %v10394 = vunpack.c.0.s8 %v10393
      %v10395 = vlaneseq
      %v10396 = vshrl.u32 %v10395, 7
      %v10397 = vsub.s32 %v10394, %v10396
      %v10398 = vrot.slane %v10384, %v10397
      %v10399 = vcombine.low %v10391, %v10398
      %v10401 = vunpack.c.l.s4 1983009808
      %v10402 = vunpack.c.0.s8 %v10401
      %v10403 = vlaneseq
      %v10404 = vshrl.u32 %v10403, 7
      %v10405 = vsub.s32 %v10402, %v10404
      %v10406 = vrot.slane %v9822, %v10405
      %v10437 = vsel %vm9967, %v10013, 0.0
      %v10438 = vsel %vm9968, %v10030, 0.0
      %v10439 = vsel %vm9969, %v10037, 0.0
      %v10440 = vsel %vm9970, %v10054, 0.0
      %v10441 = vsel %vm9971, %v10071, 0.0
      %v10442 = vsel %vm9972, %v10078, 0.0
      %v10443 = vsel %vm9973, %v10095, 0.0
      %v10444 = vsel %vm9974, %v10112, 0.0
      %v10445 = vsel %vm9975, %v10119, 0.0
      %v10446 = vsel %vm9976, %v10136, 0.0
      %v10447 = vsel %vm9977, %v10153, 0.0
      %v10448 = vsel %vm9978, %v10160, 0.0
      %v10449 = vsel %vm9979, %v10177, 0.0
      %v10450 = vsel %vm9980, %v10194, 0.0
      %v10451 = vsel %vm9981, %v10201, 0.0
      %v10452 = vsel %vm9982, %v10218, 0.0
      %v10453 = vsel %vm9983, %v10235, 0.0
      %v10454 = vsel %vm9984, %v10242, 0.0
      %v10455 = vsel %vm9985, %v10259, 0.0
      %v10456 = vsel %vm9986, %v10276, 0.0
      %v10457 = vsel %vm9987, %v10283, 0.0
      %v10458 = vsel %vm9988, %v10300, 0.0
      %v10459 = vsel %vm9989, %v10317, 0.0
      %v10460 = vsel %vm9990, %v10324, 0.0
      %v10461 = vsel %vm9991, %v10341, 0.0
      %v10462 = vsel %vm9992, %v10358, 0.0
      %v10463 = vsel %vm9993, %v10365, 0.0
      %v10464 = vsel %vm9994, %v10382, 0.0
      %v10465 = vsel %vm9995, %v10399, 0.0
      %v10466 = vsel %vm9996, %v10406, 0.0
      %v10467 = vld [vmem:[%s4] sm:$0xff]
      %v10468 = vld [vmem:[%s4 + $0x8] sm:$0xff]
      %v10469 = vld [vmem:[%s4 + $0x10] sm:$0xff]
      %v10470 = vld [vmem:[%s4 + $0x18] sm:$0xff]
      %v10471 = vld [vmem:[%s4 + $0x20] sm:$0xff]
      %v10472 = vld [vmem:[%s4 + $0x28] sm:$0xff]
      %v10473 = vld [vmem:[%s4 + $0x30] sm:$0xff]
      %v10474 = vld [vmem:[%s4 + $0x38] sm:$0xff]
      %v10475 = vld [vmem:[%s4 + $0x40] sm:$0xff]
      %v10476 = vld [vmem:[%s4 + $0x48] sm:$0xff]
      %v10477 = vld [vmem:[%s4 + $0x50] sm:$0xff]
      %v10478 = vld [vmem:[%s4 + $0x58] sm:$0xff]
      %v10479 = vld [vmem:[%s4 + $0x60] sm:$0xff]
      %v10480 = vld [vmem:[%s4 + $0x68] sm:$0xff]
      %v10481 = vld [vmem:[%s4 + $0x70] sm:$0xff]
      %v10482 = vld [vmem:[%s4 + $0x78] sm:$0xff]
      %v10483 = vld [vmem:[%s4 + $0x80] sm:$0xff]
      %v10484 = vld [vmem:[%s4 + $0x88] sm:$0xff]
      %v10485 = vld [vmem:[%s4 + $0x90] sm:$0xff]
      %v10486 = vld [vmem:[%s4 + $0x98] sm:$0xff]
      %v10487 = vld [vmem:[%s4 + $0xa0] sm:$0xff]
      %v10488 = vld [vmem:[%s4 + $0xa8] sm:$0xff]
      %v10489 = vld [vmem:[%s4 + $0xb0] sm:$0xff]
      %v10490 = vld [vmem:[%s4 + $0xb8] sm:$0xff]
      %v10491 = vld [vmem:[%s4 + $0xc0] sm:$0xff]
      %v10492 = vld [vmem:[%s4 + $0xc8] sm:$0xff]
      %v10493 = vld [vmem:[%s4 + $0xd0] sm:$0xff]
      %v10494 = vld [vmem:[%s4 + $0xd8] sm:$0xff]
      %v10495 = vld [vmem:[%s4 + $0xe0] sm:$0xff]
      %v10496 = vld [vmem:[%s4 + $0xe8] sm:$0xff]
      %v10497 = vld [vmem:[%s4 + $0xf0] sm:$0xff]
      %v10498 = vld [vmem:[%s4 + $0xf8] sm:$0xff]
      %v10499 = vld [vmem:[%s4 + $0x100] sm:$0xff]
      %v10500 = vld [vmem:[%s4 + $0x108] sm:$0xff]
      %v10501 = vld [vmem:[%s4 + $0x110] sm:$0xff]
      %v10502 = vld [vmem:[%s4 + $0x118] sm:$0xff]
      %v10503 = vld [vmem:[%s4 + $0x120] sm:$0xff]
      %v10504 = vld [vmem:[%s4 + $0x128] sm:$0xff]
      %v10505 = vld [vmem:[%s4 + $0x130] sm:$0xff]
      %v10506 = vld [vmem:[%s4 + $0x138] sm:$0xff]
      %v10507 = vld [vmem:[%s4 + $0x140] sm:$0xff]
      %v10508 = vld [vmem:[%s4 + $0x148] sm:$0xff]
      %v10509 = vld [vmem:[%s4 + $0x150] sm:$0xff]
      %v10510 = vld [vmem:[%s4 + $0x158] sm:$0xff]
      %v10511 = vld [vmem:[%s4 + $0x160] sm:$0xff]
      %v10512 = vld [vmem:[%s4 + $0x168] sm:$0xff]
      %v10513 = vld [vmem:[%s4 + $0x170] sm:$0xff]
      %v10514 = vld [vmem:[%s4 + $0x178] sm:$0xff]
      %v10515 = vld [vmem:[%s4 + $0x180] sm:$0xff]
      %v10516 = vld [vmem:[%s4 + $0x188] sm:$0xff]
      %v10517 = vld [vmem:[%s4 + $0x190] sm:$0xff]
      %v10518 = vld [vmem:[%s4 + $0x198] sm:$0xff]
      %v10519 = vld [vmem:[%s4 + $0x1a0] sm:$0xff]
      %v10520 = vld [vmem:[%s4 + $0x1a8] sm:$0xff]
      %v10521 = vld [vmem:[%s4 + $0x1b0] sm:$0xff]
      %v10522 = vld [vmem:[%s4 + $0x1b8] sm:$0xff]
      %v10523 = vld [vmem:[%s4 + $0x1c0] sm:$0xff]
      %v10524 = vld [vmem:[%s4 + $0x1c8] sm:$0xff]
      %v10525 = vld [vmem:[%s4 + $0x1d0] sm:$0xff]
      %v10526 = vld [vmem:[%s4 + $0x1d8] sm:$0xff]
      %v10527 = vld [vmem:[%s4 + $0x1e0] sm:$0xff]
      %v10528 = vld [vmem:[%s4 + $0x1e8] sm:$0xff]
      %v10529 = vld [vmem:[%s4 + $0x1f0] sm:$0xff]
      %v10530 = vld [vmem:[%s4 + $0x1f8] sm:$0xff]
      %v10531 = vld [vmem:[%s4 + $0x200] sm:$0xff]
      %v10532 = vld [vmem:[%s4 + $0x208] sm:$0xff]
      %v10533 = vld [vmem:[%s4 + $0x210] sm:$0xff]
      %v10534 = vld [vmem:[%s4 + $0x218] sm:$0xff]
      %v10535 = vld [vmem:[%s4 + $0x220] sm:$0xff]
      %v10536 = vld [vmem:[%s4 + $0x228] sm:$0xff]
      %v10537 = vld [vmem:[%s4 + $0x230] sm:$0xff]
      %v10538 = vld [vmem:[%s4 + $0x238] sm:$0xff]
      %v10539 = vld [vmem:[%s4 + $0x240] sm:$0xff]
      %v10540 = vld [vmem:[%s4 + $0x248] sm:$0xff]
      %v10541 = vld [vmem:[%s4 + $0x250] sm:$0xff]
      %v10542 = vld [vmem:[%s4 + $0x258] sm:$0xff]
      %v10543 = vld [vmem:[%s4 + $0x260] sm:$0xff]
      %v10544 = vld [vmem:[%s4 + $0x268] sm:$0xff]
      %v10545 = vld [vmem:[%s4 + $0x270] sm:$0xff]
      %v10546 = vld [vmem:[%s4 + $0x278] sm:$0xff]
      %v10547 = vld [vmem:[%s4 + $0x280] sm:$0xff]
      %v10548 = vld [vmem:[%s4 + $0x288] sm:$0xff]
      %v10549 = vld [vmem:[%s4 + $0x290] sm:$0xff]
      %v10550 = vld [vmem:[%s4 + $0x298] sm:$0xff]
      %v10551 = vld [vmem:[%s4 + $0x2a0] sm:$0xff]
      %v10552 = vld [vmem:[%s4 + $0x2a8] sm:$0xff]
      %v10553 = vld [vmem:[%s4 + $0x2b0] sm:$0xff]
      %v10554 = vld [vmem:[%s4 + $0x2b8] sm:$0xff]
      %v10555 = vld [vmem:[%s4 + $0x2c0] sm:$0xff]
      %v10556 = vld [vmem:[%s4 + $0x2c8] sm:$0xff]
      %v10557 = vld [vmem:[%s4 + $0x2d0] sm:$0xff]
      %v10558 = vld [vmem:[%s4 + $0x2d8] sm:$0xff]
      %v10559 = vld [vmem:[%s4 + $0x2e0] sm:$0xff]
      %v10560 = vld [vmem:[%s4 + $0x2e8] sm:$0xff]
      %v10561 = vld [vmem:[%s4 + $0x2f0] sm:$0xff]
      %v10562 = vld [vmem:[%s4 + $0x2f8] sm:$0xff]
      %v10563 = vld [vmem:[%s4 + $0x300] sm:$0xff]
      %v10564 = vld [vmem:[%s4 + $0x308] sm:$0xff]
      %v10565 = vld [vmem:[%s4 + $0x310] sm:$0xff]
      %v10566 = vld [vmem:[%s4 + $0x318] sm:$0xff]
      %v10567 = vld [vmem:[%s4 + $0x320] sm:$0xff]
      %v10568 = vld [vmem:[%s4 + $0x328] sm:$0xff]
      %v10569 = vld [vmem:[%s4 + $0x330] sm:$0xff]
      %v10570 = vld [vmem:[%s4 + $0x338] sm:$0xff]
      %v10571 = vld [vmem:[%s4 + $0x340] sm:$0xff]
      %v10572 = vld [vmem:[%s4 + $0x348] sm:$0xff]
      %v10573 = vld [vmem:[%s4 + $0x350] sm:$0xff]
      %v10574 = vld [vmem:[%s4 + $0x358] sm:$0xff]
      %v10575 = vld [vmem:[%s4 + $0x360] sm:$0xff]
      %v10576 = vld [vmem:[%s4 + $0x368] sm:$0xff]
      %v10577 = vld [vmem:[%s4 + $0x370] sm:$0xff]
      %v10578 = vld [vmem:[%s4 + $0x378] sm:$0xff]
      %v10579 = vld [vmem:[%s4 + $0x380] sm:$0xff]
      %v10580 = vld [vmem:[%s4 + $0x388] sm:$0xff]
      %v10581 = vld [vmem:[%s4 + $0x390] sm:$0xff]
      %v10582 = vld [vmem:[%s4 + $0x398] sm:$0xff]
      %v10583 = vld [vmem:[%s4 + $0x3a0] sm:$0xff]
      %v10584 = vld [vmem:[%s4 + $0x3a8] sm:$0xff]
      %v10585 = vld [vmem:[%s4 + $0x3b0] sm:$0xff]
      %v10586 = vld [vmem:[%s4 + $0x3b8] sm:$0xff]
      %v10587 = vld [vmem:[%s4 + $0x3c0] sm:$0xff]
      %v10588 = vld [vmem:[%s4 + $0x3c8] sm:$0xff]
      %v10589 = vld [vmem:[%s4 + $0x3d0] sm:$0xff]
      %v10590 = vld [vmem:[%s4 + $0x3d8] sm:$0xff]
      %v10591 = vld [vmem:[%s4 + $0x3e0] sm:$0xff]
      %v10592 = vld [vmem:[%s4 + $0x3e8] sm:$0xff]
      %v10593 = vld [vmem:[%s4 + $0x3f0] sm:$0xff]
      %v10594 = vld [vmem:[%s4 + $0x3f8] sm:$0xff]
      %v10595 = vld [vmem:[%s4 + $0x400] sm:$0xff]
      %v10596 = vld [vmem:[%s4 + $0x408] sm:$0xff]
      %v10597 = vld [vmem:[%s4 + $0x410] sm:$0xff]
      %v10598 = vld [vmem:[%s4 + $0x418] sm:$0xff]
      %v10599 = vld [vmem:[%s4 + $0x420] sm:$0xff]
      %v10600 = vld [vmem:[%s4 + $0x428] sm:$0xff]
      %v10601 = vld [vmem:[%s4 + $0x430] sm:$0xff]
      %v10602 = vld [vmem:[%s4 + $0x438] sm:$0xff]
      %v10603 = vld [vmem:[%s4 + $0x440] sm:$0xff]
      %v10604 = vld [vmem:[%s4 + $0x448] sm:$0xff]
      %v10605 = vld [vmem:[%s4 + $0x450] sm:$0xff]
      %v10606 = vld [vmem:[%s4 + $0x458] sm:$0xff]
      %v10607 = vld [vmem:[%s4 + $0x460] sm:$0xff]
      %v10608 = vld [vmem:[%s4 + $0x468] sm:$0xff]
      %v10609 = vld [vmem:[%s4 + $0x470] sm:$0xff]
      %v10610 = vld [vmem:[%s4 + $0x478] sm:$0xff]
      %vm10635 = vcmask 1046528
      %v10636 = vrot.slane %v10437, 1
      %v10637 = vrot.slane %v10438, 1
      %v10638 = vsel %vm10635, %v10636, %v10637
      %v10639 = vrot.slane %v10439, 1
      %v10640 = vsel %vm10635, %v10637, %v10639
      %v10641 = vrot.slane %v10440, 1
      %v10642 = vrot.slane %v10441, 1
      %v10643 = vsel %vm10635, %v10641, %v10642
      %v10644 = vrot.slane %v10442, 1
      %v10645 = vsel %vm10635, %v10642, %v10644
      %v10646 = vrot.slane %v10443, 1
      %v10647 = vrot.slane %v10444, 1
      %v10648 = vsel %vm10635, %v10646, %v10647
      %v10649 = vrot.slane %v10445, 1
      %v10650 = vsel %vm10635, %v10647, %v10649
      %v10651 = vrot.slane %v10446, 1
      %v10652 = vrot.slane %v10447, 1
      %v10653 = vsel %vm10635, %v10651, %v10652
      %v10654 = vrot.slane %v10448, 1
      %v10655 = vsel %vm10635, %v10652, %v10654
      %v10656 = vrot.slane %v10449, 1
      %v10657 = vrot.slane %v10450, 1
      %v10658 = vsel %vm10635, %v10656, %v10657
      %v10659 = vrot.slane %v10451, 1
      %v10660 = vsel %vm10635, %v10657, %v10659
      %v10661 = vrot.slane %v10452, 1
      %v10662 = vrot.slane %v10453, 1
      %v10663 = vsel %vm10635, %v10661, %v10662
      %v10664 = vrot.slane %v10454, 1
      %v10665 = vsel %vm10635, %v10662, %v10664
      %v10666 = vrot.slane %v10455, 1
      %v10667 = vrot.slane %v10456, 1
      %v10668 = vsel %vm10635, %v10666, %v10667
      %v10669 = vrot.slane %v10457, 1
      %v10670 = vsel %vm10635, %v10667, %v10669
      %v10671 = vrot.slane %v10458, 1
      %v10672 = vrot.slane %v10459, 1
      %v10673 = vsel %vm10635, %v10671, %v10672
      %v10674 = vrot.slane %v10460, 1
      %v10675 = vsel %vm10635, %v10672, %v10674
      %vm10692 = vcmask 1045504
      %v10693 = vrot.slane %v10437, 2
      %v10694 = vrot.slane %v10438, 2
      %v10695 = vsel %vm10692, %v10693, %v10694
      %v10696 = vrot.slane %v10439, 2
      %v10697 = vsel %vm10692, %v10694, %v10696
      %v10698 = vrot.slane %v10440, 2
      %v10699 = vrot.slane %v10441, 2
      %v10700 = vsel %vm10692, %v10698, %v10699
      %v10701 = vrot.slane %v10442, 2
      %v10702 = vsel %vm10692, %v10699, %v10701
      %v10703 = vrot.slane %v10443, 2
      %v10704 = vrot.slane %v10444, 2
      %v10705 = vsel %vm10692, %v10703, %v10704
      %v10706 = vrot.slane %v10445, 2
      %v10707 = vsel %vm10692, %v10704, %v10706
      %v10708 = vrot.slane %v10446, 2
      %v10709 = vrot.slane %v10447, 2
      %v10710 = vsel %vm10692, %v10708, %v10709
      %v10711 = vrot.slane %v10448, 2
      %v10712 = vsel %vm10692, %v10709, %v10711
      %v10713 = vrot.slane %v10449, 2
      %v10714 = vrot.slane %v10450, 2
      %v10715 = vsel %vm10692, %v10713, %v10714
      %v10716 = vrot.slane %v10451, 2
      %v10717 = vsel %vm10692, %v10714, %v10716
      %v10718 = vrot.slane %v10452, 2
      %v10719 = vrot.slane %v10453, 2
      %v10720 = vsel %vm10692, %v10718, %v10719
      %v10721 = vrot.slane %v10454, 2
      %v10722 = vsel %vm10692, %v10719, %v10721
      %v10723 = vrot.slane %v10455, 2
      %v10724 = vrot.slane %v10456, 2
      %v10725 = vsel %vm10692, %v10723, %v10724
      %v10726 = vrot.slane %v10457, 2
      %v10727 = vsel %vm10692, %v10724, %v10726
      %v10728 = vrot.slane %v10458, 2
      %v10729 = vrot.slane %v10459, 2
      %v10730 = vsel %vm10692, %v10728, %v10729
      %v10731 = vrot.slane %v10460, 2
      %v10732 = vsel %vm10692, %v10729, %v10731
      %v10752 = vrot.slane %v10461, 1
      %v10753 = vrot.slane %v10462, 1
      %v10754 = vsel %vm10635, %v10752, %v10753
      %v10755 = vrot.slane %v10463, 1
      %v10756 = vsel %vm10635, %v10753, %v10755
      %v10759 = vrot.slane %v10461, 2
      %v10760 = vrot.slane %v10462, 2
      %v10761 = vsel %vm10692, %v10759, %v10760
      %v10762 = vrot.slane %v10463, 2
      %v10763 = vsel %vm10692, %v10760, %v10762
      %v10769 = vrot.slane %v10464, 1
      %v10770 = vrot.slane %v10465, 1
      %v10771 = vsel %vm10635, %v10769, %v10770
      %v10772 = vrot.slane %v10466, 1
      %v10773 = vsel %vm10635, %v10770, %v10772
      %v10776 = vrot.slane %v10464, 2
      %v10777 = vrot.slane %v10465, 2
      %v10778 = vsel %vm10692, %v10776, %v10777
      %v10779 = vrot.slane %v10466, 2
      %v10780 = vsel %vm10692, %v10777, %v10779
      %10783 = vmatprep.subr.mxu0 0.0
      %10784 = vmatpush1.msra.mxu0 %v10482
      %10785 = vmatprep.subr.mxu0 0.0
      %10786 = vmatpush1.msra.mxu0 %v10481
      %10787 = vmatprep.subr.mxu0 0.0
      %10788 = vmatpush1.msra.mxu0 %v10480
      %10789 = vmatprep.subr.mxu0 0.0
      %10790 = vmatpush1.msra.mxu0 %v10479
      %10791 = vmatprep.subr.mxu0 0.0
      %10792 = vmatpush1.msra.mxu0 %v10478
      %10793 = vmatprep.subr.mxu0 0.0
      %10794 = vmatpush1.msra.mxu0 %v10477
      %10795 = vmatprep.subr.mxu0 0.0
      %10796 = vmatpush1.msra.mxu0 %v10476
      %10797 = vmatprep.subr.mxu0 0.0
      %10798 = vmatpush1.msra.mxu0 %v10475
      %10799 = vmatprep.subr.mxu0 0.0
      %10800 = vmatpush1.msra.mxu0 %v10474
      %10801 = vmatprep.subr.mxu0 0.0
      %10802 = vmatpush1.msra.mxu0 %v10473
      %10803 = vmatprep.subr.mxu0 0.0
      %10804 = vmatpush1.msra.mxu0 %v10472
      %10805 = vmatprep.subr.mxu0 0.0
      %10806 = vmatpush1.msra.mxu0 %v10471
      %10807 = vmatprep.subr.mxu0 0.0
      %10808 = vmatpush1.msra.mxu0 %v10470
      %10809 = vmatprep.subr.mxu0 0.0
      %10810 = vmatpush1.msra.mxu0 %v10469
      %10811 = vmatprep.subr.mxu0 0.0
      %10812 = vmatpush1.msra.mxu0 %v10468
      %10813 = vmatprep.subr.mxu0 0.0
      %10814 = vmatpush1.msra.mxu0 %v10467
      %10815 = vmatprep.subr.mxu0 0.0
      %10816 = vmatpush2.msra.mxu0 %v10498
      %10817 = vmatprep.subr.mxu0 0.0
      %10818 = vmatpush2.msra.mxu0 %v10497
      %10819 = vmatprep.subr.mxu0 0.0
      %10820 = vmatpush2.msra.mxu0 %v10496
      %10821 = vmatprep.subr.mxu0 0.0
      %10822 = vmatpush2.msra.mxu0 %v10495
      %10823 = vmatprep.subr.mxu0 0.0
      %10824 = vmatpush2.msra.mxu0 %v10494
      %10825 = vmatprep.subr.mxu0 0.0
      %10826 = vmatpush2.msra.mxu0 %v10493
      %10827 = vmatprep.subr.mxu0 0.0
      %10828 = vmatpush2.msra.mxu0 %v10492
      %10829 = vmatprep.subr.mxu0 0.0
      %10830 = vmatpush2.msra.mxu0 %v10491
      %10831 = vmatprep.subr.mxu0 0.0
      %10832 = vmatpush2.msra.mxu0 %v10490
      %10833 = vmatprep.subr.mxu0 0.0
      %10834 = vmatpush2.msra.mxu0 %v10489
      %10835 = vmatprep.subr.mxu0 0.0
      %10836 = vmatpush2.msra.mxu0 %v10488
      %10837 = vmatprep.subr.mxu0 0.0
      %10838 = vmatpush2.msra.mxu0 %v10487
      %10839 = vmatprep.subr.mxu0 0.0
      %10840 = vmatpush2.msra.mxu0 %v10486
      %10841 = vmatprep.subr.mxu0 0.0
      %10842 = vmatpush2.msra.mxu0 %v10485
      %10843 = vmatprep.subr.mxu0 0.0
      %10844 = vmatpush2.msra.mxu0 %v10484
      %10845 = vmatprep.subr.mxu0 0.0
      %10846 = vmatpush2.msra.mxu0 %v10483
      %10847 = vmatprep.mubr.f32.mxu0 %v10638
      %10848 = vmatmul.mubr.f32.gmra.mxu0 %v10437
      %v10849 = vpop.f32.mrf.mxu0
      %v10850 = vadd.f32 0.0, %v10849
      %v10851 = vpop.f32.mrf.mxu0
      %10852 = vmatprep.mubr.f32.mxu0 %v10640
      %10853 = vmatmul.mubr.f32.gmra.mxu0 %v10438
      %v10854 = vpop.f32.mrf.mxu0
      %v10855 = vadd.f32 0.0, %v10854
      %v10856 = vpop.f32.mrf.mxu0
      %10857 = vmatprep.mubr.f32.mxu0 %v10643
      %10858 = vmatmul.mubr.f32.gmra.mxu0 %v10440
      %v10859 = vpop.f32.mrf.mxu0
      %v10860 = vadd.f32 0.0, %v10859
      %v10861 = vpop.f32.mrf.mxu0
      %10862 = vmatprep.mubr.f32.mxu0 %v10645
      %10863 = vmatmul.mubr.f32.gmra.mxu0 %v10441
      %v10864 = vpop.f32.mrf.mxu0
      %v10865 = vadd.f32 0.0, %v10864
      %v10866 = vpop.f32.mrf.mxu0
      %10867 = vmatprep.mubr.f32.mxu0 %v10648
      %10868 = vmatmul.mubr.f32.gmra.mxu0 %v10443
      %v10869 = vpop.f32.mrf.mxu0
      %v10870 = vadd.f32 0.0, %v10869
      %v10871 = vpop.f32.mrf.mxu0
      %10872 = vmatprep.mubr.f32.mxu0 %v10650
      %10873 = vmatmul.mubr.f32.gmra.mxu0 %v10444
      %v10874 = vpop.f32.mrf.mxu0
      %v10875 = vadd.f32 0.0, %v10874
      %v10876 = vpop.f32.mrf.mxu0
      %10877 = vmatprep.mubr.f32.mxu0 %v10653
      %10878 = vmatmul.mubr.f32.gmra.mxu0 %v10446
      %v10879 = vpop.f32.mrf.mxu0
      %v10880 = vadd.f32 0.0, %v10879
      %v10881 = vpop.f32.mrf.mxu0
      %10882 = vmatprep.mubr.f32.mxu0 %v10655
      %10883 = vmatmul.mubr.f32.gmra.mxu0 %v10447
      %v10884 = vpop.f32.mrf.mxu0
      %v10885 = vadd.f32 0.0, %v10884
      %v10886 = vpop.f32.mrf.mxu0
      %10887 = vmatprep.mubr.f32.mxu0 %v10658
      %10888 = vmatmul.mubr.f32.gmra.mxu0 %v10449
      %v10889 = vpop.f32.mrf.mxu0
      %v10890 = vadd.f32 0.0, %v10889
      %v10891 = vpop.f32.mrf.mxu0
      %10892 = vmatprep.mubr.f32.mxu0 %v10660
      %10893 = vmatmul.mubr.f32.gmra.mxu0 %v10450
      %v10894 = vpop.f32.mrf.mxu0
      %v10895 = vadd.f32 0.0, %v10894
      %v10896 = vpop.f32.mrf.mxu0
      %10897 = vmatprep.mubr.f32.mxu0 %v10663
      %10898 = vmatmul.mubr.f32.gmra.mxu0 %v10452
      %v10899 = vpop.f32.mrf.mxu0
      %v10900 = vadd.f32 0.0, %v10899
      %v10901 = vpop.f32.mrf.mxu0
      %10902 = vmatprep.mubr.f32.mxu0 %v10665
      %10903 = vmatmul.mubr.f32.gmra.mxu0 %v10453
      %v10904 = vpop.f32.mrf.mxu0
      %v10905 = vadd.f32 0.0, %v10904
      %v10906 = vpop.f32.mrf.mxu0
      %10907 = vmatprep.mubr.f32.mxu0 %v10668
      %10908 = vmatmul.mubr.f32.gmra.mxu0 %v10455
      %v10909 = vpop.f32.mrf.mxu0
      %v10910 = vadd.f32 0.0, %v10909
      %v10911 = vpop.f32.mrf.mxu0
      %10912 = vmatprep.mubr.f32.mxu0 %v10670
      %10913 = vmatmul.mubr.f32.gmra.mxu0 %v10456
      %v10914 = vpop.f32.mrf.mxu0
      %v10915 = vadd.f32 0.0, %v10914
      %v10916 = vpop.f32.mrf.mxu0
      %10917 = vmatprep.mubr.f32.mxu0 %v10673
      %10918 = vmatmul.mubr.f32.gmra.mxu0 %v10458
      %v10919 = vpop.f32.mrf.mxu0
      %v10920 = vadd.f32 0.0, %v10919
      %v10921 = vpop.f32.mrf.mxu0
      %10922 = vmatprep.mubr.f32.mxu0 %v10675
      %10923 = vmatmul.mubr.f32.gmra.mxu0 %v10459
      %v10924 = vpop.f32.mrf.mxu0
      %v10925 = vadd.f32 0.0, %v10924
      %v10926 = vpop.f32.mrf.mxu0
      %10927 = vdwg.mxu0
      %10928 = vmatprep.subr.mxu0 0.0
      %10929 = vmatpush1.msra.mxu0 %v10514
      %10930 = vmatprep.subr.mxu0 0.0
      %10931 = vmatpush1.msra.mxu0 %v10513
      %10932 = vmatprep.subr.mxu0 0.0
      %10933 = vmatpush1.msra.mxu0 %v10512
      %10934 = vmatprep.subr.mxu0 0.0
      %10935 = vmatpush1.msra.mxu0 %v10511
      %10936 = vmatprep.subr.mxu0 0.0
      %10937 = vmatpush1.msra.mxu0 %v10510
      %10938 = vmatprep.subr.mxu0 0.0
      %10939 = vmatpush1.msra.mxu0 %v10509
      %10940 = vmatprep.subr.mxu0 0.0
      %10941 = vmatpush1.msra.mxu0 %v10508
      %10942 = vmatprep.subr.mxu0 0.0
      %10943 = vmatpush1.msra.mxu0 %v10507
      %10944 = vmatprep.subr.mxu0 0.0
      %10945 = vmatpush1.msra.mxu0 %v10506
      %10946 = vmatprep.subr.mxu0 0.0
      %10947 = vmatpush1.msra.mxu0 %v10505
      %10948 = vmatprep.subr.mxu0 0.0
      %10949 = vmatpush1.msra.mxu0 %v10504
      %10950 = vmatprep.subr.mxu0 0.0
      %10951 = vmatpush1.msra.mxu0 %v10503
      %10952 = vmatprep.subr.mxu0 0.0
      %10953 = vmatpush1.msra.mxu0 %v10502
      %10954 = vmatprep.subr.mxu0 0.0
      %10955 = vmatpush1.msra.mxu0 %v10501
      %10956 = vmatprep.subr.mxu0 0.0
      %10957 = vmatpush1.msra.mxu0 %v10500
      %10958 = vmatprep.subr.mxu0 0.0
      %10959 = vmatpush1.msra.mxu0 %v10499
      %10960 = vmatprep.subr.mxu0 0.0
      %10961 = vmatpush2.msra.mxu0 %v10530
      %10962 = vmatprep.subr.mxu0 0.0
      %10963 = vmatpush2.msra.mxu0 %v10529
      %10964 = vmatprep.subr.mxu0 0.0
      %10965 = vmatpush2.msra.mxu0 %v10528
      %10966 = vmatprep.subr.mxu0 0.0
      %10967 = vmatpush2.msra.mxu0 %v10527
      %10968 = vmatprep.subr.mxu0 0.0
      %10969 = vmatpush2.msra.mxu0 %v10526
      %10970 = vmatprep.subr.mxu0 0.0
      %10971 = vmatpush2.msra.mxu0 %v10525
      %10972 = vmatprep.subr.mxu0 0.0
      %10973 = vmatpush2.msra.mxu0 %v10524
      %10974 = vmatprep.subr.mxu0 0.0
      %10975 = vmatpush2.msra.mxu0 %v10523
      %10976 = vmatprep.subr.mxu0 0.0
      %10977 = vmatpush2.msra.mxu0 %v10522
      %10978 = vmatprep.subr.mxu0 0.0
      %10979 = vmatpush2.msra.mxu0 %v10521
      %10980 = vmatprep.subr.mxu0 0.0
      %10981 = vmatpush2.msra.mxu0 %v10520
      %10982 = vmatprep.subr.mxu0 0.0
      %10983 = vmatpush2.msra.mxu0 %v10519
      %10984 = vmatprep.subr.mxu0 0.0
      %10985 = vmatpush2.msra.mxu0 %v10518
      %10986 = vmatprep.subr.mxu0 0.0
      %10987 = vmatpush2.msra.mxu0 %v10517
      %10988 = vmatprep.subr.mxu0 0.0
      %10989 = vmatpush2.msra.mxu0 %v10516
      %10990 = vmatprep.subr.mxu0 0.0
      %10991 = vmatpush2.msra.mxu0 %v10515
      %10992 = vmatprep.mubr.f32.mxu0 %v10440
      %10993 = vmatmul.mubr.f32.gmra.mxu0 %v10695
      %v10994 = vpop.f32.mrf.mxu0
      %v10995 = vadd.f32 %v10850, %v10994
      %v10996 = vpop.f32.mrf.mxu0
      %10997 = vmatprep.mubr.f32.mxu0 %v10441
      %10998 = vmatmul.mubr.f32.gmra.mxu0 %v10697
      %v10999 = vpop.f32.mrf.mxu0
      %v11000 = vadd.f32 %v10855, %v10999
      %v11001 = vpop.f32.mrf.mxu0
      %11002 = vmatprep.mubr.f32.mxu0 %v10443
      %11003 = vmatmul.mubr.f32.gmra.mxu0 %v10700
      %v11004 = vpop.f32.mrf.mxu0
      %v11005 = vadd.f32 %v10860, %v11004
      %v11006 = vpop.f32.mrf.mxu0
      %11007 = vmatprep.mubr.f32.mxu0 %v10444
      %11008 = vmatmul.mubr.f32.gmra.mxu0 %v10702
      %v11009 = vpop.f32.mrf.mxu0
      %v11010 = vadd.f32 %v10865, %v11009
      %v11011 = vpop.f32.mrf.mxu0
      %11012 = vmatprep.mubr.f32.mxu0 %v10446
      %11013 = vmatmul.mubr.f32.gmra.mxu0 %v10705
      %v11014 = vpop.f32.mrf.mxu0
      %v11015 = vadd.f32 %v10870, %v11014
      %v11016 = vpop.f32.mrf.mxu0
      %11017 = vmatprep.mubr.f32.mxu0 %v10447
      %11018 = vmatmul.mubr.f32.gmra.mxu0 %v10707
      %v11019 = vpop.f32.mrf.mxu0
      %v11020 = vadd.f32 %v10875, %v11019
      %v11021 = vpop.f32.mrf.mxu0
      %11022 = vmatprep.mubr.f32.mxu0 %v10449
      %11023 = vmatmul.mubr.f32.gmra.mxu0 %v10710
      %v11024 = vpop.f32.mrf.mxu0
      %v11025 = vadd.f32 %v10880, %v11024
      %v11026 = vpop.f32.mrf.mxu0
      %11027 = vmatprep.mubr.f32.mxu0 %v10450
      %11028 = vmatmul.mubr.f32.gmra.mxu0 %v10712
      %v11029 = vpop.f32.mrf.mxu0
      %v11030 = vadd.f32 %v10885, %v11029
      %v11031 = vpop.f32.mrf.mxu0
      %11032 = vmatprep.mubr.f32.mxu0 %v10452
      %11033 = vmatmul.mubr.f32.gmra.mxu0 %v10715
      %v11034 = vpop.f32.mrf.mxu0
      %v11035 = vadd.f32 %v10890, %v11034
      %v11036 = vpop.f32.mrf.mxu0
      %11037 = vmatprep.mubr.f32.mxu0 %v10453
      %11038 = vmatmul.mubr.f32.gmra.mxu0 %v10717
      %v11039 = vpop.f32.mrf.mxu0
      %v11040 = vadd.f32 %v10895, %v11039
      %v11041 = vpop.f32.mrf.mxu0
      %11042 = vmatprep.mubr.f32.mxu0 %v10455
      %11043 = vmatmul.mubr.f32.gmra.mxu0 %v10720
      %v11044 = vpop.f32.mrf.mxu0
      %v11045 = vadd.f32 %v10900, %v11044
      %v11046 = vpop.f32.mrf.mxu0
      %11047 = vmatprep.mubr.f32.mxu0 %v10456
      %11048 = vmatmul.mubr.f32.gmra.mxu0 %v10722
      %v11049 = vpop.f32.mrf.mxu0
      %v11050 = vadd.f32 %v10905, %v11049
      %v11051 = vpop.f32.mrf.mxu0
      %11052 = vmatprep.mubr.f32.mxu0 %v10458
      %11053 = vmatmul.mubr.f32.gmra.mxu0 %v10725
      %v11054 = vpop.f32.mrf.mxu0
      %v11055 = vadd.f32 %v10910, %v11054
      %v11056 = vpop.f32.mrf.mxu0
      %11057 = vmatprep.mubr.f32.mxu0 %v10459
      %11058 = vmatmul.mubr.f32.gmra.mxu0 %v10727
      %v11059 = vpop.f32.mrf.mxu0
      %v11060 = vadd.f32 %v10915, %v11059
      %v11061 = vpop.f32.mrf.mxu0
      %11062 = vmatprep.mubr.f32.mxu0 %v10461
      %11063 = vmatmul.mubr.f32.gmra.mxu0 %v10730
      %v11064 = vpop.f32.mrf.mxu0
      %v11065 = vadd.f32 %v10920, %v11064
      %v11066 = vpop.f32.mrf.mxu0
      %11067 = vmatprep.mubr.f32.mxu0 %v10462
      %11068 = vmatmul.mubr.f32.gmra.mxu0 %v10732
      %v11069 = vpop.f32.mrf.mxu0
      %v11070 = vadd.f32 %v10925, %v11069
      %v11071 = vpop.f32.mrf.mxu0
      %11072 = vdwg.mxu0
      %11073 = vmatprep.subr.mxu0 0.0
      %11074 = vmatpush1.msra.mxu0 %v10546
      %11075 = vmatprep.subr.mxu0 0.0
      %11076 = vmatpush1.msra.mxu0 %v10545
      %11077 = vmatprep.subr.mxu0 0.0
      %11078 = vmatpush1.msra.mxu0 %v10544
      %11079 = vmatprep.subr.mxu0 0.0
      %11080 = vmatpush1.msra.mxu0 %v10543
      %11081 = vmatprep.subr.mxu0 0.0
      %11082 = vmatpush1.msra.mxu0 %v10542
      %11083 = vmatprep.subr.mxu0 0.0
      %11084 = vmatpush1.msra.mxu0 %v10541
      %11085 = vmatprep.subr.mxu0 0.0
      %11086 = vmatpush1.msra.mxu0 %v10540
      %11087 = vmatprep.subr.mxu0 0.0
      %11088 = vmatpush1.msra.mxu0 %v10539
      %11089 = vmatprep.subr.mxu0 0.0
      %11090 = vmatpush1.msra.mxu0 %v10538
      %11091 = vmatprep.subr.mxu0 0.0
      %11092 = vmatpush1.msra.mxu0 %v10537
      %11093 = vmatprep.subr.mxu0 0.0
      %11094 = vmatpush1.msra.mxu0 %v10536
      %11095 = vmatprep.subr.mxu0 0.0
      %11096 = vmatpush1.msra.mxu0 %v10535
      %11097 = vmatprep.subr.mxu0 0.0
      %11098 = vmatpush1.msra.mxu0 %v10534
      %11099 = vmatprep.subr.mxu0 0.0
      %11100 = vmatpush1.msra.mxu0 %v10533
      %11101 = vmatprep.subr.mxu0 0.0
      %11102 = vmatpush1.msra.mxu0 %v10532
      %11103 = vmatprep.subr.mxu0 0.0
      %11104 = vmatpush1.msra.mxu0 %v10531
      %11105 = vmatprep.subr.mxu0 0.0
      %11106 = vmatpush2.msra.mxu0 %v10562
      %11107 = vmatprep.subr.mxu0 0.0
      %11108 = vmatpush2.msra.mxu0 %v10561
      %11109 = vmatprep.subr.mxu0 0.0
      %11110 = vmatpush2.msra.mxu0 %v10560
      %11111 = vmatprep.subr.mxu0 0.0
      %11112 = vmatpush2.msra.mxu0 %v10559
      %11113 = vmatprep.subr.mxu0 0.0
      %11114 = vmatpush2.msra.mxu0 %v10558
      %11115 = vmatprep.subr.mxu0 0.0
      %11116 = vmatpush2.msra.mxu0 %v10557
      %11117 = vmatprep.subr.mxu0 0.0
      %11118 = vmatpush2.msra.mxu0 %v10556
      %11119 = vmatprep.subr.mxu0 0.0
      %11120 = vmatpush2.msra.mxu0 %v10555
      %11121 = vmatprep.subr.mxu0 0.0
      %11122 = vmatpush2.msra.mxu0 %v10554
      %11123 = vmatprep.subr.mxu0 0.0
      %11124 = vmatpush2.msra.mxu0 %v10553
      %11125 = vmatprep.subr.mxu0 0.0
      %11126 = vmatpush2.msra.mxu0 %v10552
      %11127 = vmatprep.subr.mxu0 0.0
      %11128 = vmatpush2.msra.mxu0 %v10551
      %11129 = vmatprep.subr.mxu0 0.0
      %11130 = vmatpush2.msra.mxu0 %v10550
      %11131 = vmatprep.subr.mxu0 0.0
      %11132 = vmatpush2.msra.mxu0 %v10549
      %11133 = vmatprep.subr.mxu0 0.0
      %11134 = vmatpush2.msra.mxu0 %v10548
      %11135 = vmatprep.subr.mxu0 0.0
      %11136 = vmatpush2.msra.mxu0 %v10547
      %11137 = vmatprep.mubr.f32.mxu0 %v10700
      %11138 = vmatmul.mubr.f32.gmra.mxu0 %v10643
      %v11139 = vpop.f32.mrf.mxu0
      %v11140 = vadd.f32 %v10995, %v11139
      %v11141 = vpop.f32.mrf.mxu0
      %11142 = vmatprep.mubr.f32.mxu0 %v10702
      %11143 = vmatmul.mubr.f32.gmra.mxu0 %v10645
      %v11144 = vpop.f32.mrf.mxu0
      %v11145 = vadd.f32 %v11000, %v11144
      %v11146 = vpop.f32.mrf.mxu0
      %11147 = vmatprep.mubr.f32.mxu0 %v10705
      %11148 = vmatmul.mubr.f32.gmra.mxu0 %v10648
      %v11149 = vpop.f32.mrf.mxu0
      %v11150 = vadd.f32 %v11005, %v11149
      %v11151 = vpop.f32.mrf.mxu0
      %11152 = vmatprep.mubr.f32.mxu0 %v10707
      %11153 = vmatmul.mubr.f32.gmra.mxu0 %v10650
      %v11154 = vpop.f32.mrf.mxu0
      %v11155 = vadd.f32 %v11010, %v11154
      %v11156 = vpop.f32.mrf.mxu0
      %11157 = vmatprep.mubr.f32.mxu0 %v10710
      %11158 = vmatmul.mubr.f32.gmra.mxu0 %v10653
      %v11159 = vpop.f32.mrf.mxu0
      %v11160 = vadd.f32 %v11015, %v11159
      %v11161 = vpop.f32.mrf.mxu0
      %11162 = vmatprep.mubr.f32.mxu0 %v10712
      %11163 = vmatmul.mubr.f32.gmra.mxu0 %v10655
      %v11164 = vpop.f32.mrf.mxu0
      %v11165 = vadd.f32 %v11020, %v11164
      %v11166 = vpop.f32.mrf.mxu0
      %11167 = vmatprep.mubr.f32.mxu0 %v10715
      %11168 = vmatmul.mubr.f32.gmra.mxu0 %v10658
      %v11169 = vpop.f32.mrf.mxu0
      %v11170 = vadd.f32 %v11025, %v11169
      %v11171 = vpop.f32.mrf.mxu0
      %11172 = vmatprep.mubr.f32.mxu0 %v10717
      %11173 = vmatmul.mubr.f32.gmra.mxu0 %v10660
      %v11174 = vpop.f32.mrf.mxu0
      %v11175 = vadd.f32 %v11030, %v11174
      %v11176 = vpop.f32.mrf.mxu0
      %11177 = vmatprep.mubr.f32.mxu0 %v10720
      %11178 = vmatmul.mubr.f32.gmra.mxu0 %v10663
      %v11179 = vpop.f32.mrf.mxu0
      %v11180 = vadd.f32 %v11035, %v11179
      %v11181 = vpop.f32.mrf.mxu0
      %11182 = vmatprep.mubr.f32.mxu0 %v10722
      %11183 = vmatmul.mubr.f32.gmra.mxu0 %v10665
      %v11184 = vpop.f32.mrf.mxu0
      %v11185 = vadd.f32 %v11040, %v11184
      %v11186 = vpop.f32.mrf.mxu0
      %11187 = vmatprep.mubr.f32.mxu0 %v10725
      %11188 = vmatmul.mubr.f32.gmra.mxu0 %v10668
      %v11189 = vpop.f32.mrf.mxu0
      %v11190 = vadd.f32 %v11045, %v11189
      %v11191 = vpop.f32.mrf.mxu0
      %11192 = vmatprep.mubr.f32.mxu0 %v10727
      %11193 = vmatmul.mubr.f32.gmra.mxu0 %v10670
      %v11194 = vpop.f32.mrf.mxu0
      %v11195 = vadd.f32 %v11050, %v11194
      %v11196 = vpop.f32.mrf.mxu0
      %11197 = vmatprep.mubr.f32.mxu0 %v10730
      %11198 = vmatmul.mubr.f32.gmra.mxu0 %v10673
      %v11199 = vpop.f32.mrf.mxu0
      %v11200 = vadd.f32 %v11055, %v11199
      %v11201 = vpop.f32.mrf.mxu0
      %11202 = vmatprep.mubr.f32.mxu0 %v10732
      %11203 = vmatmul.mubr.f32.gmra.mxu0 %v10675
      %v11204 = vpop.f32.mrf.mxu0
      %v11205 = vadd.f32 %v11060, %v11204
      %v11206 = vpop.f32.mrf.mxu0
      %11207 = vmatprep.mubr.f32.mxu0 %v10761
      %11208 = vmatmul.mubr.f32.gmra.mxu0 %v10754
      %v11209 = vpop.f32.mrf.mxu0
      %v11210 = vadd.f32 %v11065, %v11209
      %v11211 = vpop.f32.mrf.mxu0
      %11212 = vmatprep.mubr.f32.mxu0 %v10763
      %11213 = vmatmul.mubr.f32.gmra.mxu0 %v10756
      %v11214 = vpop.f32.mrf.mxu0
      %v11215 = vadd.f32 %v11070, %v11214
      %v11216 = vpop.f32.mrf.mxu0
      %11217 = vdwg.mxu0
      %11218 = vmatprep.subr.mxu0 0.0
      %11219 = vmatpush1.msra.mxu0 %v10578
      %11220 = vmatprep.subr.mxu0 0.0
      %11221 = vmatpush1.msra.mxu0 %v10577
      %11222 = vmatprep.subr.mxu0 0.0
      %11223 = vmatpush1.msra.mxu0 %v10576
      %11224 = vmatprep.subr.mxu0 0.0
      %11225 = vmatpush1.msra.mxu0 %v10575
      %11226 = vmatprep.subr.mxu0 0.0
      %11227 = vmatpush1.msra.mxu0 %v10574
      %11228 = vmatprep.subr.mxu0 0.0
      %11229 = vmatpush1.msra.mxu0 %v10573
      %11230 = vmatprep.subr.mxu0 0.0
      %11231 = vmatpush1.msra.mxu0 %v10572
      %11232 = vmatprep.subr.mxu0 0.0
      %11233 = vmatpush1.msra.mxu0 %v10571
      %11234 = vmatprep.subr.mxu0 0.0
      %11235 = vmatpush1.msra.mxu0 %v10570
      %11236 = vmatprep.subr.mxu0 0.0
      %11237 = vmatpush1.msra.mxu0 %v10569
      %11238 = vmatprep.subr.mxu0 0.0
      %11239 = vmatpush1.msra.mxu0 %v10568
      %11240 = vmatprep.subr.mxu0 0.0
      %11241 = vmatpush1.msra.mxu0 %v10567
      %11242 = vmatprep.subr.mxu0 0.0
      %11243 = vmatpush1.msra.mxu0 %v10566
      %11244 = vmatprep.subr.mxu0 0.0
      %11245 = vmatpush1.msra.mxu0 %v10565
      %11246 = vmatprep.subr.mxu0 0.0
      %11247 = vmatpush1.msra.mxu0 %v10564
      %11248 = vmatprep.subr.mxu0 0.0
      %11249 = vmatpush1.msra.mxu0 %v10563
      %11250 = vmatprep.subr.mxu0 0.0
      %11251 = vmatpush2.msra.mxu0 %v10594
      %11252 = vmatprep.subr.mxu0 0.0
      %11253 = vmatpush2.msra.mxu0 %v10593
      %11254 = vmatprep.subr.mxu0 0.0
      %11255 = vmatpush2.msra.mxu0 %v10592
      %11256 = vmatprep.subr.mxu0 0.0
      %11257 = vmatpush2.msra.mxu0 %v10591
      %11258 = vmatprep.subr.mxu0 0.0
      %11259 = vmatpush2.msra.mxu0 %v10590
      %11260 = vmatprep.subr.mxu0 0.0
      %11261 = vmatpush2.msra.mxu0 %v10589
      %11262 = vmatprep.subr.mxu0 0.0
      %11263 = vmatpush2.msra.mxu0 %v10588
      %11264 = vmatprep.subr.mxu0 0.0
      %11265 = vmatpush2.msra.mxu0 %v10587
      %11266 = vmatprep.subr.mxu0 0.0
      %11267 = vmatpush2.msra.mxu0 %v10586
      %11268 = vmatprep.subr.mxu0 0.0
      %11269 = vmatpush2.msra.mxu0 %v10585
      %11270 = vmatprep.subr.mxu0 0.0
      %11271 = vmatpush2.msra.mxu0 %v10584
      %11272 = vmatprep.subr.mxu0 0.0
      %11273 = vmatpush2.msra.mxu0 %v10583
      %11274 = vmatprep.subr.mxu0 0.0
      %11275 = vmatpush2.msra.mxu0 %v10582
      %11276 = vmatprep.subr.mxu0 0.0
      %11277 = vmatpush2.msra.mxu0 %v10581
      %11278 = vmatprep.subr.mxu0 0.0
      %11279 = vmatpush2.msra.mxu0 %v10580
      %11280 = vmatprep.subr.mxu0 0.0
      %11281 = vmatpush2.msra.mxu0 %v10579
      %11282 = vmatprep.mubr.f32.mxu0 %v10648
      %11283 = vmatmul.mubr.f32.gmra.mxu0 %v10443
      %v11284 = vpop.f32.mrf.mxu0
      %v11285 = vadd.f32 %v11140, %v11284
      %v11286 = vpop.f32.mrf.mxu0
      %11287 = vmatprep.mubr.f32.mxu0 %v10650
      %11288 = vmatmul.mubr.f32.gmra.mxu0 %v10444
      %v11289 = vpop.f32.mrf.mxu0
      %v11290 = vadd.f32 %v11145, %v11289
      %v11291 = vpop.f32.mrf.mxu0
      %11292 = vmatprep.mubr.f32.mxu0 %v10653
      %11293 = vmatmul.mubr.f32.gmra.mxu0 %v10446
      %v11294 = vpop.f32.mrf.mxu0
      %v11295 = vadd.f32 %v11150, %v11294
      %v11296 = vpop.f32.mrf.mxu0
      %11297 = vmatprep.mubr.f32.mxu0 %v10655
      %11298 = vmatmul.mubr.f32.gmra.mxu0 %v10447
      %v11299 = vpop.f32.mrf.mxu0
      %v11300 = vadd.f32 %v11155, %v11299
      %v11301 = vpop.f32.mrf.mxu0
      %11302 = vmatprep.mubr.f32.mxu0 %v10658
      %11303 = vmatmul.mubr.f32.gmra.mxu0 %v10449
      %v11304 = vpop.f32.mrf.mxu0
      %v11305 = vadd.f32 %v11160, %v11304
      %v11306 = vpop.f32.mrf.mxu0
      %11307 = vmatprep.mubr.f32.mxu0 %v10660
      %11308 = vmatmul.mubr.f32.gmra.mxu0 %v10450
      %v11309 = vpop.f32.mrf.mxu0
      %v11310 = vadd.f32 %v11165, %v11309
      %v11311 = vpop.f32.mrf.mxu0
      %11312 = vmatprep.mubr.f32.mxu0 %v10663
      %11313 = vmatmul.mubr.f32.gmra.mxu0 %v10452
      %v11314 = vpop.f32.mrf.mxu0
      %v11315 = vadd.f32 %v11170, %v11314
      %v11316 = vpop.f32.mrf.mxu0
      %11317 = vmatprep.mubr.f32.mxu0 %v10665
      %11318 = vmatmul.mubr.f32.gmra.mxu0 %v10453
      %v11319 = vpop.f32.mrf.mxu0
      %v11320 = vadd.f32 %v11175, %v11319
      %v11321 = vpop.f32.mrf.mxu0
      %11322 = vmatprep.mubr.f32.mxu0 %v10668
      %11323 = vmatmul.mubr.f32.gmra.mxu0 %v10455
      %v11324 = vpop.f32.mrf.mxu0
      %v11325 = vadd.f32 %v11180, %v11324
      %v11326 = vpop.f32.mrf.mxu0
      %11327 = vmatprep.mubr.f32.mxu0 %v10670
      %11328 = vmatmul.mubr.f32.gmra.mxu0 %v10456
      %v11329 = vpop.f32.mrf.mxu0
      %v11330 = vadd.f32 %v11185, %v11329
      %v11331 = vpop.f32.mrf.mxu0
      %11332 = vmatprep.mubr.f32.mxu0 %v10673
      %11333 = vmatmul.mubr.f32.gmra.mxu0 %v10458
      %v11334 = vpop.f32.mrf.mxu0
      %v11335 = vadd.f32 %v11190, %v11334
      %v11336 = vpop.f32.mrf.mxu0
      %11337 = vmatprep.mubr.f32.mxu0 %v10675
      %11338 = vmatmul.mubr.f32.gmra.mxu0 %v10459
      %v11339 = vpop.f32.mrf.mxu0
      %v11340 = vadd.f32 %v11195, %v11339
      %v11341 = vpop.f32.mrf.mxu0
      %11342 = vmatprep.mubr.f32.mxu0 %v10754
      %11343 = vmatmul.mubr.f32.gmra.mxu0 %v10461
      %v11344 = vpop.f32.mrf.mxu0
      %v11345 = vadd.f32 %v11200, %v11344
      %v11346 = vpop.f32.mrf.mxu0
      %11347 = vmatprep.mubr.f32.mxu0 %v10756
      %11348 = vmatmul.mubr.f32.gmra.mxu0 %v10462
      %v11349 = vpop.f32.mrf.mxu0
      %v11350 = vadd.f32 %v11205, %v11349
      %v11351 = vpop.f32.mrf.mxu0
      %11352 = vmatprep.mubr.f32.mxu0 %v10771
      %11353 = vmatmul.mubr.f32.gmra.mxu0 %v10464
      %v11354 = vpop.f32.mrf.mxu0
      %v11355 = vadd.f32 %v11210, %v11354
      %v11356 = vpop.f32.mrf.mxu0
      %11357 = vmatprep.mubr.f32.mxu0 %v10773
      %11358 = vmatmul.mubr.f32.gmra.mxu0 %v10465
      %v11359 = vpop.f32.mrf.mxu0
      %v11360 = vadd.f32 %v11215, %v11359
      %v11361 = vpop.f32.mrf.mxu0
      %11362 = vdwg.mxu0
      %11363 = vmatprep.subr.mxu0 0.0
      %11364 = vmatpush1.msra.mxu0 %v10610
      %11365 = vmatprep.subr.mxu0 0.0
      %11366 = vmatpush1.msra.mxu0 %v10609
      %11367 = vmatprep.subr.mxu0 0.0
      %11368 = vmatpush1.msra.mxu0 %v10608
      %11369 = vmatprep.subr.mxu0 0.0
      %11370 = vmatpush1.msra.mxu0 %v10607
      %11371 = vmatprep.subr.mxu0 0.0
      %11372 = vmatpush1.msra.mxu0 %v10606
      %11373 = vmatprep.subr.mxu0 0.0
      %11374 = vmatpush1.msra.mxu0 %v10605
      %11375 = vmatprep.subr.mxu0 0.0
      %11376 = vmatpush1.msra.mxu0 %v10604
      %11377 = vmatprep.subr.mxu0 0.0
      %11378 = vmatpush1.msra.mxu0 %v10603
      %11379 = vmatprep.subr.mxu0 0.0
      %11380 = vmatpush1.msra.mxu0 %v10602
      %11381 = vmatprep.subr.mxu0 0.0
      %11382 = vmatpush1.msra.mxu0 %v10601
      %11383 = vmatprep.subr.mxu0 0.0
      %11384 = vmatpush1.msra.mxu0 %v10600
      %11385 = vmatprep.subr.mxu0 0.0
      %11386 = vmatpush1.msra.mxu0 %v10599
      %11387 = vmatprep.subr.mxu0 0.0
      %11388 = vmatpush1.msra.mxu0 %v10598
      %11389 = vmatprep.subr.mxu0 0.0
      %11390 = vmatpush1.msra.mxu0 %v10597
      %11391 = vmatprep.subr.mxu0 0.0
      %11392 = vmatpush1.msra.mxu0 %v10596
      %11393 = vmatprep.subr.mxu0 0.0
      %11394 = vmatpush1.msra.mxu0 %v10595
      %11395 = vmatprep.subr.mxu0 0.0
      %11396 = vmatpush2.msra.mxu0 0.0
      %11397 = vmatprep.subr.mxu0 0.0
      %11398 = vmatpush2.msra.mxu0 0.0
      %11399 = vmatprep.subr.mxu0 0.0
      %11400 = vmatpush2.msra.mxu0 0.0
      %11401 = vmatprep.subr.mxu0 0.0
      %11402 = vmatpush2.msra.mxu0 0.0
      %11403 = vmatprep.subr.mxu0 0.0
      %11404 = vmatpush2.msra.mxu0 0.0
      %11405 = vmatprep.subr.mxu0 0.0
      %11406 = vmatpush2.msra.mxu0 0.0
      %11407 = vmatprep.subr.mxu0 0.0
      %11408 = vmatpush2.msra.mxu0 0.0
      %11409 = vmatprep.subr.mxu0 0.0
      %11410 = vmatpush2.msra.mxu0 0.0
      %11411 = vmatprep.subr.mxu0 0.0
      %11412 = vmatpush2.msra.mxu0 0.0
      %11413 = vmatprep.subr.mxu0 0.0
      %11414 = vmatpush2.msra.mxu0 0.0
      %11415 = vmatprep.subr.mxu0 0.0
      %11416 = vmatpush2.msra.mxu0 0.0
      %11417 = vmatprep.subr.mxu0 0.0
      %11418 = vmatpush2.msra.mxu0 0.0
      %11419 = vmatprep.subr.mxu0 0.0
      %11420 = vmatpush2.msra.mxu0 0.0
      %11421 = vmatprep.subr.mxu0 0.0
      %11422 = vmatpush2.msra.mxu0 0.0
      %11423 = vmatprep.subr.mxu0 0.0
      %11424 = vmatpush2.msra.mxu0 0.0
      %11425 = vmatprep.subr.mxu0 0.0
      %11426 = vmatpush2.msra.mxu0 0.0
      %11427 = vmatprep.mubr.f32.mxu0 0.0
      %11428 = vmatmul.mubr.f32.gmra.mxu0 %v10705
      %v11429 = vpop.f32.mrf.mxu0
      %v11430 = vadd.f32 %v11285, %v11429
      %v11431 = vpop.f32.mrf.mxu0
      %11432 = vmatprep.mubr.f32.mxu0 0.0
      %11433 = vmatmul.mubr.f32.gmra.mxu0 %v10707
      %v11434 = vpop.f32.mrf.mxu0
      %v11435 = vadd.f32 %v11290, %v11434
      %v11436 = vpop.f32.mrf.mxu0
      %11437 = vmatprep.mubr.f32.mxu0 0.0
      %11438 = vmatmul.mubr.f32.gmra.mxu0 %v10710
      %v11439 = vpop.f32.mrf.mxu0
      %v11440 = vadd.f32 %v11295, %v11439
      %v11441 = vpop.f32.mrf.mxu0
      %11442 = vmatprep.mubr.f32.mxu0 0.0
      %11443 = vmatmul.mubr.f32.gmra.mxu0 %v10712
      %v11444 = vpop.f32.mrf.mxu0
      %v11445 = vadd.f32 %v11300, %v11444
      %v11446 = vpop.f32.mrf.mxu0
      %11447 = vmatprep.mubr.f32.mxu0 0.0
      %11448 = vmatmul.mubr.f32.gmra.mxu0 %v10715
      %v11449 = vpop.f32.mrf.mxu0
      %v11450 = vadd.f32 %v11305, %v11449
      %v11451 = vpop.f32.mrf.mxu0
      %11452 = vmatprep.mubr.f32.mxu0 0.0
      %11453 = vmatmul.mubr.f32.gmra.mxu0 %v10717
      %v11454 = vpop.f32.mrf.mxu0
      %v11455 = vadd.f32 %v11310, %v11454
      %v11456 = vpop.f32.mrf.mxu0
      %11457 = vmatprep.mubr.f32.mxu0 0.0
      %11458 = vmatmul.mubr.f32.gmra.mxu0 %v10720
      %v11459 = vpop.f32.mrf.mxu0
      %v11460 = vadd.f32 %v11315, %v11459
      %v11461 = vpop.f32.mrf.mxu0
      %11462 = vmatprep.mubr.f32.mxu0 0.0
      %11463 = vmatmul.mubr.f32.gmra.mxu0 %v10722
      %v11464 = vpop.f32.mrf.mxu0
      %v11465 = vadd.f32 %v11320, %v11464
      %v11466 = vpop.f32.mrf.mxu0
      %11467 = vmatprep.mubr.f32.mxu0 0.0
      %11468 = vmatmul.mubr.f32.gmra.mxu0 %v10725
      %v11469 = vpop.f32.mrf.mxu0
      %v11470 = vadd.f32 %v11325, %v11469
      %v11471 = vpop.f32.mrf.mxu0
      %11472 = vmatprep.mubr.f32.mxu0 0.0
      %11473 = vmatmul.mubr.f32.gmra.mxu0 %v10727
      %v11474 = vpop.f32.mrf.mxu0
      %v11475 = vadd.f32 %v11330, %v11474
      %v11476 = vpop.f32.mrf.mxu0
      %11477 = vmatprep.mubr.f32.mxu0 0.0
      %11478 = vmatmul.mubr.f32.gmra.mxu0 %v10730
      %v11479 = vpop.f32.mrf.mxu0
      %v11480 = vadd.f32 %v11335, %v11479
      %v11481 = vpop.f32.mrf.mxu0
      %11482 = vmatprep.mubr.f32.mxu0 0.0
      %11483 = vmatmul.mubr.f32.gmra.mxu0 %v10732
      %v11484 = vpop.f32.mrf.mxu0
      %v11485 = vadd.f32 %v11340, %v11484
      %v11486 = vpop.f32.mrf.mxu0
      %11487 = vmatprep.mubr.f32.mxu0 0.0
      %11488 = vmatmul.mubr.f32.gmra.mxu0 %v10761
      %v11489 = vpop.f32.mrf.mxu0
      %v11490 = vadd.f32 %v11345, %v11489
      %v11491 = vpop.f32.mrf.mxu0
      %11492 = vmatprep.mubr.f32.mxu0 0.0
      %11493 = vmatmul.mubr.f32.gmra.mxu0 %v10763
      %v11494 = vpop.f32.mrf.mxu0
      %v11495 = vadd.f32 %v11350, %v11494
      %v11496 = vpop.f32.mrf.mxu0
      %11497 = vmatprep.mubr.f32.mxu0 0.0
      %11498 = vmatmul.mubr.f32.gmra.mxu0 %v10778
      %v11499 = vpop.f32.mrf.mxu0
      %v11500 = vadd.f32 %v11355, %v11499
      %v11501 = vpop.f32.mrf.mxu0
      %11502 = vmatprep.mubr.f32.mxu0 0.0
      %11503 = vmatmul.mubr.f32.gmra.mxu0 %v10780
      %v11504 = vpop.f32.mrf.mxu0
      %v11505 = vadd.f32 %v11360, %v11504
      %v11506 = vpop.f32.mrf.mxu0
      %11507 = vdwg.mxu0
      %v11508 = vld [vmem:[%s5] sm:$0x1]
      %v11510 = vlaneseq
      %v11511 = vshrl.u32 %v11510, 7
      %v11512 = vsub.s32 0, %v11511
      %v11513 = vrot.slane %v11508, %v11512
      %v11515 = vmul.f32 %v11430, %v11513
      %v11516 = vmul.f32 %v11435, %v11513
      %v11517 = vmul.f32 %v11440, %v11513
      %v11518 = vmul.f32 %v11445, %v11513
      %v11519 = vmul.f32 %v11450, %v11513
      %v11520 = vmul.f32 %v11455, %v11513
      %v11521 = vmul.f32 %v11460, %v11513
      %v11522 = vmul.f32 %v11465, %v11513
      %v11523 = vmul.f32 %v11470, %v11513
      %v11524 = vmul.f32 %v11475, %v11513
      %v11525 = vmul.f32 %v11480, %v11513
      %v11526 = vmul.f32 %v11485, %v11513
      %v11527 = vmul.f32 %v11490, %v11513
      %v11528 = vmul.f32 %v11495, %v11513
      %v11529 = vmul.f32 %v11500, %v11513
      %v11530 = vmul.f32 %v11505, %v11513
      %v11531 = vld [vmem:[%s6] sm:$0x1]
      %v11533 = vlaneseq
      %v11534 = vshrl.u32 %v11533, 7
      %v11535 = vsub.s32 0, %v11534
      %v11536 = vrot.slane %v11531, %v11535
      %v11538 = vadd.f32 %v11515, %v11536
      %v11539 = vadd.f32 %v11516, %v11536
      %v11540 = vadd.f32 %v11517, %v11536
      %v11541 = vadd.f32 %v11518, %v11536
      %v11542 = vadd.f32 %v11519, %v11536
      %v11543 = vadd.f32 %v11520, %v11536
      %v11544 = vadd.f32 %v11521, %v11536
      %v11545 = vadd.f32 %v11522, %v11536
      %v11546 = vadd.f32 %v11523, %v11536
      %v11547 = vadd.f32 %v11524, %v11536
      %v11548 = vadd.f32 %v11525, %v11536
      %v11549 = vadd.f32 %v11526, %v11536
      %v11550 = vadd.f32 %v11527, %v11536
      %v11551 = vadd.f32 %v11528, %v11536
      %v11552 = vadd.f32 %v11529, %v11536
      %v11553 = vadd.f32 %v11530, %v11536
      %v11554 = vmax.f32 %v11538, 0.0
      %v11555 = vmax.f32 %v11539, 0.0
      %v11556 = vmax.f32 %v11540, 0.0
      %v11557 = vmax.f32 %v11541, 0.0
      %v11558 = vmax.f32 %v11542, 0.0
      %v11559 = vmax.f32 %v11543, 0.0
      %v11560 = vmax.f32 %v11544, 0.0
      %v11561 = vmax.f32 %v11545, 0.0
      %v11562 = vmax.f32 %v11546, 0.0
      %v11563 = vmax.f32 %v11547, 0.0
      %v11564 = vmax.f32 %v11548, 0.0
      %v11565 = vmax.f32 %v11549, 0.0
      %v11566 = vmax.f32 %v11550, 0.0
      %v11567 = vmax.f32 %v11551, 0.0
      %v11568 = vmax.f32 %v11552, 0.0
      %v11569 = vmax.f32 %v11553, 0.0
      %11570 = vst [vmem:[%s256] sm:$0xff] %v11554
      %11571 = vst [vmem:[%s256 + $0x8] sm:$0xff] %v11555
      %11572 = vst [vmem:[%s256 + $0x10] sm:$0xff] %v11556
      %11573 = vst [vmem:[%s256 + $0x18] sm:$0xff] %v11557
      %11574 = vst [vmem:[%s256 + $0x20] sm:$0xff] %v11558
      %11575 = vst [vmem:[%s256 + $0x28] sm:$0xff] %v11559
      %11576 = vst [vmem:[%s256 + $0x30] sm:$0xff] %v11560
      %11577 = vst [vmem:[%s256 + $0x38] sm:$0xff] %v11561
      %11578 = vst [vmem:[%s256 + $0x40] sm:$0xff] %v11562
      %11579 = vst [vmem:[%s256 + $0x48] sm:$0xff] %v11563
      %11580 = vst [vmem:[%s256 + $0x50] sm:$0xff] %v11564
      %11581 = vst [vmem:[%s256 + $0x58] sm:$0xff] %v11565
      %11582 = vst [vmem:[%s256 + $0x60] sm:$0xff] %v11566
      %11583 = vst [vmem:[%s256 + $0x68] sm:$0xff] %v11567
      %11584 = vst [vmem:[%s256 + $0x70] sm:$0xff] %v11568
      %11585 = vst [vmem:[%s256 + $0x78] sm:$0xff] %v11569
      %s11586 = smul.u32 8, %s23
      %p11587 = scmp.lt.s32.totalorder %s22, 1
      %s11588 = scalar_select %p11587, %s22, 1
      %p11589 = scmp.lt.s32.totalorder %s11586, 15
      %s11590 = scalar_select %p11589, %s11586, 15
      %s11591 = smul.addr %s11590, 2
      %s11592 = smul.addr %s11588, 32
      %s11593 = sadd.s32 %s11591, %s11592
      %s11594 = smul.addr %s11593, 8
      %s11595 = scalar_lea.vmem %s7, %s11594
      // Predicated region
      $region82: #{double_conv_forward.1} parent=43 // pred_check
        %p11596 = pneg %p176
      $region83: #{double_conv_forward.1} parent=43 // pred_check_branch
        %11598 = sbr.rel (%p11596) target = $region85
      $region84: #{double_conv_forward.1} parent=43 // pred_region
        %s11599 = smul.u32 8, %s23
      $region85: #{double_conv_forward.1} parent=43 // pred_fallthru
        _
    $region44: #{double_conv_forward.1} parent=5 // pred_fallthru
      _
    %p11600 = scmp.le.s32.totalorder 2, %s13
    // Predicated region
    $region86: #{double_conv_forward.1} parent=5 // pred_check
      %p11601 = pneg %p11600
    $region87: #{double_conv_forward.1} parent=5 // pred_check_branch
      %11603 = sbr.rel (%p11601) target = $region89
    $region88: #{double_conv_forward.1} parent=5 // pred_region
      %s11604 = ssub.s32 %s13, 2
      // Predicated region
      $region90: #{double_conv_forward.1} parent=88 // pred_check
        %p11605 = pneg %p182
      $region91: #{double_conv_forward.1} parent=88 // pred_check_branch
        %11607 = sbr.rel (%p11605) target = $region93
      $region92: #{double_conv_forward.1} parent=88 // pred_region
        %s11608 = smul.u32 8, %s25
        %p11609 = scmp.lt.s32.totalorder %s24, 1
        %s11610 = scalar_select %p11609, %s24, 1
        %p11611 = scmp.lt.s32.totalorder %s11608, 15
        %s11612 = scalar_select %p11611, %s11608, 15
        %s11613 = smul.addr %s11612, 2
        %s11614 = smul.addr %s11610, 32
        %s11615 = sadd.s32 %s11613, %s11614
        %s11616 = smul.addr %s11615, 8
        %s11617 = scalar_lea.vmem %s7, %s11616
      $region93: #{double_conv_forward.1} parent=88 // pred_fallthru
        _
    $region89: #{double_conv_forward.1} parent=5 // pred_fallthru
      _
  $region6: #{double_conv_forward.1} parent=0 // loop_footer
    %s17 = sadd.s32 1, %s13
  $region7: #{double_conv_forward.1} parent=0 // loop_footer_branch
    %12 = sbr.rel target = $region3
  $region8: #{double_conv_forward.1} parent=0 // loop_exit
    _
  %11618 = vsyncmov [#allocation3]
  %s11619 = vpop.sfrf %11618
  %p11620 = scmp.eq.s32.totalorder %s11619, 0
  %p11621 = pneg %p11620
  %11623 = shalt.err (%p11621)

</llo_original>
